<compile_context>
chip_gen: v7x
topology: tpu7x:2x2x1
jax: 0.10.0
libtpu: 0.0.40
codegen_flags: <defaults>
</compile_context>

<pallas_src>
import jax
import jax.numpy as jnp
from jax import lax
from jax.experimental import pallas as pl
from jax.experimental.pallas import tpu as pltpu

INPUT_SIZE = 7
IN_PAD = 8            # input features padded to sublane granularity
HIDDEN = 100
HP = 128              # hidden padded to lane width
NUM_LAYERS = 3
OUTPUT = 1

# PyTorch packs LSTM gates as [i, f, g, o]; repack to [i, f, o, g] (sigmoid gates contiguous).
GATE_ORDER = (0, 1, 3, 2)


def _lstm3_kernel(x_ref,
                  wih0_ref, whh0_ref, b0_ref,
                  wih1_ref, whh1_ref, b1_ref,
                  wih2_ref, whh2_ref, b2_ref,
                  wfc_ref, bfc_ref,
                  out_ref,
                  xw_scr, hseq_scr):
    # x_ref:    (T, IN_PAD)   f32
    # wih*_ref: (K, 4*HP)     f32   (padded W_ih^T, gates [i,f,o,g])
    # whh*_ref: (HP, 4*HP)    bf16  (padded W_hh^T, gates [i,f,o,g])
    # b*_ref:   (1, 4*HP)     f32   (b_ih + b_hh, padded)
    # wfc_ref:  (1, HP), bfc_ref: (1, 1)  f32
    # out_ref:  (T, 1)        f32   (fc applied at every timestep, as in the module)
    # xw_scr:   (T, 4*HP) f32 — gate preactivations of the current layer
    # hseq_scr: (T, HP)   f32 — hidden-state sequence of the current layer
    T = x_ref.shape[0]
    Hp = hseq_scr.shape[1]

    def run_layer(whh_ref):
        # Recurrence over precomputed preactivations in xw_scr; writes hseq_scr.
        def step(t, carry):
            h, c = carry                                           # vreg-carried state
            gates = xw_scr[pl.ds(t, 1), :] + jnp.dot(
                h.astype(jnp.bfloat16), whh_ref[...],
                preferred_element_type=jnp.float32)
            sig = jax.nn.sigmoid(gates[:, :3 * Hp])                # [i | f | o] in one pass
            g = jnp.tanh(gates[:, 3 * Hp:])
            i_g = sig[:, 0 * Hp:1 * Hp]
            f_g = sig[:, 1 * Hp:2 * Hp]
            o_g = sig[:, 2 * Hp:3 * Hp]
            c_new = f_g * c + i_g * g
            h_new = o_g * jnp.tanh(c_new)
            hseq_scr[pl.ds(t, 1), :] = h_new
            return (h_new, c_new)

        zero = jnp.zeros((1, Hp), jnp.float32)
        lax.fori_loop(0, T, step, (zero, zero), unroll=True)

    # Layer 0: one-shot input projection for all timesteps on the MXU.
    xw_scr[...] = jnp.dot(x_ref[...], wih0_ref[...],
                          preferred_element_type=jnp.float32) + b0_ref[...]
    run_layer(whh0_ref)
    # Layer 1.
    xw_scr[...] = jnp.dot(hseq_scr[...], wih1_ref[...],
                          preferred_element_type=jnp.float32) + b1_ref[...]
    run_layer(whh1_ref)
    # Layer 2.
    xw_scr[...] = jnp.dot(hseq_scr[...], wih2_ref[...],
                          preferred_element_type=jnp.float32) + b2_ref[...]
    run_layer(whh2_ref)

    # fc over all timesteps: (T,HP)@(HP,1) done as VPU multiply + lane reduce.
    out_ref[...] = (jnp.sum(hseq_scr[...] * wfc_ref[...], axis=1, keepdims=True)
                    + bfc_ref[...])


def _pack_gate_matrix(w, k_pad):
    """(4*HIDDEN, K) PyTorch gate-stacked weight -> (k_pad, 4*HP) transposed/padded,
    gates reordered to [i, f, o, g] (padded rows/cols are zero)."""
    blocks = jnp.split(w, 4, axis=0)
    blocks = [blocks[i] for i in GATE_ORDER]
    blocks = [jnp.pad(b, ((0, HP - HIDDEN), (0, 0))) for b in blocks]
    w4 = jnp.concatenate(blocks, axis=0)                       # (4*HP, K)
    w4 = jnp.pad(w4, ((0, 0), (0, k_pad - w.shape[1])))        # pad contraction dim
    return w4.T                                                # (k_pad, 4*HP)


def _pack_gate_bias(b_ih, b_hh):
    b = b_ih + b_hh
    blocks = jnp.split(b, 4)
    blocks = [blocks[i] for i in GATE_ORDER]
    blocks = [jnp.pad(bb, (0, HP - HIDDEN)) for bb in blocks]
    return jnp.concatenate(blocks).reshape(1, 4 * HP)


@jax.jit
def lstm_fc_pallas(x, params):
    """x: (T, INPUT_SIZE) f32 (batch of 1 squeezed). Returns (T, 1) = fc(lstm(x))."""
    T = x.shape[0]
    x_p = jnp.pad(x.astype(jnp.float32), ((0, 0), (0, IN_PAD - INPUT_SIZE)))

    args = [x_p]
    k_pads = (IN_PAD, HP, HP)
    for l in range(NUM_LAYERS):
        p = params[f"l{l}"]
        args.append(_pack_gate_matrix(p["w_ih"], k_pads[l]).astype(jnp.float32))
        args.append(_pack_gate_matrix(p["w_hh"], HP).astype(jnp.bfloat16))
        args.append(_pack_gate_bias(p["b_ih"], p["b_hh"]).astype(jnp.float32))
    args.append(jnp.pad(params["fc"]["w"],
                        ((0, 0), (0, HP - HIDDEN))).astype(jnp.float32))   # (1, HP)
    args.append(params["fc"]["b"].reshape(1, OUTPUT).astype(jnp.float32))  # (1, 1)

    return pl.pallas_call(
        _lstm3_kernel,
        out_shape=jax.ShapeDtypeStruct((T, OUTPUT), jnp.float32),
        in_specs=[pl.BlockSpec(memory_space=pltpu.MemorySpace.VMEM)] * len(args),
        out_specs=pl.BlockSpec(memory_space=pltpu.MemorySpace.VMEM),
        scratch_shapes=[
            pltpu.VMEM((T, 4 * HP), jnp.float32),   # gate preactivations (reused per layer)
            pltpu.VMEM((T, HP), jnp.float32),       # layer output sequence (reused per layer)
        ],
    )(*args)


def net_forward(x, params):
    """Mirrors Net.forward: x is (batch, seq, input_size) with batch_first=True.
    The trailing `.view(1)` requires batch*seq == 1, exactly as in the PyTorch module."""
    assert x.ndim == 3 and x.shape[0] == 1
    preds = lstm_fc_pallas(x[0], params)     # (seq, 1)
    return preds.reshape(OUTPUT)             # == x.view(1)


def ref_forward(x, params, recurrent_dtype=jnp.float32):
    """Pure-JAX reference matching nn.LSTM(num_layers=3) + Linear (fc at every step).
    recurrent_dtype=jnp.bfloat16 mimics the kernel's bf16 recurrent weights."""
    def quant(a):
        return a.astype(recurrent_dtype).astype(jnp.float32)

    def run_layer(xs, p):
        w_hh_q = quant(p["w_hh"])

        def step(carry, xt):
            h, c = carry
            gates = p["w_ih"] @ xt + p["b_ih"] + w_hh_q @ quant(h) + p["b_hh"]
            i, f, g, o = jnp.split(gates, 4)
            i = jax.nn.sigmoid(i)
            f = jax.nn.sigmoid(f)
            g = jnp.tanh(g)
            o = jax.nn.sigmoid(o)
            c = f * c + i * g
            h = o * jnp.tanh(c)
            return (h, c), h

        (_, _), hs = lax.scan(step, (jnp.zeros(HIDDEN), jnp.zeros(HIDDEN)), xs)
        return hs

    hs = x
    for l in range(NUM_LAYERS):
        hs = run_layer(hs, params[f"l{l}"])
    return hs @ params["fc"]["w"].T + params["fc"]["b"]        # (T, 1)


def init_params(key):
    k = 1.0 / (HIDDEN ** 0.5)
    keys = jax.random.split(key, 4 * NUM_LAYERS + 2)
    in_sizes = (INPUT_SIZE, HIDDEN, HIDDEN)
    params = {}
    for l in range(NUM_LAYERS):
        kk = keys[4 * l:4 * l + 4]
        params[f"l{l}"] = {
            "w_ih": jax.random.uniform(kk[0], (4 * HIDDEN, in_sizes[l]), jnp.float32, -k, k),
            "w_hh": jax.random.uniform(kk[1], (4 * HIDDEN, HIDDEN), jnp.float32, -k, k),
            "b_ih": jax.random.uniform(kk[2], (4 * HIDDEN,), jnp.float32, -k, k),
            "b_hh": jax.random.uniform(kk[3], (4 * HIDDEN,), jnp.float32, -k, k),
        }
    params["fc"] = {
        "w": jax.random.uniform(keys[-2], (OUTPUT, HIDDEN), jnp.float32, -k, k),
        "b": jax.random.uniform(keys[-1], (OUTPUT,), jnp.float32, -k, k),
    }
    return params


if __name__ == "__main__":
    key = jax.random.PRNGKey(0)
    pkey, xkey = jax.random.split(key)
    params = init_params(pkey)

    # Sequence-level check (exercises the full 3-layer recurrence and the per-step fc).
    T = 8
    x_seq = jax.random.normal(xkey, (T, INPUT_SIZE), jnp.float32)
    preds = jax.block_until_ready(lstm_fc_pallas(x_seq, params))
    assert preds.shape == (T, OUTPUT)

    ref_bf16 = ref_forward(x_seq, params, recurrent_dtype=jnp.bfloat16)  # matches kernel W_hh dtype
    ref_f32 = ref_forward(x_seq, params)                                 # exact f32 module semantics
    assert jnp.allclose(preds, ref_bf16, atol=2e-3, rtol=2e-3), (preds, ref_bf16)
    assert jnp.allclose(preds, ref_f32, atol=2e-2, rtol=2e-2), (preds, ref_f32)

    # Module-level check: Net.forward's `.view(1)` requires batch*seq == 1.
    x_mod = x_seq[:1][None]                                    # (1, 1, INPUT_SIZE), batch_first
    y = jax.block_until_ready(net_forward(x_mod, params))
    assert y.shape == (OUTPUT,)
    assert jnp.allclose(y, ref_forward(x_mod[0], params).reshape(OUTPUT), atol=2e-2, rtol=2e-2)

    print("KERNEL_OK")
</pallas_src>

<mosaic_0001>
module attributes {stable_mosaic.version = 11 : i64} {
  func.func @_lstm3_kernel(%arg0: memref<8x8xf32, #tpu.memory_space<vmem>>, %arg1: memref<8x512xf32, #tpu.memory_space<vmem>>, %arg2: memref<128x512xbf16, #tpu.memory_space<vmem>>, %arg3: memref<1x512xf32, #tpu.memory_space<vmem>>, %arg4: memref<128x512xf32, #tpu.memory_space<vmem>>, %arg5: memref<128x512xbf16, #tpu.memory_space<vmem>>, %arg6: memref<1x512xf32, #tpu.memory_space<vmem>>, %arg7: memref<128x512xf32, #tpu.memory_space<vmem>>, %arg8: memref<128x512xbf16, #tpu.memory_space<vmem>>, %arg9: memref<1x512xf32, #tpu.memory_space<vmem>>, %arg10: memref<1x128xf32, #tpu.memory_space<vmem>>, %arg11: memref<1x1xf32, #tpu.memory_space<vmem>>, %arg12: memref<8x1xf32, #tpu.memory_space<vmem>>, %arg13: memref<8x512xf32, #tpu.memory_space<vmem>>, %arg14: memref<8x128xf32, #tpu.memory_space<vmem>>) attributes {dimension_semantics = [], scalar_prefetch = 0 : i64, scratch_operands = 2 : i64, tpu.core_type = #tpu.core_type<tc>} {
    %c0 = arith.constant 0 : index
    %c0_0 = arith.constant 0 : index
    %0 = vector.load %arg0[%c0, %c0_0] : memref<8x8xf32, #tpu.memory_space<vmem>>, vector<8x8xf32>
    %c0_1 = arith.constant 0 : index
    %c0_2 = arith.constant 0 : index
    %1 = vector.load %arg1[%c0_1, %c0_2] : memref<8x512xf32, #tpu.memory_space<vmem>>, vector<8x512xf32>
    %cst = arith.constant dense<0.000000e+00> : vector<8x512xf32>
    %2 = tpu.matmul %0, %1, %cst {dimension_numbers = #tpu.dot_dimension_numbers<[1], [0], [0], [1], [0, 0, 1, 1], [], []>} : vector<8x8xf32>, vector<8x512xf32>, vector<8x512xf32> -> vector<8x512xf32>
    %c0_3 = arith.constant 0 : index
    %c0_4 = arith.constant 0 : index
    %3 = vector.load %arg3[%c0_3, %c0_4] : memref<1x512xf32, #tpu.memory_space<vmem>>, vector<1x512xf32>
    %4 = vector.broadcast %3 : vector<1x512xf32> to vector<8x512xf32>
    %5 = arith.addf %2, %4 : vector<8x512xf32>
    %c0_5 = arith.constant 0 : index
    %c0_6 = arith.constant 0 : index
    %6 = vector.load %arg13[%c0_5, %c0_6] : memref<8x512xf32, #tpu.memory_space<vmem>>, vector<8x512xf32>
    tpu.vector_store %arg13[%c0_5, %c0_6], %5 {strides = array<i32>} : memref<8x512xf32, #tpu.memory_space<vmem>>, vector<8x512xf32>,
    %cst_7 = arith.constant 0.000000e+00 : f32
    %7 = vector.broadcast %cst_7 : f32 to vector<1x128xf32>
    %c0_i32 = arith.constant 0 : i32
    %8 = arith.index_cast %c0_i32 : i32 to index
    %c0_8 = arith.constant 0 : index
    %9 = vector.load %arg13[%8, %c0_8] : memref<8x512xf32, #tpu.memory_space<vmem>>, vector<1x512xf32>
    %10 = arith.truncf %7 : vector<1x128xf32> to vector<1x128xbf16>
    %c0_9 = arith.constant 0 : index
    %c0_10 = arith.constant 0 : index
    %11 = vector.load %arg2[%c0_9, %c0_10] : memref<128x512xbf16, #tpu.memory_space<vmem>>, vector<128x512xbf16>
    %cst_11 = arith.constant dense<0.000000e+00> : vector<1x512xf32>
    %12 = tpu.matmul %10, %11, %cst_11 {dimension_numbers = #tpu.dot_dimension_numbers<[1], [0], [0], [1], [0, 0, 1, 1], [], []>} : vector<1x128xbf16>, vector<128x512xbf16>, vector<1x512xf32> -> vector<1x512xf32>
    %13 = arith.addf %9, %12 : vector<1x512xf32>
    %14 = vector.extract_strided_slice %13 {offsets = [0, 0], sizes = [1, 384], strides = [1, 1]} : vector<1x512xf32> to vector<1x384xf32>
    %15 = arith.negf %14 : vector<1x384xf32>
    %16 = math.exp %15 : vector<1x384xf32>
    %cst_12 = arith.constant 1.000000e+00 : f32
    %17 = vector.broadcast %cst_12 : f32 to vector<1x384xf32>
    %18 = arith.addf %17, %16 : vector<1x384xf32>
    %19 = arith.divf %17, %18 : vector<1x384xf32>
    %20 = vector.extract_strided_slice %13 {offsets = [0, 384], sizes = [1, 128], strides = [1, 1]} : vector<1x512xf32> to vector<1x128xf32>
    %21 = math.tanh %20 : vector<1x128xf32>
    %22 = vector.extract_strided_slice %19 {offsets = [0, 0], sizes = [1, 128], strides = [1, 1]} : vector<1x384xf32> to vector<1x128xf32>
    %23 = vector.extract_strided_slice %19 {offsets = [0, 128], sizes = [1, 128], strides = [1, 1]} : vector<1x384xf32> to vector<1x128xf32>
    %24 = vector.extract_strided_slice %19 {offsets = [0, 256], sizes = [1, 128], strides = [1, 1]} : vector<1x384xf32> to vector<1x128xf32>
    %25 = arith.mulf %23, %7 : vector<1x128xf32>
    %26 = arith.mulf %22, %21 : vector<1x128xf32>
    %27 = arith.addf %25, %26 : vector<1x128xf32>
    %28 = math.tanh %27 : vector<1x128xf32>
    %29 = arith.mulf %24, %28 : vector<1x128xf32>
    %30 = arith.index_cast %c0_i32 : i32 to index
    %c0_13 = arith.constant 0 : index
    %31 = vector.load %arg14[%30, %c0_13] : memref<8x128xf32, #tpu.memory_space<vmem>>, vector<1x128xf32>
    tpu.vector_store %arg14[%30, %c0_13], %29 {strides = array<i32>} : memref<8x128xf32, #tpu.memory_space<vmem>>, vector<1x128xf32>,
    %c1_i32 = arith.constant 1 : i32
    %32 = arith.index_cast %c1_i32 : i32 to index
    %c0_14 = arith.constant 0 : index
    %33 = vector.load %arg13[%32, %c0_14] : memref<8x512xf32, #tpu.memory_space<vmem>>, vector<1x512xf32>
    %34 = arith.truncf %29 : vector<1x128xf32> to vector<1x128xbf16>
    %c0_15 = arith.constant 0 : index
    %c0_16 = arith.constant 0 : index
    %35 = vector.load %arg2[%c0_15, %c0_16] : memref<128x512xbf16, #tpu.memory_space<vmem>>, vector<128x512xbf16>
    %cst_17 = arith.constant dense<0.000000e+00> : vector<1x512xf32>
    %36 = tpu.matmul %34, %35, %cst_17 {dimension_numbers = #tpu.dot_dimension_numbers<[1], [0], [0], [1], [0, 0, 1, 1], [], []>} : vector<1x128xbf16>, vector<128x512xbf16>, vector<1x512xf32> -> vector<1x512xf32>
    %37 = arith.addf %33, %36 : vector<1x512xf32>
    %38 = vector.extract_strided_slice %37 {offsets = [0, 0], sizes = [1, 384], strides = [1, 1]} : vector<1x512xf32> to vector<1x384xf32>
    %39 = arith.negf %38 : vector<1x384xf32>
    %40 = math.exp %39 : vector<1x384xf32>
    %cst_18 = arith.constant 1.000000e+00 : f32
    %41 = vector.broadcast %cst_18 : f32 to vector<1x384xf32>
    %42 = arith.addf %41, %40 : vector<1x384xf32>
    %43 = arith.divf %41, %42 : vector<1x384xf32>
    %44 = vector.extract_strided_slice %37 {offsets = [0, 384], sizes = [1, 128], strides = [1, 1]} : vector<1x512xf32> to vector<1x128xf32>
    %45 = math.tanh %44 : vector<1x128xf32>
    %46 = vector.extract_strided_slice %43 {offsets = [0, 0], sizes = [1, 128], strides = [1, 1]} : vector<1x384xf32> to vector<1x128xf32>
    %47 = vector.extract_strided_slice %43 {offsets = [0, 128], sizes = [1, 128], strides = [1, 1]} : vector<1x384xf32> to vector<1x128xf32>
    %48 = vector.extract_strided_slice %43 {offsets = [0, 256], sizes = [1, 128], strides = [1, 1]} : vector<1x384xf32> to vector<1x128xf32>
    %49 = arith.mulf %47, %27 : vector<1x128xf32>
    %50 = arith.mulf %46, %45 : vector<1x128xf32>
    %51 = arith.addf %49, %50 : vector<1x128xf32>
    %52 = math.tanh %51 : vector<1x128xf32>
    %53 = arith.mulf %48, %52 : vector<1x128xf32>
    %54 = arith.index_cast %c1_i32 : i32 to index
    %c0_19 = arith.constant 0 : index
    %55 = vector.load %arg14[%54, %c0_19] : memref<8x128xf32, #tpu.memory_space<vmem>>, vector<1x128xf32>
    tpu.vector_store %arg14[%54, %c0_19], %53 {strides = array<i32>} : memref<8x128xf32, #tpu.memory_space<vmem>>, vector<1x128xf32>,
    %c2_i32 = arith.constant 2 : i32
    %56 = arith.index_cast %c2_i32 : i32 to index
    %c0_20 = arith.constant 0 : index
    %57 = vector.load %arg13[%56, %c0_20] : memref<8x512xf32, #tpu.memory_space<vmem>>, vector<1x512xf32>
    %58 = arith.truncf %53 : vector<1x128xf32> to vector<1x128xbf16>
    %c0_21 = arith.constant 0 : index
    %c0_22 = arith.constant 0 : index
    %59 = vector.load %arg2[%c0_21, %c0_22] : memref<128x512xbf16, #tpu.memory_space<vmem>>, vector<128x512xbf16>
    %cst_23 = arith.constant dense<0.000000e+00> : vector<1x512xf32>
    %60 = tpu.matmul %58, %59, %cst_23 {dimension_numbers = #tpu.dot_dimension_numbers<[1], [0], [0], [1], [0, 0, 1, 1], [], []>} : vector<1x128xbf16>, vector<128x512xbf16>, vector<1x512xf32> -> vector<1x512xf32>
    %61 = arith.addf %57, %60 : vector<1x512xf32>
    %62 = vector.extract_strided_slice %61 {offsets = [0, 0], sizes = [1, 384], strides = [1, 1]} : vector<1x512xf32> to vector<1x384xf32>
    %63 = arith.negf %62 : vector<1x384xf32>
    %64 = math.exp %63 : vector<1x384xf32>
    %cst_24 = arith.constant 1.000000e+00 : f32
    %65 = vector.broadcast %cst_24 : f32 to vector<1x384xf32>
    %66 = arith.addf %65, %64 : vector<1x384xf32>
    %67 = arith.divf %65, %66 : vector<1x384xf32>
    %68 = vector.extract_strided_slice %61 {offsets = [0, 384], sizes = [1, 128], strides = [1, 1]} : vector<1x512xf32> to vector<1x128xf32>
    %69 = math.tanh %68 : vector<1x128xf32>
    %70 = vector.extract_strided_slice %67 {offsets = [0, 0], sizes = [1, 128], strides = [1, 1]} : vector<1x384xf32> to vector<1x128xf32>
    %71 = vector.extract_strided_slice %67 {offsets = [0, 128], sizes = [1, 128], strides = [1, 1]} : vector<1x384xf32> to vector<1x128xf32>
    %72 = vector.extract_strided_slice %67 {offsets = [0, 256], sizes = [1, 128], strides = [1, 1]} : vector<1x384xf32> to vector<1x128xf32>
    %73 = arith.mulf %71, %51 : vector<1x128xf32>
    %74 = arith.mulf %70, %69 : vector<1x128xf32>
    %75 = arith.addf %73, %74 : vector<1x128xf32>
    %76 = math.tanh %75 : vector<1x128xf32>
    %77 = arith.mulf %72, %76 : vector<1x128xf32>
    %78 = arith.index_cast %c2_i32 : i32 to index
    %c0_25 = arith.constant 0 : index
    %79 = vector.load %arg14[%78, %c0_25] : memref<8x128xf32, #tpu.memory_space<vmem>>, vector<1x128xf32>
    tpu.vector_store %arg14[%78, %c0_25], %77 {strides = array<i32>} : memref<8x128xf32, #tpu.memory_space<vmem>>, vector<1x128xf32>,
    %c3_i32 = arith.constant 3 : i32
    %80 = arith.index_cast %c3_i32 : i32 to index
    %c0_26 = arith.constant 0 : index
    %81 = vector.load %arg13[%80, %c0_26] : memref<8x512xf32, #tpu.memory_space<vmem>>, vector<1x512xf32>
    %82 = arith.truncf %77 : vector<1x128xf32> to vector<1x128xbf16>
    %c0_27 = arith.constant 0 : index
    %c0_28 = arith.constant 0 : index
    %83 = vector.load %arg2[%c0_27, %c0_28] : memref<128x512xbf16, #tpu.memory_space<vmem>>, vector<128x512xbf16>
    %cst_29 = arith.constant dense<0.000000e+00> : vector<1x512xf32>
    %84 = tpu.matmul %82, %83, %cst_29 {dimension_numbers = #tpu.dot_dimension_numbers<[1], [0], [0], [1], [0, 0, 1, 1], [], []>} : vector<1x128xbf16>, vector<128x512xbf16>, vector<1x512xf32> -> vector<1x512xf32>
    %85 = arith.addf %81, %84 : vector<1x512xf32>
    %86 = vector.extract_strided_slice %85 {offsets = [0, 0], sizes = [1, 384], strides = [1, 1]} : vector<1x512xf32> to vector<1x384xf32>
    %87 = arith.negf %86 : vector<1x384xf32>
    %88 = math.exp %87 : vector<1x384xf32>
    %cst_30 = arith.constant 1.000000e+00 : f32
    %89 = vector.broadcast %cst_30 : f32 to vector<1x384xf32>
    %90 = arith.addf %89, %88 : vector<1x384xf32>
    %91 = arith.divf %89, %90 : vector<1x384xf32>
    %92 = vector.extract_strided_slice %85 {offsets = [0, 384], sizes = [1, 128], strides = [1, 1]} : vector<1x512xf32> to vector<1x128xf32>
    %93 = math.tanh %92 : vector<1x128xf32>
    %94 = vector.extract_strided_slice %91 {offsets = [0, 0], sizes = [1, 128], strides = [1, 1]} : vector<1x384xf32> to vector<1x128xf32>
    %95 = vector.extract_strided_slice %91 {offsets = [0, 128], sizes = [1, 128], strides = [1, 1]} : vector<1x384xf32> to vector<1x128xf32>
    %96 = vector.extract_strided_slice %91 {offsets = [0, 256], sizes = [1, 128], strides = [1, 1]} : vector<1x384xf32> to vector<1x128xf32>
    %97 = arith.mulf %95, %75 : vector<1x128xf32>
    %98 = arith.mulf %94, %93 : vector<1x128xf32>
    %99 = arith.addf %97, %98 : vector<1x128xf32>
    %100 = math.tanh %99 : vector<1x128xf32>
    %101 = arith.mulf %96, %100 : vector<1x128xf32>
    %102 = arith.index_cast %c3_i32 : i32 to index
    %c0_31 = arith.constant 0 : index
    %103 = vector.load %arg14[%102, %c0_31] : memref<8x128xf32, #tpu.memory_space<vmem>>, vector<1x128xf32>
    tpu.vector_store %arg14[%102, %c0_31], %101 {strides = array<i32>} : memref<8x128xf32, #tpu.memory_space<vmem>>, vector<1x128xf32>,
    %c4_i32 = arith.constant 4 : i32
    %104 = arith.index_cast %c4_i32 : i32 to index
    %c0_32 = arith.constant 0 : index
    %105 = vector.load %arg13[%104, %c0_32] : memref<8x512xf32, #tpu.memory_space<vmem>>, vector<1x512xf32>
    %106 = arith.truncf %101 : vector<1x128xf32> to vector<1x128xbf16>
    %c0_33 = arith.constant 0 : index
    %c0_34 = arith.constant 0 : index
    %107 = vector.load %arg2[%c0_33, %c0_34] : memref<128x512xbf16, #tpu.memory_space<vmem>>, vector<128x512xbf16>
    %cst_35 = arith.constant dense<0.000000e+00> : vector<1x512xf32>
    %108 = tpu.matmul %106, %107, %cst_35 {dimension_numbers = #tpu.dot_dimension_numbers<[1], [0], [0], [1], [0, 0, 1, 1], [], []>} : vector<1x128xbf16>, vector<128x512xbf16>, vector<1x512xf32> -> vector<1x512xf32>
    %109 = arith.addf %105, %108 : vector<1x512xf32>
    %110 = vector.extract_strided_slice %109 {offsets = [0, 0], sizes = [1, 384], strides = [1, 1]} : vector<1x512xf32> to vector<1x384xf32>
    %111 = arith.negf %110 : vector<1x384xf32>
    %112 = math.exp %111 : vector<1x384xf32>
    %cst_36 = arith.constant 1.000000e+00 : f32
    %113 = vector.broadcast %cst_36 : f32 to vector<1x384xf32>
    %114 = arith.addf %113, %112 : vector<1x384xf32>
    %115 = arith.divf %113, %114 : vector<1x384xf32>
    %116 = vector.extract_strided_slice %109 {offsets = [0, 384], sizes = [1, 128], strides = [1, 1]} : vector<1x512xf32> to vector<1x128xf32>
    %117 = math.tanh %116 : vector<1x128xf32>
    %118 = vector.extract_strided_slice %115 {offsets = [0, 0], sizes = [1, 128], strides = [1, 1]} : vector<1x384xf32> to vector<1x128xf32>
    %119 = vector.extract_strided_slice %115 {offsets = [0, 128], sizes = [1, 128], strides = [1, 1]} : vector<1x384xf32> to vector<1x128xf32>
    %120 = vector.extract_strided_slice %115 {offsets = [0, 256], sizes = [1, 128], strides = [1, 1]} : vector<1x384xf32> to vector<1x128xf32>
    %121 = arith.mulf %119, %99 : vector<1x128xf32>
    %122 = arith.mulf %118, %117 : vector<1x128xf32>
    %123 = arith.addf %121, %122 : vector<1x128xf32>
    %124 = math.tanh %123 : vector<1x128xf32>
    %125 = arith.mulf %120, %124 : vector<1x128xf32>
    %126 = arith.index_cast %c4_i32 : i32 to index
    %c0_37 = arith.constant 0 : index
    %127 = vector.load %arg14[%126, %c0_37] : memref<8x128xf32, #tpu.memory_space<vmem>>, vector<1x128xf32>
    tpu.vector_store %arg14[%126, %c0_37], %125 {strides = array<i32>} : memref<8x128xf32, #tpu.memory_space<vmem>>, vector<1x128xf32>,
    %c5_i32 = arith.constant 5 : i32
    %128 = arith.index_cast %c5_i32 : i32 to index
    %c0_38 = arith.constant 0 : index
    %129 = vector.load %arg13[%128, %c0_38] : memref<8x512xf32, #tpu.memory_space<vmem>>, vector<1x512xf32>
    %130 = arith.truncf %125 : vector<1x128xf32> to vector<1x128xbf16>
    %c0_39 = arith.constant 0 : index
    %c0_40 = arith.constant 0 : index
    %131 = vector.load %arg2[%c0_39, %c0_40] : memref<128x512xbf16, #tpu.memory_space<vmem>>, vector<128x512xbf16>
    %cst_41 = arith.constant dense<0.000000e+00> : vector<1x512xf32>
    %132 = tpu.matmul %130, %131, %cst_41 {dimension_numbers = #tpu.dot_dimension_numbers<[1], [0], [0], [1], [0, 0, 1, 1], [], []>} : vector<1x128xbf16>, vector<128x512xbf16>, vector<1x512xf32> -> vector<1x512xf32>
    %133 = arith.addf %129, %132 : vector<1x512xf32>
    %134 = vector.extract_strided_slice %133 {offsets = [0, 0], sizes = [1, 384], strides = [1, 1]} : vector<1x512xf32> to vector<1x384xf32>
    %135 = arith.negf %134 : vector<1x384xf32>
    %136 = math.exp %135 : vector<1x384xf32>
    %cst_42 = arith.constant 1.000000e+00 : f32
    %137 = vector.broadcast %cst_42 : f32 to vector<1x384xf32>
    %138 = arith.addf %137, %136 : vector<1x384xf32>
    %139 = arith.divf %137, %138 : vector<1x384xf32>
    %140 = vector.extract_strided_slice %133 {offsets = [0, 384], sizes = [1, 128], strides = [1, 1]} : vector<1x512xf32> to vector<1x128xf32>
    %141 = math.tanh %140 : vector<1x128xf32>
    %142 = vector.extract_strided_slice %139 {offsets = [0, 0], sizes = [1, 128], strides = [1, 1]} : vector<1x384xf32> to vector<1x128xf32>
    %143 = vector.extract_strided_slice %139 {offsets = [0, 128], sizes = [1, 128], strides = [1, 1]} : vector<1x384xf32> to vector<1x128xf32>
    %144 = vector.extract_strided_slice %139 {offsets = [0, 256], sizes = [1, 128], strides = [1, 1]} : vector<1x384xf32> to vector<1x128xf32>
    %145 = arith.mulf %143, %123 : vector<1x128xf32>
    %146 = arith.mulf %142, %141 : vector<1x128xf32>
    %147 = arith.addf %145, %146 : vector<1x128xf32>
    %148 = math.tanh %147 : vector<1x128xf32>
    %149 = arith.mulf %144, %148 : vector<1x128xf32>
    %150 = arith.index_cast %c5_i32 : i32 to index
    %c0_43 = arith.constant 0 : index
    %151 = vector.load %arg14[%150, %c0_43] : memref<8x128xf32, #tpu.memory_space<vmem>>, vector<1x128xf32>
    tpu.vector_store %arg14[%150, %c0_43], %149 {strides = array<i32>} : memref<8x128xf32, #tpu.memory_space<vmem>>, vector<1x128xf32>,
    %c6_i32 = arith.constant 6 : i32
    %152 = arith.index_cast %c6_i32 : i32 to index
    %c0_44 = arith.constant 0 : index
    %153 = vector.load %arg13[%152, %c0_44] : memref<8x512xf32, #tpu.memory_space<vmem>>, vector<1x512xf32>
    %154 = arith.truncf %149 : vector<1x128xf32> to vector<1x128xbf16>
    %c0_45 = arith.constant 0 : index
    %c0_46 = arith.constant 0 : index
    %155 = vector.load %arg2[%c0_45, %c0_46] : memref<128x512xbf16, #tpu.memory_space<vmem>>, vector<128x512xbf16>
    %cst_47 = arith.constant dense<0.000000e+00> : vector<1x512xf32>
    %156 = tpu.matmul %154, %155, %cst_47 {dimension_numbers = #tpu.dot_dimension_numbers<[1], [0], [0], [1], [0, 0, 1, 1], [], []>} : vector<1x128xbf16>, vector<128x512xbf16>, vector<1x512xf32> -> vector<1x512xf32>
    %157 = arith.addf %153, %156 : vector<1x512xf32>
    %158 = vector.extract_strided_slice %157 {offsets = [0, 0], sizes = [1, 384], strides = [1, 1]} : vector<1x512xf32> to vector<1x384xf32>
    %159 = arith.negf %158 : vector<1x384xf32>
    %160 = math.exp %159 : vector<1x384xf32>
    %cst_48 = arith.constant 1.000000e+00 : f32
    %161 = vector.broadcast %cst_48 : f32 to vector<1x384xf32>
    %162 = arith.addf %161, %160 : vector<1x384xf32>
    %163 = arith.divf %161, %162 : vector<1x384xf32>
    %164 = vector.extract_strided_slice %157 {offsets = [0, 384], sizes = [1, 128], strides = [1, 1]} : vector<1x512xf32> to vector<1x128xf32>
    %165 = math.tanh %164 : vector<1x128xf32>
    %166 = vector.extract_strided_slice %163 {offsets = [0, 0], sizes = [1, 128], strides = [1, 1]} : vector<1x384xf32> to vector<1x128xf32>
    %167 = vector.extract_strided_slice %163 {offsets = [0, 128], sizes = [1, 128], strides = [1, 1]} : vector<1x384xf32> to vector<1x128xf32>
    %168 = vector.extract_strided_slice %163 {offsets = [0, 256], sizes = [1, 128], strides = [1, 1]} : vector<1x384xf32> to vector<1x128xf32>
    %169 = arith.mulf %167, %147 : vector<1x128xf32>
    %170 = arith.mulf %166, %165 : vector<1x128xf32>
    %171 = arith.addf %169, %170 : vector<1x128xf32>
    %172 = math.tanh %171 : vector<1x128xf32>
    %173 = arith.mulf %168, %172 : vector<1x128xf32>
    %174 = arith.index_cast %c6_i32 : i32 to index
    %c0_49 = arith.constant 0 : index
    %175 = vector.load %arg14[%174, %c0_49] : memref<8x128xf32, #tpu.memory_space<vmem>>, vector<1x128xf32>
    tpu.vector_store %arg14[%174, %c0_49], %173 {strides = array<i32>} : memref<8x128xf32, #tpu.memory_space<vmem>>, vector<1x128xf32>,
    %c7_i32 = arith.constant 7 : i32
    %176 = arith.index_cast %c7_i32 : i32 to index
    %c0_50 = arith.constant 0 : index
    %177 = vector.load %arg13[%176, %c0_50] : memref<8x512xf32, #tpu.memory_space<vmem>>, vector<1x512xf32>
    %178 = arith.truncf %173 : vector<1x128xf32> to vector<1x128xbf16>
    %c0_51 = arith.constant 0 : index
    %c0_52 = arith.constant 0 : index
    %179 = vector.load %arg2[%c0_51, %c0_52] : memref<128x512xbf16, #tpu.memory_space<vmem>>, vector<128x512xbf16>
    %cst_53 = arith.constant dense<0.000000e+00> : vector<1x512xf32>
    %180 = tpu.matmul %178, %179, %cst_53 {dimension_numbers = #tpu.dot_dimension_numbers<[1], [0], [0], [1], [0, 0, 1, 1], [], []>} : vector<1x128xbf16>, vector<128x512xbf16>, vector<1x512xf32> -> vector<1x512xf32>
    %181 = arith.addf %177, %180 : vector<1x512xf32>
    %182 = vector.extract_strided_slice %181 {offsets = [0, 0], sizes = [1, 384], strides = [1, 1]} : vector<1x512xf32> to vector<1x384xf32>
    %183 = arith.negf %182 : vector<1x384xf32>
    %184 = math.exp %183 : vector<1x384xf32>
    %cst_54 = arith.constant 1.000000e+00 : f32
    %185 = vector.broadcast %cst_54 : f32 to vector<1x384xf32>
    %186 = arith.addf %185, %184 : vector<1x384xf32>
    %187 = arith.divf %185, %186 : vector<1x384xf32>
    %188 = vector.extract_strided_slice %181 {offsets = [0, 384], sizes = [1, 128], strides = [1, 1]} : vector<1x512xf32> to vector<1x128xf32>
    %189 = math.tanh %188 : vector<1x128xf32>
    %190 = vector.extract_strided_slice %187 {offsets = [0, 0], sizes = [1, 128], strides = [1, 1]} : vector<1x384xf32> to vector<1x128xf32>
    %191 = vector.extract_strided_slice %187 {offsets = [0, 128], sizes = [1, 128], strides = [1, 1]} : vector<1x384xf32> to vector<1x128xf32>
    %192 = vector.extract_strided_slice %187 {offsets = [0, 256], sizes = [1, 128], strides = [1, 1]} : vector<1x384xf32> to vector<1x128xf32>
    %193 = arith.mulf %191, %171 : vector<1x128xf32>
    %194 = arith.mulf %190, %189 : vector<1x128xf32>
    %195 = arith.addf %193, %194 : vector<1x128xf32>
    %196 = math.tanh %195 : vector<1x128xf32>
    %197 = arith.mulf %192, %196 : vector<1x128xf32>
    %198 = arith.index_cast %c7_i32 : i32 to index
    %c0_55 = arith.constant 0 : index
    %199 = vector.load %arg14[%198, %c0_55] : memref<8x128xf32, #tpu.memory_space<vmem>>, vector<1x128xf32>
    tpu.vector_store %arg14[%198, %c0_55], %197 {strides = array<i32>} : memref<8x128xf32, #tpu.memory_space<vmem>>, vector<1x128xf32>,
    %c8_i32 = arith.constant 8 : i32
    %c0_56 = arith.constant 0 : index
    %c0_57 = arith.constant 0 : index
    %200 = vector.load %arg14[%c0_56, %c0_57] : memref<8x128xf32, #tpu.memory_space<vmem>>, vector<8x128xf32>
    %c0_58 = arith.constant 0 : index
    %c0_59 = arith.constant 0 : index
    %201 = vector.load %arg4[%c0_58, %c0_59] : memref<128x512xf32, #tpu.memory_space<vmem>>, vector<128x512xf32>
    %cst_60 = arith.constant dense<0.000000e+00> : vector<8x512xf32>
    %202 = tpu.matmul %200, %201, %cst_60 {dimension_numbers = #tpu.dot_dimension_numbers<[1], [0], [0], [1], [0, 0, 1, 1], [], []>} : vector<8x128xf32>, vector<128x512xf32>, vector<8x512xf32> -> vector<8x512xf32>
    %c0_61 = arith.constant 0 : index
    %c0_62 = arith.constant 0 : index
    %203 = vector.load %arg6[%c0_61, %c0_62] : memref<1x512xf32, #tpu.memory_space<vmem>>, vector<1x512xf32>
    %204 = vector.broadcast %203 : vector<1x512xf32> to vector<8x512xf32>
    %205 = arith.addf %202, %204 : vector<8x512xf32>
    %c0_63 = arith.constant 0 : index
    %c0_64 = arith.constant 0 : index
    %206 = vector.load %arg13[%c0_63, %c0_64] : memref<8x512xf32, #tpu.memory_space<vmem>>, vector<8x512xf32>
    tpu.vector_store %arg13[%c0_63, %c0_64], %205 {strides = array<i32>} : memref<8x512xf32, #tpu.memory_space<vmem>>, vector<8x512xf32>,
    %cst_65 = arith.constant 0.000000e+00 : f32
    %207 = vector.broadcast %cst_65 : f32 to vector<1x128xf32>
    %c0_i32_66 = arith.constant 0 : i32
    %208 = arith.index_cast %c0_i32_66 : i32 to index
    %c0_67 = arith.constant 0 : index
    %209 = vector.load %arg13[%208, %c0_67] : memref<8x512xf32, #tpu.memory_space<vmem>>, vector<1x512xf32>
    %210 = arith.truncf %207 : vector<1x128xf32> to vector<1x128xbf16>
    %c0_68 = arith.constant 0 : index
    %c0_69 = arith.constant 0 : index
    %211 = vector.load %arg5[%c0_68, %c0_69] : memref<128x512xbf16, #tpu.memory_space<vmem>>, vector<128x512xbf16>
    %cst_70 = arith.constant dense<0.000000e+00> : vector<1x512xf32>
    %212 = tpu.matmul %210, %211, %cst_70 {dimension_numbers = #tpu.dot_dimension_numbers<[1], [0], [0], [1], [0, 0, 1, 1], [], []>} : vector<1x128xbf16>, vector<128x512xbf16>, vector<1x512xf32> -> vector<1x512xf32>
    %213 = arith.addf %209, %212 : vector<1x512xf32>
    %214 = vector.extract_strided_slice %213 {offsets = [0, 0], sizes = [1, 384], strides = [1, 1]} : vector<1x512xf32> to vector<1x384xf32>
    %215 = arith.negf %214 : vector<1x384xf32>
    %216 = math.exp %215 : vector<1x384xf32>
    %cst_71 = arith.constant 1.000000e+00 : f32
    %217 = vector.broadcast %cst_71 : f32 to vector<1x384xf32>
    %218 = arith.addf %217, %216 : vector<1x384xf32>
    %219 = arith.divf %217, %218 : vector<1x384xf32>
    %220 = vector.extract_strided_slice %213 {offsets = [0, 384], sizes = [1, 128], strides = [1, 1]} : vector<1x512xf32> to vector<1x128xf32>
    %221 = math.tanh %220 : vector<1x128xf32>
    %222 = vector.extract_strided_slice %219 {offsets = [0, 0], sizes = [1, 128], strides = [1, 1]} : vector<1x384xf32> to vector<1x128xf32>
    %223 = vector.extract_strided_slice %219 {offsets = [0, 128], sizes = [1, 128], strides = [1, 1]} : vector<1x384xf32> to vector<1x128xf32>
    %224 = vector.extract_strided_slice %219 {offsets = [0, 256], sizes = [1, 128], strides = [1, 1]} : vector<1x384xf32> to vector<1x128xf32>
    %225 = arith.mulf %223, %207 : vector<1x128xf32>
    %226 = arith.mulf %222, %221 : vector<1x128xf32>
    %227 = arith.addf %225, %226 : vector<1x128xf32>
    %228 = math.tanh %227 : vector<1x128xf32>
    %229 = arith.mulf %224, %228 : vector<1x128xf32>
    %230 = arith.index_cast %c0_i32_66 : i32 to index
    %c0_72 = arith.constant 0 : index
    %231 = vector.load %arg14[%230, %c0_72] : memref<8x128xf32, #tpu.memory_space<vmem>>, vector<1x128xf32>
    tpu.vector_store %arg14[%230, %c0_72], %229 {strides = array<i32>} : memref<8x128xf32, #tpu.memory_space<vmem>>, vector<1x128xf32>,
    %c1_i32_73 = arith.constant 1 : i32
    %232 = arith.index_cast %c1_i32_73 : i32 to index
    %c0_74 = arith.constant 0 : index
    %233 = vector.load %arg13[%232, %c0_74] : memref<8x512xf32, #tpu.memory_space<vmem>>, vector<1x512xf32>
    %234 = arith.truncf %229 : vector<1x128xf32> to vector<1x128xbf16>
    %c0_75 = arith.constant 0 : index
    %c0_76 = arith.constant 0 : index
    %235 = vector.load %arg5[%c0_75, %c0_76] : memref<128x512xbf16, #tpu.memory_space<vmem>>, vector<128x512xbf16>
    %cst_77 = arith.constant dense<0.000000e+00> : vector<1x512xf32>
    %236 = tpu.matmul %234, %235, %cst_77 {dimension_numbers = #tpu.dot_dimension_numbers<[1], [0], [0], [1], [0, 0, 1, 1], [], []>} : vector<1x128xbf16>, vector<128x512xbf16>, vector<1x512xf32> -> vector<1x512xf32>
    %237 = arith.addf %233, %236 : vector<1x512xf32>
    %238 = vector.extract_strided_slice %237 {offsets = [0, 0], sizes = [1, 384], strides = [1, 1]} : vector<1x512xf32> to vector<1x384xf32>
    %239 = arith.negf %238 : vector<1x384xf32>
    %240 = math.exp %239 : vector<1x384xf32>
    %cst_78 = arith.constant 1.000000e+00 : f32
    %241 = vector.broadcast %cst_78 : f32 to vector<1x384xf32>
    %242 = arith.addf %241, %240 : vector<1x384xf32>
    %243 = arith.divf %241, %242 : vector<1x384xf32>
    %244 = vector.extract_strided_slice %237 {offsets = [0, 384], sizes = [1, 128], strides = [1, 1]} : vector<1x512xf32> to vector<1x128xf32>
    %245 = math.tanh %244 : vector<1x128xf32>
    %246 = vector.extract_strided_slice %243 {offsets = [0, 0], sizes = [1, 128], strides = [1, 1]} : vector<1x384xf32> to vector<1x128xf32>
    %247 = vector.extract_strided_slice %243 {offsets = [0, 128], sizes = [1, 128], strides = [1, 1]} : vector<1x384xf32> to vector<1x128xf32>
    %248 = vector.extract_strided_slice %243 {offsets = [0, 256], sizes = [1, 128], strides = [1, 1]} : vector<1x384xf32> to vector<1x128xf32>
    %249 = arith.mulf %247, %227 : vector<1x128xf32>
    %250 = arith.mulf %246, %245 : vector<1x128xf32>
    %251 = arith.addf %249, %250 : vector<1x128xf32>
    %252 = math.tanh %251 : vector<1x128xf32>
    %253 = arith.mulf %248, %252 : vector<1x128xf32>
    %254 = arith.index_cast %c1_i32_73 : i32 to index
    %c0_79 = arith.constant 0 : index
    %255 = vector.load %arg14[%254, %c0_79] : memref<8x128xf32, #tpu.memory_space<vmem>>, vector<1x128xf32>
    tpu.vector_store %arg14[%254, %c0_79], %253 {strides = array<i32>} : memref<8x128xf32, #tpu.memory_space<vmem>>, vector<1x128xf32>,
    %c2_i32_80 = arith.constant 2 : i32
    %256 = arith.index_cast %c2_i32_80 : i32 to index
    %c0_81 = arith.constant 0 : index
    %257 = vector.load %arg13[%256, %c0_81] : memref<8x512xf32, #tpu.memory_space<vmem>>, vector<1x512xf32>
    %258 = arith.truncf %253 : vector<1x128xf32> to vector<1x128xbf16>
    %c0_82 = arith.constant 0 : index
    %c0_83 = arith.constant 0 : index
    %259 = vector.load %arg5[%c0_82, %c0_83] : memref<128x512xbf16, #tpu.memory_space<vmem>>, vector<128x512xbf16>
    %cst_84 = arith.constant dense<0.000000e+00> : vector<1x512xf32>
    %260 = tpu.matmul %258, %259, %cst_84 {dimension_numbers = #tpu.dot_dimension_numbers<[1], [0], [0], [1], [0, 0, 1, 1], [], []>} : vector<1x128xbf16>, vector<128x512xbf16>, vector<1x512xf32> -> vector<1x512xf32>
    %261 = arith.addf %257, %260 : vector<1x512xf32>
    %262 = vector.extract_strided_slice %261 {offsets = [0, 0], sizes = [1, 384], strides = [1, 1]} : vector<1x512xf32> to vector<1x384xf32>
    %263 = arith.negf %262 : vector<1x384xf32>
    %264 = math.exp %263 : vector<1x384xf32>
    %cst_85 = arith.constant 1.000000e+00 : f32
    %265 = vector.broadcast %cst_85 : f32 to vector<1x384xf32>
    %266 = arith.addf %265, %264 : vector<1x384xf32>
    %267 = arith.divf %265, %266 : vector<1x384xf32>
    %268 = vector.extract_strided_slice %261 {offsets = [0, 384], sizes = [1, 128], strides = [1, 1]} : vector<1x512xf32> to vector<1x128xf32>
    %269 = math.tanh %268 : vector<1x128xf32>
    %270 = vector.extract_strided_slice %267 {offsets = [0, 0], sizes = [1, 128], strides = [1, 1]} : vector<1x384xf32> to vector<1x128xf32>
    %271 = vector.extract_strided_slice %267 {offsets = [0, 128], sizes = [1, 128], strides = [1, 1]} : vector<1x384xf32> to vector<1x128xf32>
    %272 = vector.extract_strided_slice %267 {offsets = [0, 256], sizes = [1, 128], strides = [1, 1]} : vector<1x384xf32> to vector<1x128xf32>
    %273 = arith.mulf %271, %251 : vector<1x128xf32>
    %274 = arith.mulf %270, %269 : vector<1x128xf32>
    %275 = arith.addf %273, %274 : vector<1x128xf32>
    %276 = math.tanh %275 : vector<1x128xf32>
    %277 = arith.mulf %272, %276 : vector<1x128xf32>
    %278 = arith.index_cast %c2_i32_80 : i32 to index
    %c0_86 = arith.constant 0 : index
    %279 = vector.load %arg14[%278, %c0_86] : memref<8x128xf32, #tpu.memory_space<vmem>>, vector<1x128xf32>
    tpu.vector_store %arg14[%278, %c0_86], %277 {strides = array<i32>} : memref<8x128xf32, #tpu.memory_space<vmem>>, vector<1x128xf32>,
    %c3_i32_87 = arith.constant 3 : i32
    %280 = arith.index_cast %c3_i32_87 : i32 to index
    %c0_88 = arith.constant 0 : index
    %281 = vector.load %arg13[%280, %c0_88] : memref<8x512xf32, #tpu.memory_space<vmem>>, vector<1x512xf32>
    %282 = arith.truncf %277 : vector<1x128xf32> to vector<1x128xbf16>
    %c0_89 = arith.constant 0 : index
    %c0_90 = arith.constant 0 : index
    %283 = vector.load %arg5[%c0_89, %c0_90] : memref<128x512xbf16, #tpu.memory_space<vmem>>, vector<128x512xbf16>
    %cst_91 = arith.constant dense<0.000000e+00> : vector<1x512xf32>
    %284 = tpu.matmul %282, %283, %cst_91 {dimension_numbers = #tpu.dot_dimension_numbers<[1], [0], [0], [1], [0, 0, 1, 1], [], []>} : vector<1x128xbf16>, vector<128x512xbf16>, vector<1x512xf32> -> vector<1x512xf32>
    %285 = arith.addf %281, %284 : vector<1x512xf32>
    %286 = vector.extract_strided_slice %285 {offsets = [0, 0], sizes = [1, 384], strides = [1, 1]} : vector<1x512xf32> to vector<1x384xf32>
    %287 = arith.negf %286 : vector<1x384xf32>
    %288 = math.exp %287 : vector<1x384xf32>
    %cst_92 = arith.constant 1.000000e+00 : f32
    %289 = vector.broadcast %cst_92 : f32 to vector<1x384xf32>
    %290 = arith.addf %289, %288 : vector<1x384xf32>
    %291 = arith.divf %289, %290 : vector<1x384xf32>
    %292 = vector.extract_strided_slice %285 {offsets = [0, 384], sizes = [1, 128], strides = [1, 1]} : vector<1x512xf32> to vector<1x128xf32>
    %293 = math.tanh %292 : vector<1x128xf32>
    %294 = vector.extract_strided_slice %291 {offsets = [0, 0], sizes = [1, 128], strides = [1, 1]} : vector<1x384xf32> to vector<1x128xf32>
    %295 = vector.extract_strided_slice %291 {offsets = [0, 128], sizes = [1, 128], strides = [1, 1]} : vector<1x384xf32> to vector<1x128xf32>
    %296 = vector.extract_strided_slice %291 {offsets = [0, 256], sizes = [1, 128], strides = [1, 1]} : vector<1x384xf32> to vector<1x128xf32>
    %297 = arith.mulf %295, %275 : vector<1x128xf32>
    %298 = arith.mulf %294, %293 : vector<1x128xf32>
    %299 = arith.addf %297, %298 : vector<1x128xf32>
    %300 = math.tanh %299 : vector<1x128xf32>
    %301 = arith.mulf %296, %300 : vector<1x128xf32>
    %302 = arith.index_cast %c3_i32_87 : i32 to index
    %c0_93 = arith.constant 0 : index
    %303 = vector.load %arg14[%302, %c0_93] : memref<8x128xf32, #tpu.memory_space<vmem>>, vector<1x128xf32>
    tpu.vector_store %arg14[%302, %c0_93], %301 {strides = array<i32>} : memref<8x128xf32, #tpu.memory_space<vmem>>, vector<1x128xf32>,
    %c4_i32_94 = arith.constant 4 : i32
    %304 = arith.index_cast %c4_i32_94 : i32 to index
    %c0_95 = arith.constant 0 : index
    %305 = vector.load %arg13[%304, %c0_95] : memref<8x512xf32, #tpu.memory_space<vmem>>, vector<1x512xf32>
    %306 = arith.truncf %301 : vector<1x128xf32> to vector<1x128xbf16>
    %c0_96 = arith.constant 0 : index
    %c0_97 = arith.constant 0 : index
    %307 = vector.load %arg5[%c0_96, %c0_97] : memref<128x512xbf16, #tpu.memory_space<vmem>>, vector<128x512xbf16>
    %cst_98 = arith.constant dense<0.000000e+00> : vector<1x512xf32>
    %308 = tpu.matmul %306, %307, %cst_98 {dimension_numbers = #tpu.dot_dimension_numbers<[1], [0], [0], [1], [0, 0, 1, 1], [], []>} : vector<1x128xbf16>, vector<128x512xbf16>, vector<1x512xf32> -> vector<1x512xf32>
    %309 = arith.addf %305, %308 : vector<1x512xf32>
    %310 = vector.extract_strided_slice %309 {offsets = [0, 0], sizes = [1, 384], strides = [1, 1]} : vector<1x512xf32> to vector<1x384xf32>
    %311 = arith.negf %310 : vector<1x384xf32>
    %312 = math.exp %311 : vector<1x384xf32>
    %cst_99 = arith.constant 1.000000e+00 : f32
    %313 = vector.broadcast %cst_99 : f32 to vector<1x384xf32>
    %314 = arith.addf %313, %312 : vector<1x384xf32>
    %315 = arith.divf %313, %314 : vector<1x384xf32>
    %316 = vector.extract_strided_slice %309 {offsets = [0, 384], sizes = [1, 128], strides = [1, 1]} : vector<1x512xf32> to vector<1x128xf32>
    %317 = math.tanh %316 : vector<1x128xf32>
    %318 = vector.extract_strided_slice %315 {offsets = [0, 0], sizes = [1, 128], strides = [1, 1]} : vector<1x384xf32> to vector<1x128xf32>
    %319 = vector.extract_strided_slice %315 {offsets = [0, 128], sizes = [1, 128], strides = [1, 1]} : vector<1x384xf32> to vector<1x128xf32>
    %320 = vector.extract_strided_slice %315 {offsets = [0, 256], sizes = [1, 128], strides = [1, 1]} : vector<1x384xf32> to vector<1x128xf32>
    %321 = arith.mulf %319, %299 : vector<1x128xf32>
    %322 = arith.mulf %318, %317 : vector<1x128xf32>
    %323 = arith.addf %321, %322 : vector<1x128xf32>
    %324 = math.tanh %323 : vector<1x128xf32>
    %325 = arith.mulf %320, %324 : vector<1x128xf32>
    %326 = arith.index_cast %c4_i32_94 : i32 to index
    %c0_100 = arith.constant 0 : index
    %327 = vector.load %arg14[%326, %c0_100] : memref<8x128xf32, #tpu.memory_space<vmem>>, vector<1x128xf32>
    tpu.vector_store %arg14[%326, %c0_100], %325 {strides = array<i32>} : memref<8x128xf32, #tpu.memory_space<vmem>>, vector<1x128xf32>,
    %c5_i32_101 = arith.constant 5 : i32
    %328 = arith.index_cast %c5_i32_101 : i32 to index
    %c0_102 = arith.constant 0 : index
    %329 = vector.load %arg13[%328, %c0_102] : memref<8x512xf32, #tpu.memory_space<vmem>>, vector<1x512xf32>
    %330 = arith.truncf %325 : vector<1x128xf32> to vector<1x128xbf16>
    %c0_103 = arith.constant 0 : index
    %c0_104 = arith.constant 0 : index
    %331 = vector.load %arg5[%c0_103, %c0_104] : memref<128x512xbf16, #tpu.memory_space<vmem>>, vector<128x512xbf16>
    %cst_105 = arith.constant dense<0.000000e+00> : vector<1x512xf32>
    %332 = tpu.matmul %330, %331, %cst_105 {dimension_numbers = #tpu.dot_dimension_numbers<[1], [0], [0], [1], [0, 0, 1, 1], [], []>} : vector<1x128xbf16>, vector<128x512xbf16>, vector<1x512xf32> -> vector<1x512xf32>
    %333 = arith.addf %329, %332 : vector<1x512xf32>
    %334 = vector.extract_strided_slice %333 {offsets = [0, 0], sizes = [1, 384], strides = [1, 1]} : vector<1x512xf32> to vector<1x384xf32>
    %335 = arith.negf %334 : vector<1x384xf32>
    %336 = math.exp %335 : vector<1x384xf32>
    %cst_106 = arith.constant 1.000000e+00 : f32
    %337 = vector.broadcast %cst_106 : f32 to vector<1x384xf32>
    %338 = arith.addf %337, %336 : vector<1x384xf32>
    %339 = arith.divf %337, %338 : vector<1x384xf32>
    %340 = vector.extract_strided_slice %333 {offsets = [0, 384], sizes = [1, 128], strides = [1, 1]} : vector<1x512xf32> to vector<1x128xf32>
    %341 = math.tanh %340 : vector<1x128xf32>
    %342 = vector.extract_strided_slice %339 {offsets = [0, 0], sizes = [1, 128], strides = [1, 1]} : vector<1x384xf32> to vector<1x128xf32>
    %343 = vector.extract_strided_slice %339 {offsets = [0, 128], sizes = [1, 128], strides = [1, 1]} : vector<1x384xf32> to vector<1x128xf32>
    %344 = vector.extract_strided_slice %339 {offsets = [0, 256], sizes = [1, 128], strides = [1, 1]} : vector<1x384xf32> to vector<1x128xf32>
    %345 = arith.mulf %343, %323 : vector<1x128xf32>
    %346 = arith.mulf %342, %341 : vector<1x128xf32>
    %347 = arith.addf %345, %346 : vector<1x128xf32>
    %348 = math.tanh %347 : vector<1x128xf32>
    %349 = arith.mulf %344, %348 : vector<1x128xf32>
    %350 = arith.index_cast %c5_i32_101 : i32 to index
    %c0_107 = arith.constant 0 : index
    %351 = vector.load %arg14[%350, %c0_107] : memref<8x128xf32, #tpu.memory_space<vmem>>, vector<1x128xf32>
    tpu.vector_store %arg14[%350, %c0_107], %349 {strides = array<i32>} : memref<8x128xf32, #tpu.memory_space<vmem>>, vector<1x128xf32>,
    %c6_i32_108 = arith.constant 6 : i32
    %352 = arith.index_cast %c6_i32_108 : i32 to index
    %c0_109 = arith.constant 0 : index
    %353 = vector.load %arg13[%352, %c0_109] : memref<8x512xf32, #tpu.memory_space<vmem>>, vector<1x512xf32>
    %354 = arith.truncf %349 : vector<1x128xf32> to vector<1x128xbf16>
    %c0_110 = arith.constant 0 : index
    %c0_111 = arith.constant 0 : index
    %355 = vector.load %arg5[%c0_110, %c0_111] : memref<128x512xbf16, #tpu.memory_space<vmem>>, vector<128x512xbf16>
    %cst_112 = arith.constant dense<0.000000e+00> : vector<1x512xf32>
    %356 = tpu.matmul %354, %355, %cst_112 {dimension_numbers = #tpu.dot_dimension_numbers<[1], [0], [0], [1], [0, 0, 1, 1], [], []>} : vector<1x128xbf16>, vector<128x512xbf16>, vector<1x512xf32> -> vector<1x512xf32>
    %357 = arith.addf %353, %356 : vector<1x512xf32>
    %358 = vector.extract_strided_slice %357 {offsets = [0, 0], sizes = [1, 384], strides = [1, 1]} : vector<1x512xf32> to vector<1x384xf32>
    %359 = arith.negf %358 : vector<1x384xf32>
    %360 = math.exp %359 : vector<1x384xf32>
    %cst_113 = arith.constant 1.000000e+00 : f32
    %361 = vector.broadcast %cst_113 : f32 to vector<1x384xf32>
    %362 = arith.addf %361, %360 : vector<1x384xf32>
    %363 = arith.divf %361, %362 : vector<1x384xf32>
    %364 = vector.extract_strided_slice %357 {offsets = [0, 384], sizes = [1, 128], strides = [1, 1]} : vector<1x512xf32> to vector<1x128xf32>
    %365 = math.tanh %364 : vector<1x128xf32>
    %366 = vector.extract_strided_slice %363 {offsets = [0, 0], sizes = [1, 128], strides = [1, 1]} : vector<1x384xf32> to vector<1x128xf32>
    %367 = vector.extract_strided_slice %363 {offsets = [0, 128], sizes = [1, 128], strides = [1, 1]} : vector<1x384xf32> to vector<1x128xf32>
    %368 = vector.extract_strided_slice %363 {offsets = [0, 256], sizes = [1, 128], strides = [1, 1]} : vector<1x384xf32> to vector<1x128xf32>
    %369 = arith.mulf %367, %347 : vector<1x128xf32>
    %370 = arith.mulf %366, %365 : vector<1x128xf32>
    %371 = arith.addf %369, %370 : vector<1x128xf32>
    %372 = math.tanh %371 : vector<1x128xf32>
    %373 = arith.mulf %368, %372 : vector<1x128xf32>
    %374 = arith.index_cast %c6_i32_108 : i32 to index
    %c0_114 = arith.constant 0 : index
    %375 = vector.load %arg14[%374, %c0_114] : memref<8x128xf32, #tpu.memory_space<vmem>>, vector<1x128xf32>
    tpu.vector_store %arg14[%374, %c0_114], %373 {strides = array<i32>} : memref<8x128xf32, #tpu.memory_space<vmem>>, vector<1x128xf32>,
    %c7_i32_115 = arith.constant 7 : i32
    %376 = arith.index_cast %c7_i32_115 : i32 to index
    %c0_116 = arith.constant 0 : index
    %377 = vector.load %arg13[%376, %c0_116] : memref<8x512xf32, #tpu.memory_space<vmem>>, vector<1x512xf32>
    %378 = arith.truncf %373 : vector<1x128xf32> to vector<1x128xbf16>
    %c0_117 = arith.constant 0 : index
    %c0_118 = arith.constant 0 : index
    %379 = vector.load %arg5[%c0_117, %c0_118] : memref<128x512xbf16, #tpu.memory_space<vmem>>, vector<128x512xbf16>
    %cst_119 = arith.constant dense<0.000000e+00> : vector<1x512xf32>
    %380 = tpu.matmul %378, %379, %cst_119 {dimension_numbers = #tpu.dot_dimension_numbers<[1], [0], [0], [1], [0, 0, 1, 1], [], []>} : vector<1x128xbf16>, vector<128x512xbf16>, vector<1x512xf32> -> vector<1x512xf32>
    %381 = arith.addf %377, %380 : vector<1x512xf32>
    %382 = vector.extract_strided_slice %381 {offsets = [0, 0], sizes = [1, 384], strides = [1, 1]} : vector<1x512xf32> to vector<1x384xf32>
    %383 = arith.negf %382 : vector<1x384xf32>
    %384 = math.exp %383 : vector<1x384xf32>
    %cst_120 = arith.constant 1.000000e+00 : f32
    %385 = vector.broadcast %cst_120 : f32 to vector<1x384xf32>
    %386 = arith.addf %385, %384 : vector<1x384xf32>
    %387 = arith.divf %385, %386 : vector<1x384xf32>
    %388 = vector.extract_strided_slice %381 {offsets = [0, 384], sizes = [1, 128], strides = [1, 1]} : vector<1x512xf32> to vector<1x128xf32>
    %389 = math.tanh %388 : vector<1x128xf32>
    %390 = vector.extract_strided_slice %387 {offsets = [0, 0], sizes = [1, 128], strides = [1, 1]} : vector<1x384xf32> to vector<1x128xf32>
    %391 = vector.extract_strided_slice %387 {offsets = [0, 128], sizes = [1, 128], strides = [1, 1]} : vector<1x384xf32> to vector<1x128xf32>
    %392 = vector.extract_strided_slice %387 {offsets = [0, 256], sizes = [1, 128], strides = [1, 1]} : vector<1x384xf32> to vector<1x128xf32>
    %393 = arith.mulf %391, %371 : vector<1x128xf32>
    %394 = arith.mulf %390, %389 : vector<1x128xf32>
    %395 = arith.addf %393, %394 : vector<1x128xf32>
    %396 = math.tanh %395 : vector<1x128xf32>
    %397 = arith.mulf %392, %396 : vector<1x128xf32>
    %398 = arith.index_cast %c7_i32_115 : i32 to index
    %c0_121 = arith.constant 0 : index
    %399 = vector.load %arg14[%398, %c0_121] : memref<8x128xf32, #tpu.memory_space<vmem>>, vector<1x128xf32>
    tpu.vector_store %arg14[%398, %c0_121], %397 {strides = array<i32>} : memref<8x128xf32, #tpu.memory_space<vmem>>, vector<1x128xf32>,
    %c8_i32_122 = arith.constant 8 : i32
    %c0_123 = arith.constant 0 : index
    %c0_124 = arith.constant 0 : index
    %400 = vector.load %arg14[%c0_123, %c0_124] : memref<8x128xf32, #tpu.memory_space<vmem>>, vector<8x128xf32>
    %c0_125 = arith.constant 0 : index
    %c0_126 = arith.constant 0 : index
    %401 = vector.load %arg7[%c0_125, %c0_126] : memref<128x512xf32, #tpu.memory_space<vmem>>, vector<128x512xf32>
    %cst_127 = arith.constant dense<0.000000e+00> : vector<8x512xf32>
    %402 = tpu.matmul %400, %401, %cst_127 {dimension_numbers = #tpu.dot_dimension_numbers<[1], [0], [0], [1], [0, 0, 1, 1], [], []>} : vector<8x128xf32>, vector<128x512xf32>, vector<8x512xf32> -> vector<8x512xf32>
    %c0_128 = arith.constant 0 : index
    %c0_129 = arith.constant 0 : index
    %403 = vector.load %arg9[%c0_128, %c0_129] : memref<1x512xf32, #tpu.memory_space<vmem>>, vector<1x512xf32>
    %404 = vector.broadcast %403 : vector<1x512xf32> to vector<8x512xf32>
    %405 = arith.addf %402, %404 : vector<8x512xf32>
    %c0_130 = arith.constant 0 : index
    %c0_131 = arith.constant 0 : index
    %406 = vector.load %arg13[%c0_130, %c0_131] : memref<8x512xf32, #tpu.memory_space<vmem>>, vector<8x512xf32>
    tpu.vector_store %arg13[%c0_130, %c0_131], %405 {strides = array<i32>} : memref<8x512xf32, #tpu.memory_space<vmem>>, vector<8x512xf32>,
    %cst_132 = arith.constant 0.000000e+00 : f32
    %407 = vector.broadcast %cst_132 : f32 to vector<1x128xf32>
    %c0_i32_133 = arith.constant 0 : i32
    %408 = arith.index_cast %c0_i32_133 : i32 to index
    %c0_134 = arith.constant 0 : index
    %409 = vector.load %arg13[%408, %c0_134] : memref<8x512xf32, #tpu.memory_space<vmem>>, vector<1x512xf32>
    %410 = arith.truncf %407 : vector<1x128xf32> to vector<1x128xbf16>
    %c0_135 = arith.constant 0 : index
    %c0_136 = arith.constant 0 : index
    %411 = vector.load %arg8[%c0_135, %c0_136] : memref<128x512xbf16, #tpu.memory_space<vmem>>, vector<128x512xbf16>
    %cst_137 = arith.constant dense<0.000000e+00> : vector<1x512xf32>
    %412 = tpu.matmul %410, %411, %cst_137 {dimension_numbers = #tpu.dot_dimension_numbers<[1], [0], [0], [1], [0, 0, 1, 1], [], []>} : vector<1x128xbf16>, vector<128x512xbf16>, vector<1x512xf32> -> vector<1x512xf32>
    %413 = arith.addf %409, %412 : vector<1x512xf32>
    %414 = vector.extract_strided_slice %413 {offsets = [0, 0], sizes = [1, 384], strides = [1, 1]} : vector<1x512xf32> to vector<1x384xf32>
    %415 = arith.negf %414 : vector<1x384xf32>
    %416 = math.exp %415 : vector<1x384xf32>
    %cst_138 = arith.constant 1.000000e+00 : f32
    %417 = vector.broadcast %cst_138 : f32 to vector<1x384xf32>
    %418 = arith.addf %417, %416 : vector<1x384xf32>
    %419 = arith.divf %417, %418 : vector<1x384xf32>
    %420 = vector.extract_strided_slice %413 {offsets = [0, 384], sizes = [1, 128], strides = [1, 1]} : vector<1x512xf32> to vector<1x128xf32>
    %421 = math.tanh %420 : vector<1x128xf32>
    %422 = vector.extract_strided_slice %419 {offsets = [0, 0], sizes = [1, 128], strides = [1, 1]} : vector<1x384xf32> to vector<1x128xf32>
    %423 = vector.extract_strided_slice %419 {offsets = [0, 128], sizes = [1, 128], strides = [1, 1]} : vector<1x384xf32> to vector<1x128xf32>
    %424 = vector.extract_strided_slice %419 {offsets = [0, 256], sizes = [1, 128], strides = [1, 1]} : vector<1x384xf32> to vector<1x128xf32>
    %425 = arith.mulf %423, %407 : vector<1x128xf32>
    %426 = arith.mulf %422, %421 : vector<1x128xf32>
    %427 = arith.addf %425, %426 : vector<1x128xf32>
    %428 = math.tanh %427 : vector<1x128xf32>
    %429 = arith.mulf %424, %428 : vector<1x128xf32>
    %430 = arith.index_cast %c0_i32_133 : i32 to index
    %c0_139 = arith.constant 0 : index
    %431 = vector.load %arg14[%430, %c0_139] : memref<8x128xf32, #tpu.memory_space<vmem>>, vector<1x128xf32>
    tpu.vector_store %arg14[%430, %c0_139], %429 {strides = array<i32>} : memref<8x128xf32, #tpu.memory_space<vmem>>, vector<1x128xf32>,
    %c1_i32_140 = arith.constant 1 : i32
    %432 = arith.index_cast %c1_i32_140 : i32 to index
    %c0_141 = arith.constant 0 : index
    %433 = vector.load %arg13[%432, %c0_141] : memref<8x512xf32, #tpu.memory_space<vmem>>, vector<1x512xf32>
    %434 = arith.truncf %429 : vector<1x128xf32> to vector<1x128xbf16>
    %c0_142 = arith.constant 0 : index
    %c0_143 = arith.constant 0 : index
    %435 = vector.load %arg8[%c0_142, %c0_143] : memref<128x512xbf16, #tpu.memory_space<vmem>>, vector<128x512xbf16>
    %cst_144 = arith.constant dense<0.000000e+00> : vector<1x512xf32>
    %436 = tpu.matmul %434, %435, %cst_144 {dimension_numbers = #tpu.dot_dimension_numbers<[1], [0], [0], [1], [0, 0, 1, 1], [], []>} : vector<1x128xbf16>, vector<128x512xbf16>, vector<1x512xf32> -> vector<1x512xf32>
    %437 = arith.addf %433, %436 : vector<1x512xf32>
    %438 = vector.extract_strided_slice %437 {offsets = [0, 0], sizes = [1, 384], strides = [1, 1]} : vector<1x512xf32> to vector<1x384xf32>
    %439 = arith.negf %438 : vector<1x384xf32>
    %440 = math.exp %439 : vector<1x384xf32>
    %cst_145 = arith.constant 1.000000e+00 : f32
    %441 = vector.broadcast %cst_145 : f32 to vector<1x384xf32>
    %442 = arith.addf %441, %440 : vector<1x384xf32>
    %443 = arith.divf %441, %442 : vector<1x384xf32>
    %444 = vector.extract_strided_slice %437 {offsets = [0, 384], sizes = [1, 128], strides = [1, 1]} : vector<1x512xf32> to vector<1x128xf32>
    %445 = math.tanh %444 : vector<1x128xf32>
    %446 = vector.extract_strided_slice %443 {offsets = [0, 0], sizes = [1, 128], strides = [1, 1]} : vector<1x384xf32> to vector<1x128xf32>
    %447 = vector.extract_strided_slice %443 {offsets = [0, 128], sizes = [1, 128], strides = [1, 1]} : vector<1x384xf32> to vector<1x128xf32>
    %448 = vector.extract_strided_slice %443 {offsets = [0, 256], sizes = [1, 128], strides = [1, 1]} : vector<1x384xf32> to vector<1x128xf32>
    %449 = arith.mulf %447, %427 : vector<1x128xf32>
    %450 = arith.mulf %446, %445 : vector<1x128xf32>
    %451 = arith.addf %449, %450 : vector<1x128xf32>
    %452 = math.tanh %451 : vector<1x128xf32>
    %453 = arith.mulf %448, %452 : vector<1x128xf32>
    %454 = arith.index_cast %c1_i32_140 : i32 to index
    %c0_146 = arith.constant 0 : index
    %455 = vector.load %arg14[%454, %c0_146] : memref<8x128xf32, #tpu.memory_space<vmem>>, vector<1x128xf32>
    tpu.vector_store %arg14[%454, %c0_146], %453 {strides = array<i32>} : memref<8x128xf32, #tpu.memory_space<vmem>>, vector<1x128xf32>,
    %c2_i32_147 = arith.constant 2 : i32
    %456 = arith.index_cast %c2_i32_147 : i32 to index
    %c0_148 = arith.constant 0 : index
    %457 = vector.load %arg13[%456, %c0_148] : memref<8x512xf32, #tpu.memory_space<vmem>>, vector<1x512xf32>
    %458 = arith.truncf %453 : vector<1x128xf32> to vector<1x128xbf16>
    %c0_149 = arith.constant 0 : index
    %c0_150 = arith.constant 0 : index
    %459 = vector.load %arg8[%c0_149, %c0_150] : memref<128x512xbf16, #tpu.memory_space<vmem>>, vector<128x512xbf16>
    %cst_151 = arith.constant dense<0.000000e+00> : vector<1x512xf32>
    %460 = tpu.matmul %458, %459, %cst_151 {dimension_numbers = #tpu.dot_dimension_numbers<[1], [0], [0], [1], [0, 0, 1, 1], [], []>} : vector<1x128xbf16>, vector<128x512xbf16>, vector<1x512xf32> -> vector<1x512xf32>
    %461 = arith.addf %457, %460 : vector<1x512xf32>
    %462 = vector.extract_strided_slice %461 {offsets = [0, 0], sizes = [1, 384], strides = [1, 1]} : vector<1x512xf32> to vector<1x384xf32>
    %463 = arith.negf %462 : vector<1x384xf32>
    %464 = math.exp %463 : vector<1x384xf32>
    %cst_152 = arith.constant 1.000000e+00 : f32
    %465 = vector.broadcast %cst_152 : f32 to vector<1x384xf32>
    %466 = arith.addf %465, %464 : vector<1x384xf32>
    %467 = arith.divf %465, %466 : vector<1x384xf32>
    %468 = vector.extract_strided_slice %461 {offsets = [0, 384], sizes = [1, 128], strides = [1, 1]} : vector<1x512xf32> to vector<1x128xf32>
    %469 = math.tanh %468 : vector<1x128xf32>
    %470 = vector.extract_strided_slice %467 {offsets = [0, 0], sizes = [1, 128], strides = [1, 1]} : vector<1x384xf32> to vector<1x128xf32>
    %471 = vector.extract_strided_slice %467 {offsets = [0, 128], sizes = [1, 128], strides = [1, 1]} : vector<1x384xf32> to vector<1x128xf32>
    %472 = vector.extract_strided_slice %467 {offsets = [0, 256], sizes = [1, 128], strides = [1, 1]} : vector<1x384xf32> to vector<1x128xf32>
    %473 = arith.mulf %471, %451 : vector<1x128xf32>
    %474 = arith.mulf %470, %469 : vector<1x128xf32>
    %475 = arith.addf %473, %474 : vector<1x128xf32>
    %476 = math.tanh %475 : vector<1x128xf32>
    %477 = arith.mulf %472, %476 : vector<1x128xf32>
    %478 = arith.index_cast %c2_i32_147 : i32 to index
    %c0_153 = arith.constant 0 : index
    %479 = vector.load %arg14[%478, %c0_153] : memref<8x128xf32, #tpu.memory_space<vmem>>, vector<1x128xf32>
    tpu.vector_store %arg14[%478, %c0_153], %477 {strides = array<i32>} : memref<8x128xf32, #tpu.memory_space<vmem>>, vector<1x128xf32>,
    %c3_i32_154 = arith.constant 3 : i32
    %480 = arith.index_cast %c3_i32_154 : i32 to index
    %c0_155 = arith.constant 0 : index
    %481 = vector.load %arg13[%480, %c0_155] : memref<8x512xf32, #tpu.memory_space<vmem>>, vector<1x512xf32>
    %482 = arith.truncf %477 : vector<1x128xf32> to vector<1x128xbf16>
    %c0_156 = arith.constant 0 : index
    %c0_157 = arith.constant 0 : index
    %483 = vector.load %arg8[%c0_156, %c0_157] : memref<128x512xbf16, #tpu.memory_space<vmem>>, vector<128x512xbf16>
    %cst_158 = arith.constant dense<0.000000e+00> : vector<1x512xf32>
    %484 = tpu.matmul %482, %483, %cst_158 {dimension_numbers = #tpu.dot_dimension_numbers<[1], [0], [0], [1], [0, 0, 1, 1], [], []>} : vector<1x128xbf16>, vector<128x512xbf16>, vector<1x512xf32> -> vector<1x512xf32>
    %485 = arith.addf %481, %484 : vector<1x512xf32>
    %486 = vector.extract_strided_slice %485 {offsets = [0, 0], sizes = [1, 384], strides = [1, 1]} : vector<1x512xf32> to vector<1x384xf32>
    %487 = arith.negf %486 : vector<1x384xf32>
    %488 = math.exp %487 : vector<1x384xf32>
    %cst_159 = arith.constant 1.000000e+00 : f32
    %489 = vector.broadcast %cst_159 : f32 to vector<1x384xf32>
    %490 = arith.addf %489, %488 : vector<1x384xf32>
    %491 = arith.divf %489, %490 : vector<1x384xf32>
    %492 = vector.extract_strided_slice %485 {offsets = [0, 384], sizes = [1, 128], strides = [1, 1]} : vector<1x512xf32> to vector<1x128xf32>
    %493 = math.tanh %492 : vector<1x128xf32>
    %494 = vector.extract_strided_slice %491 {offsets = [0, 0], sizes = [1, 128], strides = [1, 1]} : vector<1x384xf32> to vector<1x128xf32>
    %495 = vector.extract_strided_slice %491 {offsets = [0, 128], sizes = [1, 128], strides = [1, 1]} : vector<1x384xf32> to vector<1x128xf32>
    %496 = vector.extract_strided_slice %491 {offsets = [0, 256], sizes = [1, 128], strides = [1, 1]} : vector<1x384xf32> to vector<1x128xf32>
    %497 = arith.mulf %495, %475 : vector<1x128xf32>
    %498 = arith.mulf %494, %493 : vector<1x128xf32>
    %499 = arith.addf %497, %498 : vector<1x128xf32>
    %500 = math.tanh %499 : vector<1x128xf32>
    %501 = arith.mulf %496, %500 : vector<1x128xf32>
    %502 = arith.index_cast %c3_i32_154 : i32 to index
    %c0_160 = arith.constant 0 : index
    %503 = vector.load %arg14[%502, %c0_160] : memref<8x128xf32, #tpu.memory_space<vmem>>, vector<1x128xf32>
    tpu.vector_store %arg14[%502, %c0_160], %501 {strides = array<i32>} : memref<8x128xf32, #tpu.memory_space<vmem>>, vector<1x128xf32>,
    %c4_i32_161 = arith.constant 4 : i32
    %504 = arith.index_cast %c4_i32_161 : i32 to index
    %c0_162 = arith.constant 0 : index
    %505 = vector.load %arg13[%504, %c0_162] : memref<8x512xf32, #tpu.memory_space<vmem>>, vector<1x512xf32>
    %506 = arith.truncf %501 : vector<1x128xf32> to vector<1x128xbf16>
    %c0_163 = arith.constant 0 : index
    %c0_164 = arith.constant 0 : index
    %507 = vector.load %arg8[%c0_163, %c0_164] : memref<128x512xbf16, #tpu.memory_space<vmem>>, vector<128x512xbf16>
    %cst_165 = arith.constant dense<0.000000e+00> : vector<1x512xf32>
    %508 = tpu.matmul %506, %507, %cst_165 {dimension_numbers = #tpu.dot_dimension_numbers<[1], [0], [0], [1], [0, 0, 1, 1], [], []>} : vector<1x128xbf16>, vector<128x512xbf16>, vector<1x512xf32> -> vector<1x512xf32>
    %509 = arith.addf %505, %508 : vector<1x512xf32>
    %510 = vector.extract_strided_slice %509 {offsets = [0, 0], sizes = [1, 384], strides = [1, 1]} : vector<1x512xf32> to vector<1x384xf32>
    %511 = arith.negf %510 : vector<1x384xf32>
    %512 = math.exp %511 : vector<1x384xf32>
    %cst_166 = arith.constant 1.000000e+00 : f32
    %513 = vector.broadcast %cst_166 : f32 to vector<1x384xf32>
    %514 = arith.addf %513, %512 : vector<1x384xf32>
    %515 = arith.divf %513, %514 : vector<1x384xf32>
    %516 = vector.extract_strided_slice %509 {offsets = [0, 384], sizes = [1, 128], strides = [1, 1]} : vector<1x512xf32> to vector<1x128xf32>
    %517 = math.tanh %516 : vector<1x128xf32>
    %518 = vector.extract_strided_slice %515 {offsets = [0, 0], sizes = [1, 128], strides = [1, 1]} : vector<1x384xf32> to vector<1x128xf32>
    %519 = vector.extract_strided_slice %515 {offsets = [0, 128], sizes = [1, 128], strides = [1, 1]} : vector<1x384xf32> to vector<1x128xf32>
    %520 = vector.extract_strided_slice %515 {offsets = [0, 256], sizes = [1, 128], strides = [1, 1]} : vector<1x384xf32> to vector<1x128xf32>
    %521 = arith.mulf %519, %499 : vector<1x128xf32>
    %522 = arith.mulf %518, %517 : vector<1x128xf32>
    %523 = arith.addf %521, %522 : vector<1x128xf32>
    %524 = math.tanh %523 : vector<1x128xf32>
    %525 = arith.mulf %520, %524 : vector<1x128xf32>
    %526 = arith.index_cast %c4_i32_161 : i32 to index
    %c0_167 = arith.constant 0 : index
    %527 = vector.load %arg14[%526, %c0_167] : memref<8x128xf32, #tpu.memory_space<vmem>>, vector<1x128xf32>
    tpu.vector_store %arg14[%526, %c0_167], %525 {strides = array<i32>} : memref<8x128xf32, #tpu.memory_space<vmem>>, vector<1x128xf32>,
    %c5_i32_168 = arith.constant 5 : i32
    %528 = arith.index_cast %c5_i32_168 : i32 to index
    %c0_169 = arith.constant 0 : index
    %529 = vector.load %arg13[%528, %c0_169] : memref<8x512xf32, #tpu.memory_space<vmem>>, vector<1x512xf32>
    %530 = arith.truncf %525 : vector<1x128xf32> to vector<1x128xbf16>
    %c0_170 = arith.constant 0 : index
    %c0_171 = arith.constant 0 : index
    %531 = vector.load %arg8[%c0_170, %c0_171] : memref<128x512xbf16, #tpu.memory_space<vmem>>, vector<128x512xbf16>
    %cst_172 = arith.constant dense<0.000000e+00> : vector<1x512xf32>
    %532 = tpu.matmul %530, %531, %cst_172 {dimension_numbers = #tpu.dot_dimension_numbers<[1], [0], [0], [1], [0, 0, 1, 1], [], []>} : vector<1x128xbf16>, vector<128x512xbf16>, vector<1x512xf32> -> vector<1x512xf32>
    %533 = arith.addf %529, %532 : vector<1x512xf32>
    %534 = vector.extract_strided_slice %533 {offsets = [0, 0], sizes = [1, 384], strides = [1, 1]} : vector<1x512xf32> to vector<1x384xf32>
    %535 = arith.negf %534 : vector<1x384xf32>
    %536 = math.exp %535 : vector<1x384xf32>
    %cst_173 = arith.constant 1.000000e+00 : f32
    %537 = vector.broadcast %cst_173 : f32 to vector<1x384xf32>
    %538 = arith.addf %537, %536 : vector<1x384xf32>
    %539 = arith.divf %537, %538 : vector<1x384xf32>
    %540 = vector.extract_strided_slice %533 {offsets = [0, 384], sizes = [1, 128], strides = [1, 1]} : vector<1x512xf32> to vector<1x128xf32>
    %541 = math.tanh %540 : vector<1x128xf32>
    %542 = vector.extract_strided_slice %539 {offsets = [0, 0], sizes = [1, 128], strides = [1, 1]} : vector<1x384xf32> to vector<1x128xf32>
    %543 = vector.extract_strided_slice %539 {offsets = [0, 128], sizes = [1, 128], strides = [1, 1]} : vector<1x384xf32> to vector<1x128xf32>
    %544 = vector.extract_strided_slice %539 {offsets = [0, 256], sizes = [1, 128], strides = [1, 1]} : vector<1x384xf32> to vector<1x128xf32>
    %545 = arith.mulf %543, %523 : vector<1x128xf32>
    %546 = arith.mulf %542, %541 : vector<1x128xf32>
    %547 = arith.addf %545, %546 : vector<1x128xf32>
    %548 = math.tanh %547 : vector<1x128xf32>
    %549 = arith.mulf %544, %548 : vector<1x128xf32>
    %550 = arith.index_cast %c5_i32_168 : i32 to index
    %c0_174 = arith.constant 0 : index
    %551 = vector.load %arg14[%550, %c0_174] : memref<8x128xf32, #tpu.memory_space<vmem>>, vector<1x128xf32>
    tpu.vector_store %arg14[%550, %c0_174], %549 {strides = array<i32>} : memref<8x128xf32, #tpu.memory_space<vmem>>, vector<1x128xf32>,
    %c6_i32_175 = arith.constant 6 : i32
    %552 = arith.index_cast %c6_i32_175 : i32 to index
    %c0_176 = arith.constant 0 : index
    %553 = vector.load %arg13[%552, %c0_176] : memref<8x512xf32, #tpu.memory_space<vmem>>, vector<1x512xf32>
    %554 = arith.truncf %549 : vector<1x128xf32> to vector<1x128xbf16>
    %c0_177 = arith.constant 0 : index
    %c0_178 = arith.constant 0 : index
    %555 = vector.load %arg8[%c0_177, %c0_178] : memref<128x512xbf16, #tpu.memory_space<vmem>>, vector<128x512xbf16>
    %cst_179 = arith.constant dense<0.000000e+00> : vector<1x512xf32>
    %556 = tpu.matmul %554, %555, %cst_179 {dimension_numbers = #tpu.dot_dimension_numbers<[1], [0], [0], [1], [0, 0, 1, 1], [], []>} : vector<1x128xbf16>, vector<128x512xbf16>, vector<1x512xf32> -> vector<1x512xf32>
    %557 = arith.addf %553, %556 : vector<1x512xf32>
    %558 = vector.extract_strided_slice %557 {offsets = [0, 0], sizes = [1, 384], strides = [1, 1]} : vector<1x512xf32> to vector<1x384xf32>
    %559 = arith.negf %558 : vector<1x384xf32>
    %560 = math.exp %559 : vector<1x384xf32>
    %cst_180 = arith.constant 1.000000e+00 : f32
    %561 = vector.broadcast %cst_180 : f32 to vector<1x384xf32>
    %562 = arith.addf %561, %560 : vector<1x384xf32>
    %563 = arith.divf %561, %562 : vector<1x384xf32>
    %564 = vector.extract_strided_slice %557 {offsets = [0, 384], sizes = [1, 128], strides = [1, 1]} : vector<1x512xf32> to vector<1x128xf32>
    %565 = math.tanh %564 : vector<1x128xf32>
    %566 = vector.extract_strided_slice %563 {offsets = [0, 0], sizes = [1, 128], strides = [1, 1]} : vector<1x384xf32> to vector<1x128xf32>
    %567 = vector.extract_strided_slice %563 {offsets = [0, 128], sizes = [1, 128], strides = [1, 1]} : vector<1x384xf32> to vector<1x128xf32>
    %568 = vector.extract_strided_slice %563 {offsets = [0, 256], sizes = [1, 128], strides = [1, 1]} : vector<1x384xf32> to vector<1x128xf32>
    %569 = arith.mulf %567, %547 : vector<1x128xf32>
    %570 = arith.mulf %566, %565 : vector<1x128xf32>
    %571 = arith.addf %569, %570 : vector<1x128xf32>
    %572 = math.tanh %571 : vector<1x128xf32>
    %573 = arith.mulf %568, %572 : vector<1x128xf32>
    %574 = arith.index_cast %c6_i32_175 : i32 to index
    %c0_181 = arith.constant 0 : index
    %575 = vector.load %arg14[%574, %c0_181] : memref<8x128xf32, #tpu.memory_space<vmem>>, vector<1x128xf32>
    tpu.vector_store %arg14[%574, %c0_181], %573 {strides = array<i32>} : memref<8x128xf32, #tpu.memory_space<vmem>>, vector<1x128xf32>,
    %c7_i32_182 = arith.constant 7 : i32
    %576 = arith.index_cast %c7_i32_182 : i32 to index
    %c0_183 = arith.constant 0 : index
    %577 = vector.load %arg13[%576, %c0_183] : memref<8x512xf32, #tpu.memory_space<vmem>>, vector<1x512xf32>
    %578 = arith.truncf %573 : vector<1x128xf32> to vector<1x128xbf16>
    %c0_184 = arith.constant 0 : index
    %c0_185 = arith.constant 0 : index
    %579 = vector.load %arg8[%c0_184, %c0_185] : memref<128x512xbf16, #tpu.memory_space<vmem>>, vector<128x512xbf16>
    %cst_186 = arith.constant dense<0.000000e+00> : vector<1x512xf32>
    %580 = tpu.matmul %578, %579, %cst_186 {dimension_numbers = #tpu.dot_dimension_numbers<[1], [0], [0], [1], [0, 0, 1, 1], [], []>} : vector<1x128xbf16>, vector<128x512xbf16>, vector<1x512xf32> -> vector<1x512xf32>
    %581 = arith.addf %577, %580 : vector<1x512xf32>
    %582 = vector.extract_strided_slice %581 {offsets = [0, 0], sizes = [1, 384], strides = [1, 1]} : vector<1x512xf32> to vector<1x384xf32>
    %583 = arith.negf %582 : vector<1x384xf32>
    %584 = math.exp %583 : vector<1x384xf32>
    %cst_187 = arith.constant 1.000000e+00 : f32
    %585 = vector.broadcast %cst_187 : f32 to vector<1x384xf32>
    %586 = arith.addf %585, %584 : vector<1x384xf32>
    %587 = arith.divf %585, %586 : vector<1x384xf32>
    %588 = vector.extract_strided_slice %581 {offsets = [0, 384], sizes = [1, 128], strides = [1, 1]} : vector<1x512xf32> to vector<1x128xf32>
    %589 = math.tanh %588 : vector<1x128xf32>
    %590 = vector.extract_strided_slice %587 {offsets = [0, 0], sizes = [1, 128], strides = [1, 1]} : vector<1x384xf32> to vector<1x128xf32>
    %591 = vector.extract_strided_slice %587 {offsets = [0, 128], sizes = [1, 128], strides = [1, 1]} : vector<1x384xf32> to vector<1x128xf32>
    %592 = vector.extract_strided_slice %587 {offsets = [0, 256], sizes = [1, 128], strides = [1, 1]} : vector<1x384xf32> to vector<1x128xf32>
    %593 = arith.mulf %591, %571 : vector<1x128xf32>
    %594 = arith.mulf %590, %589 : vector<1x128xf32>
    %595 = arith.addf %593, %594 : vector<1x128xf32>
    %596 = math.tanh %595 : vector<1x128xf32>
    %597 = arith.mulf %592, %596 : vector<1x128xf32>
    %598 = arith.index_cast %c7_i32_182 : i32 to index
    %c0_188 = arith.constant 0 : index
    %599 = vector.load %arg14[%598, %c0_188] : memref<8x128xf32, #tpu.memory_space<vmem>>, vector<1x128xf32>
    tpu.vector_store %arg14[%598, %c0_188], %597 {strides = array<i32>} : memref<8x128xf32, #tpu.memory_space<vmem>>, vector<1x128xf32>,
    %c8_i32_189 = arith.constant 8 : i32
    %c0_190 = arith.constant 0 : index
    %c0_191 = arith.constant 0 : index
    %600 = vector.load %arg14[%c0_190, %c0_191] : memref<8x128xf32, #tpu.memory_space<vmem>>, vector<8x128xf32>
    %c0_192 = arith.constant 0 : index
    %c0_193 = arith.constant 0 : index
    %601 = vector.load %arg10[%c0_192, %c0_193] : memref<1x128xf32, #tpu.memory_space<vmem>>, vector<1x128xf32>
    %602 = vector.broadcast %601 : vector<1x128xf32> to vector<8x128xf32>
    %603 = arith.mulf %600, %602 : vector<8x128xf32>
    %cst_194 = arith.constant dense<0.000000e+00> : vector<8xf32>
    %604 = vector.multi_reduction <add>, %603, %cst_194 [1] : vector<8x128xf32> to vector<8xf32>
    %605 = vector.shape_cast %604 : vector<8xf32> to vector<8x1xf32>
    %c0_195 = arith.constant 0 : index
    %c0_196 = arith.constant 0 : index
    %606 = vector.load %arg11[%c0_195, %c0_196] : memref<1x1xf32, #tpu.memory_space<vmem>>, vector<1x1xf32>
    %607 = vector.broadcast %606 : vector<1x1xf32> to vector<8x1xf32>
    %608 = arith.addf %605, %607 : vector<8x1xf32>
    %c0_197 = arith.constant 0 : index
    %c0_198 = arith.constant 0 : index
    %609 = vector.load %arg12[%c0_197, %c0_198] : memref<8x1xf32, #tpu.memory_space<vmem>>, vector<8x1xf32>
    tpu.vector_store %arg12[%c0_197, %c0_198], %608 {strides = array<i32>} : memref<8x1xf32, #tpu.memory_space<vmem>>, vector<8x1xf32>,
    return
  }
}

</mosaic_0001>

<llo_original>
// kernel: lstm_fc_pallas.1
$region0: #{lstm_fc_pallas.1}
  #allocation0 [shape = 'u32[]', space=smem, size = 0x4, offset = 0x4, fixed_abs, tag = 'smem constant byte address 0x4 - core index']
  #allocation1 [shape = 'u32[144,128]{1,0:T(1,128)}', space=vmem, size = 0x12000, scoped, tag = 'internal scratch']
  #allocation2 [shape = 'f32[8,512]{1,0:T(8,128)}', space=vmem, size = 0x4000, scoped, tag = 'scratch operand']
  #allocation3 [shape = 'f32[8,128]{1,0:T(8,128)}', space=vmem, size = 0x1000, scoped, tag = 'scratch operand']
  #allocation4 [shape = 'f32[1,1]{1,0:T(1,128)S(1)}', space=vmem, size = 0x200, scoped, tag = 'scoped memory for lstm_fc_pallas.1']
  %s0 = inlined_call_operand.vmem [shape: f32[8,8], index: 0, kind: input, shape index: {}]
  %s1 = inlined_call_operand.vmem [shape: f32[8,512], index: 1, kind: input, shape index: {}]
  %s2 = inlined_call_operand.vmem [shape: bf16[128,512], index: 2, kind: input, shape index: {}]
  %s3 = inlined_call_operand.vmem [shape: f32[1,512], index: 3, kind: input, shape index: {}]
  %s4 = inlined_call_operand.vmem [shape: f32[128,512], index: 4, kind: input, shape index: {}]
  %s5 = inlined_call_operand.vmem [shape: bf16[128,512], index: 5, kind: input, shape index: {}]
  %s6 = inlined_call_operand.vmem [shape: f32[1,512], index: 6, kind: input, shape index: {}]
  %s7 = inlined_call_operand.vmem [shape: f32[128,512], index: 7, kind: input, shape index: {}]
  %s8 = inlined_call_operand.vmem [shape: bf16[128,512], index: 8, kind: input, shape index: {}]
  %s9 = inlined_call_operand.vmem [shape: f32[1,512], index: 9, kind: input, shape index: {}]
  %s10 = inlined_call_operand.vmem [shape: f32[1,128], index: 10, kind: input, shape index: {}]
  %s11 = inlined_call_operand.<no memory space> [shape: f32[1,1], index: 11, kind: input, shape index: {}]
  %s12 = inlined_call_operand.vmem [shape: f32[8,1], index: 12, kind: output, shape index: {}]
  %s13 = sld [smem:[#allocation0]]
  $region58: #{lstm_fc_pallas.1} parent=0
    _
  %s15 = ssub.s32 1, %s13
  %s16 = scalar_select 0, %s15, %s13
  %v17 = vstv %s11
  %18 = vst [vmem:[#allocation4] sm:$0x1] %v17
  // Predicated region
  $region2: #{lstm_fc_pallas.1} parent=0 // pred_check
    _
  $region3: #{lstm_fc_pallas.1} parent=0 // pred_check_branch
    %20 = sbr.rel (0) target = $region5
  $region4: #{lstm_fc_pallas.1} parent=0 // pred_region
    _
  $region5: #{lstm_fc_pallas.1} parent=0 // pred_fallthru
    _
  // Predicated region
  $region6: #{lstm_fc_pallas.1} parent=0 // pred_check
    _
  $region7: #{lstm_fc_pallas.1} parent=0 // pred_check_branch
    %22 = sbr.rel (0) target = $region9
  $region8: #{lstm_fc_pallas.1} parent=0 // pred_region
    _
  $region9: #{lstm_fc_pallas.1} parent=0 // pred_fallthru
    _
  // Predicated region
  $region10: #{lstm_fc_pallas.1} parent=0 // pred_check
    _
  $region11: #{lstm_fc_pallas.1} parent=0 // pred_check_branch
    %24 = sbr.rel (0) target = $region13
  $region12: #{lstm_fc_pallas.1} parent=0 // pred_region
    _
  $region13: #{lstm_fc_pallas.1} parent=0 // pred_fallthru
    _
  // Predicated region
  $region14: #{lstm_fc_pallas.1} parent=0 // pred_check
    _
  $region15: #{lstm_fc_pallas.1} parent=0 // pred_check_branch
    %26 = sbr.rel (0) target = $region17
  $region16: #{lstm_fc_pallas.1} parent=0 // pred_region
    _
  $region17: #{lstm_fc_pallas.1} parent=0 // pred_fallthru
    _
  // Predicated region
  $region18: #{lstm_fc_pallas.1} parent=0 // pred_check
    _
  $region19: #{lstm_fc_pallas.1} parent=0 // pred_check_branch
    %28 = sbr.rel (0) target = $region21
  $region20: #{lstm_fc_pallas.1} parent=0 // pred_region
    _
  $region21: #{lstm_fc_pallas.1} parent=0 // pred_fallthru
    _
  // Predicated region
  $region22: #{lstm_fc_pallas.1} parent=0 // pred_check
    _
  $region23: #{lstm_fc_pallas.1} parent=0 // pred_check_branch
    %30 = sbr.rel (0) target = $region25
  $region24: #{lstm_fc_pallas.1} parent=0 // pred_region
    _
  $region25: #{lstm_fc_pallas.1} parent=0 // pred_fallthru
    _
  // Predicated region
  $region26: #{lstm_fc_pallas.1} parent=0 // pred_check
    _
  $region27: #{lstm_fc_pallas.1} parent=0 // pred_check_branch
    %32 = sbr.rel (0) target = $region29
  $region28: #{lstm_fc_pallas.1} parent=0 // pred_region
    _
  $region29: #{lstm_fc_pallas.1} parent=0 // pred_fallthru
    _
  // Predicated region
  $region30: #{lstm_fc_pallas.1} parent=0 // pred_check
    _
  $region31: #{lstm_fc_pallas.1} parent=0 // pred_check_branch
    %34 = sbr.rel (0) target = $region33
  $region32: #{lstm_fc_pallas.1} parent=0 // pred_region
    _
  $region33: #{lstm_fc_pallas.1} parent=0 // pred_fallthru
    _
  // Predicated region
  $region34: #{lstm_fc_pallas.1} parent=0 // pred_check
    _
  $region35: #{lstm_fc_pallas.1} parent=0 // pred_check_branch
    %36 = sbr.rel (0) target = $region37
  $region36: #{lstm_fc_pallas.1} parent=0 // pred_region
    _
  $region37: #{lstm_fc_pallas.1} parent=0 // pred_fallthru
    _
  // Predicated region
  $region38: #{lstm_fc_pallas.1} parent=0 // pred_check
    _
  $region39: #{lstm_fc_pallas.1} parent=0 // pred_check_branch
    %38 = sbr.rel (0) target = $region41
  $region40: #{lstm_fc_pallas.1} parent=0 // pred_region
    _
  $region41: #{lstm_fc_pallas.1} parent=0 // pred_fallthru
    _
  // Predicated region
  $region42: #{lstm_fc_pallas.1} parent=0 // pred_check
    _
  $region43: #{lstm_fc_pallas.1} parent=0 // pred_check_branch
    %40 = sbr.rel (0) target = $region45
  $region44: #{lstm_fc_pallas.1} parent=0 // pred_region
    _
  $region45: #{lstm_fc_pallas.1} parent=0 // pred_fallthru
    _
  // Predicated region
  $region46: #{lstm_fc_pallas.1} parent=0 // pred_check
    _
  $region47: #{lstm_fc_pallas.1} parent=0 // pred_check_branch
    %42 = sbr.rel (0) target = $region49
  $region48: #{lstm_fc_pallas.1} parent=0 // pred_region
    _
  $region49: #{lstm_fc_pallas.1} parent=0 // pred_fallthru
    _
  %v44 = vld [vmem:[%s0] sm:$0xff]
  %v45 = vld [vmem:[%s1] sm:$0xff]
  %v46 = vld [vmem:[%s1 + $0x8] sm:$0xff]
  %v47 = vld [vmem:[%s1 + $0x10] sm:$0xff]
  %v48 = vld [vmem:[%s1 + $0x18] sm:$0xff]
  %v49 = vld [vmem:[%s3] sm:$0xf]
  %v51 = vlaneseq
  %v52 = vshrl.u32 %v51, 7
  %v53 = vsub.s32 0, %v52
  %v54 = vrot.slane %v49, %v53
  %v55 = vlaneseq
  %v56 = vshrl.u32 %v55, 7
  %v57 = vsub.s32 1, %v56
  %v58 = vrot.slane %v49, %v57
  %v59 = vlaneseq
  %v60 = vshrl.u32 %v59, 7
  %v61 = vsub.s32 2, %v60
  %v62 = vrot.slane %v49, %v61
  %v63 = vlaneseq
  %v64 = vshrl.u32 %v63, 7
  %v65 = vsub.s32 3, %v64
  %v66 = vrot.slane %v49, %v65
  %vm71 = vcmask 64512
  %v73 = vsel %vm71, %v44, 0
  %75 = vmatprep.subr.mxu0 %v46
  %76 = vmatpush1.msra.mxu0 %v45
  %77 = vmatprep.subr.mxu0 0.0
  %78 = vmatpush1.msra.mxu0 0.0
  %79 = vmatprep.subr.mxu0 0.0
  %80 = vmatpush1.msra.mxu0 0.0
  %81 = vmatprep.subr.mxu0 0.0
  %82 = vmatpush1.msra.mxu0 0.0
  %83 = vmatprep.subr.mxu0 0.0
  %84 = vmatpush1.msra.mxu0 0.0
  %85 = vmatprep.subr.mxu0 0.0
  %86 = vmatpush1.msra.mxu0 0.0
  %87 = vmatprep.subr.mxu0 0.0
  %88 = vmatpush1.msra.mxu0 0.0
  %89 = vmatprep.subr.mxu0 0.0
  %90 = vmatpush1.msra.mxu0 0.0
  %91 = vmatprep.subr.mxu0 0.0
  %92 = vmatpush1.msra.mxu0 0.0
  %93 = vmatprep.subr.mxu0 0.0
  %94 = vmatpush1.msra.mxu0 0.0
  %95 = vmatprep.subr.mxu0 0.0
  %96 = vmatpush1.msra.mxu0 0.0
  %97 = vmatprep.subr.mxu0 0.0
  %98 = vmatpush1.msra.mxu0 0.0
  %99 = vmatprep.subr.mxu0 0.0
  %100 = vmatpush1.msra.mxu0 0.0
  %101 = vmatprep.subr.mxu0 0.0
  %102 = vmatpush1.msra.mxu0 0.0
  %103 = vmatprep.subr.mxu0 0.0
  %104 = vmatpush1.msra.mxu0 0.0
  %105 = vmatprep.subr.mxu0 0.0
  %106 = vmatpush1.msra.mxu0 0.0
  %107 = vmatprep.subr.mxu0 0.0
  %108 = vmatpush1.msra.mxu0 0.0
  %109 = vmatprep.subr.mxu0 0.0
  %110 = vmatpush1.msra.mxu0 0.0
  %111 = vmatprep.subr.mxu0 0.0
  %112 = vmatpush1.msra.mxu0 0.0
  %113 = vmatprep.subr.mxu0 0.0
  %114 = vmatpush1.msra.mxu0 0.0
  %115 = vmatprep.subr.mxu0 0.0
  %116 = vmatpush1.msra.mxu0 0.0
  %117 = vmatprep.subr.mxu0 0.0
  %118 = vmatpush1.msra.mxu0 0.0
  %119 = vmatprep.subr.mxu0 0.0
  %120 = vmatpush1.msra.mxu0 0.0
  %121 = vmatprep.subr.mxu0 0.0
  %122 = vmatpush1.msra.mxu0 0.0
  %123 = vmatprep.subr.mxu0 0.0
  %124 = vmatpush1.msra.mxu0 0.0
  %125 = vmatprep.subr.mxu0 0.0
  %126 = vmatpush1.msra.mxu0 0.0
  %127 = vmatprep.subr.mxu0 0.0
  %128 = vmatpush1.msra.mxu0 0.0
  %129 = vmatprep.subr.mxu0 0.0
  %130 = vmatpush1.msra.mxu0 0.0
  %131 = vmatprep.subr.mxu0 0.0
  %132 = vmatpush1.msra.mxu0 0.0
  %133 = vmatprep.subr.mxu0 0.0
  %134 = vmatpush1.msra.mxu0 0.0
  %135 = vmatprep.subr.mxu0 0.0
  %136 = vmatpush1.msra.mxu0 0.0
  %137 = vmatprep.subr.mxu0 0.0
  %138 = vmatpush1.msra.mxu0 0.0
  %139 = vmatprep.mubr.f32.mxu0 0.0
  %140 = vmatmul.mubr.f32.gmra.mrb[0].mxu0 %v73
  %v141 = vpop.f32.mrb[0].mxu0
  %v142 = vadd.f32 %v54, %v141
  %v143 = vpop.f32.mrb[0].mxu0
  %v144 = vadd.f32 %v58, %v143
  %145 = vdwg.mxu0
  %146 = vmatprep.subr.mxu0 %v48
  %147 = vmatpush1.msra.mxu0 %v47
  %148 = vmatprep.subr.mxu0 0.0
  %149 = vmatpush1.msra.mxu0 0.0
  %150 = vmatprep.subr.mxu0 0.0
  %151 = vmatpush1.msra.mxu0 0.0
  %152 = vmatprep.subr.mxu0 0.0
  %153 = vmatpush1.msra.mxu0 0.0
  %154 = vmatprep.subr.mxu0 0.0
  %155 = vmatpush1.msra.mxu0 0.0
  %156 = vmatprep.subr.mxu0 0.0
  %157 = vmatpush1.msra.mxu0 0.0
  %158 = vmatprep.subr.mxu0 0.0
  %159 = vmatpush1.msra.mxu0 0.0
  %160 = vmatprep.subr.mxu0 0.0
  %161 = vmatpush1.msra.mxu0 0.0
  %162 = vmatprep.subr.mxu0 0.0
  %163 = vmatpush1.msra.mxu0 0.0
  %164 = vmatprep.subr.mxu0 0.0
  %165 = vmatpush1.msra.mxu0 0.0
  %166 = vmatprep.subr.mxu0 0.0
  %167 = vmatpush1.msra.mxu0 0.0
  %168 = vmatprep.subr.mxu0 0.0
  %169 = vmatpush1.msra.mxu0 0.0
  %170 = vmatprep.subr.mxu0 0.0
  %171 = vmatpush1.msra.mxu0 0.0
  %172 = vmatprep.subr.mxu0 0.0
  %173 = vmatpush1.msra.mxu0 0.0
  %174 = vmatprep.subr.mxu0 0.0
  %175 = vmatpush1.msra.mxu0 0.0
  %176 = vmatprep.subr.mxu0 0.0
  %177 = vmatpush1.msra.mxu0 0.0
  %178 = vmatprep.subr.mxu0 0.0
  %179 = vmatpush1.msra.mxu0 0.0
  %180 = vmatprep.subr.mxu0 0.0
  %181 = vmatpush1.msra.mxu0 0.0
  %182 = vmatprep.subr.mxu0 0.0
  %183 = vmatpush1.msra.mxu0 0.0
  %184 = vmatprep.subr.mxu0 0.0
  %185 = vmatpush1.msra.mxu0 0.0
  %186 = vmatprep.subr.mxu0 0.0
  %187 = vmatpush1.msra.mxu0 0.0
  %188 = vmatprep.subr.mxu0 0.0
  %189 = vmatpush1.msra.mxu0 0.0
  %190 = vmatprep.subr.mxu0 0.0
  %191 = vmatpush1.msra.mxu0 0.0
  %192 = vmatprep.subr.mxu0 0.0
  %193 = vmatpush1.msra.mxu0 0.0
  %194 = vmatprep.subr.mxu0 0.0
  %195 = vmatpush1.msra.mxu0 0.0
  %196 = vmatprep.subr.mxu0 0.0
  %197 = vmatpush1.msra.mxu0 0.0
  %198 = vmatprep.subr.mxu0 0.0
  %199 = vmatpush1.msra.mxu0 0.0
  %200 = vmatprep.subr.mxu0 0.0
  %201 = vmatpush1.msra.mxu0 0.0
  %202 = vmatprep.subr.mxu0 0.0
  %203 = vmatpush1.msra.mxu0 0.0
  %204 = vmatprep.subr.mxu0 0.0
  %205 = vmatpush1.msra.mxu0 0.0
  %206 = vmatprep.subr.mxu0 0.0
  %207 = vmatpush1.msra.mxu0 0.0
  %208 = vmatprep.subr.mxu0 0.0
  %209 = vmatpush1.msra.mxu0 0.0
  %210 = vmatprep.mubr.f32.mxu0 0.0
  %211 = vmatmul.mubr.f32.gmra.mrb[0].mxu0 %v73
  %v212 = vpop.f32.mrb[0].mxu0
  %v213 = vadd.f32 %v62, %v212
  %v214 = vpop.f32.mrb[0].mxu0
  %v215 = vadd.f32 %v66, %v214
  %216 = vdwg.mxu0
  %217 = vst [vmem:[#allocation2] sm:$0xff] %v142
  %218 = vst [vmem:[#allocation2 + $0x8] sm:$0xff] %v144
  %219 = vst [vmem:[#allocation2 + $0x10] sm:$0xff] %v213
  %220 = vst [vmem:[#allocation2 + $0x18] sm:$0xff] %v215
  %v221 = vld [vmem:[#allocation2] ss:$8 sm:$0xf]
  %v222 = vld [vmem:[%s2] sm:$0xff]
  %v223 = vld [vmem:[%s2 + $0x8] sm:$0xff]
  %v224 = vld [vmem:[%s2 + $0x10] sm:$0xff]
  %v225 = vld [vmem:[%s2 + $0x18] sm:$0xff]
  %v226 = vld [vmem:[%s2 + $0x20] sm:$0xff]
  %v227 = vld [vmem:[%s2 + $0x28] sm:$0xff]
  %v228 = vld [vmem:[%s2 + $0x30] sm:$0xff]
  %v229 = vld [vmem:[%s2 + $0x38] sm:$0xff]
  %v230 = vld [vmem:[%s2 + $0x40] sm:$0xff]
  %v231 = vld [vmem:[%s2 + $0x48] sm:$0xff]
  %v232 = vld [vmem:[%s2 + $0x50] sm:$0xff]
  %v233 = vld [vmem:[%s2 + $0x58] sm:$0xff]
  %v234 = vld [vmem:[%s2 + $0x60] sm:$0xff]
  %v235 = vld [vmem:[%s2 + $0x68] sm:$0xff]
  %v236 = vld [vmem:[%s2 + $0x70] sm:$0xff]
  %v237 = vld [vmem:[%s2 + $0x78] sm:$0xff]
  %v238 = vld [vmem:[%s2 + $0x80] sm:$0xff]
  %v239 = vld [vmem:[%s2 + $0x88] sm:$0xff]
  %v240 = vld [vmem:[%s2 + $0x90] sm:$0xff]
  %v241 = vld [vmem:[%s2 + $0x98] sm:$0xff]
  %v242 = vld [vmem:[%s2 + $0xa0] sm:$0xff]
  %v243 = vld [vmem:[%s2 + $0xa8] sm:$0xff]
  %v244 = vld [vmem:[%s2 + $0xb0] sm:$0xff]
  %v245 = vld [vmem:[%s2 + $0xb8] sm:$0xff]
  %v246 = vld [vmem:[%s2 + $0xc0] sm:$0xff]
  %v247 = vld [vmem:[%s2 + $0xc8] sm:$0xff]
  %v248 = vld [vmem:[%s2 + $0xd0] sm:$0xff]
  %v249 = vld [vmem:[%s2 + $0xd8] sm:$0xff]
  %v250 = vld [vmem:[%s2 + $0xe0] sm:$0xff]
  %v251 = vld [vmem:[%s2 + $0xe8] sm:$0xff]
  %v252 = vld [vmem:[%s2 + $0xf0] sm:$0xff]
  %v253 = vld [vmem:[%s2 + $0xf8] sm:$0xff]
  %v286 = vunpack.c.l.b16 %v222
  %v287 = vunpack.c.h.b16 %v222
  %v288 = vunpack.c.l.b16 %v223
  %v289 = vunpack.c.h.b16 %v223
  %v290 = vunpack.c.l.b16 %v224
  %v291 = vunpack.c.h.b16 %v224
  %v292 = vunpack.c.l.b16 %v225
  %v293 = vunpack.c.h.b16 %v225
  %v294 = vunpack.c.l.b16 %v226
  %v295 = vunpack.c.h.b16 %v226
  %v296 = vunpack.c.l.b16 %v227
  %v297 = vunpack.c.h.b16 %v227
  %v298 = vunpack.c.l.b16 %v228
  %v299 = vunpack.c.h.b16 %v228
  %v300 = vunpack.c.l.b16 %v229
  %v301 = vunpack.c.h.b16 %v229
  %v302 = vunpack.c.l.b16 %v230
  %v303 = vunpack.c.h.b16 %v230
  %v304 = vunpack.c.l.b16 %v231
  %v305 = vunpack.c.h.b16 %v231
  %v306 = vunpack.c.l.b16 %v232
  %v307 = vunpack.c.h.b16 %v232
  %v308 = vunpack.c.l.b16 %v233
  %v309 = vunpack.c.h.b16 %v233
  %v310 = vunpack.c.l.b16 %v234
  %v311 = vunpack.c.h.b16 %v234
  %v312 = vunpack.c.l.b16 %v235
  %v313 = vunpack.c.h.b16 %v235
  %v314 = vunpack.c.l.b16 %v236
  %v315 = vunpack.c.h.b16 %v236
  %v316 = vunpack.c.l.b16 %v237
  %v317 = vunpack.c.h.b16 %v237
  %v318 = vunpack.c.l.b16 %v238
  %v319 = vunpack.c.h.b16 %v238
  %v320 = vunpack.c.l.b16 %v239
  %v321 = vunpack.c.h.b16 %v239
  %v322 = vunpack.c.l.b16 %v240
  %v323 = vunpack.c.h.b16 %v240
  %v324 = vunpack.c.l.b16 %v241
  %v325 = vunpack.c.h.b16 %v241
  %v326 = vunpack.c.l.b16 %v242
  %v327 = vunpack.c.h.b16 %v242
  %v328 = vunpack.c.l.b16 %v243
  %v329 = vunpack.c.h.b16 %v243
  %v330 = vunpack.c.l.b16 %v244
  %v331 = vunpack.c.h.b16 %v244
  %v332 = vunpack.c.l.b16 %v245
  %v333 = vunpack.c.h.b16 %v245
  %v334 = vunpack.c.l.b16 %v246
  %v335 = vunpack.c.h.b16 %v246
  %v336 = vunpack.c.l.b16 %v247
  %v337 = vunpack.c.h.b16 %v247
  %v338 = vunpack.c.l.b16 %v248
  %v339 = vunpack.c.h.b16 %v248
  %v340 = vunpack.c.l.b16 %v249
  %v341 = vunpack.c.h.b16 %v249
  %v342 = vunpack.c.l.b16 %v250
  %v343 = vunpack.c.h.b16 %v250
  %v344 = vunpack.c.l.b16 %v251
  %v345 = vunpack.c.h.b16 %v251
  %v346 = vunpack.c.l.b16 %v252
  %v347 = vunpack.c.h.b16 %v252
  %v348 = vunpack.c.l.b16 %v253
  %v349 = vunpack.c.h.b16 %v253
  %v350 = vpack.c.b16 %v290, %v286
  %v351 = vpack.c.b16 %v291, %v287
  %v352 = vpack.c.b16 %v292, %v288
  %v353 = vpack.c.b16 %v293, %v289
  %v354 = vpack.c.b16 %v298, %v294
  %v355 = vpack.c.b16 %v299, %v295
  %v356 = vpack.c.b16 %v300, %v296
  %v357 = vpack.c.b16 %v301, %v297
  %v358 = vpack.c.b16 %v306, %v302
  %v359 = vpack.c.b16 %v307, %v303
  %v360 = vpack.c.b16 %v308, %v304
  %v361 = vpack.c.b16 %v309, %v305
  %v362 = vpack.c.b16 %v314, %v310
  %v363 = vpack.c.b16 %v315, %v311
  %v364 = vpack.c.b16 %v316, %v312
  %v365 = vpack.c.b16 %v317, %v313
  %v366 = vpack.c.b16 %v322, %v318
  %v367 = vpack.c.b16 %v323, %v319
  %v368 = vpack.c.b16 %v324, %v320
  %v369 = vpack.c.b16 %v325, %v321
  %v370 = vpack.c.b16 %v330, %v326
  %v371 = vpack.c.b16 %v331, %v327
  %v372 = vpack.c.b16 %v332, %v328
  %v373 = vpack.c.b16 %v333, %v329
  %v374 = vpack.c.b16 %v338, %v334
  %v375 = vpack.c.b16 %v339, %v335
  %v376 = vpack.c.b16 %v340, %v336
  %v377 = vpack.c.b16 %v341, %v337
  %v378 = vpack.c.b16 %v346, %v342
  %v379 = vpack.c.b16 %v347, %v343
  %v380 = vpack.c.b16 %v348, %v344
  %v381 = vpack.c.b16 %v349, %v345
  %414 = vmatprep.subr.bf16.mxu0 %v351
  %415 = vmatpush1.bf16.msra.mxu0 %v350
  %416 = vmatprep.subr.bf16.mxu0 %v355
  %417 = vmatpush1.bf16.msra.mxu0 %v354
  %418 = vmatprep.subr.bf16.mxu0 %v359
  %419 = vmatpush1.bf16.msra.mxu0 %v358
  %420 = vmatprep.subr.bf16.mxu0 %v363
  %421 = vmatpush1.bf16.msra.mxu0 %v362
  %422 = vmatprep.subr.bf16.mxu0 %v367
  %423 = vmatpush1.bf16.msra.mxu0 %v366
  %424 = vmatprep.subr.bf16.mxu0 %v371
  %425 = vmatpush1.bf16.msra.mxu0 %v370
  %426 = vmatprep.subr.bf16.mxu0 %v375
  %427 = vmatpush1.bf16.msra.mxu0 %v374
  %428 = vmatprep.subr.bf16.mxu0 %v379
  %429 = vmatpush1.bf16.msra.mxu0 %v378
  %430 = vmatprep.subr.bf16.mxu0 0
  %431 = vmatpush1.bf16.msra.mxu0 0
  %432 = vmatprep.subr.bf16.mxu0 0
  %433 = vmatpush1.bf16.msra.mxu0 0
  %434 = vmatprep.subr.bf16.mxu0 0
  %435 = vmatpush1.bf16.msra.mxu0 0
  %436 = vmatprep.subr.bf16.mxu0 0
  %437 = vmatpush1.bf16.msra.mxu0 0
  %438 = vmatprep.subr.bf16.mxu0 0
  %439 = vmatpush1.bf16.msra.mxu0 0
  %440 = vmatprep.subr.bf16.mxu0 0
  %441 = vmatpush1.bf16.msra.mxu0 0
  %442 = vmatprep.subr.bf16.mxu0 0
  %443 = vmatpush1.bf16.msra.mxu0 0
  %444 = vmatprep.subr.bf16.mxu0 0
  %445 = vmatpush1.bf16.msra.mxu0 0
  %446 = vmatprep.mubr.bf16.mxu0 0
  %447 = vmatmul.mubr.bf16.gmra.mrb[0].mxu0 0
  %v448 = vpop.f32.mrb[0].mxu0
  %v449 = vadd.f32 0.0, %v448
  %v450 = vpop.f32.mrb[0].mxu0
  %v451 = vadd.f32 0.0, %v450
  %v452 = vpop.f32.mrb[0].mxu0
  %v453 = vpop.f32.mrb[0].mxu0
  %454 = vdwg.mxu0
  %455 = vmatprep.subr.bf16.mxu0 %v353
  %456 = vmatpush1.bf16.msra.mxu0 %v352
  %457 = vmatprep.subr.bf16.mxu0 %v357
  %458 = vmatpush1.bf16.msra.mxu0 %v356
  %459 = vmatprep.subr.bf16.mxu0 %v361
  %460 = vmatpush1.bf16.msra.mxu0 %v360
  %461 = vmatprep.subr.bf16.mxu0 %v365
  %462 = vmatpush1.bf16.msra.mxu0 %v364
  %463 = vmatprep.subr.bf16.mxu0 %v369
  %464 = vmatpush1.bf16.msra.mxu0 %v368
  %465 = vmatprep.subr.bf16.mxu0 %v373
  %466 = vmatpush1.bf16.msra.mxu0 %v372
  %467 = vmatprep.subr.bf16.mxu0 %v377
  %468 = vmatpush1.bf16.msra.mxu0 %v376
  %469 = vmatprep.subr.bf16.mxu0 %v381
  %470 = vmatpush1.bf16.msra.mxu0 %v380
  %471 = vmatprep.subr.bf16.mxu0 0
  %472 = vmatpush1.bf16.msra.mxu0 0
  %473 = vmatprep.subr.bf16.mxu0 0
  %474 = vmatpush1.bf16.msra.mxu0 0
  %475 = vmatprep.subr.bf16.mxu0 0
  %476 = vmatpush1.bf16.msra.mxu0 0
  %477 = vmatprep.subr.bf16.mxu0 0
  %478 = vmatpush1.bf16.msra.mxu0 0
  %479 = vmatprep.subr.bf16.mxu0 0
  %480 = vmatpush1.bf16.msra.mxu0 0
  %481 = vmatprep.subr.bf16.mxu0 0
  %482 = vmatpush1.bf16.msra.mxu0 0
  %483 = vmatprep.subr.bf16.mxu0 0
  %484 = vmatpush1.bf16.msra.mxu0 0
  %485 = vmatprep.subr.bf16.mxu0 0
  %486 = vmatpush1.bf16.msra.mxu0 0
  %487 = vmatprep.mubr.bf16.mxu0 0
  %488 = vmatmul.mubr.bf16.gmra.mrb[0].mxu0 0
  %v489 = vpop.f32.mrb[0].mxu0
  %v490 = vadd.f32 0.0, %v489
  %v491 = vpop.f32.mrb[0].mxu0
  %v492 = vadd.f32 0.0, %v491
  %v493 = vpop.f32.mrb[0].mxu0
  %v494 = vpop.f32.mrb[0].mxu0
  %495 = vdwg.mxu0
  %v500 = vcombine.low %v449, %v451
  %v501 = vcombine.low %v490, %v492
  %v503 = vunpack.c.l.s4 1966171168
  %v504 = vunpack.c.0.s8 %v503
  %v505 = vlaneseq
  %v506 = vshrl.u32 %v505, 7
  %v507 = vsub.s32 %v504, %v506
  %v508 = vrot.slane %v500, %v507
  %v510 = vunpack.c.l.s4 1966171168
  %v511 = vunpack.c.0.s8 %v510
  %v512 = vlaneseq
  %v513 = vshrl.u32 %v512, 7
  %v514 = vsub.s32 %v511, %v513
  %v515 = vrot.slane %v501, %v514
  %v516 = vcombine.low %v508, %v515
  %v518 = vunpack.c.l.s4 1966171168
  %v519 = vunpack.c.0.s8 %v518
  %v520 = vlaneseq
  %v521 = vshrl.u32 %v520, 7
  %v522 = vsub.s32 %v519, %v521
  %v523 = vrot.slane %v516, %v522
  %v525 = vadd.f32 %v221, %v523
  %v526 = vxor.u32 %v525, 2147483648
  %v527 = vmul.f32 %v526, 1.442695
  %v528 = vpow.pop %v527
  %v529 = vadd.f32 %v528, 1.0
  %v530 = vrcp.pop %v529
  %v531 = vmul.f32 1.0, %v530
  %v533 = vrot.slane %v525, 3
  %v535 = vtanh.pop %v533
  %v537 = vrot.slane %v531, 1
  %v539 = vmul.f32 %v537, 0.0
  %v540 = vmul.f32 %v531, %v535
  %v541 = vadd.f32 %v539, %v540
  %v542 = vtanh.pop %v541
  %v543 = vrot.slane %v531, 2
  %v545 = vmul.f32 %v543, %v542
  %546 = vst [vmem:[#allocation3] sm:$0x1] %v545
  %s547 = scalar_lea.vmem [#allocation2], 1
  %v548 = vld [vmem:[%s547] ss:$8 sm:$0xf]
  %v549 = vpack.c.bf16 %v545, %v545
  %v550 = vld [vmem:[%s2] sm:$0xff]
  %v551 = vld [vmem:[%s2 + $0x8] sm:$0xff]
  %v552 = vld [vmem:[%s2 + $0x10] sm:$0xff]
  %v553 = vld [vmem:[%s2 + $0x18] sm:$0xff]
  %v554 = vld [vmem:[%s2 + $0x20] sm:$0xff]
  %v555 = vld [vmem:[%s2 + $0x28] sm:$0xff]
  %v556 = vld [vmem:[%s2 + $0x30] sm:$0xff]
  %v557 = vld [vmem:[%s2 + $0x38] sm:$0xff]
  %v558 = vld [vmem:[%s2 + $0x40] sm:$0xff]
  %v559 = vld [vmem:[%s2 + $0x48] sm:$0xff]
  %v560 = vld [vmem:[%s2 + $0x50] sm:$0xff]
  %v561 = vld [vmem:[%s2 + $0x58] sm:$0xff]
  %v562 = vld [vmem:[%s2 + $0x60] sm:$0xff]
  %v563 = vld [vmem:[%s2 + $0x68] sm:$0xff]
  %v564 = vld [vmem:[%s2 + $0x70] sm:$0xff]
  %v565 = vld [vmem:[%s2 + $0x78] sm:$0xff]
  %v566 = vld [vmem:[%s2 + $0x80] sm:$0xff]
  %v567 = vld [vmem:[%s2 + $0x88] sm:$0xff]
  %v568 = vld [vmem:[%s2 + $0x90] sm:$0xff]
  %v569 = vld [vmem:[%s2 + $0x98] sm:$0xff]
  %v570 = vld [vmem:[%s2 + $0xa0] sm:$0xff]
  %v571 = vld [vmem:[%s2 + $0xa8] sm:$0xff]
  %v572 = vld [vmem:[%s2 + $0xb0] sm:$0xff]
  %v573 = vld [vmem:[%s2 + $0xb8] sm:$0xff]
  %v574 = vld [vmem:[%s2 + $0xc0] sm:$0xff]
  %v575 = vld [vmem:[%s2 + $0xc8] sm:$0xff]
  %v576 = vld [vmem:[%s2 + $0xd0] sm:$0xff]
  %v577 = vld [vmem:[%s2 + $0xd8] sm:$0xff]
  %v578 = vld [vmem:[%s2 + $0xe0] sm:$0xff]
  %v579 = vld [vmem:[%s2 + $0xe8] sm:$0xff]
  %v580 = vld [vmem:[%s2 + $0xf0] sm:$0xff]
  %v581 = vld [vmem:[%s2 + $0xf8] sm:$0xff]
  %v614 = vunpack.c.l.b16 %v550
  %v615 = vunpack.c.h.b16 %v550
  %v616 = vunpack.c.l.b16 %v551
  %v617 = vunpack.c.h.b16 %v551
  %v618 = vunpack.c.l.b16 %v552
  %v619 = vunpack.c.h.b16 %v552
  %v620 = vunpack.c.l.b16 %v553
  %v621 = vunpack.c.h.b16 %v553
  %v622 = vunpack.c.l.b16 %v554
  %v623 = vunpack.c.h.b16 %v554
  %v624 = vunpack.c.l.b16 %v555
  %v625 = vunpack.c.h.b16 %v555
  %v626 = vunpack.c.l.b16 %v556
  %v627 = vunpack.c.h.b16 %v556
  %v628 = vunpack.c.l.b16 %v557
  %v629 = vunpack.c.h.b16 %v557
  %v630 = vunpack.c.l.b16 %v558
  %v631 = vunpack.c.h.b16 %v558
  %v632 = vunpack.c.l.b16 %v559
  %v633 = vunpack.c.h.b16 %v559
  %v634 = vunpack.c.l.b16 %v560
  %v635 = vunpack.c.h.b16 %v560
  %v636 = vunpack.c.l.b16 %v561
  %v637 = vunpack.c.h.b16 %v561
  %v638 = vunpack.c.l.b16 %v562
  %v639 = vunpack.c.h.b16 %v562
  %v640 = vunpack.c.l.b16 %v563
  %v641 = vunpack.c.h.b16 %v563
  %v642 = vunpack.c.l.b16 %v564
  %v643 = vunpack.c.h.b16 %v564
  %v644 = vunpack.c.l.b16 %v565
  %v645 = vunpack.c.h.b16 %v565
  %v646 = vunpack.c.l.b16 %v566
  %v647 = vunpack.c.h.b16 %v566
  %v648 = vunpack.c.l.b16 %v567
  %v649 = vunpack.c.h.b16 %v567
  %v650 = vunpack.c.l.b16 %v568
  %v651 = vunpack.c.h.b16 %v568
  %v652 = vunpack.c.l.b16 %v569
  %v653 = vunpack.c.h.b16 %v569
  %v654 = vunpack.c.l.b16 %v570
  %v655 = vunpack.c.h.b16 %v570
  %v656 = vunpack.c.l.b16 %v571
  %v657 = vunpack.c.h.b16 %v571
  %v658 = vunpack.c.l.b16 %v572
  %v659 = vunpack.c.h.b16 %v572
  %v660 = vunpack.c.l.b16 %v573
  %v661 = vunpack.c.h.b16 %v573
  %v662 = vunpack.c.l.b16 %v574
  %v663 = vunpack.c.h.b16 %v574
  %v664 = vunpack.c.l.b16 %v575
  %v665 = vunpack.c.h.b16 %v575
  %v666 = vunpack.c.l.b16 %v576
  %v667 = vunpack.c.h.b16 %v576
  %v668 = vunpack.c.l.b16 %v577
  %v669 = vunpack.c.h.b16 %v577
  %v670 = vunpack.c.l.b16 %v578
  %v671 = vunpack.c.h.b16 %v578
  %v672 = vunpack.c.l.b16 %v579
  %v673 = vunpack.c.h.b16 %v579
  %v674 = vunpack.c.l.b16 %v580
  %v675 = vunpack.c.h.b16 %v580
  %v676 = vunpack.c.l.b16 %v581
  %v677 = vunpack.c.h.b16 %v581
  %v678 = vpack.c.b16 %v618, %v614
  %v679 = vpack.c.b16 %v619, %v615
  %v680 = vpack.c.b16 %v620, %v616
  %v681 = vpack.c.b16 %v621, %v617
  %v682 = vpack.c.b16 %v626, %v622
  %v683 = vpack.c.b16 %v627, %v623
  %v684 = vpack.c.b16 %v628, %v624
  %v685 = vpack.c.b16 %v629, %v625
  %v686 = vpack.c.b16 %v634, %v630
  %v687 = vpack.c.b16 %v635, %v631
  %v688 = vpack.c.b16 %v636, %v632
  %v689 = vpack.c.b16 %v637, %v633
  %v690 = vpack.c.b16 %v642, %v638
  %v691 = vpack.c.b16 %v643, %v639
  %v692 = vpack.c.b16 %v644, %v640
  %v693 = vpack.c.b16 %v645, %v641
  %v694 = vpack.c.b16 %v650, %v646
  %v695 = vpack.c.b16 %v651, %v647
  %v696 = vpack.c.b16 %v652, %v648
  %v697 = vpack.c.b16 %v653, %v649
  %v698 = vpack.c.b16 %v658, %v654
  %v699 = vpack.c.b16 %v659, %v655
  %v700 = vpack.c.b16 %v660, %v656
  %v701 = vpack.c.b16 %v661, %v657
  %v702 = vpack.c.b16 %v666, %v662
  %v703 = vpack.c.b16 %v667, %v663
  %v704 = vpack.c.b16 %v668, %v664
  %v705 = vpack.c.b16 %v669, %v665
  %v706 = vpack.c.b16 %v674, %v670
  %v707 = vpack.c.b16 %v675, %v671
  %v708 = vpack.c.b16 %v676, %v672
  %v709 = vpack.c.b16 %v677, %v673
  %742 = vmatprep.subr.bf16.mxu0 %v679
  %743 = vmatpush1.bf16.msra.mxu0 %v678
  %744 = vmatprep.subr.bf16.mxu0 %v683
  %745 = vmatpush1.bf16.msra.mxu0 %v682
  %746 = vmatprep.subr.bf16.mxu0 %v687
  %747 = vmatpush1.bf16.msra.mxu0 %v686
  %748 = vmatprep.subr.bf16.mxu0 %v691
  %749 = vmatpush1.bf16.msra.mxu0 %v690
  %750 = vmatprep.subr.bf16.mxu0 %v695
  %751 = vmatpush1.bf16.msra.mxu0 %v694
  %752 = vmatprep.subr.bf16.mxu0 %v699
  %753 = vmatpush1.bf16.msra.mxu0 %v698
  %754 = vmatprep.subr.bf16.mxu0 %v703
  %755 = vmatpush1.bf16.msra.mxu0 %v702
  %756 = vmatprep.subr.bf16.mxu0 %v707
  %757 = vmatpush1.bf16.msra.mxu0 %v706
  %758 = vmatprep.subr.bf16.mxu0 0
  %759 = vmatpush1.bf16.msra.mxu0 0
  %760 = vmatprep.subr.bf16.mxu0 0
  %761 = vmatpush1.bf16.msra.mxu0 0
  %762 = vmatprep.subr.bf16.mxu0 0
  %763 = vmatpush1.bf16.msra.mxu0 0
  %764 = vmatprep.subr.bf16.mxu0 0
  %765 = vmatpush1.bf16.msra.mxu0 0
  %766 = vmatprep.subr.bf16.mxu0 0
  %767 = vmatpush1.bf16.msra.mxu0 0
  %768 = vmatprep.subr.bf16.mxu0 0
  %769 = vmatpush1.bf16.msra.mxu0 0
  %770 = vmatprep.subr.bf16.mxu0 0
  %771 = vmatpush1.bf16.msra.mxu0 0
  %772 = vmatprep.subr.bf16.mxu0 0
  %773 = vmatpush1.bf16.msra.mxu0 0
  %774 = vmatprep.mubr.bf16.mxu0 0
  %775 = vmatmul.mubr.bf16.gmra.mrb[0].mxu0 %v549
  %v776 = vpop.f32.mrb[0].mxu0
  %v777 = vadd.f32 0.0, %v776
  %v778 = vpop.f32.mrb[0].mxu0
  %v779 = vadd.f32 0.0, %v778
  %v780 = vpop.f32.mrb[0].mxu0
  %v781 = vpop.f32.mrb[0].mxu0
  %782 = vdwg.mxu0
  %783 = vmatprep.subr.bf16.mxu0 %v681
  %784 = vmatpush1.bf16.msra.mxu0 %v680
  %785 = vmatprep.subr.bf16.mxu0 %v685
  %786 = vmatpush1.bf16.msra.mxu0 %v684
  %787 = vmatprep.subr.bf16.mxu0 %v689
  %788 = vmatpush1.bf16.msra.mxu0 %v688
  %789 = vmatprep.subr.bf16.mxu0 %v693
  %790 = vmatpush1.bf16.msra.mxu0 %v692
  %791 = vmatprep.subr.bf16.mxu0 %v697
  %792 = vmatpush1.bf16.msra.mxu0 %v696
  %793 = vmatprep.subr.bf16.mxu0 %v701
  %794 = vmatpush1.bf16.msra.mxu0 %v700
  %795 = vmatprep.subr.bf16.mxu0 %v705
  %796 = vmatpush1.bf16.msra.mxu0 %v704
  %797 = vmatprep.subr.bf16.mxu0 %v709
  %798 = vmatpush1.bf16.msra.mxu0 %v708
  %799 = vmatprep.subr.bf16.mxu0 0
  %800 = vmatpush1.bf16.msra.mxu0 0
  %801 = vmatprep.subr.bf16.mxu0 0
  %802 = vmatpush1.bf16.msra.mxu0 0
  %803 = vmatprep.subr.bf16.mxu0 0
  %804 = vmatpush1.bf16.msra.mxu0 0
  %805 = vmatprep.subr.bf16.mxu0 0
  %806 = vmatpush1.bf16.msra.mxu0 0
  %807 = vmatprep.subr.bf16.mxu0 0
  %808 = vmatpush1.bf16.msra.mxu0 0
  %809 = vmatprep.subr.bf16.mxu0 0
  %810 = vmatpush1.bf16.msra.mxu0 0
  %811 = vmatprep.subr.bf16.mxu0 0
  %812 = vmatpush1.bf16.msra.mxu0 0
  %813 = vmatprep.subr.bf16.mxu0 0
  %814 = vmatpush1.bf16.msra.mxu0 0
  %815 = vmatprep.mubr.bf16.mxu0 0
  %816 = vmatmul.mubr.bf16.gmra.mrb[0].mxu0 %v549
  %v817 = vpop.f32.mrb[0].mxu0
  %v818 = vadd.f32 0.0, %v817
  %v819 = vpop.f32.mrb[0].mxu0
  %v820 = vadd.f32 0.0, %v819
  %v821 = vpop.f32.mrb[0].mxu0
  %v822 = vpop.f32.mrb[0].mxu0
  %823 = vdwg.mxu0
  %v828 = vcombine.low %v777, %v779
  %v829 = vcombine.low %v818, %v820
  %v831 = vunpack.c.l.s4 1966171168
  %v832 = vunpack.c.0.s8 %v831
  %v833 = vlaneseq
  %v834 = vshrl.u32 %v833, 7
  %v835 = vsub.s32 %v832, %v834
  %v836 = vrot.slane %v828, %v835
  %v838 = vunpack.c.l.s4 1966171168
  %v839 = vunpack.c.0.s8 %v838
  %v840 = vlaneseq
  %v841 = vshrl.u32 %v840, 7
  %v842 = vsub.s32 %v839, %v841
  %v843 = vrot.slane %v829, %v842
  %v844 = vcombine.low %v836, %v843
  %v846 = vunpack.c.l.s4 1966171168
  %v847 = vunpack.c.0.s8 %v846
  %v848 = vlaneseq
  %v849 = vshrl.u32 %v848, 7
  %v850 = vsub.s32 %v847, %v849
  %v851 = vrot.slane %v844, %v850
  %v853 = vadd.f32 %v548, %v851
  %v854 = vxor.u32 %v853, 2147483648
  %v855 = vmul.f32 %v854, 1.442695
  %v856 = vpow.pop %v855
  %v857 = vadd.f32 %v856, 1.0
  %v858 = vrcp.pop %v857
  %v859 = vmul.f32 1.0, %v858
  %v861 = vrot.slane %v853, 3
  %v863 = vtanh.pop %v861
  %v865 = vrot.slane %v859, 1
  %v867 = vmul.f32 %v865, %v541
  %v868 = vmul.f32 %v859, %v863
  %v869 = vadd.f32 %v867, %v868
  %v870 = vtanh.pop %v869
  %v871 = vrot.slane %v859, 2
  %v873 = vmul.f32 %v871, %v870
  %874 = vst [vmem:[#allocation3 + $0x1] sm:$0x1] %v873
  %s875 = scalar_lea.vmem [#allocation2], 2
  %v876 = vld [vmem:[%s875] ss:$8 sm:$0xf]
  %v877 = vpack.c.bf16 %v873, %v873
  %v878 = vld [vmem:[%s2] sm:$0xff]
  %v879 = vld [vmem:[%s2 + $0x8] sm:$0xff]
  %v880 = vld [vmem:[%s2 + $0x10] sm:$0xff]
  %v881 = vld [vmem:[%s2 + $0x18] sm:$0xff]
  %v882 = vld [vmem:[%s2 + $0x20] sm:$0xff]
  %v883 = vld [vmem:[%s2 + $0x28] sm:$0xff]
  %v884 = vld [vmem:[%s2 + $0x30] sm:$0xff]
  %v885 = vld [vmem:[%s2 + $0x38] sm:$0xff]
  %v886 = vld [vmem:[%s2 + $0x40] sm:$0xff]
  %v887 = vld [vmem:[%s2 + $0x48] sm:$0xff]
  %v888 = vld [vmem:[%s2 + $0x50] sm:$0xff]
  %v889 = vld [vmem:[%s2 + $0x58] sm:$0xff]
  %v890 = vld [vmem:[%s2 + $0x60] sm:$0xff]
  %v891 = vld [vmem:[%s2 + $0x68] sm:$0xff]
  %v892 = vld [vmem:[%s2 + $0x70] sm:$0xff]
  %v893 = vld [vmem:[%s2 + $0x78] sm:$0xff]
  %v894 = vld [vmem:[%s2 + $0x80] sm:$0xff]
  %v895 = vld [vmem:[%s2 + $0x88] sm:$0xff]
  %v896 = vld [vmem:[%s2 + $0x90] sm:$0xff]
  %v897 = vld [vmem:[%s2 + $0x98] sm:$0xff]
  %v898 = vld [vmem:[%s2 + $0xa0] sm:$0xff]
  %v899 = vld [vmem:[%s2 + $0xa8] sm:$0xff]
  %v900 = vld [vmem:[%s2 + $0xb0] sm:$0xff]
  %v901 = vld [vmem:[%s2 + $0xb8] sm:$0xff]
  %v902 = vld [vmem:[%s2 + $0xc0] sm:$0xff]
  %v903 = vld [vmem:[%s2 + $0xc8] sm:$0xff]
  %v904 = vld [vmem:[%s2 + $0xd0] sm:$0xff]
  %v905 = vld [vmem:[%s2 + $0xd8] sm:$0xff]
  %v906 = vld [vmem:[%s2 + $0xe0] sm:$0xff]
  %v907 = vld [vmem:[%s2 + $0xe8] sm:$0xff]
  %v908 = vld [vmem:[%s2 + $0xf0] sm:$0xff]
  %v909 = vld [vmem:[%s2 + $0xf8] sm:$0xff]
  %v942 = vunpack.c.l.b16 %v878
  %v943 = vunpack.c.h.b16 %v878
  %v944 = vunpack.c.l.b16 %v879
  %v945 = vunpack.c.h.b16 %v879
  %v946 = vunpack.c.l.b16 %v880
  %v947 = vunpack.c.h.b16 %v880
  %v948 = vunpack.c.l.b16 %v881
  %v949 = vunpack.c.h.b16 %v881
  %v950 = vunpack.c.l.b16 %v882
  %v951 = vunpack.c.h.b16 %v882
  %v952 = vunpack.c.l.b16 %v883
  %v953 = vunpack.c.h.b16 %v883
  %v954 = vunpack.c.l.b16 %v884
  %v955 = vunpack.c.h.b16 %v884
  %v956 = vunpack.c.l.b16 %v885
  %v957 = vunpack.c.h.b16 %v885
  %v958 = vunpack.c.l.b16 %v886
  %v959 = vunpack.c.h.b16 %v886
  %v960 = vunpack.c.l.b16 %v887
  %v961 = vunpack.c.h.b16 %v887
  %v962 = vunpack.c.l.b16 %v888
  %v963 = vunpack.c.h.b16 %v888
  %v964 = vunpack.c.l.b16 %v889
  %v965 = vunpack.c.h.b16 %v889
  %v966 = vunpack.c.l.b16 %v890
  %v967 = vunpack.c.h.b16 %v890
  %v968 = vunpack.c.l.b16 %v891
  %v969 = vunpack.c.h.b16 %v891
  %v970 = vunpack.c.l.b16 %v892
  %v971 = vunpack.c.h.b16 %v892
  %v972 = vunpack.c.l.b16 %v893
  %v973 = vunpack.c.h.b16 %v893
  %v974 = vunpack.c.l.b16 %v894
  %v975 = vunpack.c.h.b16 %v894
  %v976 = vunpack.c.l.b16 %v895
  %v977 = vunpack.c.h.b16 %v895
  %v978 = vunpack.c.l.b16 %v896
  %v979 = vunpack.c.h.b16 %v896
  %v980 = vunpack.c.l.b16 %v897
  %v981 = vunpack.c.h.b16 %v897
  %v982 = vunpack.c.l.b16 %v898
  %v983 = vunpack.c.h.b16 %v898
  %v984 = vunpack.c.l.b16 %v899
  %v985 = vunpack.c.h.b16 %v899
  %v986 = vunpack.c.l.b16 %v900
  %v987 = vunpack.c.h.b16 %v900
  %v988 = vunpack.c.l.b16 %v901
  %v989 = vunpack.c.h.b16 %v901
  %v990 = vunpack.c.l.b16 %v902
  %v991 = vunpack.c.h.b16 %v902
  %v992 = vunpack.c.l.b16 %v903
  %v993 = vunpack.c.h.b16 %v903
  %v994 = vunpack.c.l.b16 %v904
  %v995 = vunpack.c.h.b16 %v904
  %v996 = vunpack.c.l.b16 %v905
  %v997 = vunpack.c.h.b16 %v905
  %v998 = vunpack.c.l.b16 %v906
  %v999 = vunpack.c.h.b16 %v906
  %v1000 = vunpack.c.l.b16 %v907
  %v1001 = vunpack.c.h.b16 %v907
  %v1002 = vunpack.c.l.b16 %v908
  %v1003 = vunpack.c.h.b16 %v908
  %v1004 = vunpack.c.l.b16 %v909
  %v1005 = vunpack.c.h.b16 %v909
  %v1006 = vpack.c.b16 %v946, %v942
  %v1007 = vpack.c.b16 %v947, %v943
  %v1008 = vpack.c.b16 %v948, %v944
  %v1009 = vpack.c.b16 %v949, %v945
  %v1010 = vpack.c.b16 %v954, %v950
  %v1011 = vpack.c.b16 %v955, %v951
  %v1012 = vpack.c.b16 %v956, %v952
  %v1013 = vpack.c.b16 %v957, %v953
  %v1014 = vpack.c.b16 %v962, %v958
  %v1015 = vpack.c.b16 %v963, %v959
  %v1016 = vpack.c.b16 %v964, %v960
  %v1017 = vpack.c.b16 %v965, %v961
  %v1018 = vpack.c.b16 %v970, %v966
  %v1019 = vpack.c.b16 %v971, %v967
  %v1020 = vpack.c.b16 %v972, %v968
  %v1021 = vpack.c.b16 %v973, %v969
  %v1022 = vpack.c.b16 %v978, %v974
  %v1023 = vpack.c.b16 %v979, %v975
  %v1024 = vpack.c.b16 %v980, %v976
  %v1025 = vpack.c.b16 %v981, %v977
  %v1026 = vpack.c.b16 %v986, %v982
  %v1027 = vpack.c.b16 %v987, %v983
  %v1028 = vpack.c.b16 %v988, %v984
  %v1029 = vpack.c.b16 %v989, %v985
  %v1030 = vpack.c.b16 %v994, %v990
  %v1031 = vpack.c.b16 %v995, %v991
  %v1032 = vpack.c.b16 %v996, %v992
  %v1033 = vpack.c.b16 %v997, %v993
  %v1034 = vpack.c.b16 %v1002, %v998
  %v1035 = vpack.c.b16 %v1003, %v999
  %v1036 = vpack.c.b16 %v1004, %v1000
  %v1037 = vpack.c.b16 %v1005, %v1001
  %1070 = vmatprep.subr.bf16.mxu0 %v1007
  %1071 = vmatpush1.bf16.msra.mxu0 %v1006
  %1072 = vmatprep.subr.bf16.mxu0 %v1011
  %1073 = vmatpush1.bf16.msra.mxu0 %v1010
  %1074 = vmatprep.subr.bf16.mxu0 %v1015
  %1075 = vmatpush1.bf16.msra.mxu0 %v1014
  %1076 = vmatprep.subr.bf16.mxu0 %v1019
  %1077 = vmatpush1.bf16.msra.mxu0 %v1018
  %1078 = vmatprep.subr.bf16.mxu0 %v1023
  %1079 = vmatpush1.bf16.msra.mxu0 %v1022
  %1080 = vmatprep.subr.bf16.mxu0 %v1027
  %1081 = vmatpush1.bf16.msra.mxu0 %v1026
  %1082 = vmatprep.subr.bf16.mxu0 %v1031
  %1083 = vmatpush1.bf16.msra.mxu0 %v1030
  %1084 = vmatprep.subr.bf16.mxu0 %v1035
  %1085 = vmatpush1.bf16.msra.mxu0 %v1034
  %1086 = vmatprep.subr.bf16.mxu0 0
  %1087 = vmatpush1.bf16.msra.mxu0 0
  %1088 = vmatprep.subr.bf16.mxu0 0
  %1089 = vmatpush1.bf16.msra.mxu0 0
  %1090 = vmatprep.subr.bf16.mxu0 0
  %1091 = vmatpush1.bf16.msra.mxu0 0
  %1092 = vmatprep.subr.bf16.mxu0 0
  %1093 = vmatpush1.bf16.msra.mxu0 0
  %1094 = vmatprep.subr.bf16.mxu0 0
  %1095 = vmatpush1.bf16.msra.mxu0 0
  %1096 = vmatprep.subr.bf16.mxu0 0
  %1097 = vmatpush1.bf16.msra.mxu0 0
  %1098 = vmatprep.subr.bf16.mxu0 0
  %1099 = vmatpush1.bf16.msra.mxu0 0
  %1100 = vmatprep.subr.bf16.mxu0 0
  %1101 = vmatpush1.bf16.msra.mxu0 0
  %1102 = vmatprep.mubr.bf16.mxu0 0
  %1103 = vmatmul.mubr.bf16.gmra.mrb[0].mxu0 %v877
  %v1104 = vpop.f32.mrb[0].mxu0
  %v1105 = vadd.f32 0.0, %v1104
  %v1106 = vpop.f32.mrb[0].mxu0
  %v1107 = vadd.f32 0.0, %v1106
  %v1108 = vpop.f32.mrb[0].mxu0
  %v1109 = vpop.f32.mrb[0].mxu0
  %1110 = vdwg.mxu0
  %1111 = vmatprep.subr.bf16.mxu0 %v1009
  %1112 = vmatpush1.bf16.msra.mxu0 %v1008
  %1113 = vmatprep.subr.bf16.mxu0 %v1013
  %1114 = vmatpush1.bf16.msra.mxu0 %v1012
  %1115 = vmatprep.subr.bf16.mxu0 %v1017
  %1116 = vmatpush1.bf16.msra.mxu0 %v1016
  %1117 = vmatprep.subr.bf16.mxu0 %v1021
  %1118 = vmatpush1.bf16.msra.mxu0 %v1020
  %1119 = vmatprep.subr.bf16.mxu0 %v1025
  %1120 = vmatpush1.bf16.msra.mxu0 %v1024
  %1121 = vmatprep.subr.bf16.mxu0 %v1029
  %1122 = vmatpush1.bf16.msra.mxu0 %v1028
  %1123 = vmatprep.subr.bf16.mxu0 %v1033
  %1124 = vmatpush1.bf16.msra.mxu0 %v1032
  %1125 = vmatprep.subr.bf16.mxu0 %v1037
  %1126 = vmatpush1.bf16.msra.mxu0 %v1036
  %1127 = vmatprep.subr.bf16.mxu0 0
  %1128 = vmatpush1.bf16.msra.mxu0 0
  %1129 = vmatprep.subr.bf16.mxu0 0
  %1130 = vmatpush1.bf16.msra.mxu0 0
  %1131 = vmatprep.subr.bf16.mxu0 0
  %1132 = vmatpush1.bf16.msra.mxu0 0
  %1133 = vmatprep.subr.bf16.mxu0 0
  %1134 = vmatpush1.bf16.msra.mxu0 0
  %1135 = vmatprep.subr.bf16.mxu0 0
  %1136 = vmatpush1.bf16.msra.mxu0 0
  %1137 = vmatprep.subr.bf16.mxu0 0
  %1138 = vmatpush1.bf16.msra.mxu0 0
  %1139 = vmatprep.subr.bf16.mxu0 0
  %1140 = vmatpush1.bf16.msra.mxu0 0
  %1141 = vmatprep.subr.bf16.mxu0 0
  %1142 = vmatpush1.bf16.msra.mxu0 0
  %1143 = vmatprep.mubr.bf16.mxu0 0
  %1144 = vmatmul.mubr.bf16.gmra.mrb[0].mxu0 %v877
  %v1145 = vpop.f32.mrb[0].mxu0
  %v1146 = vadd.f32 0.0, %v1145
  %v1147 = vpop.f32.mrb[0].mxu0
  %v1148 = vadd.f32 0.0, %v1147
  %v1149 = vpop.f32.mrb[0].mxu0
  %v1150 = vpop.f32.mrb[0].mxu0
  %1151 = vdwg.mxu0
  %v1156 = vcombine.low %v1105, %v1107
  %v1157 = vcombine.low %v1146, %v1148
  %v1159 = vunpack.c.l.s4 1966171168
  %v1160 = vunpack.c.0.s8 %v1159
  %v1161 = vlaneseq
  %v1162 = vshrl.u32 %v1161, 7
  %v1163 = vsub.s32 %v1160, %v1162
  %v1164 = vrot.slane %v1156, %v1163
  %v1166 = vunpack.c.l.s4 1966171168
  %v1167 = vunpack.c.0.s8 %v1166
  %v1168 = vlaneseq
  %v1169 = vshrl.u32 %v1168, 7
  %v1170 = vsub.s32 %v1167, %v1169
  %v1171 = vrot.slane %v1157, %v1170
  %v1172 = vcombine.low %v1164, %v1171
  %v1174 = vunpack.c.l.s4 1966171168
  %v1175 = vunpack.c.0.s8 %v1174
  %v1176 = vlaneseq
  %v1177 = vshrl.u32 %v1176, 7
  %v1178 = vsub.s32 %v1175, %v1177
  %v1179 = vrot.slane %v1172, %v1178
  %v1181 = vadd.f32 %v876, %v1179
  %v1182 = vxor.u32 %v1181, 2147483648
  %v1183 = vmul.f32 %v1182, 1.442695
  %v1184 = vpow.pop %v1183
  %v1185 = vadd.f32 %v1184, 1.0
  %v1186 = vrcp.pop %v1185
  %v1187 = vmul.f32 1.0, %v1186
  %v1189 = vrot.slane %v1181, 3
  %v1191 = vtanh.pop %v1189
  %v1193 = vrot.slane %v1187, 1
  %v1195 = vmul.f32 %v1193, %v869
  %v1196 = vmul.f32 %v1187, %v1191
  %v1197 = vadd.f32 %v1195, %v1196
  %v1198 = vtanh.pop %v1197
  %v1199 = vrot.slane %v1187, 2
  %v1201 = vmul.f32 %v1199, %v1198
  %1202 = vst [vmem:[#allocation3 + $0x2] sm:$0x1] %v1201
  %s1203 = scalar_lea.vmem [#allocation2], 3
  %v1204 = vld [vmem:[%s1203] ss:$8 sm:$0xf]
  %v1205 = vpack.c.bf16 %v1201, %v1201
  %v1206 = vld [vmem:[%s2] sm:$0xff]
  %v1207 = vld [vmem:[%s2 + $0x8] sm:$0xff]
  %v1208 = vld [vmem:[%s2 + $0x10] sm:$0xff]
  %v1209 = vld [vmem:[%s2 + $0x18] sm:$0xff]
  %v1210 = vld [vmem:[%s2 + $0x20] sm:$0xff]
  %v1211 = vld [vmem:[%s2 + $0x28] sm:$0xff]
  %v1212 = vld [vmem:[%s2 + $0x30] sm:$0xff]
  %v1213 = vld [vmem:[%s2 + $0x38] sm:$0xff]
  %v1214 = vld [vmem:[%s2 + $0x40] sm:$0xff]
  %v1215 = vld [vmem:[%s2 + $0x48] sm:$0xff]
  %v1216 = vld [vmem:[%s2 + $0x50] sm:$0xff]
  %v1217 = vld [vmem:[%s2 + $0x58] sm:$0xff]
  %v1218 = vld [vmem:[%s2 + $0x60] sm:$0xff]
  %v1219 = vld [vmem:[%s2 + $0x68] sm:$0xff]
  %v1220 = vld [vmem:[%s2 + $0x70] sm:$0xff]
  %v1221 = vld [vmem:[%s2 + $0x78] sm:$0xff]
  %v1222 = vld [vmem:[%s2 + $0x80] sm:$0xff]
  %v1223 = vld [vmem:[%s2 + $0x88] sm:$0xff]
  %v1224 = vld [vmem:[%s2 + $0x90] sm:$0xff]
  %v1225 = vld [vmem:[%s2 + $0x98] sm:$0xff]
  %v1226 = vld [vmem:[%s2 + $0xa0] sm:$0xff]
  %v1227 = vld [vmem:[%s2 + $0xa8] sm:$0xff]
  %v1228 = vld [vmem:[%s2 + $0xb0] sm:$0xff]
  %v1229 = vld [vmem:[%s2 + $0xb8] sm:$0xff]
  %v1230 = vld [vmem:[%s2 + $0xc0] sm:$0xff]
  %v1231 = vld [vmem:[%s2 + $0xc8] sm:$0xff]
  %v1232 = vld [vmem:[%s2 + $0xd0] sm:$0xff]
  %v1233 = vld [vmem:[%s2 + $0xd8] sm:$0xff]
  %v1234 = vld [vmem:[%s2 + $0xe0] sm:$0xff]
  %v1235 = vld [vmem:[%s2 + $0xe8] sm:$0xff]
  %v1236 = vld [vmem:[%s2 + $0xf0] sm:$0xff]
  %v1237 = vld [vmem:[%s2 + $0xf8] sm:$0xff]
  %v1270 = vunpack.c.l.b16 %v1206
  %v1271 = vunpack.c.h.b16 %v1206
  %v1272 = vunpack.c.l.b16 %v1207
  %v1273 = vunpack.c.h.b16 %v1207
  %v1274 = vunpack.c.l.b16 %v1208
  %v1275 = vunpack.c.h.b16 %v1208
  %v1276 = vunpack.c.l.b16 %v1209
  %v1277 = vunpack.c.h.b16 %v1209
  %v1278 = vunpack.c.l.b16 %v1210
  %v1279 = vunpack.c.h.b16 %v1210
  %v1280 = vunpack.c.l.b16 %v1211
  %v1281 = vunpack.c.h.b16 %v1211
  %v1282 = vunpack.c.l.b16 %v1212
  %v1283 = vunpack.c.h.b16 %v1212
  %v1284 = vunpack.c.l.b16 %v1213
  %v1285 = vunpack.c.h.b16 %v1213
  %v1286 = vunpack.c.l.b16 %v1214
  %v1287 = vunpack.c.h.b16 %v1214
  %v1288 = vunpack.c.l.b16 %v1215
  %v1289 = vunpack.c.h.b16 %v1215
  %v1290 = vunpack.c.l.b16 %v1216
  %v1291 = vunpack.c.h.b16 %v1216
  %v1292 = vunpack.c.l.b16 %v1217
  %v1293 = vunpack.c.h.b16 %v1217
  %v1294 = vunpack.c.l.b16 %v1218
  %v1295 = vunpack.c.h.b16 %v1218
  %v1296 = vunpack.c.l.b16 %v1219
  %v1297 = vunpack.c.h.b16 %v1219
  %v1298 = vunpack.c.l.b16 %v1220
  %v1299 = vunpack.c.h.b16 %v1220
  %v1300 = vunpack.c.l.b16 %v1221
  %v1301 = vunpack.c.h.b16 %v1221
  %v1302 = vunpack.c.l.b16 %v1222
  %v1303 = vunpack.c.h.b16 %v1222
  %v1304 = vunpack.c.l.b16 %v1223
  %v1305 = vunpack.c.h.b16 %v1223
  %v1306 = vunpack.c.l.b16 %v1224
  %v1307 = vunpack.c.h.b16 %v1224
  %v1308 = vunpack.c.l.b16 %v1225
  %v1309 = vunpack.c.h.b16 %v1225
  %v1310 = vunpack.c.l.b16 %v1226
  %v1311 = vunpack.c.h.b16 %v1226
  %v1312 = vunpack.c.l.b16 %v1227
  %v1313 = vunpack.c.h.b16 %v1227
  %v1314 = vunpack.c.l.b16 %v1228
  %v1315 = vunpack.c.h.b16 %v1228
  %v1316 = vunpack.c.l.b16 %v1229
  %v1317 = vunpack.c.h.b16 %v1229
  %v1318 = vunpack.c.l.b16 %v1230
  %v1319 = vunpack.c.h.b16 %v1230
  %v1320 = vunpack.c.l.b16 %v1231
  %v1321 = vunpack.c.h.b16 %v1231
  %v1322 = vunpack.c.l.b16 %v1232
  %v1323 = vunpack.c.h.b16 %v1232
  %v1324 = vunpack.c.l.b16 %v1233
  %v1325 = vunpack.c.h.b16 %v1233
  %v1326 = vunpack.c.l.b16 %v1234
  %v1327 = vunpack.c.h.b16 %v1234
  %v1328 = vunpack.c.l.b16 %v1235
  %v1329 = vunpack.c.h.b16 %v1235
  %v1330 = vunpack.c.l.b16 %v1236
  %v1331 = vunpack.c.h.b16 %v1236
  %v1332 = vunpack.c.l.b16 %v1237
  %v1333 = vunpack.c.h.b16 %v1237
  %v1334 = vpack.c.b16 %v1274, %v1270
  %v1335 = vpack.c.b16 %v1275, %v1271
  %v1336 = vpack.c.b16 %v1276, %v1272
  %v1337 = vpack.c.b16 %v1277, %v1273
  %v1338 = vpack.c.b16 %v1282, %v1278
  %v1339 = vpack.c.b16 %v1283, %v1279
  %v1340 = vpack.c.b16 %v1284, %v1280
  %v1341 = vpack.c.b16 %v1285, %v1281
  %v1342 = vpack.c.b16 %v1290, %v1286
  %v1343 = vpack.c.b16 %v1291, %v1287
  %v1344 = vpack.c.b16 %v1292, %v1288
  %v1345 = vpack.c.b16 %v1293, %v1289
  %v1346 = vpack.c.b16 %v1298, %v1294
  %v1347 = vpack.c.b16 %v1299, %v1295
  %v1348 = vpack.c.b16 %v1300, %v1296
  %v1349 = vpack.c.b16 %v1301, %v1297
  %v1350 = vpack.c.b16 %v1306, %v1302
  %v1351 = vpack.c.b16 %v1307, %v1303
  %v1352 = vpack.c.b16 %v1308, %v1304
  %v1353 = vpack.c.b16 %v1309, %v1305
  %v1354 = vpack.c.b16 %v1314, %v1310
  %v1355 = vpack.c.b16 %v1315, %v1311
  %v1356 = vpack.c.b16 %v1316, %v1312
  %v1357 = vpack.c.b16 %v1317, %v1313
  %v1358 = vpack.c.b16 %v1322, %v1318
  %v1359 = vpack.c.b16 %v1323, %v1319
  %v1360 = vpack.c.b16 %v1324, %v1320
  %v1361 = vpack.c.b16 %v1325, %v1321
  %v1362 = vpack.c.b16 %v1330, %v1326
  %v1363 = vpack.c.b16 %v1331, %v1327
  %v1364 = vpack.c.b16 %v1332, %v1328
  %v1365 = vpack.c.b16 %v1333, %v1329
  %1398 = vmatprep.subr.bf16.mxu0 %v1335
  %1399 = vmatpush1.bf16.msra.mxu0 %v1334
  %1400 = vmatprep.subr.bf16.mxu0 %v1339
  %1401 = vmatpush1.bf16.msra.mxu0 %v1338
  %1402 = vmatprep.subr.bf16.mxu0 %v1343
  %1403 = vmatpush1.bf16.msra.mxu0 %v1342
  %1404 = vmatprep.subr.bf16.mxu0 %v1347
  %1405 = vmatpush1.bf16.msra.mxu0 %v1346
  %1406 = vmatprep.subr.bf16.mxu0 %v1351
  %1407 = vmatpush1.bf16.msra.mxu0 %v1350
  %1408 = vmatprep.subr.bf16.mxu0 %v1355
  %1409 = vmatpush1.bf16.msra.mxu0 %v1354
  %1410 = vmatprep.subr.bf16.mxu0 %v1359
  %1411 = vmatpush1.bf16.msra.mxu0 %v1358
  %1412 = vmatprep.subr.bf16.mxu0 %v1363
  %1413 = vmatpush1.bf16.msra.mxu0 %v1362
  %1414 = vmatprep.subr.bf16.mxu0 0
  %1415 = vmatpush1.bf16.msra.mxu0 0
  %1416 = vmatprep.subr.bf16.mxu0 0
  %1417 = vmatpush1.bf16.msra.mxu0 0
  %1418 = vmatprep.subr.bf16.mxu0 0
  %1419 = vmatpush1.bf16.msra.mxu0 0
  %1420 = vmatprep.subr.bf16.mxu0 0
  %1421 = vmatpush1.bf16.msra.mxu0 0
  %1422 = vmatprep.subr.bf16.mxu0 0
  %1423 = vmatpush1.bf16.msra.mxu0 0
  %1424 = vmatprep.subr.bf16.mxu0 0
  %1425 = vmatpush1.bf16.msra.mxu0 0
  %1426 = vmatprep.subr.bf16.mxu0 0
  %1427 = vmatpush1.bf16.msra.mxu0 0
  %1428 = vmatprep.subr.bf16.mxu0 0
  %1429 = vmatpush1.bf16.msra.mxu0 0
  %1430 = vmatprep.mubr.bf16.mxu0 0
  %1431 = vmatmul.mubr.bf16.gmra.mrb[0].mxu0 %v1205
  %v1432 = vpop.f32.mrb[0].mxu0
  %v1433 = vadd.f32 0.0, %v1432
  %v1434 = vpop.f32.mrb[0].mxu0
  %v1435 = vadd.f32 0.0, %v1434
  %v1436 = vpop.f32.mrb[0].mxu0
  %v1437 = vpop.f32.mrb[0].mxu0
  %1438 = vdwg.mxu0
  %1439 = vmatprep.subr.bf16.mxu0 %v1337
  %1440 = vmatpush1.bf16.msra.mxu0 %v1336
  %1441 = vmatprep.subr.bf16.mxu0 %v1341
  %1442 = vmatpush1.bf16.msra.mxu0 %v1340
  %1443 = vmatprep.subr.bf16.mxu0 %v1345
  %1444 = vmatpush1.bf16.msra.mxu0 %v1344
  %1445 = vmatprep.subr.bf16.mxu0 %v1349
  %1446 = vmatpush1.bf16.msra.mxu0 %v1348
  %1447 = vmatprep.subr.bf16.mxu0 %v1353
  %1448 = vmatpush1.bf16.msra.mxu0 %v1352
  %1449 = vmatprep.subr.bf16.mxu0 %v1357
  %1450 = vmatpush1.bf16.msra.mxu0 %v1356
  %1451 = vmatprep.subr.bf16.mxu0 %v1361
  %1452 = vmatpush1.bf16.msra.mxu0 %v1360
  %1453 = vmatprep.subr.bf16.mxu0 %v1365
  %1454 = vmatpush1.bf16.msra.mxu0 %v1364
  %1455 = vmatprep.subr.bf16.mxu0 0
  %1456 = vmatpush1.bf16.msra.mxu0 0
  %1457 = vmatprep.subr.bf16.mxu0 0
  %1458 = vmatpush1.bf16.msra.mxu0 0
  %1459 = vmatprep.subr.bf16.mxu0 0
  %1460 = vmatpush1.bf16.msra.mxu0 0
  %1461 = vmatprep.subr.bf16.mxu0 0
  %1462 = vmatpush1.bf16.msra.mxu0 0
  %1463 = vmatprep.subr.bf16.mxu0 0
  %1464 = vmatpush1.bf16.msra.mxu0 0
  %1465 = vmatprep.subr.bf16.mxu0 0
  %1466 = vmatpush1.bf16.msra.mxu0 0
  %1467 = vmatprep.subr.bf16.mxu0 0
  %1468 = vmatpush1.bf16.msra.mxu0 0
  %1469 = vmatprep.subr.bf16.mxu0 0
  %1470 = vmatpush1.bf16.msra.mxu0 0
  %1471 = vmatprep.mubr.bf16.mxu0 0
  %1472 = vmatmul.mubr.bf16.gmra.mrb[0].mxu0 %v1205
  %v1473 = vpop.f32.mrb[0].mxu0
  %v1474 = vadd.f32 0.0, %v1473
  %v1475 = vpop.f32.mrb[0].mxu0
  %v1476 = vadd.f32 0.0, %v1475
  %v1477 = vpop.f32.mrb[0].mxu0
  %v1478 = vpop.f32.mrb[0].mxu0
  %1479 = vdwg.mxu0
  %v1484 = vcombine.low %v1433, %v1435
  %v1485 = vcombine.low %v1474, %v1476
  %v1487 = vunpack.c.l.s4 1966171168
  %v1488 = vunpack.c.0.s8 %v1487
  %v1489 = vlaneseq
  %v1490 = vshrl.u32 %v1489, 7
  %v1491 = vsub.s32 %v1488, %v1490
  %v1492 = vrot.slane %v1484, %v1491
  %v1494 = vunpack.c.l.s4 1966171168
  %v1495 = vunpack.c.0.s8 %v1494
  %v1496 = vlaneseq
  %v1497 = vshrl.u32 %v1496, 7
  %v1498 = vsub.s32 %v1495, %v1497
  %v1499 = vrot.slane %v1485, %v1498
  %v1500 = vcombine.low %v1492, %v1499
  %v1502 = vunpack.c.l.s4 1966171168
  %v1503 = vunpack.c.0.s8 %v1502
  %v1504 = vlaneseq
  %v1505 = vshrl.u32 %v1504, 7
  %v1506 = vsub.s32 %v1503, %v1505
  %v1507 = vrot.slane %v1500, %v1506
  %v1509 = vadd.f32 %v1204, %v1507
  %v1510 = vxor.u32 %v1509, 2147483648
  %v1511 = vmul.f32 %v1510, 1.442695
  %v1512 = vpow.pop %v1511
  %v1513 = vadd.f32 %v1512, 1.0
  %v1514 = vrcp.pop %v1513
  %v1515 = vmul.f32 1.0, %v1514
  %v1517 = vrot.slane %v1509, 3
  %v1519 = vtanh.pop %v1517
  %v1521 = vrot.slane %v1515, 1
  %v1523 = vmul.f32 %v1521, %v1197
  %v1524 = vmul.f32 %v1515, %v1519
  %v1525 = vadd.f32 %v1523, %v1524
  %v1526 = vtanh.pop %v1525
  %v1527 = vrot.slane %v1515, 2
  %v1529 = vmul.f32 %v1527, %v1526
  %1530 = vst [vmem:[#allocation3 + $0x3] sm:$0x1] %v1529
  %s1531 = scalar_lea.vmem [#allocation2], 4
  %v1532 = vld [vmem:[%s1531] ss:$8 sm:$0xf]
  %v1533 = vpack.c.bf16 %v1529, %v1529
  %v1534 = vld [vmem:[%s2] sm:$0xff]
  %v1535 = vld [vmem:[%s2 + $0x8] sm:$0xff]
  %v1536 = vld [vmem:[%s2 + $0x10] sm:$0xff]
  %v1537 = vld [vmem:[%s2 + $0x18] sm:$0xff]
  %v1538 = vld [vmem:[%s2 + $0x20] sm:$0xff]
  %v1539 = vld [vmem:[%s2 + $0x28] sm:$0xff]
  %v1540 = vld [vmem:[%s2 + $0x30] sm:$0xff]
  %v1541 = vld [vmem:[%s2 + $0x38] sm:$0xff]
  %v1542 = vld [vmem:[%s2 + $0x40] sm:$0xff]
  %v1543 = vld [vmem:[%s2 + $0x48] sm:$0xff]
  %v1544 = vld [vmem:[%s2 + $0x50] sm:$0xff]
  %v1545 = vld [vmem:[%s2 + $0x58] sm:$0xff]
  %v1546 = vld [vmem:[%s2 + $0x60] sm:$0xff]
  %v1547 = vld [vmem:[%s2 + $0x68] sm:$0xff]
  %v1548 = vld [vmem:[%s2 + $0x70] sm:$0xff]
  %v1549 = vld [vmem:[%s2 + $0x78] sm:$0xff]
  %v1550 = vld [vmem:[%s2 + $0x80] sm:$0xff]
  %v1551 = vld [vmem:[%s2 + $0x88] sm:$0xff]
  %v1552 = vld [vmem:[%s2 + $0x90] sm:$0xff]
  %v1553 = vld [vmem:[%s2 + $0x98] sm:$0xff]
  %v1554 = vld [vmem:[%s2 + $0xa0] sm:$0xff]
  %v1555 = vld [vmem:[%s2 + $0xa8] sm:$0xff]
  %v1556 = vld [vmem:[%s2 + $0xb0] sm:$0xff]
  %v1557 = vld [vmem:[%s2 + $0xb8] sm:$0xff]
  %v1558 = vld [vmem:[%s2 + $0xc0] sm:$0xff]
  %v1559 = vld [vmem:[%s2 + $0xc8] sm:$0xff]
  %v1560 = vld [vmem:[%s2 + $0xd0] sm:$0xff]
  %v1561 = vld [vmem:[%s2 + $0xd8] sm:$0xff]
  %v1562 = vld [vmem:[%s2 + $0xe0] sm:$0xff]
  %v1563 = vld [vmem:[%s2 + $0xe8] sm:$0xff]
  %v1564 = vld [vmem:[%s2 + $0xf0] sm:$0xff]
  %v1565 = vld [vmem:[%s2 + $0xf8] sm:$0xff]
  %v1598 = vunpack.c.l.b16 %v1534
  %v1599 = vunpack.c.h.b16 %v1534
  %v1600 = vunpack.c.l.b16 %v1535
  %v1601 = vunpack.c.h.b16 %v1535
  %v1602 = vunpack.c.l.b16 %v1536
  %v1603 = vunpack.c.h.b16 %v1536
  %v1604 = vunpack.c.l.b16 %v1537
  %v1605 = vunpack.c.h.b16 %v1537
  %v1606 = vunpack.c.l.b16 %v1538
  %v1607 = vunpack.c.h.b16 %v1538
  %v1608 = vunpack.c.l.b16 %v1539
  %v1609 = vunpack.c.h.b16 %v1539
  %v1610 = vunpack.c.l.b16 %v1540
  %v1611 = vunpack.c.h.b16 %v1540
  %v1612 = vunpack.c.l.b16 %v1541
  %v1613 = vunpack.c.h.b16 %v1541
  %v1614 = vunpack.c.l.b16 %v1542
  %v1615 = vunpack.c.h.b16 %v1542
  %v1616 = vunpack.c.l.b16 %v1543
  %v1617 = vunpack.c.h.b16 %v1543
  %v1618 = vunpack.c.l.b16 %v1544
  %v1619 = vunpack.c.h.b16 %v1544
  %v1620 = vunpack.c.l.b16 %v1545
  %v1621 = vunpack.c.h.b16 %v1545
  %v1622 = vunpack.c.l.b16 %v1546
  %v1623 = vunpack.c.h.b16 %v1546
  %v1624 = vunpack.c.l.b16 %v1547
  %v1625 = vunpack.c.h.b16 %v1547
  %v1626 = vunpack.c.l.b16 %v1548
  %v1627 = vunpack.c.h.b16 %v1548
  %v1628 = vunpack.c.l.b16 %v1549
  %v1629 = vunpack.c.h.b16 %v1549
  %v1630 = vunpack.c.l.b16 %v1550
  %v1631 = vunpack.c.h.b16 %v1550
  %v1632 = vunpack.c.l.b16 %v1551
  %v1633 = vunpack.c.h.b16 %v1551
  %v1634 = vunpack.c.l.b16 %v1552
  %v1635 = vunpack.c.h.b16 %v1552
  %v1636 = vunpack.c.l.b16 %v1553
  %v1637 = vunpack.c.h.b16 %v1553
  %v1638 = vunpack.c.l.b16 %v1554
  %v1639 = vunpack.c.h.b16 %v1554
  %v1640 = vunpack.c.l.b16 %v1555
  %v1641 = vunpack.c.h.b16 %v1555
  %v1642 = vunpack.c.l.b16 %v1556
  %v1643 = vunpack.c.h.b16 %v1556
  %v1644 = vunpack.c.l.b16 %v1557
  %v1645 = vunpack.c.h.b16 %v1557
  %v1646 = vunpack.c.l.b16 %v1558
  %v1647 = vunpack.c.h.b16 %v1558
  %v1648 = vunpack.c.l.b16 %v1559
  %v1649 = vunpack.c.h.b16 %v1559
  %v1650 = vunpack.c.l.b16 %v1560
  %v1651 = vunpack.c.h.b16 %v1560
  %v1652 = vunpack.c.l.b16 %v1561
  %v1653 = vunpack.c.h.b16 %v1561
  %v1654 = vunpack.c.l.b16 %v1562
  %v1655 = vunpack.c.h.b16 %v1562
  %v1656 = vunpack.c.l.b16 %v1563
  %v1657 = vunpack.c.h.b16 %v1563
  %v1658 = vunpack.c.l.b16 %v1564
  %v1659 = vunpack.c.h.b16 %v1564
  %v1660 = vunpack.c.l.b16 %v1565
  %v1661 = vunpack.c.h.b16 %v1565
  %v1662 = vpack.c.b16 %v1602, %v1598
  %v1663 = vpack.c.b16 %v1603, %v1599
  %v1664 = vpack.c.b16 %v1604, %v1600
  %v1665 = vpack.c.b16 %v1605, %v1601
  %v1666 = vpack.c.b16 %v1610, %v1606
  %v1667 = vpack.c.b16 %v1611, %v1607
  %v1668 = vpack.c.b16 %v1612, %v1608
  %v1669 = vpack.c.b16 %v1613, %v1609
  %v1670 = vpack.c.b16 %v1618, %v1614
  %v1671 = vpack.c.b16 %v1619, %v1615
  %v1672 = vpack.c.b16 %v1620, %v1616
  %v1673 = vpack.c.b16 %v1621, %v1617
  %v1674 = vpack.c.b16 %v1626, %v1622
  %v1675 = vpack.c.b16 %v1627, %v1623
  %v1676 = vpack.c.b16 %v1628, %v1624
  %v1677 = vpack.c.b16 %v1629, %v1625
  %v1678 = vpack.c.b16 %v1634, %v1630
  %v1679 = vpack.c.b16 %v1635, %v1631
  %v1680 = vpack.c.b16 %v1636, %v1632
  %v1681 = vpack.c.b16 %v1637, %v1633
  %v1682 = vpack.c.b16 %v1642, %v1638
  %v1683 = vpack.c.b16 %v1643, %v1639
  %v1684 = vpack.c.b16 %v1644, %v1640
  %v1685 = vpack.c.b16 %v1645, %v1641
  %v1686 = vpack.c.b16 %v1650, %v1646
  %v1687 = vpack.c.b16 %v1651, %v1647
  %v1688 = vpack.c.b16 %v1652, %v1648
  %v1689 = vpack.c.b16 %v1653, %v1649
  %v1690 = vpack.c.b16 %v1658, %v1654
  %v1691 = vpack.c.b16 %v1659, %v1655
  %v1692 = vpack.c.b16 %v1660, %v1656
  %v1693 = vpack.c.b16 %v1661, %v1657
  %1726 = vmatprep.subr.bf16.mxu0 %v1663
  %1727 = vmatpush1.bf16.msra.mxu0 %v1662
  %1728 = vmatprep.subr.bf16.mxu0 %v1667
  %1729 = vmatpush1.bf16.msra.mxu0 %v1666
  %1730 = vmatprep.subr.bf16.mxu0 %v1671
  %1731 = vmatpush1.bf16.msra.mxu0 %v1670
  %1732 = vmatprep.subr.bf16.mxu0 %v1675
  %1733 = vmatpush1.bf16.msra.mxu0 %v1674
  %1734 = vmatprep.subr.bf16.mxu0 %v1679
  %1735 = vmatpush1.bf16.msra.mxu0 %v1678
  %1736 = vmatprep.subr.bf16.mxu0 %v1683
  %1737 = vmatpush1.bf16.msra.mxu0 %v1682
  %1738 = vmatprep.subr.bf16.mxu0 %v1687
  %1739 = vmatpush1.bf16.msra.mxu0 %v1686
  %1740 = vmatprep.subr.bf16.mxu0 %v1691
  %1741 = vmatpush1.bf16.msra.mxu0 %v1690
  %1742 = vmatprep.subr.bf16.mxu0 0
  %1743 = vmatpush1.bf16.msra.mxu0 0
  %1744 = vmatprep.subr.bf16.mxu0 0
  %1745 = vmatpush1.bf16.msra.mxu0 0
  %1746 = vmatprep.subr.bf16.mxu0 0
  %1747 = vmatpush1.bf16.msra.mxu0 0
  %1748 = vmatprep.subr.bf16.mxu0 0
  %1749 = vmatpush1.bf16.msra.mxu0 0
  %1750 = vmatprep.subr.bf16.mxu0 0
  %1751 = vmatpush1.bf16.msra.mxu0 0
  %1752 = vmatprep.subr.bf16.mxu0 0
  %1753 = vmatpush1.bf16.msra.mxu0 0
  %1754 = vmatprep.subr.bf16.mxu0 0
  %1755 = vmatpush1.bf16.msra.mxu0 0
  %1756 = vmatprep.subr.bf16.mxu0 0
  %1757 = vmatpush1.bf16.msra.mxu0 0
  %1758 = vmatprep.mubr.bf16.mxu0 0
  %1759 = vmatmul.mubr.bf16.gmra.mrb[0].mxu0 %v1533
  %v1760 = vpop.f32.mrb[0].mxu0
  %v1761 = vadd.f32 0.0, %v1760
  %v1762 = vpop.f32.mrb[0].mxu0
  %v1763 = vadd.f32 0.0, %v1762
  %v1764 = vpop.f32.mrb[0].mxu0
  %v1765 = vpop.f32.mrb[0].mxu0
  %1766 = vdwg.mxu0
  %1767 = vmatprep.subr.bf16.mxu0 %v1665
  %1768 = vmatpush1.bf16.msra.mxu0 %v1664
  %1769 = vmatprep.subr.bf16.mxu0 %v1669
  %1770 = vmatpush1.bf16.msra.mxu0 %v1668
  %1771 = vmatprep.subr.bf16.mxu0 %v1673
  %1772 = vmatpush1.bf16.msra.mxu0 %v1672
  %1773 = vmatprep.subr.bf16.mxu0 %v1677
  %1774 = vmatpush1.bf16.msra.mxu0 %v1676
  %1775 = vmatprep.subr.bf16.mxu0 %v1681
  %1776 = vmatpush1.bf16.msra.mxu0 %v1680
  %1777 = vmatprep.subr.bf16.mxu0 %v1685
  %1778 = vmatpush1.bf16.msra.mxu0 %v1684
  %1779 = vmatprep.subr.bf16.mxu0 %v1689
  %1780 = vmatpush1.bf16.msra.mxu0 %v1688
  %1781 = vmatprep.subr.bf16.mxu0 %v1693
  %1782 = vmatpush1.bf16.msra.mxu0 %v1692
  %1783 = vmatprep.subr.bf16.mxu0 0
  %1784 = vmatpush1.bf16.msra.mxu0 0
  %1785 = vmatprep.subr.bf16.mxu0 0
  %1786 = vmatpush1.bf16.msra.mxu0 0
  %1787 = vmatprep.subr.bf16.mxu0 0
  %1788 = vmatpush1.bf16.msra.mxu0 0
  %1789 = vmatprep.subr.bf16.mxu0 0
  %1790 = vmatpush1.bf16.msra.mxu0 0
  %1791 = vmatprep.subr.bf16.mxu0 0
  %1792 = vmatpush1.bf16.msra.mxu0 0
  %1793 = vmatprep.subr.bf16.mxu0 0
  %1794 = vmatpush1.bf16.msra.mxu0 0
  %1795 = vmatprep.subr.bf16.mxu0 0
  %1796 = vmatpush1.bf16.msra.mxu0 0
  %1797 = vmatprep.subr.bf16.mxu0 0
  %1798 = vmatpush1.bf16.msra.mxu0 0
  %1799 = vmatprep.mubr.bf16.mxu0 0
  %1800 = vmatmul.mubr.bf16.gmra.mrb[0].mxu0 %v1533
  %v1801 = vpop.f32.mrb[0].mxu0
  %v1802 = vadd.f32 0.0, %v1801
  %v1803 = vpop.f32.mrb[0].mxu0
  %v1804 = vadd.f32 0.0, %v1803
  %v1805 = vpop.f32.mrb[0].mxu0
  %v1806 = vpop.f32.mrb[0].mxu0
  %1807 = vdwg.mxu0
  %v1812 = vcombine.low %v1761, %v1763
  %v1813 = vcombine.low %v1802, %v1804
  %v1815 = vunpack.c.l.s4 1966171168
  %v1816 = vunpack.c.0.s8 %v1815
  %v1817 = vlaneseq
  %v1818 = vshrl.u32 %v1817, 7
  %v1819 = vsub.s32 %v1816, %v1818
  %v1820 = vrot.slane %v1812, %v1819
  %v1822 = vunpack.c.l.s4 1966171168
  %v1823 = vunpack.c.0.s8 %v1822
  %v1824 = vlaneseq
  %v1825 = vshrl.u32 %v1824, 7
  %v1826 = vsub.s32 %v1823, %v1825
  %v1827 = vrot.slane %v1813, %v1826
  %v1828 = vcombine.low %v1820, %v1827
  %v1830 = vunpack.c.l.s4 1966171168
  %v1831 = vunpack.c.0.s8 %v1830
  %v1832 = vlaneseq
  %v1833 = vshrl.u32 %v1832, 7
  %v1834 = vsub.s32 %v1831, %v1833
  %v1835 = vrot.slane %v1828, %v1834
  %v1837 = vadd.f32 %v1532, %v1835
  %v1838 = vxor.u32 %v1837, 2147483648
  %v1839 = vmul.f32 %v1838, 1.442695
  %v1840 = vpow.pop %v1839
  %v1841 = vadd.f32 %v1840, 1.0
  %v1842 = vrcp.pop %v1841
  %v1843 = vmul.f32 1.0, %v1842
  %v1845 = vrot.slane %v1837, 3
  %v1847 = vtanh.pop %v1845
  %v1849 = vrot.slane %v1843, 1
  %v1851 = vmul.f32 %v1849, %v1525
  %v1852 = vmul.f32 %v1843, %v1847
  %v1853 = vadd.f32 %v1851, %v1852
  %v1854 = vtanh.pop %v1853
  %v1855 = vrot.slane %v1843, 2
  %v1857 = vmul.f32 %v1855, %v1854
  %1858 = vst [vmem:[#allocation3 + $0x4] sm:$0x1] %v1857
  %s1859 = scalar_lea.vmem [#allocation2], 5
  %v1860 = vld [vmem:[%s1859] ss:$8 sm:$0xf]
  %v1861 = vpack.c.bf16 %v1857, %v1857
  %v1862 = vld [vmem:[%s2] sm:$0xff]
  %v1863 = vld [vmem:[%s2 + $0x8] sm:$0xff]
  %v1864 = vld [vmem:[%s2 + $0x10] sm:$0xff]
  %v1865 = vld [vmem:[%s2 + $0x18] sm:$0xff]
  %v1866 = vld [vmem:[%s2 + $0x20] sm:$0xff]
  %v1867 = vld [vmem:[%s2 + $0x28] sm:$0xff]
  %v1868 = vld [vmem:[%s2 + $0x30] sm:$0xff]
  %v1869 = vld [vmem:[%s2 + $0x38] sm:$0xff]
  %v1870 = vld [vmem:[%s2 + $0x40] sm:$0xff]
  %v1871 = vld [vmem:[%s2 + $0x48] sm:$0xff]
  %v1872 = vld [vmem:[%s2 + $0x50] sm:$0xff]
  %v1873 = vld [vmem:[%s2 + $0x58] sm:$0xff]
  %v1874 = vld [vmem:[%s2 + $0x60] sm:$0xff]
  %v1875 = vld [vmem:[%s2 + $0x68] sm:$0xff]
  %v1876 = vld [vmem:[%s2 + $0x70] sm:$0xff]
  %v1877 = vld [vmem:[%s2 + $0x78] sm:$0xff]
  %v1878 = vld [vmem:[%s2 + $0x80] sm:$0xff]
  %v1879 = vld [vmem:[%s2 + $0x88] sm:$0xff]
  %v1880 = vld [vmem:[%s2 + $0x90] sm:$0xff]
  %v1881 = vld [vmem:[%s2 + $0x98] sm:$0xff]
  %v1882 = vld [vmem:[%s2 + $0xa0] sm:$0xff]
  %v1883 = vld [vmem:[%s2 + $0xa8] sm:$0xff]
  %v1884 = vld [vmem:[%s2 + $0xb0] sm:$0xff]
  %v1885 = vld [vmem:[%s2 + $0xb8] sm:$0xff]
  %v1886 = vld [vmem:[%s2 + $0xc0] sm:$0xff]
  %v1887 = vld [vmem:[%s2 + $0xc8] sm:$0xff]
  %v1888 = vld [vmem:[%s2 + $0xd0] sm:$0xff]
  %v1889 = vld [vmem:[%s2 + $0xd8] sm:$0xff]
  %v1890 = vld [vmem:[%s2 + $0xe0] sm:$0xff]
  %v1891 = vld [vmem:[%s2 + $0xe8] sm:$0xff]
  %v1892 = vld [vmem:[%s2 + $0xf0] sm:$0xff]
  %v1893 = vld [vmem:[%s2 + $0xf8] sm:$0xff]
  %v1926 = vunpack.c.l.b16 %v1862
  %v1927 = vunpack.c.h.b16 %v1862
  %v1928 = vunpack.c.l.b16 %v1863
  %v1929 = vunpack.c.h.b16 %v1863
  %v1930 = vunpack.c.l.b16 %v1864
  %v1931 = vunpack.c.h.b16 %v1864
  %v1932 = vunpack.c.l.b16 %v1865
  %v1933 = vunpack.c.h.b16 %v1865
  %v1934 = vunpack.c.l.b16 %v1866
  %v1935 = vunpack.c.h.b16 %v1866
  %v1936 = vunpack.c.l.b16 %v1867
  %v1937 = vunpack.c.h.b16 %v1867
  %v1938 = vunpack.c.l.b16 %v1868
  %v1939 = vunpack.c.h.b16 %v1868
  %v1940 = vunpack.c.l.b16 %v1869
  %v1941 = vunpack.c.h.b16 %v1869
  %v1942 = vunpack.c.l.b16 %v1870
  %v1943 = vunpack.c.h.b16 %v1870
  %v1944 = vunpack.c.l.b16 %v1871
  %v1945 = vunpack.c.h.b16 %v1871
  %v1946 = vunpack.c.l.b16 %v1872
  %v1947 = vunpack.c.h.b16 %v1872
  %v1948 = vunpack.c.l.b16 %v1873
  %v1949 = vunpack.c.h.b16 %v1873
  %v1950 = vunpack.c.l.b16 %v1874
  %v1951 = vunpack.c.h.b16 %v1874
  %v1952 = vunpack.c.l.b16 %v1875
  %v1953 = vunpack.c.h.b16 %v1875
  %v1954 = vunpack.c.l.b16 %v1876
  %v1955 = vunpack.c.h.b16 %v1876
  %v1956 = vunpack.c.l.b16 %v1877
  %v1957 = vunpack.c.h.b16 %v1877
  %v1958 = vunpack.c.l.b16 %v1878
  %v1959 = vunpack.c.h.b16 %v1878
  %v1960 = vunpack.c.l.b16 %v1879
  %v1961 = vunpack.c.h.b16 %v1879
  %v1962 = vunpack.c.l.b16 %v1880
  %v1963 = vunpack.c.h.b16 %v1880
  %v1964 = vunpack.c.l.b16 %v1881
  %v1965 = vunpack.c.h.b16 %v1881
  %v1966 = vunpack.c.l.b16 %v1882
  %v1967 = vunpack.c.h.b16 %v1882
  %v1968 = vunpack.c.l.b16 %v1883
  %v1969 = vunpack.c.h.b16 %v1883
  %v1970 = vunpack.c.l.b16 %v1884
  %v1971 = vunpack.c.h.b16 %v1884
  %v1972 = vunpack.c.l.b16 %v1885
  %v1973 = vunpack.c.h.b16 %v1885
  %v1974 = vunpack.c.l.b16 %v1886
  %v1975 = vunpack.c.h.b16 %v1886
  %v1976 = vunpack.c.l.b16 %v1887
  %v1977 = vunpack.c.h.b16 %v1887
  %v1978 = vunpack.c.l.b16 %v1888
  %v1979 = vunpack.c.h.b16 %v1888
  %v1980 = vunpack.c.l.b16 %v1889
  %v1981 = vunpack.c.h.b16 %v1889
  %v1982 = vunpack.c.l.b16 %v1890
  %v1983 = vunpack.c.h.b16 %v1890
  %v1984 = vunpack.c.l.b16 %v1891
  %v1985 = vunpack.c.h.b16 %v1891
  %v1986 = vunpack.c.l.b16 %v1892
  %v1987 = vunpack.c.h.b16 %v1892
  %v1988 = vunpack.c.l.b16 %v1893
  %v1989 = vunpack.c.h.b16 %v1893
  %v1990 = vpack.c.b16 %v1930, %v1926
  %v1991 = vpack.c.b16 %v1931, %v1927
  %v1992 = vpack.c.b16 %v1932, %v1928
  %v1993 = vpack.c.b16 %v1933, %v1929
  %v1994 = vpack.c.b16 %v1938, %v1934
  %v1995 = vpack.c.b16 %v1939, %v1935
  %v1996 = vpack.c.b16 %v1940, %v1936
  %v1997 = vpack.c.b16 %v1941, %v1937
  %v1998 = vpack.c.b16 %v1946, %v1942
  %v1999 = vpack.c.b16 %v1947, %v1943
  %v2000 = vpack.c.b16 %v1948, %v1944
  %v2001 = vpack.c.b16 %v1949, %v1945
  %v2002 = vpack.c.b16 %v1954, %v1950
  %v2003 = vpack.c.b16 %v1955, %v1951
  %v2004 = vpack.c.b16 %v1956, %v1952
  %v2005 = vpack.c.b16 %v1957, %v1953
  %v2006 = vpack.c.b16 %v1962, %v1958
  %v2007 = vpack.c.b16 %v1963, %v1959
  %v2008 = vpack.c.b16 %v1964, %v1960
  %v2009 = vpack.c.b16 %v1965, %v1961
  %v2010 = vpack.c.b16 %v1970, %v1966
  %v2011 = vpack.c.b16 %v1971, %v1967
  %v2012 = vpack.c.b16 %v1972, %v1968
  %v2013 = vpack.c.b16 %v1973, %v1969
  %v2014 = vpack.c.b16 %v1978, %v1974
  %v2015 = vpack.c.b16 %v1979, %v1975
  %v2016 = vpack.c.b16 %v1980, %v1976
  %v2017 = vpack.c.b16 %v1981, %v1977
  %v2018 = vpack.c.b16 %v1986, %v1982
  %v2019 = vpack.c.b16 %v1987, %v1983
  %v2020 = vpack.c.b16 %v1988, %v1984
  %v2021 = vpack.c.b16 %v1989, %v1985
  %2054 = vmatprep.subr.bf16.mxu0 %v1991
  %2055 = vmatpush1.bf16.msra.mxu0 %v1990
  %2056 = vmatprep.subr.bf16.mxu0 %v1995
  %2057 = vmatpush1.bf16.msra.mxu0 %v1994
  %2058 = vmatprep.subr.bf16.mxu0 %v1999
  %2059 = vmatpush1.bf16.msra.mxu0 %v1998
  %2060 = vmatprep.subr.bf16.mxu0 %v2003
  %2061 = vmatpush1.bf16.msra.mxu0 %v2002
  %2062 = vmatprep.subr.bf16.mxu0 %v2007
  %2063 = vmatpush1.bf16.msra.mxu0 %v2006
  %2064 = vmatprep.subr.bf16.mxu0 %v2011
  %2065 = vmatpush1.bf16.msra.mxu0 %v2010
  %2066 = vmatprep.subr.bf16.mxu0 %v2015
  %2067 = vmatpush1.bf16.msra.mxu0 %v2014
  %2068 = vmatprep.subr.bf16.mxu0 %v2019
  %2069 = vmatpush1.bf16.msra.mxu0 %v2018
  %2070 = vmatprep.subr.bf16.mxu0 0
  %2071 = vmatpush1.bf16.msra.mxu0 0
  %2072 = vmatprep.subr.bf16.mxu0 0
  %2073 = vmatpush1.bf16.msra.mxu0 0
  %2074 = vmatprep.subr.bf16.mxu0 0
  %2075 = vmatpush1.bf16.msra.mxu0 0
  %2076 = vmatprep.subr.bf16.mxu0 0
  %2077 = vmatpush1.bf16.msra.mxu0 0
  %2078 = vmatprep.subr.bf16.mxu0 0
  %2079 = vmatpush1.bf16.msra.mxu0 0
  %2080 = vmatprep.subr.bf16.mxu0 0
  %2081 = vmatpush1.bf16.msra.mxu0 0
  %2082 = vmatprep.subr.bf16.mxu0 0
  %2083 = vmatpush1.bf16.msra.mxu0 0
  %2084 = vmatprep.subr.bf16.mxu0 0
  %2085 = vmatpush1.bf16.msra.mxu0 0
  %2086 = vmatprep.mubr.bf16.mxu0 0
  %2087 = vmatmul.mubr.bf16.gmra.mrb[0].mxu0 %v1861
  %v2088 = vpop.f32.mrb[0].mxu0
  %v2089 = vadd.f32 0.0, %v2088
  %v2090 = vpop.f32.mrb[0].mxu0
  %v2091 = vadd.f32 0.0, %v2090
  %v2092 = vpop.f32.mrb[0].mxu0
  %v2093 = vpop.f32.mrb[0].mxu0
  %2094 = vdwg.mxu0
  %2095 = vmatprep.subr.bf16.mxu0 %v1993
  %2096 = vmatpush1.bf16.msra.mxu0 %v1992
  %2097 = vmatprep.subr.bf16.mxu0 %v1997
  %2098 = vmatpush1.bf16.msra.mxu0 %v1996
  %2099 = vmatprep.subr.bf16.mxu0 %v2001
  %2100 = vmatpush1.bf16.msra.mxu0 %v2000
  %2101 = vmatprep.subr.bf16.mxu0 %v2005
  %2102 = vmatpush1.bf16.msra.mxu0 %v2004
  %2103 = vmatprep.subr.bf16.mxu0 %v2009
  %2104 = vmatpush1.bf16.msra.mxu0 %v2008
  %2105 = vmatprep.subr.bf16.mxu0 %v2013
  %2106 = vmatpush1.bf16.msra.mxu0 %v2012
  %2107 = vmatprep.subr.bf16.mxu0 %v2017
  %2108 = vmatpush1.bf16.msra.mxu0 %v2016
  %2109 = vmatprep.subr.bf16.mxu0 %v2021
  %2110 = vmatpush1.bf16.msra.mxu0 %v2020
  %2111 = vmatprep.subr.bf16.mxu0 0
  %2112 = vmatpush1.bf16.msra.mxu0 0
  %2113 = vmatprep.subr.bf16.mxu0 0
  %2114 = vmatpush1.bf16.msra.mxu0 0
  %2115 = vmatprep.subr.bf16.mxu0 0
  %2116 = vmatpush1.bf16.msra.mxu0 0
  %2117 = vmatprep.subr.bf16.mxu0 0
  %2118 = vmatpush1.bf16.msra.mxu0 0
  %2119 = vmatprep.subr.bf16.mxu0 0
  %2120 = vmatpush1.bf16.msra.mxu0 0
  %2121 = vmatprep.subr.bf16.mxu0 0
  %2122 = vmatpush1.bf16.msra.mxu0 0
  %2123 = vmatprep.subr.bf16.mxu0 0
  %2124 = vmatpush1.bf16.msra.mxu0 0
  %2125 = vmatprep.subr.bf16.mxu0 0
  %2126 = vmatpush1.bf16.msra.mxu0 0
  %2127 = vmatprep.mubr.bf16.mxu0 0
  %2128 = vmatmul.mubr.bf16.gmra.mrb[0].mxu0 %v1861
  %v2129 = vpop.f32.mrb[0].mxu0
  %v2130 = vadd.f32 0.0, %v2129
  %v2131 = vpop.f32.mrb[0].mxu0
  %v2132 = vadd.f32 0.0, %v2131
  %v2133 = vpop.f32.mrb[0].mxu0
  %v2134 = vpop.f32.mrb[0].mxu0
  %2135 = vdwg.mxu0
  %v2140 = vcombine.low %v2089, %v2091
  %v2141 = vcombine.low %v2130, %v2132
  %v2143 = vunpack.c.l.s4 1966171168
  %v2144 = vunpack.c.0.s8 %v2143
  %v2145 = vlaneseq
  %v2146 = vshrl.u32 %v2145, 7
  %v2147 = vsub.s32 %v2144, %v2146
  %v2148 = vrot.slane %v2140, %v2147
  %v2150 = vunpack.c.l.s4 1966171168
  %v2151 = vunpack.c.0.s8 %v2150
  %v2152 = vlaneseq
  %v2153 = vshrl.u32 %v2152, 7
  %v2154 = vsub.s32 %v2151, %v2153
  %v2155 = vrot.slane %v2141, %v2154
  %v2156 = vcombine.low %v2148, %v2155
  %v2158 = vunpack.c.l.s4 1966171168
  %v2159 = vunpack.c.0.s8 %v2158
  %v2160 = vlaneseq
  %v2161 = vshrl.u32 %v2160, 7
  %v2162 = vsub.s32 %v2159, %v2161
  %v2163 = vrot.slane %v2156, %v2162
  %v2165 = vadd.f32 %v1860, %v2163
  %v2166 = vxor.u32 %v2165, 2147483648
  %v2167 = vmul.f32 %v2166, 1.442695
  %v2168 = vpow.pop %v2167
  %v2169 = vadd.f32 %v2168, 1.0
  %v2170 = vrcp.pop %v2169
  %v2171 = vmul.f32 1.0, %v2170
  %v2173 = vrot.slane %v2165, 3
  %v2175 = vtanh.pop %v2173
  %v2177 = vrot.slane %v2171, 1
  %v2179 = vmul.f32 %v2177, %v1853
  %v2180 = vmul.f32 %v2171, %v2175
  %v2181 = vadd.f32 %v2179, %v2180
  %v2182 = vtanh.pop %v2181
  %v2183 = vrot.slane %v2171, 2
  %v2185 = vmul.f32 %v2183, %v2182
  %2186 = vst [vmem:[#allocation3 + $0x5] sm:$0x1] %v2185
  %s2187 = scalar_lea.vmem [#allocation2], 6
  %v2188 = vld [vmem:[%s2187] ss:$8 sm:$0xf]
  %v2189 = vpack.c.bf16 %v2185, %v2185
  %v2190 = vld [vmem:[%s2] sm:$0xff]
  %v2191 = vld [vmem:[%s2 + $0x8] sm:$0xff]
  %v2192 = vld [vmem:[%s2 + $0x10] sm:$0xff]
  %v2193 = vld [vmem:[%s2 + $0x18] sm:$0xff]
  %v2194 = vld [vmem:[%s2 + $0x20] sm:$0xff]
  %v2195 = vld [vmem:[%s2 + $0x28] sm:$0xff]
  %v2196 = vld [vmem:[%s2 + $0x30] sm:$0xff]
  %v2197 = vld [vmem:[%s2 + $0x38] sm:$0xff]
  %v2198 = vld [vmem:[%s2 + $0x40] sm:$0xff]
  %v2199 = vld [vmem:[%s2 + $0x48] sm:$0xff]
  %v2200 = vld [vmem:[%s2 + $0x50] sm:$0xff]
  %v2201 = vld [vmem:[%s2 + $0x58] sm:$0xff]
  %v2202 = vld [vmem:[%s2 + $0x60] sm:$0xff]
  %v2203 = vld [vmem:[%s2 + $0x68] sm:$0xff]
  %v2204 = vld [vmem:[%s2 + $0x70] sm:$0xff]
  %v2205 = vld [vmem:[%s2 + $0x78] sm:$0xff]
  %v2206 = vld [vmem:[%s2 + $0x80] sm:$0xff]
  %v2207 = vld [vmem:[%s2 + $0x88] sm:$0xff]
  %v2208 = vld [vmem:[%s2 + $0x90] sm:$0xff]
  %v2209 = vld [vmem:[%s2 + $0x98] sm:$0xff]
  %v2210 = vld [vmem:[%s2 + $0xa0] sm:$0xff]
  %v2211 = vld [vmem:[%s2 + $0xa8] sm:$0xff]
  %v2212 = vld [vmem:[%s2 + $0xb0] sm:$0xff]
  %v2213 = vld [vmem:[%s2 + $0xb8] sm:$0xff]
  %v2214 = vld [vmem:[%s2 + $0xc0] sm:$0xff]
  %v2215 = vld [vmem:[%s2 + $0xc8] sm:$0xff]
  %v2216 = vld [vmem:[%s2 + $0xd0] sm:$0xff]
  %v2217 = vld [vmem:[%s2 + $0xd8] sm:$0xff]
  %v2218 = vld [vmem:[%s2 + $0xe0] sm:$0xff]
  %v2219 = vld [vmem:[%s2 + $0xe8] sm:$0xff]
  %v2220 = vld [vmem:[%s2 + $0xf0] sm:$0xff]
  %v2221 = vld [vmem:[%s2 + $0xf8] sm:$0xff]
  %v2254 = vunpack.c.l.b16 %v2190
  %v2255 = vunpack.c.h.b16 %v2190
  %v2256 = vunpack.c.l.b16 %v2191
  %v2257 = vunpack.c.h.b16 %v2191
  %v2258 = vunpack.c.l.b16 %v2192
  %v2259 = vunpack.c.h.b16 %v2192
  %v2260 = vunpack.c.l.b16 %v2193
  %v2261 = vunpack.c.h.b16 %v2193
  %v2262 = vunpack.c.l.b16 %v2194
  %v2263 = vunpack.c.h.b16 %v2194
  %v2264 = vunpack.c.l.b16 %v2195
  %v2265 = vunpack.c.h.b16 %v2195
  %v2266 = vunpack.c.l.b16 %v2196
  %v2267 = vunpack.c.h.b16 %v2196
  %v2268 = vunpack.c.l.b16 %v2197
  %v2269 = vunpack.c.h.b16 %v2197
  %v2270 = vunpack.c.l.b16 %v2198
  %v2271 = vunpack.c.h.b16 %v2198
  %v2272 = vunpack.c.l.b16 %v2199
  %v2273 = vunpack.c.h.b16 %v2199
  %v2274 = vunpack.c.l.b16 %v2200
  %v2275 = vunpack.c.h.b16 %v2200
  %v2276 = vunpack.c.l.b16 %v2201
  %v2277 = vunpack.c.h.b16 %v2201
  %v2278 = vunpack.c.l.b16 %v2202
  %v2279 = vunpack.c.h.b16 %v2202
  %v2280 = vunpack.c.l.b16 %v2203
  %v2281 = vunpack.c.h.b16 %v2203
  %v2282 = vunpack.c.l.b16 %v2204
  %v2283 = vunpack.c.h.b16 %v2204
  %v2284 = vunpack.c.l.b16 %v2205
  %v2285 = vunpack.c.h.b16 %v2205
  %v2286 = vunpack.c.l.b16 %v2206
  %v2287 = vunpack.c.h.b16 %v2206
  %v2288 = vunpack.c.l.b16 %v2207
  %v2289 = vunpack.c.h.b16 %v2207
  %v2290 = vunpack.c.l.b16 %v2208
  %v2291 = vunpack.c.h.b16 %v2208
  %v2292 = vunpack.c.l.b16 %v2209
  %v2293 = vunpack.c.h.b16 %v2209
  %v2294 = vunpack.c.l.b16 %v2210
  %v2295 = vunpack.c.h.b16 %v2210
  %v2296 = vunpack.c.l.b16 %v2211
  %v2297 = vunpack.c.h.b16 %v2211
  %v2298 = vunpack.c.l.b16 %v2212
  %v2299 = vunpack.c.h.b16 %v2212
  %v2300 = vunpack.c.l.b16 %v2213
  %v2301 = vunpack.c.h.b16 %v2213
  %v2302 = vunpack.c.l.b16 %v2214
  %v2303 = vunpack.c.h.b16 %v2214
  %v2304 = vunpack.c.l.b16 %v2215
  %v2305 = vunpack.c.h.b16 %v2215
  %v2306 = vunpack.c.l.b16 %v2216
  %v2307 = vunpack.c.h.b16 %v2216
  %v2308 = vunpack.c.l.b16 %v2217
  %v2309 = vunpack.c.h.b16 %v2217
  %v2310 = vunpack.c.l.b16 %v2218
  %v2311 = vunpack.c.h.b16 %v2218
  %v2312 = vunpack.c.l.b16 %v2219
  %v2313 = vunpack.c.h.b16 %v2219
  %v2314 = vunpack.c.l.b16 %v2220
  %v2315 = vunpack.c.h.b16 %v2220
  %v2316 = vunpack.c.l.b16 %v2221
  %v2317 = vunpack.c.h.b16 %v2221
  %v2318 = vpack.c.b16 %v2258, %v2254
  %v2319 = vpack.c.b16 %v2259, %v2255
  %v2320 = vpack.c.b16 %v2260, %v2256
  %v2321 = vpack.c.b16 %v2261, %v2257
  %v2322 = vpack.c.b16 %v2266, %v2262
  %v2323 = vpack.c.b16 %v2267, %v2263
  %v2324 = vpack.c.b16 %v2268, %v2264
  %v2325 = vpack.c.b16 %v2269, %v2265
  %v2326 = vpack.c.b16 %v2274, %v2270
  %v2327 = vpack.c.b16 %v2275, %v2271
  %v2328 = vpack.c.b16 %v2276, %v2272
  %v2329 = vpack.c.b16 %v2277, %v2273
  %v2330 = vpack.c.b16 %v2282, %v2278
  %v2331 = vpack.c.b16 %v2283, %v2279
  %v2332 = vpack.c.b16 %v2284, %v2280
  %v2333 = vpack.c.b16 %v2285, %v2281
  %v2334 = vpack.c.b16 %v2290, %v2286
  %v2335 = vpack.c.b16 %v2291, %v2287
  %v2336 = vpack.c.b16 %v2292, %v2288
  %v2337 = vpack.c.b16 %v2293, %v2289
  %v2338 = vpack.c.b16 %v2298, %v2294
  %v2339 = vpack.c.b16 %v2299, %v2295
  %v2340 = vpack.c.b16 %v2300, %v2296
  %v2341 = vpack.c.b16 %v2301, %v2297
  %v2342 = vpack.c.b16 %v2306, %v2302
  %v2343 = vpack.c.b16 %v2307, %v2303
  %v2344 = vpack.c.b16 %v2308, %v2304
  %v2345 = vpack.c.b16 %v2309, %v2305
  %v2346 = vpack.c.b16 %v2314, %v2310
  %v2347 = vpack.c.b16 %v2315, %v2311
  %v2348 = vpack.c.b16 %v2316, %v2312
  %v2349 = vpack.c.b16 %v2317, %v2313
  %2382 = vmatprep.subr.bf16.mxu0 %v2319
  %2383 = vmatpush1.bf16.msra.mxu0 %v2318
  %2384 = vmatprep.subr.bf16.mxu0 %v2323
  %2385 = vmatpush1.bf16.msra.mxu0 %v2322
  %2386 = vmatprep.subr.bf16.mxu0 %v2327
  %2387 = vmatpush1.bf16.msra.mxu0 %v2326
  %2388 = vmatprep.subr.bf16.mxu0 %v2331
  %2389 = vmatpush1.bf16.msra.mxu0 %v2330
  %2390 = vmatprep.subr.bf16.mxu0 %v2335
  %2391 = vmatpush1.bf16.msra.mxu0 %v2334
  %2392 = vmatprep.subr.bf16.mxu0 %v2339
  %2393 = vmatpush1.bf16.msra.mxu0 %v2338
  %2394 = vmatprep.subr.bf16.mxu0 %v2343
  %2395 = vmatpush1.bf16.msra.mxu0 %v2342
  %2396 = vmatprep.subr.bf16.mxu0 %v2347
  %2397 = vmatpush1.bf16.msra.mxu0 %v2346
  %2398 = vmatprep.subr.bf16.mxu0 0
  %2399 = vmatpush1.bf16.msra.mxu0 0
  %2400 = vmatprep.subr.bf16.mxu0 0
  %2401 = vmatpush1.bf16.msra.mxu0 0
  %2402 = vmatprep.subr.bf16.mxu0 0
  %2403 = vmatpush1.bf16.msra.mxu0 0
  %2404 = vmatprep.subr.bf16.mxu0 0
  %2405 = vmatpush1.bf16.msra.mxu0 0
  %2406 = vmatprep.subr.bf16.mxu0 0
  %2407 = vmatpush1.bf16.msra.mxu0 0
  %2408 = vmatprep.subr.bf16.mxu0 0
  %2409 = vmatpush1.bf16.msra.mxu0 0
  %2410 = vmatprep.subr.bf16.mxu0 0
  %2411 = vmatpush1.bf16.msra.mxu0 0
  %2412 = vmatprep.subr.bf16.mxu0 0
  %2413 = vmatpush1.bf16.msra.mxu0 0
  %2414 = vmatprep.mubr.bf16.mxu0 0
  %2415 = vmatmul.mubr.bf16.gmra.mrb[0].mxu0 %v2189
  %v2416 = vpop.f32.mrb[0].mxu0
  %v2417 = vadd.f32 0.0, %v2416
  %v2418 = vpop.f32.mrb[0].mxu0
  %v2419 = vadd.f32 0.0, %v2418
  %v2420 = vpop.f32.mrb[0].mxu0
  %v2421 = vpop.f32.mrb[0].mxu0
  %2422 = vdwg.mxu0
  %2423 = vmatprep.subr.bf16.mxu0 %v2321
  %2424 = vmatpush1.bf16.msra.mxu0 %v2320
  %2425 = vmatprep.subr.bf16.mxu0 %v2325
  %2426 = vmatpush1.bf16.msra.mxu0 %v2324
  %2427 = vmatprep.subr.bf16.mxu0 %v2329
  %2428 = vmatpush1.bf16.msra.mxu0 %v2328
  %2429 = vmatprep.subr.bf16.mxu0 %v2333
  %2430 = vmatpush1.bf16.msra.mxu0 %v2332
  %2431 = vmatprep.subr.bf16.mxu0 %v2337
  %2432 = vmatpush1.bf16.msra.mxu0 %v2336
  %2433 = vmatprep.subr.bf16.mxu0 %v2341
  %2434 = vmatpush1.bf16.msra.mxu0 %v2340
  %2435 = vmatprep.subr.bf16.mxu0 %v2345
  %2436 = vmatpush1.bf16.msra.mxu0 %v2344
  %2437 = vmatprep.subr.bf16.mxu0 %v2349
  %2438 = vmatpush1.bf16.msra.mxu0 %v2348
  %2439 = vmatprep.subr.bf16.mxu0 0
  %2440 = vmatpush1.bf16.msra.mxu0 0
  %2441 = vmatprep.subr.bf16.mxu0 0
  %2442 = vmatpush1.bf16.msra.mxu0 0
  %2443 = vmatprep.subr.bf16.mxu0 0
  %2444 = vmatpush1.bf16.msra.mxu0 0
  %2445 = vmatprep.subr.bf16.mxu0 0
  %2446 = vmatpush1.bf16.msra.mxu0 0
  %2447 = vmatprep.subr.bf16.mxu0 0
  %2448 = vmatpush1.bf16.msra.mxu0 0
  %2449 = vmatprep.subr.bf16.mxu0 0
  %2450 = vmatpush1.bf16.msra.mxu0 0
  %2451 = vmatprep.subr.bf16.mxu0 0
  %2452 = vmatpush1.bf16.msra.mxu0 0
  %2453 = vmatprep.subr.bf16.mxu0 0
  %2454 = vmatpush1.bf16.msra.mxu0 0
  %2455 = vmatprep.mubr.bf16.mxu0 0
  %2456 = vmatmul.mubr.bf16.gmra.mrb[0].mxu0 %v2189
  %v2457 = vpop.f32.mrb[0].mxu0
  %v2458 = vadd.f32 0.0, %v2457
  %v2459 = vpop.f32.mrb[0].mxu0
  %v2460 = vadd.f32 0.0, %v2459
  %v2461 = vpop.f32.mrb[0].mxu0
  %v2462 = vpop.f32.mrb[0].mxu0
  %2463 = vdwg.mxu0
  %v2468 = vcombine.low %v2417, %v2419
  %v2469 = vcombine.low %v2458, %v2460
  %v2471 = vunpack.c.l.s4 1966171168
  %v2472 = vunpack.c.0.s8 %v2471
  %v2473 = vlaneseq
  %v2474 = vshrl.u32 %v2473, 7
  %v2475 = vsub.s32 %v2472, %v2474
  %v2476 = vrot.slane %v2468, %v2475
  %v2478 = vunpack.c.l.s4 1966171168
  %v2479 = vunpack.c.0.s8 %v2478
  %v2480 = vlaneseq
  %v2481 = vshrl.u32 %v2480, 7
  %v2482 = vsub.s32 %v2479, %v2481
  %v2483 = vrot.slane %v2469, %v2482
  %v2484 = vcombine.low %v2476, %v2483
  %v2486 = vunpack.c.l.s4 1966171168
  %v2487 = vunpack.c.0.s8 %v2486
  %v2488 = vlaneseq
  %v2489 = vshrl.u32 %v2488, 7
  %v2490 = vsub.s32 %v2487, %v2489
  %v2491 = vrot.slane %v2484, %v2490
  %v2493 = vadd.f32 %v2188, %v2491
  %v2494 = vxor.u32 %v2493, 2147483648
  %v2495 = vmul.f32 %v2494, 1.442695
  %v2496 = vpow.pop %v2495
  %v2497 = vadd.f32 %v2496, 1.0
  %v2498 = vrcp.pop %v2497
  %v2499 = vmul.f32 1.0, %v2498
  %v2501 = vrot.slane %v2493, 3
  %v2503 = vtanh.pop %v2501
  %v2505 = vrot.slane %v2499, 1
  %v2507 = vmul.f32 %v2505, %v2181
  %v2508 = vmul.f32 %v2499, %v2503
  %v2509 = vadd.f32 %v2507, %v2508
  %v2510 = vtanh.pop %v2509
  %v2511 = vrot.slane %v2499, 2
  %v2513 = vmul.f32 %v2511, %v2510
  %2514 = vst [vmem:[#allocation3 + $0x6] sm:$0x1] %v2513
  %s2515 = scalar_lea.vmem [#allocation2], 7
  %v2516 = vld [vmem:[%s2515] ss:$8 sm:$0xf]
  %v2517 = vpack.c.bf16 %v2513, %v2513
  %v2518 = vld [vmem:[%s2] sm:$0xff]
  %v2519 = vld [vmem:[%s2 + $0x8] sm:$0xff]
  %v2520 = vld [vmem:[%s2 + $0x10] sm:$0xff]
  %v2521 = vld [vmem:[%s2 + $0x18] sm:$0xff]
  %v2522 = vld [vmem:[%s2 + $0x20] sm:$0xff]
  %v2523 = vld [vmem:[%s2 + $0x28] sm:$0xff]
  %v2524 = vld [vmem:[%s2 + $0x30] sm:$0xff]
  %v2525 = vld [vmem:[%s2 + $0x38] sm:$0xff]
  %v2526 = vld [vmem:[%s2 + $0x40] sm:$0xff]
  %v2527 = vld [vmem:[%s2 + $0x48] sm:$0xff]
  %v2528 = vld [vmem:[%s2 + $0x50] sm:$0xff]
  %v2529 = vld [vmem:[%s2 + $0x58] sm:$0xff]
  %v2530 = vld [vmem:[%s2 + $0x60] sm:$0xff]
  %v2531 = vld [vmem:[%s2 + $0x68] sm:$0xff]
  %v2532 = vld [vmem:[%s2 + $0x70] sm:$0xff]
  %v2533 = vld [vmem:[%s2 + $0x78] sm:$0xff]
  %v2534 = vld [vmem:[%s2 + $0x80] sm:$0xff]
  %v2535 = vld [vmem:[%s2 + $0x88] sm:$0xff]
  %v2536 = vld [vmem:[%s2 + $0x90] sm:$0xff]
  %v2537 = vld [vmem:[%s2 + $0x98] sm:$0xff]
  %v2538 = vld [vmem:[%s2 + $0xa0] sm:$0xff]
  %v2539 = vld [vmem:[%s2 + $0xa8] sm:$0xff]
  %v2540 = vld [vmem:[%s2 + $0xb0] sm:$0xff]
  %v2541 = vld [vmem:[%s2 + $0xb8] sm:$0xff]
  %v2542 = vld [vmem:[%s2 + $0xc0] sm:$0xff]
  %v2543 = vld [vmem:[%s2 + $0xc8] sm:$0xff]
  %v2544 = vld [vmem:[%s2 + $0xd0] sm:$0xff]
  %v2545 = vld [vmem:[%s2 + $0xd8] sm:$0xff]
  %v2546 = vld [vmem:[%s2 + $0xe0] sm:$0xff]
  %v2547 = vld [vmem:[%s2 + $0xe8] sm:$0xff]
  %v2548 = vld [vmem:[%s2 + $0xf0] sm:$0xff]
  %v2549 = vld [vmem:[%s2 + $0xf8] sm:$0xff]
  %v2582 = vunpack.c.l.b16 %v2518
  %v2583 = vunpack.c.h.b16 %v2518
  %v2584 = vunpack.c.l.b16 %v2519
  %v2585 = vunpack.c.h.b16 %v2519
  %v2586 = vunpack.c.l.b16 %v2520
  %v2587 = vunpack.c.h.b16 %v2520
  %v2588 = vunpack.c.l.b16 %v2521
  %v2589 = vunpack.c.h.b16 %v2521
  %v2590 = vunpack.c.l.b16 %v2522
  %v2591 = vunpack.c.h.b16 %v2522
  %v2592 = vunpack.c.l.b16 %v2523
  %v2593 = vunpack.c.h.b16 %v2523
  %v2594 = vunpack.c.l.b16 %v2524
  %v2595 = vunpack.c.h.b16 %v2524
  %v2596 = vunpack.c.l.b16 %v2525
  %v2597 = vunpack.c.h.b16 %v2525
  %v2598 = vunpack.c.l.b16 %v2526
  %v2599 = vunpack.c.h.b16 %v2526
  %v2600 = vunpack.c.l.b16 %v2527
  %v2601 = vunpack.c.h.b16 %v2527
  %v2602 = vunpack.c.l.b16 %v2528
  %v2603 = vunpack.c.h.b16 %v2528
  %v2604 = vunpack.c.l.b16 %v2529
  %v2605 = vunpack.c.h.b16 %v2529
  %v2606 = vunpack.c.l.b16 %v2530
  %v2607 = vunpack.c.h.b16 %v2530
  %v2608 = vunpack.c.l.b16 %v2531
  %v2609 = vunpack.c.h.b16 %v2531
  %v2610 = vunpack.c.l.b16 %v2532
  %v2611 = vunpack.c.h.b16 %v2532
  %v2612 = vunpack.c.l.b16 %v2533
  %v2613 = vunpack.c.h.b16 %v2533
  %v2614 = vunpack.c.l.b16 %v2534
  %v2615 = vunpack.c.h.b16 %v2534
  %v2616 = vunpack.c.l.b16 %v2535
  %v2617 = vunpack.c.h.b16 %v2535
  %v2618 = vunpack.c.l.b16 %v2536
  %v2619 = vunpack.c.h.b16 %v2536
  %v2620 = vunpack.c.l.b16 %v2537
  %v2621 = vunpack.c.h.b16 %v2537
  %v2622 = vunpack.c.l.b16 %v2538
  %v2623 = vunpack.c.h.b16 %v2538
  %v2624 = vunpack.c.l.b16 %v2539
  %v2625 = vunpack.c.h.b16 %v2539
  %v2626 = vunpack.c.l.b16 %v2540
  %v2627 = vunpack.c.h.b16 %v2540
  %v2628 = vunpack.c.l.b16 %v2541
  %v2629 = vunpack.c.h.b16 %v2541
  %v2630 = vunpack.c.l.b16 %v2542
  %v2631 = vunpack.c.h.b16 %v2542
  %v2632 = vunpack.c.l.b16 %v2543
  %v2633 = vunpack.c.h.b16 %v2543
  %v2634 = vunpack.c.l.b16 %v2544
  %v2635 = vunpack.c.h.b16 %v2544
  %v2636 = vunpack.c.l.b16 %v2545
  %v2637 = vunpack.c.h.b16 %v2545
  %v2638 = vunpack.c.l.b16 %v2546
  %v2639 = vunpack.c.h.b16 %v2546
  %v2640 = vunpack.c.l.b16 %v2547
  %v2641 = vunpack.c.h.b16 %v2547
  %v2642 = vunpack.c.l.b16 %v2548
  %v2643 = vunpack.c.h.b16 %v2548
  %v2644 = vunpack.c.l.b16 %v2549
  %v2645 = vunpack.c.h.b16 %v2549
  %v2646 = vpack.c.b16 %v2586, %v2582
  %v2647 = vpack.c.b16 %v2587, %v2583
  %v2648 = vpack.c.b16 %v2588, %v2584
  %v2649 = vpack.c.b16 %v2589, %v2585
  %v2650 = vpack.c.b16 %v2594, %v2590
  %v2651 = vpack.c.b16 %v2595, %v2591
  %v2652 = vpack.c.b16 %v2596, %v2592
  %v2653 = vpack.c.b16 %v2597, %v2593
  %v2654 = vpack.c.b16 %v2602, %v2598
  %v2655 = vpack.c.b16 %v2603, %v2599
  %v2656 = vpack.c.b16 %v2604, %v2600
  %v2657 = vpack.c.b16 %v2605, %v2601
  %v2658 = vpack.c.b16 %v2610, %v2606
  %v2659 = vpack.c.b16 %v2611, %v2607
  %v2660 = vpack.c.b16 %v2612, %v2608
  %v2661 = vpack.c.b16 %v2613, %v2609
  %v2662 = vpack.c.b16 %v2618, %v2614
  %v2663 = vpack.c.b16 %v2619, %v2615
  %v2664 = vpack.c.b16 %v2620, %v2616
  %v2665 = vpack.c.b16 %v2621, %v2617
  %v2666 = vpack.c.b16 %v2626, %v2622
  %v2667 = vpack.c.b16 %v2627, %v2623
  %v2668 = vpack.c.b16 %v2628, %v2624
  %v2669 = vpack.c.b16 %v2629, %v2625
  %v2670 = vpack.c.b16 %v2634, %v2630
  %v2671 = vpack.c.b16 %v2635, %v2631
  %v2672 = vpack.c.b16 %v2636, %v2632
  %v2673 = vpack.c.b16 %v2637, %v2633
  %v2674 = vpack.c.b16 %v2642, %v2638
  %v2675 = vpack.c.b16 %v2643, %v2639
  %v2676 = vpack.c.b16 %v2644, %v2640
  %v2677 = vpack.c.b16 %v2645, %v2641
  %2710 = vmatprep.subr.bf16.mxu0 %v2647
  %2711 = vmatpush1.bf16.msra.mxu0 %v2646
  %2712 = vmatprep.subr.bf16.mxu0 %v2651
  %2713 = vmatpush1.bf16.msra.mxu0 %v2650
  %2714 = vmatprep.subr.bf16.mxu0 %v2655
  %2715 = vmatpush1.bf16.msra.mxu0 %v2654
  %2716 = vmatprep.subr.bf16.mxu0 %v2659
  %2717 = vmatpush1.bf16.msra.mxu0 %v2658
  %2718 = vmatprep.subr.bf16.mxu0 %v2663
  %2719 = vmatpush1.bf16.msra.mxu0 %v2662
  %2720 = vmatprep.subr.bf16.mxu0 %v2667
  %2721 = vmatpush1.bf16.msra.mxu0 %v2666
  %2722 = vmatprep.subr.bf16.mxu0 %v2671
  %2723 = vmatpush1.bf16.msra.mxu0 %v2670
  %2724 = vmatprep.subr.bf16.mxu0 %v2675
  %2725 = vmatpush1.bf16.msra.mxu0 %v2674
  %2726 = vmatprep.subr.bf16.mxu0 0
  %2727 = vmatpush1.bf16.msra.mxu0 0
  %2728 = vmatprep.subr.bf16.mxu0 0
  %2729 = vmatpush1.bf16.msra.mxu0 0
  %2730 = vmatprep.subr.bf16.mxu0 0
  %2731 = vmatpush1.bf16.msra.mxu0 0
  %2732 = vmatprep.subr.bf16.mxu0 0
  %2733 = vmatpush1.bf16.msra.mxu0 0
  %2734 = vmatprep.subr.bf16.mxu0 0
  %2735 = vmatpush1.bf16.msra.mxu0 0
  %2736 = vmatprep.subr.bf16.mxu0 0
  %2737 = vmatpush1.bf16.msra.mxu0 0
  %2738 = vmatprep.subr.bf16.mxu0 0
  %2739 = vmatpush1.bf16.msra.mxu0 0
  %2740 = vmatprep.subr.bf16.mxu0 0
  %2741 = vmatpush1.bf16.msra.mxu0 0
  %2742 = vmatprep.mubr.bf16.mxu0 0
  %2743 = vmatmul.mubr.bf16.gmra.mrb[0].mxu0 %v2517
  %v2744 = vpop.f32.mrb[0].mxu0
  %v2745 = vadd.f32 0.0, %v2744
  %v2746 = vpop.f32.mrb[0].mxu0
  %v2747 = vadd.f32 0.0, %v2746
  %v2748 = vpop.f32.mrb[0].mxu0
  %v2749 = vpop.f32.mrb[0].mxu0
  %2750 = vdwg.mxu0
  %2751 = vmatprep.subr.bf16.mxu0 %v2649
  %2752 = vmatpush1.bf16.msra.mxu0 %v2648
  %2753 = vmatprep.subr.bf16.mxu0 %v2653
  %2754 = vmatpush1.bf16.msra.mxu0 %v2652
  %2755 = vmatprep.subr.bf16.mxu0 %v2657
  %2756 = vmatpush1.bf16.msra.mxu0 %v2656
  %2757 = vmatprep.subr.bf16.mxu0 %v2661
  %2758 = vmatpush1.bf16.msra.mxu0 %v2660
  %2759 = vmatprep.subr.bf16.mxu0 %v2665
  %2760 = vmatpush1.bf16.msra.mxu0 %v2664
  %2761 = vmatprep.subr.bf16.mxu0 %v2669
  %2762 = vmatpush1.bf16.msra.mxu0 %v2668
  %2763 = vmatprep.subr.bf16.mxu0 %v2673
  %2764 = vmatpush1.bf16.msra.mxu0 %v2672
  %2765 = vmatprep.subr.bf16.mxu0 %v2677
  %2766 = vmatpush1.bf16.msra.mxu0 %v2676
  %2767 = vmatprep.subr.bf16.mxu0 0
  %2768 = vmatpush1.bf16.msra.mxu0 0
  %2769 = vmatprep.subr.bf16.mxu0 0
  %2770 = vmatpush1.bf16.msra.mxu0 0
  %2771 = vmatprep.subr.bf16.mxu0 0
  %2772 = vmatpush1.bf16.msra.mxu0 0
  %2773 = vmatprep.subr.bf16.mxu0 0
  %2774 = vmatpush1.bf16.msra.mxu0 0
  %2775 = vmatprep.subr.bf16.mxu0 0
  %2776 = vmatpush1.bf16.msra.mxu0 0
  %2777 = vmatprep.subr.bf16.mxu0 0
  %2778 = vmatpush1.bf16.msra.mxu0 0
  %2779 = vmatprep.subr.bf16.mxu0 0
  %2780 = vmatpush1.bf16.msra.mxu0 0
  %2781 = vmatprep.subr.bf16.mxu0 0
  %2782 = vmatpush1.bf16.msra.mxu0 0
  %2783 = vmatprep.mubr.bf16.mxu0 0
  %2784 = vmatmul.mubr.bf16.gmra.mrb[0].mxu0 %v2517
  %v2785 = vpop.f32.mrb[0].mxu0
  %v2786 = vadd.f32 0.0, %v2785
  %v2787 = vpop.f32.mrb[0].mxu0
  %v2788 = vadd.f32 0.0, %v2787
  %v2789 = vpop.f32.mrb[0].mxu0
  %v2790 = vpop.f32.mrb[0].mxu0
  %2791 = vdwg.mxu0
  %v2796 = vcombine.low %v2745, %v2747
  %v2797 = vcombine.low %v2786, %v2788
  %v2799 = vunpack.c.l.s4 1966171168
  %v2800 = vunpack.c.0.s8 %v2799
  %v2801 = vlaneseq
  %v2802 = vshrl.u32 %v2801, 7
  %v2803 = vsub.s32 %v2800, %v2802
  %v2804 = vrot.slane %v2796, %v2803
  %v2806 = vunpack.c.l.s4 1966171168
  %v2807 = vunpack.c.0.s8 %v2806
  %v2808 = vlaneseq
  %v2809 = vshrl.u32 %v2808, 7
  %v2810 = vsub.s32 %v2807, %v2809
  %v2811 = vrot.slane %v2797, %v2810
  %v2812 = vcombine.low %v2804, %v2811
  %v2814 = vunpack.c.l.s4 1966171168
  %v2815 = vunpack.c.0.s8 %v2814
  %v2816 = vlaneseq
  %v2817 = vshrl.u32 %v2816, 7
  %v2818 = vsub.s32 %v2815, %v2817
  %v2819 = vrot.slane %v2812, %v2818
  %v2821 = vadd.f32 %v2516, %v2819
  %v2822 = vxor.u32 %v2821, 2147483648
  %v2823 = vmul.f32 %v2822, 1.442695
  %v2824 = vpow.pop %v2823
  %v2825 = vadd.f32 %v2824, 1.0
  %v2826 = vrcp.pop %v2825
  %v2827 = vmul.f32 1.0, %v2826
  %v2829 = vrot.slane %v2821, 3
  %v2831 = vtanh.pop %v2829
  %v2833 = vrot.slane %v2827, 1
  %v2835 = vmul.f32 %v2833, %v2509
  %v2836 = vmul.f32 %v2827, %v2831
  %v2837 = vadd.f32 %v2835, %v2836
  %v2838 = vtanh.pop %v2837
  %v2839 = vrot.slane %v2827, 2
  %v2841 = vmul.f32 %v2839, %v2838
  %2842 = vst [vmem:[#allocation3 + $0x7] sm:$0x1] %v2841
  %v2843 = vld [vmem:[#allocation3] sm:$0xff]
  %v2844 = vld [vmem:[%s4] sm:$0xff]
  %v2845 = vld [vmem:[%s4 + $0x8] sm:$0xff]
  %v2846 = vld [vmem:[%s4 + $0x10] sm:$0xff]
  %v2847 = vld [vmem:[%s4 + $0x18] sm:$0xff]
  %v2848 = vld [vmem:[%s4 + $0x20] sm:$0xff]
  %v2849 = vld [vmem:[%s4 + $0x28] sm:$0xff]
  %v2850 = vld [vmem:[%s4 + $0x30] sm:$0xff]
  %v2851 = vld [vmem:[%s4 + $0x38] sm:$0xff]
  %v2852 = vld [vmem:[%s4 + $0x40] sm:$0xff]
  %v2853 = vld [vmem:[%s4 + $0x48] sm:$0xff]
  %v2854 = vld [vmem:[%s4 + $0x50] sm:$0xff]
  %v2855 = vld [vmem:[%s4 + $0x58] sm:$0xff]
  %v2856 = vld [vmem:[%s4 + $0x60] sm:$0xff]
  %v2857 = vld [vmem:[%s4 + $0x68] sm:$0xff]
  %v2858 = vld [vmem:[%s4 + $0x70] sm:$0xff]
  %v2859 = vld [vmem:[%s4 + $0x78] sm:$0xff]
  %v2860 = vld [vmem:[%s4 + $0x80] sm:$0xff]
  %v2861 = vld [vmem:[%s4 + $0x88] sm:$0xff]
  %v2862 = vld [vmem:[%s4 + $0x90] sm:$0xff]
  %v2863 = vld [vmem:[%s4 + $0x98] sm:$0xff]
  %v2864 = vld [vmem:[%s4 + $0xa0] sm:$0xff]
  %v2865 = vld [vmem:[%s4 + $0xa8] sm:$0xff]
  %v2866 = vld [vmem:[%s4 + $0xb0] sm:$0xff]
  %v2867 = vld [vmem:[%s4 + $0xb8] sm:$0xff]
  %v2868 = vld [vmem:[%s4 + $0xc0] sm:$0xff]
  %v2869 = vld [vmem:[%s4 + $0xc8] sm:$0xff]
  %v2870 = vld [vmem:[%s4 + $0xd0] sm:$0xff]
  %v2871 = vld [vmem:[%s4 + $0xd8] sm:$0xff]
  %v2872 = vld [vmem:[%s4 + $0xe0] sm:$0xff]
  %v2873 = vld [vmem:[%s4 + $0xe8] sm:$0xff]
  %v2874 = vld [vmem:[%s4 + $0xf0] sm:$0xff]
  %v2875 = vld [vmem:[%s4 + $0xf8] sm:$0xff]
  %v2876 = vld [vmem:[%s4 + $0x100] sm:$0xff]
  %v2877 = vld [vmem:[%s4 + $0x108] sm:$0xff]
  %v2878 = vld [vmem:[%s4 + $0x110] sm:$0xff]
  %v2879 = vld [vmem:[%s4 + $0x118] sm:$0xff]
  %v2880 = vld [vmem:[%s4 + $0x120] sm:$0xff]
  %v2881 = vld [vmem:[%s4 + $0x128] sm:$0xff]
  %v2882 = vld [vmem:[%s4 + $0x130] sm:$0xff]
  %v2883 = vld [vmem:[%s4 + $0x138] sm:$0xff]
  %v2884 = vld [vmem:[%s4 + $0x140] sm:$0xff]
  %v2885 = vld [vmem:[%s4 + $0x148] sm:$0xff]
  %v2886 = vld [vmem:[%s4 + $0x150] sm:$0xff]
  %v2887 = vld [vmem:[%s4 + $0x158] sm:$0xff]
  %v2888 = vld [vmem:[%s4 + $0x160] sm:$0xff]
  %v2889 = vld [vmem:[%s4 + $0x168] sm:$0xff]
  %v2890 = vld [vmem:[%s4 + $0x170] sm:$0xff]
  %v2891 = vld [vmem:[%s4 + $0x178] sm:$0xff]
  %v2892 = vld [vmem:[%s4 + $0x180] sm:$0xff]
  %v2893 = vld [vmem:[%s4 + $0x188] sm:$0xff]
  %v2894 = vld [vmem:[%s4 + $0x190] sm:$0xff]
  %v2895 = vld [vmem:[%s4 + $0x198] sm:$0xff]
  %v2896 = vld [vmem:[%s4 + $0x1a0] sm:$0xff]
  %v2897 = vld [vmem:[%s4 + $0x1a8] sm:$0xff]
  %v2898 = vld [vmem:[%s4 + $0x1b0] sm:$0xff]
  %v2899 = vld [vmem:[%s4 + $0x1b8] sm:$0xff]
  %v2900 = vld [vmem:[%s4 + $0x1c0] sm:$0xff]
  %v2901 = vld [vmem:[%s4 + $0x1c8] sm:$0xff]
  %v2902 = vld [vmem:[%s4 + $0x1d0] sm:$0xff]
  %v2903 = vld [vmem:[%s4 + $0x1d8] sm:$0xff]
  %v2904 = vld [vmem:[%s4 + $0x1e0] sm:$0xff]
  %v2905 = vld [vmem:[%s4 + $0x1e8] sm:$0xff]
  %v2906 = vld [vmem:[%s4 + $0x1f0] sm:$0xff]
  %v2907 = vld [vmem:[%s4 + $0x1f8] sm:$0xff]
  %v2908 = vld [vmem:[%s6] sm:$0xf]
  %v2910 = vlaneseq
  %v2911 = vshrl.u32 %v2910, 7
  %v2912 = vsub.s32 0, %v2911
  %v2913 = vrot.slane %v2908, %v2912
  %v2914 = vlaneseq
  %v2915 = vshrl.u32 %v2914, 7
  %v2916 = vsub.s32 1, %v2915
  %v2917 = vrot.slane %v2908, %v2916
  %v2918 = vlaneseq
  %v2919 = vshrl.u32 %v2918, 7
  %v2920 = vsub.s32 2, %v2919
  %v2921 = vrot.slane %v2908, %v2920
  %v2922 = vlaneseq
  %v2923 = vshrl.u32 %v2922, 7
  %v2924 = vsub.s32 3, %v2923
  %v2925 = vrot.slane %v2908, %v2924
  %2930 = vmatprep.subr.mxu0 %v2845
  %2931 = vmatpush1.msra.mxu0 %v2844
  %2932 = vmatprep.subr.mxu0 %v2849
  %2933 = vmatpush1.msra.mxu0 %v2848
  %2934 = vmatprep.subr.mxu0 %v2853
  %2935 = vmatpush1.msra.mxu0 %v2852
  %2936 = vmatprep.subr.mxu0 %v2857
  %2937 = vmatpush1.msra.mxu0 %v2856
  %2938 = vmatprep.subr.mxu0 %v2861
  %2939 = vmatpush1.msra.mxu0 %v2860
  %2940 = vmatprep.subr.mxu0 %v2865
  %2941 = vmatpush1.msra.mxu0 %v2864
  %2942 = vmatprep.subr.mxu0 %v2869
  %2943 = vmatpush1.msra.mxu0 %v2868
  %2944 = vmatprep.subr.mxu0 %v2873
  %2945 = vmatpush1.msra.mxu0 %v2872
  %2946 = vmatprep.subr.mxu0 %v2877
  %2947 = vmatpush1.msra.mxu0 %v2876
  %2948 = vmatprep.subr.mxu0 %v2881
  %2949 = vmatpush1.msra.mxu0 %v2880
  %2950 = vmatprep.subr.mxu0 %v2885
  %2951 = vmatpush1.msra.mxu0 %v2884
  %2952 = vmatprep.subr.mxu0 %v2889
  %2953 = vmatpush1.msra.mxu0 %v2888
  %2954 = vmatprep.subr.mxu0 %v2893
  %2955 = vmatpush1.msra.mxu0 %v2892
  %2956 = vmatprep.subr.mxu0 %v2897
  %2957 = vmatpush1.msra.mxu0 %v2896
  %2958 = vmatprep.subr.mxu0 %v2901
  %2959 = vmatpush1.msra.mxu0 %v2900
  %2960 = vmatprep.subr.mxu0 %v2905
  %2961 = vmatpush1.msra.mxu0 %v2904
  %2962 = vmatprep.subr.mxu0 0.0
  %2963 = vmatpush1.msra.mxu0 0.0
  %2964 = vmatprep.subr.mxu0 0.0
  %2965 = vmatpush1.msra.mxu0 0.0
  %2966 = vmatprep.subr.mxu0 0.0
  %2967 = vmatpush1.msra.mxu0 0.0
  %2968 = vmatprep.subr.mxu0 0.0
  %2969 = vmatpush1.msra.mxu0 0.0
  %2970 = vmatprep.subr.mxu0 0.0
  %2971 = vmatpush1.msra.mxu0 0.0
  %2972 = vmatprep.subr.mxu0 0.0
  %2973 = vmatpush1.msra.mxu0 0.0
  %2974 = vmatprep.subr.mxu0 0.0
  %2975 = vmatpush1.msra.mxu0 0.0
  %2976 = vmatprep.subr.mxu0 0.0
  %2977 = vmatpush1.msra.mxu0 0.0
  %2978 = vmatprep.subr.mxu0 0.0
  %2979 = vmatpush1.msra.mxu0 0.0
  %2980 = vmatprep.subr.mxu0 0.0
  %2981 = vmatpush1.msra.mxu0 0.0
  %2982 = vmatprep.subr.mxu0 0.0
  %2983 = vmatpush1.msra.mxu0 0.0
  %2984 = vmatprep.subr.mxu0 0.0
  %2985 = vmatpush1.msra.mxu0 0.0
  %2986 = vmatprep.subr.mxu0 0.0
  %2987 = vmatpush1.msra.mxu0 0.0
  %2988 = vmatprep.subr.mxu0 0.0
  %2989 = vmatpush1.msra.mxu0 0.0
  %2990 = vmatprep.subr.mxu0 0.0
  %2991 = vmatpush1.msra.mxu0 0.0
  %2992 = vmatprep.subr.mxu0 0.0
  %2993 = vmatpush1.msra.mxu0 0.0
  %2994 = vmatprep.mubr.f32.mxu0 0.0
  %2995 = vmatmul.mubr.f32.gmra.mrb[0].mxu0 %v2843
  %v2996 = vpop.f32.mrb[0].mxu0
  %v2997 = vadd.f32 %v2913, %v2996
  %v2998 = vpop.f32.mrb[0].mxu0
  %v2999 = vadd.f32 %v2917, %v2998
  %3000 = vdwg.mxu0
  %3001 = vmatprep.subr.mxu0 %v2847
  %3002 = vmatpush1.msra.mxu0 %v2846
  %3003 = vmatprep.subr.mxu0 %v2851
  %3004 = vmatpush1.msra.mxu0 %v2850
  %3005 = vmatprep.subr.mxu0 %v2855
  %3006 = vmatpush1.msra.mxu0 %v2854
  %3007 = vmatprep.subr.mxu0 %v2859
  %3008 = vmatpush1.msra.mxu0 %v2858
  %3009 = vmatprep.subr.mxu0 %v2863
  %3010 = vmatpush1.msra.mxu0 %v2862
  %3011 = vmatprep.subr.mxu0 %v2867
  %3012 = vmatpush1.msra.mxu0 %v2866
  %3013 = vmatprep.subr.mxu0 %v2871
  %3014 = vmatpush1.msra.mxu0 %v2870
  %3015 = vmatprep.subr.mxu0 %v2875
  %3016 = vmatpush1.msra.mxu0 %v2874
  %3017 = vmatprep.subr.mxu0 %v2879
  %3018 = vmatpush1.msra.mxu0 %v2878
  %3019 = vmatprep.subr.mxu0 %v2883
  %3020 = vmatpush1.msra.mxu0 %v2882
  %3021 = vmatprep.subr.mxu0 %v2887
  %3022 = vmatpush1.msra.mxu0 %v2886
  %3023 = vmatprep.subr.mxu0 %v2891
  %3024 = vmatpush1.msra.mxu0 %v2890
  %3025 = vmatprep.subr.mxu0 %v2895
  %3026 = vmatpush1.msra.mxu0 %v2894
  %3027 = vmatprep.subr.mxu0 %v2899
  %3028 = vmatpush1.msra.mxu0 %v2898
  %3029 = vmatprep.subr.mxu0 %v2903
  %3030 = vmatpush1.msra.mxu0 %v2902
  %3031 = vmatprep.subr.mxu0 %v2907
  %3032 = vmatpush1.msra.mxu0 %v2906
  %3033 = vmatprep.subr.mxu0 0.0
  %3034 = vmatpush1.msra.mxu0 0.0
  %3035 = vmatprep.subr.mxu0 0.0
  %3036 = vmatpush1.msra.mxu0 0.0
  %3037 = vmatprep.subr.mxu0 0.0
  %3038 = vmatpush1.msra.mxu0 0.0
  %3039 = vmatprep.subr.mxu0 0.0
  %3040 = vmatpush1.msra.mxu0 0.0
  %3041 = vmatprep.subr.mxu0 0.0
  %3042 = vmatpush1.msra.mxu0 0.0
  %3043 = vmatprep.subr.mxu0 0.0
  %3044 = vmatpush1.msra.mxu0 0.0
  %3045 = vmatprep.subr.mxu0 0.0
  %3046 = vmatpush1.msra.mxu0 0.0
  %3047 = vmatprep.subr.mxu0 0.0
  %3048 = vmatpush1.msra.mxu0 0.0
  %3049 = vmatprep.subr.mxu0 0.0
  %3050 = vmatpush1.msra.mxu0 0.0
  %3051 = vmatprep.subr.mxu0 0.0
  %3052 = vmatpush1.msra.mxu0 0.0
  %3053 = vmatprep.subr.mxu0 0.0
  %3054 = vmatpush1.msra.mxu0 0.0
  %3055 = vmatprep.subr.mxu0 0.0
  %3056 = vmatpush1.msra.mxu0 0.0
  %3057 = vmatprep.subr.mxu0 0.0
  %3058 = vmatpush1.msra.mxu0 0.0
  %3059 = vmatprep.subr.mxu0 0.0
  %3060 = vmatpush1.msra.mxu0 0.0
  %3061 = vmatprep.subr.mxu0 0.0
  %3062 = vmatpush1.msra.mxu0 0.0
  %3063 = vmatprep.subr.mxu0 0.0
  %3064 = vmatpush1.msra.mxu0 0.0
  %3065 = vmatprep.mubr.f32.mxu0 0.0
  %3066 = vmatmul.mubr.f32.gmra.mrb[0].mxu0 %v2843
  %v3067 = vpop.f32.mrb[0].mxu0
  %v3068 = vadd.f32 %v2921, %v3067
  %v3069 = vpop.f32.mrb[0].mxu0
  %v3070 = vadd.f32 %v2925, %v3069
  %3071 = vdwg.mxu0
  %3072 = vst [vmem:[#allocation2] sm:$0xff] %v2997
  %3073 = vst [vmem:[#allocation2 + $0x8] sm:$0xff] %v2999
  %3074 = vst [vmem:[#allocation2 + $0x10] sm:$0xff] %v3068
  %3075 = vst [vmem:[#allocation2 + $0x18] sm:$0xff] %v3070
  %v3076 = vld [vmem:[#allocation2] ss:$8 sm:$0xf]
  %v3077 = vld [vmem:[%s5] sm:$0xff]
  %v3078 = vld [vmem:[%s5 + $0x8] sm:$0xff]
  %v3079 = vld [vmem:[%s5 + $0x10] sm:$0xff]
  %v3080 = vld [vmem:[%s5 + $0x18] sm:$0xff]
  %v3081 = vld [vmem:[%s5 + $0x20] sm:$0xff]
  %v3082 = vld [vmem:[%s5 + $0x28] sm:$0xff]
  %v3083 = vld [vmem:[%s5 + $0x30] sm:$0xff]
  %v3084 = vld [vmem:[%s5 + $0x38] sm:$0xff]
  %v3085 = vld [vmem:[%s5 + $0x40] sm:$0xff]
  %v3086 = vld [vmem:[%s5 + $0x48] sm:$0xff]
  %v3087 = vld [vmem:[%s5 + $0x50] sm:$0xff]
  %v3088 = vld [vmem:[%s5 + $0x58] sm:$0xff]
  %v3089 = vld [vmem:[%s5 + $0x60] sm:$0xff]
  %v3090 = vld [vmem:[%s5 + $0x68] sm:$0xff]
  %v3091 = vld [vmem:[%s5 + $0x70] sm:$0xff]
  %v3092 = vld [vmem:[%s5 + $0x78] sm:$0xff]
  %v3093 = vld [vmem:[%s5 + $0x80] sm:$0xff]
  %v3094 = vld [vmem:[%s5 + $0x88] sm:$0xff]
  %v3095 = vld [vmem:[%s5 + $0x90] sm:$0xff]
  %v3096 = vld [vmem:[%s5 + $0x98] sm:$0xff]
  %v3097 = vld [vmem:[%s5 + $0xa0] sm:$0xff]
  %v3098 = vld [vmem:[%s5 + $0xa8] sm:$0xff]
  %v3099 = vld [vmem:[%s5 + $0xb0] sm:$0xff]
  %v3100 = vld [vmem:[%s5 + $0xb8] sm:$0xff]
  %v3101 = vld [vmem:[%s5 + $0xc0] sm:$0xff]
  %v3102 = vld [vmem:[%s5 + $0xc8] sm:$0xff]
  %v3103 = vld [vmem:[%s5 + $0xd0] sm:$0xff]
  %v3104 = vld [vmem:[%s5 + $0xd8] sm:$0xff]
  %v3105 = vld [vmem:[%s5 + $0xe0] sm:$0xff]
  %v3106 = vld [vmem:[%s5 + $0xe8] sm:$0xff]
  %v3107 = vld [vmem:[%s5 + $0xf0] sm:$0xff]
  %v3108 = vld [vmem:[%s5 + $0xf8] sm:$0xff]
  %v3141 = vunpack.c.l.b16 %v3077
  %v3142 = vunpack.c.h.b16 %v3077
  %v3143 = vunpack.c.l.b16 %v3078
  %v3144 = vunpack.c.h.b16 %v3078
  %v3145 = vunpack.c.l.b16 %v3079
  %v3146 = vunpack.c.h.b16 %v3079
  %v3147 = vunpack.c.l.b16 %v3080
  %v3148 = vunpack.c.h.b16 %v3080
  %v3149 = vunpack.c.l.b16 %v3081
  %v3150 = vunpack.c.h.b16 %v3081
  %v3151 = vunpack.c.l.b16 %v3082
  %v3152 = vunpack.c.h.b16 %v3082
  %v3153 = vunpack.c.l.b16 %v3083
  %v3154 = vunpack.c.h.b16 %v3083
  %v3155 = vunpack.c.l.b16 %v3084
  %v3156 = vunpack.c.h.b16 %v3084
  %v3157 = vunpack.c.l.b16 %v3085
  %v3158 = vunpack.c.h.b16 %v3085
  %v3159 = vunpack.c.l.b16 %v3086
  %v3160 = vunpack.c.h.b16 %v3086
  %v3161 = vunpack.c.l.b16 %v3087
  %v3162 = vunpack.c.h.b16 %v3087
  %v3163 = vunpack.c.l.b16 %v3088
  %v3164 = vunpack.c.h.b16 %v3088
  %v3165 = vunpack.c.l.b16 %v3089
  %v3166 = vunpack.c.h.b16 %v3089
  %v3167 = vunpack.c.l.b16 %v3090
  %v3168 = vunpack.c.h.b16 %v3090
  %v3169 = vunpack.c.l.b16 %v3091
  %v3170 = vunpack.c.h.b16 %v3091
  %v3171 = vunpack.c.l.b16 %v3092
  %v3172 = vunpack.c.h.b16 %v3092
  %v3173 = vunpack.c.l.b16 %v3093
  %v3174 = vunpack.c.h.b16 %v3093
  %v3175 = vunpack.c.l.b16 %v3094
  %v3176 = vunpack.c.h.b16 %v3094
  %v3177 = vunpack.c.l.b16 %v3095
  %v3178 = vunpack.c.h.b16 %v3095
  %v3179 = vunpack.c.l.b16 %v3096
  %v3180 = vunpack.c.h.b16 %v3096
  %v3181 = vunpack.c.l.b16 %v3097
  %v3182 = vunpack.c.h.b16 %v3097
  %v3183 = vunpack.c.l.b16 %v3098
  %v3184 = vunpack.c.h.b16 %v3098
  %v3185 = vunpack.c.l.b16 %v3099
  %v3186 = vunpack.c.h.b16 %v3099
  %v3187 = vunpack.c.l.b16 %v3100
  %v3188 = vunpack.c.h.b16 %v3100
  %v3189 = vunpack.c.l.b16 %v3101
  %v3190 = vunpack.c.h.b16 %v3101
  %v3191 = vunpack.c.l.b16 %v3102
  %v3192 = vunpack.c.h.b16 %v3102
  %v3193 = vunpack.c.l.b16 %v3103
  %v3194 = vunpack.c.h.b16 %v3103
  %v3195 = vunpack.c.l.b16 %v3104
  %v3196 = vunpack.c.h.b16 %v3104
  %v3197 = vunpack.c.l.b16 %v3105
  %v3198 = vunpack.c.h.b16 %v3105
  %v3199 = vunpack.c.l.b16 %v3106
  %v3200 = vunpack.c.h.b16 %v3106
  %v3201 = vunpack.c.l.b16 %v3107
  %v3202 = vunpack.c.h.b16 %v3107
  %v3203 = vunpack.c.l.b16 %v3108
  %v3204 = vunpack.c.h.b16 %v3108
  %v3205 = vpack.c.b16 %v3145, %v3141
  %v3206 = vpack.c.b16 %v3146, %v3142
  %v3207 = vpack.c.b16 %v3147, %v3143
  %v3208 = vpack.c.b16 %v3148, %v3144
  %v3209 = vpack.c.b16 %v3153, %v3149
  %v3210 = vpack.c.b16 %v3154, %v3150
  %v3211 = vpack.c.b16 %v3155, %v3151
  %v3212 = vpack.c.b16 %v3156, %v3152
  %v3213 = vpack.c.b16 %v3161, %v3157
  %v3214 = vpack.c.b16 %v3162, %v3158
  %v3215 = vpack.c.b16 %v3163, %v3159
  %v3216 = vpack.c.b16 %v3164, %v3160
  %v3217 = vpack.c.b16 %v3169, %v3165
  %v3218 = vpack.c.b16 %v3170, %v3166
  %v3219 = vpack.c.b16 %v3171, %v3167
  %v3220 = vpack.c.b16 %v3172, %v3168
  %v3221 = vpack.c.b16 %v3177, %v3173
  %v3222 = vpack.c.b16 %v3178, %v3174
  %v3223 = vpack.c.b16 %v3179, %v3175
  %v3224 = vpack.c.b16 %v3180, %v3176
  %v3225 = vpack.c.b16 %v3185, %v3181
  %v3226 = vpack.c.b16 %v3186, %v3182
  %v3227 = vpack.c.b16 %v3187, %v3183
  %v3228 = vpack.c.b16 %v3188, %v3184
  %v3229 = vpack.c.b16 %v3193, %v3189
  %v3230 = vpack.c.b16 %v3194, %v3190
  %v3231 = vpack.c.b16 %v3195, %v3191
  %v3232 = vpack.c.b16 %v3196, %v3192
  %v3233 = vpack.c.b16 %v3201, %v3197
  %v3234 = vpack.c.b16 %v3202, %v3198
  %v3235 = vpack.c.b16 %v3203, %v3199
  %v3236 = vpack.c.b16 %v3204, %v3200
  %3269 = vmatprep.subr.bf16.mxu0 %v3206
  %3270 = vmatpush1.bf16.msra.mxu0 %v3205
  %3271 = vmatprep.subr.bf16.mxu0 %v3210
  %3272 = vmatpush1.bf16.msra.mxu0 %v3209
  %3273 = vmatprep.subr.bf16.mxu0 %v3214
  %3274 = vmatpush1.bf16.msra.mxu0 %v3213
  %3275 = vmatprep.subr.bf16.mxu0 %v3218
  %3276 = vmatpush1.bf16.msra.mxu0 %v3217
  %3277 = vmatprep.subr.bf16.mxu0 %v3222
  %3278 = vmatpush1.bf16.msra.mxu0 %v3221
  %3279 = vmatprep.subr.bf16.mxu0 %v3226
  %3280 = vmatpush1.bf16.msra.mxu0 %v3225
  %3281 = vmatprep.subr.bf16.mxu0 %v3230
  %3282 = vmatpush1.bf16.msra.mxu0 %v3229
  %3283 = vmatprep.subr.bf16.mxu0 %v3234
  %3284 = vmatpush1.bf16.msra.mxu0 %v3233
  %3285 = vmatprep.subr.bf16.mxu0 0
  %3286 = vmatpush1.bf16.msra.mxu0 0
  %3287 = vmatprep.subr.bf16.mxu0 0
  %3288 = vmatpush1.bf16.msra.mxu0 0
  %3289 = vmatprep.subr.bf16.mxu0 0
  %3290 = vmatpush1.bf16.msra.mxu0 0
  %3291 = vmatprep.subr.bf16.mxu0 0
  %3292 = vmatpush1.bf16.msra.mxu0 0
  %3293 = vmatprep.subr.bf16.mxu0 0
  %3294 = vmatpush1.bf16.msra.mxu0 0
  %3295 = vmatprep.subr.bf16.mxu0 0
  %3296 = vmatpush1.bf16.msra.mxu0 0
  %3297 = vmatprep.subr.bf16.mxu0 0
  %3298 = vmatpush1.bf16.msra.mxu0 0
  %3299 = vmatprep.subr.bf16.mxu0 0
  %3300 = vmatpush1.bf16.msra.mxu0 0
  %3301 = vmatprep.mubr.bf16.mxu0 0
  %3302 = vmatmul.mubr.bf16.gmra.mrb[0].mxu0 0
  %v3303 = vpop.f32.mrb[0].mxu0
  %v3304 = vadd.f32 0.0, %v3303
  %v3305 = vpop.f32.mrb[0].mxu0
  %v3306 = vadd.f32 0.0, %v3305
  %v3307 = vpop.f32.mrb[0].mxu0
  %v3308 = vpop.f32.mrb[0].mxu0
  %3309 = vdwg.mxu0
  %3310 = vmatprep.subr.bf16.mxu0 %v3208
  %3311 = vmatpush1.bf16.msra.mxu0 %v3207
  %3312 = vmatprep.subr.bf16.mxu0 %v3212
  %3313 = vmatpush1.bf16.msra.mxu0 %v3211
  %3314 = vmatprep.subr.bf16.mxu0 %v3216
  %3315 = vmatpush1.bf16.msra.mxu0 %v3215
  %3316 = vmatprep.subr.bf16.mxu0 %v3220
  %3317 = vmatpush1.bf16.msra.mxu0 %v3219
  %3318 = vmatprep.subr.bf16.mxu0 %v3224
  %3319 = vmatpush1.bf16.msra.mxu0 %v3223
  %3320 = vmatprep.subr.bf16.mxu0 %v3228
  %3321 = vmatpush1.bf16.msra.mxu0 %v3227
  %3322 = vmatprep.subr.bf16.mxu0 %v3232
  %3323 = vmatpush1.bf16.msra.mxu0 %v3231
  %3324 = vmatprep.subr.bf16.mxu0 %v3236
  %3325 = vmatpush1.bf16.msra.mxu0 %v3235
  %3326 = vmatprep.subr.bf16.mxu0 0
  %3327 = vmatpush1.bf16.msra.mxu0 0
  %3328 = vmatprep.subr.bf16.mxu0 0
  %3329 = vmatpush1.bf16.msra.mxu0 0
  %3330 = vmatprep.subr.bf16.mxu0 0
  %3331 = vmatpush1.bf16.msra.mxu0 0
  %3332 = vmatprep.subr.bf16.mxu0 0
  %3333 = vmatpush1.bf16.msra.mxu0 0
  %3334 = vmatprep.subr.bf16.mxu0 0
  %3335 = vmatpush1.bf16.msra.mxu0 0
  %3336 = vmatprep.subr.bf16.mxu0 0
  %3337 = vmatpush1.bf16.msra.mxu0 0
  %3338 = vmatprep.subr.bf16.mxu0 0
  %3339 = vmatpush1.bf16.msra.mxu0 0
  %3340 = vmatprep.subr.bf16.mxu0 0
  %3341 = vmatpush1.bf16.msra.mxu0 0
  %3342 = vmatprep.mubr.bf16.mxu0 0
  %3343 = vmatmul.mubr.bf16.gmra.mrb[0].mxu0 0
  %v3344 = vpop.f32.mrb[0].mxu0
  %v3345 = vadd.f32 0.0, %v3344
  %v3346 = vpop.f32.mrb[0].mxu0
  %v3347 = vadd.f32 0.0, %v3346
  %v3348 = vpop.f32.mrb[0].mxu0
  %v3349 = vpop.f32.mrb[0].mxu0
  %3350 = vdwg.mxu0
  %v3355 = vcombine.low %v3304, %v3306
  %v3356 = vcombine.low %v3345, %v3347
  %v3358 = vunpack.c.l.s4 1966171168
  %v3359 = vunpack.c.0.s8 %v3358
  %v3360 = vlaneseq
  %v3361 = vshrl.u32 %v3360, 7
  %v3362 = vsub.s32 %v3359, %v3361
  %v3363 = vrot.slane %v3355, %v3362
  %v3365 = vunpack.c.l.s4 1966171168
  %v3366 = vunpack.c.0.s8 %v3365
  %v3367 = vlaneseq
  %v3368 = vshrl.u32 %v3367, 7
  %v3369 = vsub.s32 %v3366, %v3368
  %v3370 = vrot.slane %v3356, %v3369
  %v3371 = vcombine.low %v3363, %v3370
  %v3373 = vunpack.c.l.s4 1966171168
  %v3374 = vunpack.c.0.s8 %v3373
  %v3375 = vlaneseq
  %v3376 = vshrl.u32 %v3375, 7
  %v3377 = vsub.s32 %v3374, %v3376
  %v3378 = vrot.slane %v3371, %v3377
  %v3380 = vadd.f32 %v3076, %v3378
  %v3381 = vxor.u32 %v3380, 2147483648
  %v3382 = vmul.f32 %v3381, 1.442695
  %v3383 = vpow.pop %v3382
  %v3384 = vadd.f32 %v3383, 1.0
  %v3385 = vrcp.pop %v3384
  %v3386 = vmul.f32 1.0, %v3385
  %v3388 = vrot.slane %v3380, 3
  %v3390 = vtanh.pop %v3388
  %v3392 = vrot.slane %v3386, 1
  %v3394 = vmul.f32 %v3392, 0.0
  %v3395 = vmul.f32 %v3386, %v3390
  %v3396 = vadd.f32 %v3394, %v3395
  %v3397 = vtanh.pop %v3396
  %v3398 = vrot.slane %v3386, 2
  %v3400 = vmul.f32 %v3398, %v3397
  %3401 = vst [vmem:[#allocation3] sm:$0x1] %v3400
  %v3402 = vld [vmem:[%s547] ss:$8 sm:$0xf]
  %v3403 = vpack.c.bf16 %v3400, %v3400
  %v3404 = vld [vmem:[%s5] sm:$0xff]
  %v3405 = vld [vmem:[%s5 + $0x8] sm:$0xff]
  %v3406 = vld [vmem:[%s5 + $0x10] sm:$0xff]
  %v3407 = vld [vmem:[%s5 + $0x18] sm:$0xff]
  %v3408 = vld [vmem:[%s5 + $0x20] sm:$0xff]
  %v3409 = vld [vmem:[%s5 + $0x28] sm:$0xff]
  %v3410 = vld [vmem:[%s5 + $0x30] sm:$0xff]
  %v3411 = vld [vmem:[%s5 + $0x38] sm:$0xff]
  %v3412 = vld [vmem:[%s5 + $0x40] sm:$0xff]
  %v3413 = vld [vmem:[%s5 + $0x48] sm:$0xff]
  %v3414 = vld [vmem:[%s5 + $0x50] sm:$0xff]
  %v3415 = vld [vmem:[%s5 + $0x58] sm:$0xff]
  %v3416 = vld [vmem:[%s5 + $0x60] sm:$0xff]
  %v3417 = vld [vmem:[%s5 + $0x68] sm:$0xff]
  %v3418 = vld [vmem:[%s5 + $0x70] sm:$0xff]
  %v3419 = vld [vmem:[%s5 + $0x78] sm:$0xff]
  %v3420 = vld [vmem:[%s5 + $0x80] sm:$0xff]
  %v3421 = vld [vmem:[%s5 + $0x88] sm:$0xff]
  %v3422 = vld [vmem:[%s5 + $0x90] sm:$0xff]
  %v3423 = vld [vmem:[%s5 + $0x98] sm:$0xff]
  %v3424 = vld [vmem:[%s5 + $0xa0] sm:$0xff]
  %v3425 = vld [vmem:[%s5 + $0xa8] sm:$0xff]
  %v3426 = vld [vmem:[%s5 + $0xb0] sm:$0xff]
  %v3427 = vld [vmem:[%s5 + $0xb8] sm:$0xff]
  %v3428 = vld [vmem:[%s5 + $0xc0] sm:$0xff]
  %v3429 = vld [vmem:[%s5 + $0xc8] sm:$0xff]
  %v3430 = vld [vmem:[%s5 + $0xd0] sm:$0xff]
  %v3431 = vld [vmem:[%s5 + $0xd8] sm:$0xff]
  %v3432 = vld [vmem:[%s5 + $0xe0] sm:$0xff]
  %v3433 = vld [vmem:[%s5 + $0xe8] sm:$0xff]
  %v3434 = vld [vmem:[%s5 + $0xf0] sm:$0xff]
  %v3435 = vld [vmem:[%s5 + $0xf8] sm:$0xff]
  %v3468 = vunpack.c.l.b16 %v3404
  %v3469 = vunpack.c.h.b16 %v3404
  %v3470 = vunpack.c.l.b16 %v3405
  %v3471 = vunpack.c.h.b16 %v3405
  %v3472 = vunpack.c.l.b16 %v3406
  %v3473 = vunpack.c.h.b16 %v3406
  %v3474 = vunpack.c.l.b16 %v3407
  %v3475 = vunpack.c.h.b16 %v3407
  %v3476 = vunpack.c.l.b16 %v3408
  %v3477 = vunpack.c.h.b16 %v3408
  %v3478 = vunpack.c.l.b16 %v3409
  %v3479 = vunpack.c.h.b16 %v3409
  %v3480 = vunpack.c.l.b16 %v3410
  %v3481 = vunpack.c.h.b16 %v3410
  %v3482 = vunpack.c.l.b16 %v3411
  %v3483 = vunpack.c.h.b16 %v3411
  %v3484 = vunpack.c.l.b16 %v3412
  %v3485 = vunpack.c.h.b16 %v3412
  %v3486 = vunpack.c.l.b16 %v3413
  %v3487 = vunpack.c.h.b16 %v3413
  %v3488 = vunpack.c.l.b16 %v3414
  %v3489 = vunpack.c.h.b16 %v3414
  %v3490 = vunpack.c.l.b16 %v3415
  %v3491 = vunpack.c.h.b16 %v3415
  %v3492 = vunpack.c.l.b16 %v3416
  %v3493 = vunpack.c.h.b16 %v3416
  %v3494 = vunpack.c.l.b16 %v3417
  %v3495 = vunpack.c.h.b16 %v3417
  %v3496 = vunpack.c.l.b16 %v3418
  %v3497 = vunpack.c.h.b16 %v3418
  %v3498 = vunpack.c.l.b16 %v3419
  %v3499 = vunpack.c.h.b16 %v3419
  %v3500 = vunpack.c.l.b16 %v3420
  %v3501 = vunpack.c.h.b16 %v3420
  %v3502 = vunpack.c.l.b16 %v3421
  %v3503 = vunpack.c.h.b16 %v3421
  %v3504 = vunpack.c.l.b16 %v3422
  %v3505 = vunpack.c.h.b16 %v3422
  %v3506 = vunpack.c.l.b16 %v3423
  %v3507 = vunpack.c.h.b16 %v3423
  %v3508 = vunpack.c.l.b16 %v3424
  %v3509 = vunpack.c.h.b16 %v3424
  %v3510 = vunpack.c.l.b16 %v3425
  %v3511 = vunpack.c.h.b16 %v3425
  %v3512 = vunpack.c.l.b16 %v3426
  %v3513 = vunpack.c.h.b16 %v3426
  %v3514 = vunpack.c.l.b16 %v3427
  %v3515 = vunpack.c.h.b16 %v3427
  %v3516 = vunpack.c.l.b16 %v3428
  %v3517 = vunpack.c.h.b16 %v3428
  %v3518 = vunpack.c.l.b16 %v3429
  %v3519 = vunpack.c.h.b16 %v3429
  %v3520 = vunpack.c.l.b16 %v3430
  %v3521 = vunpack.c.h.b16 %v3430
  %v3522 = vunpack.c.l.b16 %v3431
  %v3523 = vunpack.c.h.b16 %v3431
  %v3524 = vunpack.c.l.b16 %v3432
  %v3525 = vunpack.c.h.b16 %v3432
  %v3526 = vunpack.c.l.b16 %v3433
  %v3527 = vunpack.c.h.b16 %v3433
  %v3528 = vunpack.c.l.b16 %v3434
  %v3529 = vunpack.c.h.b16 %v3434
  %v3530 = vunpack.c.l.b16 %v3435
  %v3531 = vunpack.c.h.b16 %v3435
  %v3532 = vpack.c.b16 %v3472, %v3468
  %v3533 = vpack.c.b16 %v3473, %v3469
  %v3534 = vpack.c.b16 %v3474, %v3470
  %v3535 = vpack.c.b16 %v3475, %v3471
  %v3536 = vpack.c.b16 %v3480, %v3476
  %v3537 = vpack.c.b16 %v3481, %v3477
  %v3538 = vpack.c.b16 %v3482, %v3478
  %v3539 = vpack.c.b16 %v3483, %v3479
  %v3540 = vpack.c.b16 %v3488, %v3484
  %v3541 = vpack.c.b16 %v3489, %v3485
  %v3542 = vpack.c.b16 %v3490, %v3486
  %v3543 = vpack.c.b16 %v3491, %v3487
  %v3544 = vpack.c.b16 %v3496, %v3492
  %v3545 = vpack.c.b16 %v3497, %v3493
  %v3546 = vpack.c.b16 %v3498, %v3494
  %v3547 = vpack.c.b16 %v3499, %v3495
  %v3548 = vpack.c.b16 %v3504, %v3500
  %v3549 = vpack.c.b16 %v3505, %v3501
  %v3550 = vpack.c.b16 %v3506, %v3502
  %v3551 = vpack.c.b16 %v3507, %v3503
  %v3552 = vpack.c.b16 %v3512, %v3508
  %v3553 = vpack.c.b16 %v3513, %v3509
  %v3554 = vpack.c.b16 %v3514, %v3510
  %v3555 = vpack.c.b16 %v3515, %v3511
  %v3556 = vpack.c.b16 %v3520, %v3516
  %v3557 = vpack.c.b16 %v3521, %v3517
  %v3558 = vpack.c.b16 %v3522, %v3518
  %v3559 = vpack.c.b16 %v3523, %v3519
  %v3560 = vpack.c.b16 %v3528, %v3524
  %v3561 = vpack.c.b16 %v3529, %v3525
  %v3562 = vpack.c.b16 %v3530, %v3526
  %v3563 = vpack.c.b16 %v3531, %v3527
  %3596 = vmatprep.subr.bf16.mxu0 %v3533
  %3597 = vmatpush1.bf16.msra.mxu0 %v3532
  %3598 = vmatprep.subr.bf16.mxu0 %v3537
  %3599 = vmatpush1.bf16.msra.mxu0 %v3536
  %3600 = vmatprep.subr.bf16.mxu0 %v3541
  %3601 = vmatpush1.bf16.msra.mxu0 %v3540
  %3602 = vmatprep.subr.bf16.mxu0 %v3545
  %3603 = vmatpush1.bf16.msra.mxu0 %v3544
  %3604 = vmatprep.subr.bf16.mxu0 %v3549
  %3605 = vmatpush1.bf16.msra.mxu0 %v3548
  %3606 = vmatprep.subr.bf16.mxu0 %v3553
  %3607 = vmatpush1.bf16.msra.mxu0 %v3552
  %3608 = vmatprep.subr.bf16.mxu0 %v3557
  %3609 = vmatpush1.bf16.msra.mxu0 %v3556
  %3610 = vmatprep.subr.bf16.mxu0 %v3561
  %3611 = vmatpush1.bf16.msra.mxu0 %v3560
  %3612 = vmatprep.subr.bf16.mxu0 0
  %3613 = vmatpush1.bf16.msra.mxu0 0
  %3614 = vmatprep.subr.bf16.mxu0 0
  %3615 = vmatpush1.bf16.msra.mxu0 0
  %3616 = vmatprep.subr.bf16.mxu0 0
  %3617 = vmatpush1.bf16.msra.mxu0 0
  %3618 = vmatprep.subr.bf16.mxu0 0
  %3619 = vmatpush1.bf16.msra.mxu0 0
  %3620 = vmatprep.subr.bf16.mxu0 0
  %3621 = vmatpush1.bf16.msra.mxu0 0
  %3622 = vmatprep.subr.bf16.mxu0 0
  %3623 = vmatpush1.bf16.msra.mxu0 0
  %3624 = vmatprep.subr.bf16.mxu0 0
  %3625 = vmatpush1.bf16.msra.mxu0 0
  %3626 = vmatprep.subr.bf16.mxu0 0
  %3627 = vmatpush1.bf16.msra.mxu0 0
  %3628 = vmatprep.mubr.bf16.mxu0 0
  %3629 = vmatmul.mubr.bf16.gmra.mrb[0].mxu0 %v3403
  %v3630 = vpop.f32.mrb[0].mxu0
  %v3631 = vadd.f32 0.0, %v3630
  %v3632 = vpop.f32.mrb[0].mxu0
  %v3633 = vadd.f32 0.0, %v3632
  %v3634 = vpop.f32.mrb[0].mxu0
  %v3635 = vpop.f32.mrb[0].mxu0
  %3636 = vdwg.mxu0
  %3637 = vmatprep.subr.bf16.mxu0 %v3535
  %3638 = vmatpush1.bf16.msra.mxu0 %v3534
  %3639 = vmatprep.subr.bf16.mxu0 %v3539
  %3640 = vmatpush1.bf16.msra.mxu0 %v3538
  %3641 = vmatprep.subr.bf16.mxu0 %v3543
  %3642 = vmatpush1.bf16.msra.mxu0 %v3542
  %3643 = vmatprep.subr.bf16.mxu0 %v3547
  %3644 = vmatpush1.bf16.msra.mxu0 %v3546
  %3645 = vmatprep.subr.bf16.mxu0 %v3551
  %3646 = vmatpush1.bf16.msra.mxu0 %v3550
  %3647 = vmatprep.subr.bf16.mxu0 %v3555
  %3648 = vmatpush1.bf16.msra.mxu0 %v3554
  %3649 = vmatprep.subr.bf16.mxu0 %v3559
  %3650 = vmatpush1.bf16.msra.mxu0 %v3558
  %3651 = vmatprep.subr.bf16.mxu0 %v3563
  %3652 = vmatpush1.bf16.msra.mxu0 %v3562
  %3653 = vmatprep.subr.bf16.mxu0 0
  %3654 = vmatpush1.bf16.msra.mxu0 0
  %3655 = vmatprep.subr.bf16.mxu0 0
  %3656 = vmatpush1.bf16.msra.mxu0 0
  %3657 = vmatprep.subr.bf16.mxu0 0
  %3658 = vmatpush1.bf16.msra.mxu0 0
  %3659 = vmatprep.subr.bf16.mxu0 0
  %3660 = vmatpush1.bf16.msra.mxu0 0
  %3661 = vmatprep.subr.bf16.mxu0 0
  %3662 = vmatpush1.bf16.msra.mxu0 0
  %3663 = vmatprep.subr.bf16.mxu0 0
  %3664 = vmatpush1.bf16.msra.mxu0 0
  %3665 = vmatprep.subr.bf16.mxu0 0
  %3666 = vmatpush1.bf16.msra.mxu0 0
  %3667 = vmatprep.subr.bf16.mxu0 0
  %3668 = vmatpush1.bf16.msra.mxu0 0
  %3669 = vmatprep.mubr.bf16.mxu0 0
  %3670 = vmatmul.mubr.bf16.gmra.mrb[0].mxu0 %v3403
  %v3671 = vpop.f32.mrb[0].mxu0
  %v3672 = vadd.f32 0.0, %v3671
  %v3673 = vpop.f32.mrb[0].mxu0
  %v3674 = vadd.f32 0.0, %v3673
  %v3675 = vpop.f32.mrb[0].mxu0
  %v3676 = vpop.f32.mrb[0].mxu0
  %3677 = vdwg.mxu0
  %v3682 = vcombine.low %v3631, %v3633
  %v3683 = vcombine.low %v3672, %v3674
  %v3685 = vunpack.c.l.s4 1966171168
  %v3686 = vunpack.c.0.s8 %v3685
  %v3687 = vlaneseq
  %v3688 = vshrl.u32 %v3687, 7
  %v3689 = vsub.s32 %v3686, %v3688
  %v3690 = vrot.slane %v3682, %v3689
  %v3692 = vunpack.c.l.s4 1966171168
  %v3693 = vunpack.c.0.s8 %v3692
  %v3694 = vlaneseq
  %v3695 = vshrl.u32 %v3694, 7
  %v3696 = vsub.s32 %v3693, %v3695
  %v3697 = vrot.slane %v3683, %v3696
  %v3698 = vcombine.low %v3690, %v3697
  %v3700 = vunpack.c.l.s4 1966171168
  %v3701 = vunpack.c.0.s8 %v3700
  %v3702 = vlaneseq
  %v3703 = vshrl.u32 %v3702, 7
  %v3704 = vsub.s32 %v3701, %v3703
  %v3705 = vrot.slane %v3698, %v3704
  %v3707 = vadd.f32 %v3402, %v3705
  %v3708 = vxor.u32 %v3707, 2147483648
  %v3709 = vmul.f32 %v3708, 1.442695
  %v3710 = vpow.pop %v3709
  %v3711 = vadd.f32 %v3710, 1.0
  %v3712 = vrcp.pop %v3711
  %v3713 = vmul.f32 1.0, %v3712
  %v3715 = vrot.slane %v3707, 3
  %v3717 = vtanh.pop %v3715
  %v3719 = vrot.slane %v3713, 1
  %v3721 = vmul.f32 %v3719, %v3396
  %v3722 = vmul.f32 %v3713, %v3717
  %v3723 = vadd.f32 %v3721, %v3722
  %v3724 = vtanh.pop %v3723
  %v3725 = vrot.slane %v3713, 2
  %v3727 = vmul.f32 %v3725, %v3724
  %3728 = vst [vmem:[#allocation3 + $0x1] sm:$0x1] %v3727
  %v3729 = vld [vmem:[%s875] ss:$8 sm:$0xf]
  %v3730 = vpack.c.bf16 %v3727, %v3727
  %v3731 = vld [vmem:[%s5] sm:$0xff]
  %v3732 = vld [vmem:[%s5 + $0x8] sm:$0xff]
  %v3733 = vld [vmem:[%s5 + $0x10] sm:$0xff]
  %v3734 = vld [vmem:[%s5 + $0x18] sm:$0xff]
  %v3735 = vld [vmem:[%s5 + $0x20] sm:$0xff]
  %v3736 = vld [vmem:[%s5 + $0x28] sm:$0xff]
  %v3737 = vld [vmem:[%s5 + $0x30] sm:$0xff]
  %v3738 = vld [vmem:[%s5 + $0x38] sm:$0xff]
  %v3739 = vld [vmem:[%s5 + $0x40] sm:$0xff]
  %v3740 = vld [vmem:[%s5 + $0x48] sm:$0xff]
  %v3741 = vld [vmem:[%s5 + $0x50] sm:$0xff]
  %v3742 = vld [vmem:[%s5 + $0x58] sm:$0xff]
  %v3743 = vld [vmem:[%s5 + $0x60] sm:$0xff]
  %v3744 = vld [vmem:[%s5 + $0x68] sm:$0xff]
  %v3745 = vld [vmem:[%s5 + $0x70] sm:$0xff]
  %v3746 = vld [vmem:[%s5 + $0x78] sm:$0xff]
  %v3747 = vld [vmem:[%s5 + $0x80] sm:$0xff]
  %v3748 = vld [vmem:[%s5 + $0x88] sm:$0xff]
  %v3749 = vld [vmem:[%s5 + $0x90] sm:$0xff]
  %v3750 = vld [vmem:[%s5 + $0x98] sm:$0xff]
  %v3751 = vld [vmem:[%s5 + $0xa0] sm:$0xff]
  %v3752 = vld [vmem:[%s5 + $0xa8] sm:$0xff]
  %v3753 = vld [vmem:[%s5 + $0xb0] sm:$0xff]
  %v3754 = vld [vmem:[%s5 + $0xb8] sm:$0xff]
  %v3755 = vld [vmem:[%s5 + $0xc0] sm:$0xff]
  %v3756 = vld [vmem:[%s5 + $0xc8] sm:$0xff]
  %v3757 = vld [vmem:[%s5 + $0xd0] sm:$0xff]
  %v3758 = vld [vmem:[%s5 + $0xd8] sm:$0xff]
  %v3759 = vld [vmem:[%s5 + $0xe0] sm:$0xff]
  %v3760 = vld [vmem:[%s5 + $0xe8] sm:$0xff]
  %v3761 = vld [vmem:[%s5 + $0xf0] sm:$0xff]
  %v3762 = vld [vmem:[%s5 + $0xf8] sm:$0xff]
  %v3795 = vunpack.c.l.b16 %v3731
  %v3796 = vunpack.c.h.b16 %v3731
  %v3797 = vunpack.c.l.b16 %v3732
  %v3798 = vunpack.c.h.b16 %v3732
  %v3799 = vunpack.c.l.b16 %v3733
  %v3800 = vunpack.c.h.b16 %v3733
  %v3801 = vunpack.c.l.b16 %v3734
  %v3802 = vunpack.c.h.b16 %v3734
  %v3803 = vunpack.c.l.b16 %v3735
  %v3804 = vunpack.c.h.b16 %v3735
  %v3805 = vunpack.c.l.b16 %v3736
  %v3806 = vunpack.c.h.b16 %v3736
  %v3807 = vunpack.c.l.b16 %v3737
  %v3808 = vunpack.c.h.b16 %v3737
  %v3809 = vunpack.c.l.b16 %v3738
  %v3810 = vunpack.c.h.b16 %v3738
  %v3811 = vunpack.c.l.b16 %v3739
  %v3812 = vunpack.c.h.b16 %v3739
  %v3813 = vunpack.c.l.b16 %v3740
  %v3814 = vunpack.c.h.b16 %v3740
  %v3815 = vunpack.c.l.b16 %v3741
  %v3816 = vunpack.c.h.b16 %v3741
  %v3817 = vunpack.c.l.b16 %v3742
  %v3818 = vunpack.c.h.b16 %v3742
  %v3819 = vunpack.c.l.b16 %v3743
  %v3820 = vunpack.c.h.b16 %v3743
  %v3821 = vunpack.c.l.b16 %v3744
  %v3822 = vunpack.c.h.b16 %v3744
  %v3823 = vunpack.c.l.b16 %v3745
  %v3824 = vunpack.c.h.b16 %v3745
  %v3825 = vunpack.c.l.b16 %v3746
  %v3826 = vunpack.c.h.b16 %v3746
  %v3827 = vunpack.c.l.b16 %v3747
  %v3828 = vunpack.c.h.b16 %v3747
  %v3829 = vunpack.c.l.b16 %v3748
  %v3830 = vunpack.c.h.b16 %v3748
  %v3831 = vunpack.c.l.b16 %v3749
  %v3832 = vunpack.c.h.b16 %v3749
  %v3833 = vunpack.c.l.b16 %v3750
  %v3834 = vunpack.c.h.b16 %v3750
  %v3835 = vunpack.c.l.b16 %v3751
  %v3836 = vunpack.c.h.b16 %v3751
  %v3837 = vunpack.c.l.b16 %v3752
  %v3838 = vunpack.c.h.b16 %v3752
  %v3839 = vunpack.c.l.b16 %v3753
  %v3840 = vunpack.c.h.b16 %v3753
  %v3841 = vunpack.c.l.b16 %v3754
  %v3842 = vunpack.c.h.b16 %v3754
  %v3843 = vunpack.c.l.b16 %v3755
  %v3844 = vunpack.c.h.b16 %v3755
  %v3845 = vunpack.c.l.b16 %v3756
  %v3846 = vunpack.c.h.b16 %v3756
  %v3847 = vunpack.c.l.b16 %v3757
  %v3848 = vunpack.c.h.b16 %v3757
  %v3849 = vunpack.c.l.b16 %v3758
  %v3850 = vunpack.c.h.b16 %v3758
  %v3851 = vunpack.c.l.b16 %v3759
  %v3852 = vunpack.c.h.b16 %v3759
  %v3853 = vunpack.c.l.b16 %v3760
  %v3854 = vunpack.c.h.b16 %v3760
  %v3855 = vunpack.c.l.b16 %v3761
  %v3856 = vunpack.c.h.b16 %v3761
  %v3857 = vunpack.c.l.b16 %v3762
  %v3858 = vunpack.c.h.b16 %v3762
  %v3859 = vpack.c.b16 %v3799, %v3795
  %v3860 = vpack.c.b16 %v3800, %v3796
  %v3861 = vpack.c.b16 %v3801, %v3797
  %v3862 = vpack.c.b16 %v3802, %v3798
  %v3863 = vpack.c.b16 %v3807, %v3803
  %v3864 = vpack.c.b16 %v3808, %v3804
  %v3865 = vpack.c.b16 %v3809, %v3805
  %v3866 = vpack.c.b16 %v3810, %v3806
  %v3867 = vpack.c.b16 %v3815, %v3811
  %v3868 = vpack.c.b16 %v3816, %v3812
  %v3869 = vpack.c.b16 %v3817, %v3813
  %v3870 = vpack.c.b16 %v3818, %v3814
  %v3871 = vpack.c.b16 %v3823, %v3819
  %v3872 = vpack.c.b16 %v3824, %v3820
  %v3873 = vpack.c.b16 %v3825, %v3821
  %v3874 = vpack.c.b16 %v3826, %v3822
  %v3875 = vpack.c.b16 %v3831, %v3827
  %v3876 = vpack.c.b16 %v3832, %v3828
  %v3877 = vpack.c.b16 %v3833, %v3829
  %v3878 = vpack.c.b16 %v3834, %v3830
  %v3879 = vpack.c.b16 %v3839, %v3835
  %v3880 = vpack.c.b16 %v3840, %v3836
  %v3881 = vpack.c.b16 %v3841, %v3837
  %v3882 = vpack.c.b16 %v3842, %v3838
  %v3883 = vpack.c.b16 %v3847, %v3843
  %v3884 = vpack.c.b16 %v3848, %v3844
  %v3885 = vpack.c.b16 %v3849, %v3845
  %v3886 = vpack.c.b16 %v3850, %v3846
  %v3887 = vpack.c.b16 %v3855, %v3851
  %v3888 = vpack.c.b16 %v3856, %v3852
  %v3889 = vpack.c.b16 %v3857, %v3853
  %v3890 = vpack.c.b16 %v3858, %v3854
  %3923 = vmatprep.subr.bf16.mxu0 %v3860
  %3924 = vmatpush1.bf16.msra.mxu0 %v3859
  %3925 = vmatprep.subr.bf16.mxu0 %v3864
  %3926 = vmatpush1.bf16.msra.mxu0 %v3863
  %3927 = vmatprep.subr.bf16.mxu0 %v3868
  %3928 = vmatpush1.bf16.msra.mxu0 %v3867
  %3929 = vmatprep.subr.bf16.mxu0 %v3872
  %3930 = vmatpush1.bf16.msra.mxu0 %v3871
  %3931 = vmatprep.subr.bf16.mxu0 %v3876
  %3932 = vmatpush1.bf16.msra.mxu0 %v3875
  %3933 = vmatprep.subr.bf16.mxu0 %v3880
  %3934 = vmatpush1.bf16.msra.mxu0 %v3879
  %3935 = vmatprep.subr.bf16.mxu0 %v3884
  %3936 = vmatpush1.bf16.msra.mxu0 %v3883
  %3937 = vmatprep.subr.bf16.mxu0 %v3888
  %3938 = vmatpush1.bf16.msra.mxu0 %v3887
  %3939 = vmatprep.subr.bf16.mxu0 0
  %3940 = vmatpush1.bf16.msra.mxu0 0
  %3941 = vmatprep.subr.bf16.mxu0 0
  %3942 = vmatpush1.bf16.msra.mxu0 0
  %3943 = vmatprep.subr.bf16.mxu0 0
  %3944 = vmatpush1.bf16.msra.mxu0 0
  %3945 = vmatprep.subr.bf16.mxu0 0
  %3946 = vmatpush1.bf16.msra.mxu0 0
  %3947 = vmatprep.subr.bf16.mxu0 0
  %3948 = vmatpush1.bf16.msra.mxu0 0
  %3949 = vmatprep.subr.bf16.mxu0 0
  %3950 = vmatpush1.bf16.msra.mxu0 0
  %3951 = vmatprep.subr.bf16.mxu0 0
  %3952 = vmatpush1.bf16.msra.mxu0 0
  %3953 = vmatprep.subr.bf16.mxu0 0
  %3954 = vmatpush1.bf16.msra.mxu0 0
  %3955 = vmatprep.mubr.bf16.mxu0 0
  %3956 = vmatmul.mubr.bf16.gmra.mrb[0].mxu0 %v3730
  %v3957 = vpop.f32.mrb[0].mxu0
  %v3958 = vadd.f32 0.0, %v3957
  %v3959 = vpop.f32.mrb[0].mxu0
  %v3960 = vadd.f32 0.0, %v3959
  %v3961 = vpop.f32.mrb[0].mxu0
  %v3962 = vpop.f32.mrb[0].mxu0
  %3963 = vdwg.mxu0
  %3964 = vmatprep.subr.bf16.mxu0 %v3862
  %3965 = vmatpush1.bf16.msra.mxu0 %v3861
  %3966 = vmatprep.subr.bf16.mxu0 %v3866
  %3967 = vmatpush1.bf16.msra.mxu0 %v3865
  %3968 = vmatprep.subr.bf16.mxu0 %v3870
  %3969 = vmatpush1.bf16.msra.mxu0 %v3869
  %3970 = vmatprep.subr.bf16.mxu0 %v3874
  %3971 = vmatpush1.bf16.msra.mxu0 %v3873
  %3972 = vmatprep.subr.bf16.mxu0 %v3878
  %3973 = vmatpush1.bf16.msra.mxu0 %v3877
  %3974 = vmatprep.subr.bf16.mxu0 %v3882
  %3975 = vmatpush1.bf16.msra.mxu0 %v3881
  %3976 = vmatprep.subr.bf16.mxu0 %v3886
  %3977 = vmatpush1.bf16.msra.mxu0 %v3885
  %3978 = vmatprep.subr.bf16.mxu0 %v3890
  %3979 = vmatpush1.bf16.msra.mxu0 %v3889
  %3980 = vmatprep.subr.bf16.mxu0 0
  %3981 = vmatpush1.bf16.msra.mxu0 0
  %3982 = vmatprep.subr.bf16.mxu0 0
  %3983 = vmatpush1.bf16.msra.mxu0 0
  %3984 = vmatprep.subr.bf16.mxu0 0
  %3985 = vmatpush1.bf16.msra.mxu0 0
  %3986 = vmatprep.subr.bf16.mxu0 0
  %3987 = vmatpush1.bf16.msra.mxu0 0
  %3988 = vmatprep.subr.bf16.mxu0 0
  %3989 = vmatpush1.bf16.msra.mxu0 0
  %3990 = vmatprep.subr.bf16.mxu0 0
  %3991 = vmatpush1.bf16.msra.mxu0 0
  %3992 = vmatprep.subr.bf16.mxu0 0
  %3993 = vmatpush1.bf16.msra.mxu0 0
  %3994 = vmatprep.subr.bf16.mxu0 0
  %3995 = vmatpush1.bf16.msra.mxu0 0
  %3996 = vmatprep.mubr.bf16.mxu0 0
  %3997 = vmatmul.mubr.bf16.gmra.mrb[0].mxu0 %v3730
  %v3998 = vpop.f32.mrb[0].mxu0
  %v3999 = vadd.f32 0.0, %v3998
  %v4000 = vpop.f32.mrb[0].mxu0
  %v4001 = vadd.f32 0.0, %v4000
  %v4002 = vpop.f32.mrb[0].mxu0
  %v4003 = vpop.f32.mrb[0].mxu0
  %4004 = vdwg.mxu0
  %v4009 = vcombine.low %v3958, %v3960
  %v4010 = vcombine.low %v3999, %v4001
  %v4012 = vunpack.c.l.s4 1966171168
  %v4013 = vunpack.c.0.s8 %v4012
  %v4014 = vlaneseq
  %v4015 = vshrl.u32 %v4014, 7
  %v4016 = vsub.s32 %v4013, %v4015
  %v4017 = vrot.slane %v4009, %v4016
  %v4019 = vunpack.c.l.s4 1966171168
  %v4020 = vunpack.c.0.s8 %v4019
  %v4021 = vlaneseq
  %v4022 = vshrl.u32 %v4021, 7
  %v4023 = vsub.s32 %v4020, %v4022
  %v4024 = vrot.slane %v4010, %v4023
  %v4025 = vcombine.low %v4017, %v4024
  %v4027 = vunpack.c.l.s4 1966171168
  %v4028 = vunpack.c.0.s8 %v4027
  %v4029 = vlaneseq
  %v4030 = vshrl.u32 %v4029, 7
  %v4031 = vsub.s32 %v4028, %v4030
  %v4032 = vrot.slane %v4025, %v4031
  %v4034 = vadd.f32 %v3729, %v4032
  %v4035 = vxor.u32 %v4034, 2147483648
  %v4036 = vmul.f32 %v4035, 1.442695
  %v4037 = vpow.pop %v4036
  %v4038 = vadd.f32 %v4037, 1.0
  %v4039 = vrcp.pop %v4038
  %v4040 = vmul.f32 1.0, %v4039
  %v4042 = vrot.slane %v4034, 3
  %v4044 = vtanh.pop %v4042
  %v4046 = vrot.slane %v4040, 1
  %v4048 = vmul.f32 %v4046, %v3723
  %v4049 = vmul.f32 %v4040, %v4044
  %v4050 = vadd.f32 %v4048, %v4049
  %v4051 = vtanh.pop %v4050
  %v4052 = vrot.slane %v4040, 2
  %v4054 = vmul.f32 %v4052, %v4051
  %4055 = vst [vmem:[#allocation3 + $0x2] sm:$0x1] %v4054
  %v4056 = vld [vmem:[%s1203] ss:$8 sm:$0xf]
  %v4057 = vpack.c.bf16 %v4054, %v4054
  %v4058 = vld [vmem:[%s5] sm:$0xff]
  %v4059 = vld [vmem:[%s5 + $0x8] sm:$0xff]
  %v4060 = vld [vmem:[%s5 + $0x10] sm:$0xff]
  %v4061 = vld [vmem:[%s5 + $0x18] sm:$0xff]
  %v4062 = vld [vmem:[%s5 + $0x20] sm:$0xff]
  %v4063 = vld [vmem:[%s5 + $0x28] sm:$0xff]
  %v4064 = vld [vmem:[%s5 + $0x30] sm:$0xff]
  %v4065 = vld [vmem:[%s5 + $0x38] sm:$0xff]
  %v4066 = vld [vmem:[%s5 + $0x40] sm:$0xff]
  %v4067 = vld [vmem:[%s5 + $0x48] sm:$0xff]
  %v4068 = vld [vmem:[%s5 + $0x50] sm:$0xff]
  %v4069 = vld [vmem:[%s5 + $0x58] sm:$0xff]
  %v4070 = vld [vmem:[%s5 + $0x60] sm:$0xff]
  %v4071 = vld [vmem:[%s5 + $0x68] sm:$0xff]
  %v4072 = vld [vmem:[%s5 + $0x70] sm:$0xff]
  %v4073 = vld [vmem:[%s5 + $0x78] sm:$0xff]
  %v4074 = vld [vmem:[%s5 + $0x80] sm:$0xff]
  %v4075 = vld [vmem:[%s5 + $0x88] sm:$0xff]
  %v4076 = vld [vmem:[%s5 + $0x90] sm:$0xff]
  %v4077 = vld [vmem:[%s5 + $0x98] sm:$0xff]
  %v4078 = vld [vmem:[%s5 + $0xa0] sm:$0xff]
  %v4079 = vld [vmem:[%s5 + $0xa8] sm:$0xff]
  %v4080 = vld [vmem:[%s5 + $0xb0] sm:$0xff]
  %v4081 = vld [vmem:[%s5 + $0xb8] sm:$0xff]
  %v4082 = vld [vmem:[%s5 + $0xc0] sm:$0xff]
  %v4083 = vld [vmem:[%s5 + $0xc8] sm:$0xff]
  %v4084 = vld [vmem:[%s5 + $0xd0] sm:$0xff]
  %v4085 = vld [vmem:[%s5 + $0xd8] sm:$0xff]
  %v4086 = vld [vmem:[%s5 + $0xe0] sm:$0xff]
  %v4087 = vld [vmem:[%s5 + $0xe8] sm:$0xff]
  %v4088 = vld [vmem:[%s5 + $0xf0] sm:$0xff]
  %v4089 = vld [vmem:[%s5 + $0xf8] sm:$0xff]
  %v4122 = vunpack.c.l.b16 %v4058
  %v4123 = vunpack.c.h.b16 %v4058
  %v4124 = vunpack.c.l.b16 %v4059
  %v4125 = vunpack.c.h.b16 %v4059
  %v4126 = vunpack.c.l.b16 %v4060
  %v4127 = vunpack.c.h.b16 %v4060
  %v4128 = vunpack.c.l.b16 %v4061
  %v4129 = vunpack.c.h.b16 %v4061
  %v4130 = vunpack.c.l.b16 %v4062
  %v4131 = vunpack.c.h.b16 %v4062
  %v4132 = vunpack.c.l.b16 %v4063
  %v4133 = vunpack.c.h.b16 %v4063
  %v4134 = vunpack.c.l.b16 %v4064
  %v4135 = vunpack.c.h.b16 %v4064
  %v4136 = vunpack.c.l.b16 %v4065
  %v4137 = vunpack.c.h.b16 %v4065
  %v4138 = vunpack.c.l.b16 %v4066
  %v4139 = vunpack.c.h.b16 %v4066
  %v4140 = vunpack.c.l.b16 %v4067
  %v4141 = vunpack.c.h.b16 %v4067
  %v4142 = vunpack.c.l.b16 %v4068
  %v4143 = vunpack.c.h.b16 %v4068
  %v4144 = vunpack.c.l.b16 %v4069
  %v4145 = vunpack.c.h.b16 %v4069
  %v4146 = vunpack.c.l.b16 %v4070
  %v4147 = vunpack.c.h.b16 %v4070
  %v4148 = vunpack.c.l.b16 %v4071
  %v4149 = vunpack.c.h.b16 %v4071
  %v4150 = vunpack.c.l.b16 %v4072
  %v4151 = vunpack.c.h.b16 %v4072
  %v4152 = vunpack.c.l.b16 %v4073
  %v4153 = vunpack.c.h.b16 %v4073
  %v4154 = vunpack.c.l.b16 %v4074
  %v4155 = vunpack.c.h.b16 %v4074
  %v4156 = vunpack.c.l.b16 %v4075
  %v4157 = vunpack.c.h.b16 %v4075
  %v4158 = vunpack.c.l.b16 %v4076
  %v4159 = vunpack.c.h.b16 %v4076
  %v4160 = vunpack.c.l.b16 %v4077
  %v4161 = vunpack.c.h.b16 %v4077
  %v4162 = vunpack.c.l.b16 %v4078
  %v4163 = vunpack.c.h.b16 %v4078
  %v4164 = vunpack.c.l.b16 %v4079
  %v4165 = vunpack.c.h.b16 %v4079
  %v4166 = vunpack.c.l.b16 %v4080
  %v4167 = vunpack.c.h.b16 %v4080
  %v4168 = vunpack.c.l.b16 %v4081
  %v4169 = vunpack.c.h.b16 %v4081
  %v4170 = vunpack.c.l.b16 %v4082
  %v4171 = vunpack.c.h.b16 %v4082
  %v4172 = vunpack.c.l.b16 %v4083
  %v4173 = vunpack.c.h.b16 %v4083
  %v4174 = vunpack.c.l.b16 %v4084
  %v4175 = vunpack.c.h.b16 %v4084
  %v4176 = vunpack.c.l.b16 %v4085
  %v4177 = vunpack.c.h.b16 %v4085
  %v4178 = vunpack.c.l.b16 %v4086
  %v4179 = vunpack.c.h.b16 %v4086
  %v4180 = vunpack.c.l.b16 %v4087
  %v4181 = vunpack.c.h.b16 %v4087
  %v4182 = vunpack.c.l.b16 %v4088
  %v4183 = vunpack.c.h.b16 %v4088
  %v4184 = vunpack.c.l.b16 %v4089
  %v4185 = vunpack.c.h.b16 %v4089
  %v4186 = vpack.c.b16 %v4126, %v4122
  %v4187 = vpack.c.b16 %v4127, %v4123
  %v4188 = vpack.c.b16 %v4128, %v4124
  %v4189 = vpack.c.b16 %v4129, %v4125
  %v4190 = vpack.c.b16 %v4134, %v4130
  %v4191 = vpack.c.b16 %v4135, %v4131
  %v4192 = vpack.c.b16 %v4136, %v4132
  %v4193 = vpack.c.b16 %v4137, %v4133
  %v4194 = vpack.c.b16 %v4142, %v4138
  %v4195 = vpack.c.b16 %v4143, %v4139
  %v4196 = vpack.c.b16 %v4144, %v4140
  %v4197 = vpack.c.b16 %v4145, %v4141
  %v4198 = vpack.c.b16 %v4150, %v4146
  %v4199 = vpack.c.b16 %v4151, %v4147
  %v4200 = vpack.c.b16 %v4152, %v4148
  %v4201 = vpack.c.b16 %v4153, %v4149
  %v4202 = vpack.c.b16 %v4158, %v4154
  %v4203 = vpack.c.b16 %v4159, %v4155
  %v4204 = vpack.c.b16 %v4160, %v4156
  %v4205 = vpack.c.b16 %v4161, %v4157
  %v4206 = vpack.c.b16 %v4166, %v4162
  %v4207 = vpack.c.b16 %v4167, %v4163
  %v4208 = vpack.c.b16 %v4168, %v4164
  %v4209 = vpack.c.b16 %v4169, %v4165
  %v4210 = vpack.c.b16 %v4174, %v4170
  %v4211 = vpack.c.b16 %v4175, %v4171
  %v4212 = vpack.c.b16 %v4176, %v4172
  %v4213 = vpack.c.b16 %v4177, %v4173
  %v4214 = vpack.c.b16 %v4182, %v4178
  %v4215 = vpack.c.b16 %v4183, %v4179
  %v4216 = vpack.c.b16 %v4184, %v4180
  %v4217 = vpack.c.b16 %v4185, %v4181
  %4250 = vmatprep.subr.bf16.mxu0 %v4187
  %4251 = vmatpush1.bf16.msra.mxu0 %v4186
  %4252 = vmatprep.subr.bf16.mxu0 %v4191
  %4253 = vmatpush1.bf16.msra.mxu0 %v4190
  %4254 = vmatprep.subr.bf16.mxu0 %v4195
  %4255 = vmatpush1.bf16.msra.mxu0 %v4194
  %4256 = vmatprep.subr.bf16.mxu0 %v4199
  %4257 = vmatpush1.bf16.msra.mxu0 %v4198
  %4258 = vmatprep.subr.bf16.mxu0 %v4203
  %4259 = vmatpush1.bf16.msra.mxu0 %v4202
  %4260 = vmatprep.subr.bf16.mxu0 %v4207
  %4261 = vmatpush1.bf16.msra.mxu0 %v4206
  %4262 = vmatprep.subr.bf16.mxu0 %v4211
  %4263 = vmatpush1.bf16.msra.mxu0 %v4210
  %4264 = vmatprep.subr.bf16.mxu0 %v4215
  %4265 = vmatpush1.bf16.msra.mxu0 %v4214
  %4266 = vmatprep.subr.bf16.mxu0 0
  %4267 = vmatpush1.bf16.msra.mxu0 0
  %4268 = vmatprep.subr.bf16.mxu0 0
  %4269 = vmatpush1.bf16.msra.mxu0 0
  %4270 = vmatprep.subr.bf16.mxu0 0
  %4271 = vmatpush1.bf16.msra.mxu0 0
  %4272 = vmatprep.subr.bf16.mxu0 0
  %4273 = vmatpush1.bf16.msra.mxu0 0
  %4274 = vmatprep.subr.bf16.mxu0 0
  %4275 = vmatpush1.bf16.msra.mxu0 0
  %4276 = vmatprep.subr.bf16.mxu0 0
  %4277 = vmatpush1.bf16.msra.mxu0 0
  %4278 = vmatprep.subr.bf16.mxu0 0
  %4279 = vmatpush1.bf16.msra.mxu0 0
  %4280 = vmatprep.subr.bf16.mxu0 0
  %4281 = vmatpush1.bf16.msra.mxu0 0
  %4282 = vmatprep.mubr.bf16.mxu0 0
  %4283 = vmatmul.mubr.bf16.gmra.mrb[0].mxu0 %v4057
  %v4284 = vpop.f32.mrb[0].mxu0
  %v4285 = vadd.f32 0.0, %v4284
  %v4286 = vpop.f32.mrb[0].mxu0
  %v4287 = vadd.f32 0.0, %v4286
  %v4288 = vpop.f32.mrb[0].mxu0
  %v4289 = vpop.f32.mrb[0].mxu0
  %4290 = vdwg.mxu0
  %4291 = vmatprep.subr.bf16.mxu0 %v4189
  %4292 = vmatpush1.bf16.msra.mxu0 %v4188
  %4293 = vmatprep.subr.bf16.mxu0 %v4193
  %4294 = vmatpush1.bf16.msra.mxu0 %v4192
  %4295 = vmatprep.subr.bf16.mxu0 %v4197
  %4296 = vmatpush1.bf16.msra.mxu0 %v4196
  %4297 = vmatprep.subr.bf16.mxu0 %v4201
  %4298 = vmatpush1.bf16.msra.mxu0 %v4200
  %4299 = vmatprep.subr.bf16.mxu0 %v4205
  %4300 = vmatpush1.bf16.msra.mxu0 %v4204
  %4301 = vmatprep.subr.bf16.mxu0 %v4209
  %4302 = vmatpush1.bf16.msra.mxu0 %v4208
  %4303 = vmatprep.subr.bf16.mxu0 %v4213
  %4304 = vmatpush1.bf16.msra.mxu0 %v4212
  %4305 = vmatprep.subr.bf16.mxu0 %v4217
  %4306 = vmatpush1.bf16.msra.mxu0 %v4216
  %4307 = vmatprep.subr.bf16.mxu0 0
  %4308 = vmatpush1.bf16.msra.mxu0 0
  %4309 = vmatprep.subr.bf16.mxu0 0
  %4310 = vmatpush1.bf16.msra.mxu0 0
  %4311 = vmatprep.subr.bf16.mxu0 0
  %4312 = vmatpush1.bf16.msra.mxu0 0
  %4313 = vmatprep.subr.bf16.mxu0 0
  %4314 = vmatpush1.bf16.msra.mxu0 0
  %4315 = vmatprep.subr.bf16.mxu0 0
  %4316 = vmatpush1.bf16.msra.mxu0 0
  %4317 = vmatprep.subr.bf16.mxu0 0
  %4318 = vmatpush1.bf16.msra.mxu0 0
  %4319 = vmatprep.subr.bf16.mxu0 0
  %4320 = vmatpush1.bf16.msra.mxu0 0
  %4321 = vmatprep.subr.bf16.mxu0 0
  %4322 = vmatpush1.bf16.msra.mxu0 0
  %4323 = vmatprep.mubr.bf16.mxu0 0
  %4324 = vmatmul.mubr.bf16.gmra.mrb[0].mxu0 %v4057
  %v4325 = vpop.f32.mrb[0].mxu0
  %v4326 = vadd.f32 0.0, %v4325
  %v4327 = vpop.f32.mrb[0].mxu0
  %v4328 = vadd.f32 0.0, %v4327
  %v4329 = vpop.f32.mrb[0].mxu0
  %v4330 = vpop.f32.mrb[0].mxu0
  %4331 = vdwg.mxu0
  %v4336 = vcombine.low %v4285, %v4287
  %v4337 = vcombine.low %v4326, %v4328
  %v4339 = vunpack.c.l.s4 1966171168
  %v4340 = vunpack.c.0.s8 %v4339
  %v4341 = vlaneseq
  %v4342 = vshrl.u32 %v4341, 7
  %v4343 = vsub.s32 %v4340, %v4342
  %v4344 = vrot.slane %v4336, %v4343
  %v4346 = vunpack.c.l.s4 1966171168
  %v4347 = vunpack.c.0.s8 %v4346
  %v4348 = vlaneseq
  %v4349 = vshrl.u32 %v4348, 7
  %v4350 = vsub.s32 %v4347, %v4349
  %v4351 = vrot.slane %v4337, %v4350
  %v4352 = vcombine.low %v4344, %v4351
  %v4354 = vunpack.c.l.s4 1966171168
  %v4355 = vunpack.c.0.s8 %v4354
  %v4356 = vlaneseq
  %v4357 = vshrl.u32 %v4356, 7
  %v4358 = vsub.s32 %v4355, %v4357
  %v4359 = vrot.slane %v4352, %v4358
  %v4361 = vadd.f32 %v4056, %v4359
  %v4362 = vxor.u32 %v4361, 2147483648
  %v4363 = vmul.f32 %v4362, 1.442695
  %v4364 = vpow.pop %v4363
  %v4365 = vadd.f32 %v4364, 1.0
  %v4366 = vrcp.pop %v4365
  %v4367 = vmul.f32 1.0, %v4366
  %v4369 = vrot.slane %v4361, 3
  %v4371 = vtanh.pop %v4369
  %v4373 = vrot.slane %v4367, 1
  %v4375 = vmul.f32 %v4373, %v4050
  %v4376 = vmul.f32 %v4367, %v4371
  %v4377 = vadd.f32 %v4375, %v4376
  %v4378 = vtanh.pop %v4377
  %v4379 = vrot.slane %v4367, 2
  %v4381 = vmul.f32 %v4379, %v4378
  %4382 = vst [vmem:[#allocation3 + $0x3] sm:$0x1] %v4381
  %v4383 = vld [vmem:[%s1531] ss:$8 sm:$0xf]
  %v4384 = vpack.c.bf16 %v4381, %v4381
  %v4385 = vld [vmem:[%s5] sm:$0xff]
  %v4386 = vld [vmem:[%s5 + $0x8] sm:$0xff]
  %v4387 = vld [vmem:[%s5 + $0x10] sm:$0xff]
  %v4388 = vld [vmem:[%s5 + $0x18] sm:$0xff]
  %v4389 = vld [vmem:[%s5 + $0x20] sm:$0xff]
  %v4390 = vld [vmem:[%s5 + $0x28] sm:$0xff]
  %v4391 = vld [vmem:[%s5 + $0x30] sm:$0xff]
  %v4392 = vld [vmem:[%s5 + $0x38] sm:$0xff]
  %v4393 = vld [vmem:[%s5 + $0x40] sm:$0xff]
  %v4394 = vld [vmem:[%s5 + $0x48] sm:$0xff]
  %v4395 = vld [vmem:[%s5 + $0x50] sm:$0xff]
  %v4396 = vld [vmem:[%s5 + $0x58] sm:$0xff]
  %v4397 = vld [vmem:[%s5 + $0x60] sm:$0xff]
  %v4398 = vld [vmem:[%s5 + $0x68] sm:$0xff]
  %v4399 = vld [vmem:[%s5 + $0x70] sm:$0xff]
  %v4400 = vld [vmem:[%s5 + $0x78] sm:$0xff]
  %v4401 = vld [vmem:[%s5 + $0x80] sm:$0xff]
  %v4402 = vld [vmem:[%s5 + $0x88] sm:$0xff]
  %v4403 = vld [vmem:[%s5 + $0x90] sm:$0xff]
  %v4404 = vld [vmem:[%s5 + $0x98] sm:$0xff]
  %v4405 = vld [vmem:[%s5 + $0xa0] sm:$0xff]
  %v4406 = vld [vmem:[%s5 + $0xa8] sm:$0xff]
  %v4407 = vld [vmem:[%s5 + $0xb0] sm:$0xff]
  %v4408 = vld [vmem:[%s5 + $0xb8] sm:$0xff]
  %v4409 = vld [vmem:[%s5 + $0xc0] sm:$0xff]
  %v4410 = vld [vmem:[%s5 + $0xc8] sm:$0xff]
  %v4411 = vld [vmem:[%s5 + $0xd0] sm:$0xff]
  %v4412 = vld [vmem:[%s5 + $0xd8] sm:$0xff]
  %v4413 = vld [vmem:[%s5 + $0xe0] sm:$0xff]
  %v4414 = vld [vmem:[%s5 + $0xe8] sm:$0xff]
  %v4415 = vld [vmem:[%s5 + $0xf0] sm:$0xff]
  %v4416 = vld [vmem:[%s5 + $0xf8] sm:$0xff]
  %v4449 = vunpack.c.l.b16 %v4385
  %v4450 = vunpack.c.h.b16 %v4385
  %v4451 = vunpack.c.l.b16 %v4386
  %v4452 = vunpack.c.h.b16 %v4386
  %v4453 = vunpack.c.l.b16 %v4387
  %v4454 = vunpack.c.h.b16 %v4387
  %v4455 = vunpack.c.l.b16 %v4388
  %v4456 = vunpack.c.h.b16 %v4388
  %v4457 = vunpack.c.l.b16 %v4389
  %v4458 = vunpack.c.h.b16 %v4389
  %v4459 = vunpack.c.l.b16 %v4390
  %v4460 = vunpack.c.h.b16 %v4390
  %v4461 = vunpack.c.l.b16 %v4391
  %v4462 = vunpack.c.h.b16 %v4391
  %v4463 = vunpack.c.l.b16 %v4392
  %v4464 = vunpack.c.h.b16 %v4392
  %v4465 = vunpack.c.l.b16 %v4393
  %v4466 = vunpack.c.h.b16 %v4393
  %v4467 = vunpack.c.l.b16 %v4394
  %v4468 = vunpack.c.h.b16 %v4394
  %v4469 = vunpack.c.l.b16 %v4395
  %v4470 = vunpack.c.h.b16 %v4395
  %v4471 = vunpack.c.l.b16 %v4396
  %v4472 = vunpack.c.h.b16 %v4396
  %v4473 = vunpack.c.l.b16 %v4397
  %v4474 = vunpack.c.h.b16 %v4397
  %v4475 = vunpack.c.l.b16 %v4398
  %v4476 = vunpack.c.h.b16 %v4398
  %v4477 = vunpack.c.l.b16 %v4399
  %v4478 = vunpack.c.h.b16 %v4399
  %v4479 = vunpack.c.l.b16 %v4400
  %v4480 = vunpack.c.h.b16 %v4400
  %v4481 = vunpack.c.l.b16 %v4401
  %v4482 = vunpack.c.h.b16 %v4401
  %v4483 = vunpack.c.l.b16 %v4402
  %v4484 = vunpack.c.h.b16 %v4402
  %v4485 = vunpack.c.l.b16 %v4403
  %v4486 = vunpack.c.h.b16 %v4403
  %v4487 = vunpack.c.l.b16 %v4404
  %v4488 = vunpack.c.h.b16 %v4404
  %v4489 = vunpack.c.l.b16 %v4405
  %v4490 = vunpack.c.h.b16 %v4405
  %v4491 = vunpack.c.l.b16 %v4406
  %v4492 = vunpack.c.h.b16 %v4406
  %v4493 = vunpack.c.l.b16 %v4407
  %v4494 = vunpack.c.h.b16 %v4407
  %v4495 = vunpack.c.l.b16 %v4408
  %v4496 = vunpack.c.h.b16 %v4408
  %v4497 = vunpack.c.l.b16 %v4409
  %v4498 = vunpack.c.h.b16 %v4409
  %v4499 = vunpack.c.l.b16 %v4410
  %v4500 = vunpack.c.h.b16 %v4410
  %v4501 = vunpack.c.l.b16 %v4411
  %v4502 = vunpack.c.h.b16 %v4411
  %v4503 = vunpack.c.l.b16 %v4412
  %v4504 = vunpack.c.h.b16 %v4412
  %v4505 = vunpack.c.l.b16 %v4413
  %v4506 = vunpack.c.h.b16 %v4413
  %v4507 = vunpack.c.l.b16 %v4414
  %v4508 = vunpack.c.h.b16 %v4414
  %v4509 = vunpack.c.l.b16 %v4415
  %v4510 = vunpack.c.h.b16 %v4415
  %v4511 = vunpack.c.l.b16 %v4416
  %v4512 = vunpack.c.h.b16 %v4416
  %v4513 = vpack.c.b16 %v4453, %v4449
  %v4514 = vpack.c.b16 %v4454, %v4450
  %v4515 = vpack.c.b16 %v4455, %v4451
  %v4516 = vpack.c.b16 %v4456, %v4452
  %v4517 = vpack.c.b16 %v4461, %v4457
  %v4518 = vpack.c.b16 %v4462, %v4458
  %v4519 = vpack.c.b16 %v4463, %v4459
  %v4520 = vpack.c.b16 %v4464, %v4460
  %v4521 = vpack.c.b16 %v4469, %v4465
  %v4522 = vpack.c.b16 %v4470, %v4466
  %v4523 = vpack.c.b16 %v4471, %v4467
  %v4524 = vpack.c.b16 %v4472, %v4468
  %v4525 = vpack.c.b16 %v4477, %v4473
  %v4526 = vpack.c.b16 %v4478, %v4474
  %v4527 = vpack.c.b16 %v4479, %v4475
  %v4528 = vpack.c.b16 %v4480, %v4476
  %v4529 = vpack.c.b16 %v4485, %v4481
  %v4530 = vpack.c.b16 %v4486, %v4482
  %v4531 = vpack.c.b16 %v4487, %v4483
  %v4532 = vpack.c.b16 %v4488, %v4484
  %v4533 = vpack.c.b16 %v4493, %v4489
  %v4534 = vpack.c.b16 %v4494, %v4490
  %v4535 = vpack.c.b16 %v4495, %v4491
  %v4536 = vpack.c.b16 %v4496, %v4492
  %v4537 = vpack.c.b16 %v4501, %v4497
  %v4538 = vpack.c.b16 %v4502, %v4498
  %v4539 = vpack.c.b16 %v4503, %v4499
  %v4540 = vpack.c.b16 %v4504, %v4500
  %v4541 = vpack.c.b16 %v4509, %v4505
  %v4542 = vpack.c.b16 %v4510, %v4506
  %v4543 = vpack.c.b16 %v4511, %v4507
  %v4544 = vpack.c.b16 %v4512, %v4508
  %4577 = vmatprep.subr.bf16.mxu0 %v4514
  %4578 = vmatpush1.bf16.msra.mxu0 %v4513
  %4579 = vmatprep.subr.bf16.mxu0 %v4518
  %4580 = vmatpush1.bf16.msra.mxu0 %v4517
  %4581 = vmatprep.subr.bf16.mxu0 %v4522
  %4582 = vmatpush1.bf16.msra.mxu0 %v4521
  %4583 = vmatprep.subr.bf16.mxu0 %v4526
  %4584 = vmatpush1.bf16.msra.mxu0 %v4525
  %4585 = vmatprep.subr.bf16.mxu0 %v4530
  %4586 = vmatpush1.bf16.msra.mxu0 %v4529
  %4587 = vmatprep.subr.bf16.mxu0 %v4534
  %4588 = vmatpush1.bf16.msra.mxu0 %v4533
  %4589 = vmatprep.subr.bf16.mxu0 %v4538
  %4590 = vmatpush1.bf16.msra.mxu0 %v4537
  %4591 = vmatprep.subr.bf16.mxu0 %v4542
  %4592 = vmatpush1.bf16.msra.mxu0 %v4541
  %4593 = vmatprep.subr.bf16.mxu0 0
  %4594 = vmatpush1.bf16.msra.mxu0 0
  %4595 = vmatprep.subr.bf16.mxu0 0
  %4596 = vmatpush1.bf16.msra.mxu0 0
  %4597 = vmatprep.subr.bf16.mxu0 0
  %4598 = vmatpush1.bf16.msra.mxu0 0
  %4599 = vmatprep.subr.bf16.mxu0 0
  %4600 = vmatpush1.bf16.msra.mxu0 0
  %4601 = vmatprep.subr.bf16.mxu0 0
  %4602 = vmatpush1.bf16.msra.mxu0 0
  %4603 = vmatprep.subr.bf16.mxu0 0
  %4604 = vmatpush1.bf16.msra.mxu0 0
  %4605 = vmatprep.subr.bf16.mxu0 0
  %4606 = vmatpush1.bf16.msra.mxu0 0
  %4607 = vmatprep.subr.bf16.mxu0 0
  %4608 = vmatpush1.bf16.msra.mxu0 0
  %4609 = vmatprep.mubr.bf16.mxu0 0
  %4610 = vmatmul.mubr.bf16.gmra.mrb[0].mxu0 %v4384
  %v4611 = vpop.f32.mrb[0].mxu0
  %v4612 = vadd.f32 0.0, %v4611
  %v4613 = vpop.f32.mrb[0].mxu0
  %v4614 = vadd.f32 0.0, %v4613
  %v4615 = vpop.f32.mrb[0].mxu0
  %v4616 = vpop.f32.mrb[0].mxu0
  %4617 = vdwg.mxu0
  %4618 = vmatprep.subr.bf16.mxu0 %v4516
  %4619 = vmatpush1.bf16.msra.mxu0 %v4515
  %4620 = vmatprep.subr.bf16.mxu0 %v4520
  %4621 = vmatpush1.bf16.msra.mxu0 %v4519
  %4622 = vmatprep.subr.bf16.mxu0 %v4524
  %4623 = vmatpush1.bf16.msra.mxu0 %v4523
  %4624 = vmatprep.subr.bf16.mxu0 %v4528
  %4625 = vmatpush1.bf16.msra.mxu0 %v4527
  %4626 = vmatprep.subr.bf16.mxu0 %v4532
  %4627 = vmatpush1.bf16.msra.mxu0 %v4531
  %4628 = vmatprep.subr.bf16.mxu0 %v4536
  %4629 = vmatpush1.bf16.msra.mxu0 %v4535
  %4630 = vmatprep.subr.bf16.mxu0 %v4540
  %4631 = vmatpush1.bf16.msra.mxu0 %v4539
  %4632 = vmatprep.subr.bf16.mxu0 %v4544
  %4633 = vmatpush1.bf16.msra.mxu0 %v4543
  %4634 = vmatprep.subr.bf16.mxu0 0
  %4635 = vmatpush1.bf16.msra.mxu0 0
  %4636 = vmatprep.subr.bf16.mxu0 0
  %4637 = vmatpush1.bf16.msra.mxu0 0
  %4638 = vmatprep.subr.bf16.mxu0 0
  %4639 = vmatpush1.bf16.msra.mxu0 0
  %4640 = vmatprep.subr.bf16.mxu0 0
  %4641 = vmatpush1.bf16.msra.mxu0 0
  %4642 = vmatprep.subr.bf16.mxu0 0
  %4643 = vmatpush1.bf16.msra.mxu0 0
  %4644 = vmatprep.subr.bf16.mxu0 0
  %4645 = vmatpush1.bf16.msra.mxu0 0
  %4646 = vmatprep.subr.bf16.mxu0 0
  %4647 = vmatpush1.bf16.msra.mxu0 0
  %4648 = vmatprep.subr.bf16.mxu0 0
  %4649 = vmatpush1.bf16.msra.mxu0 0
  %4650 = vmatprep.mubr.bf16.mxu0 0
  %4651 = vmatmul.mubr.bf16.gmra.mrb[0].mxu0 %v4384
  %v4652 = vpop.f32.mrb[0].mxu0
  %v4653 = vadd.f32 0.0, %v4652
  %v4654 = vpop.f32.mrb[0].mxu0
  %v4655 = vadd.f32 0.0, %v4654
  %v4656 = vpop.f32.mrb[0].mxu0
  %v4657 = vpop.f32.mrb[0].mxu0
  %4658 = vdwg.mxu0
  %v4663 = vcombine.low %v4612, %v4614
  %v4664 = vcombine.low %v4653, %v4655
  %v4666 = vunpack.c.l.s4 1966171168
  %v4667 = vunpack.c.0.s8 %v4666
  %v4668 = vlaneseq
  %v4669 = vshrl.u32 %v4668, 7
  %v4670 = vsub.s32 %v4667, %v4669
  %v4671 = vrot.slane %v4663, %v4670
  %v4673 = vunpack.c.l.s4 1966171168
  %v4674 = vunpack.c.0.s8 %v4673
  %v4675 = vlaneseq
  %v4676 = vshrl.u32 %v4675, 7
  %v4677 = vsub.s32 %v4674, %v4676
  %v4678 = vrot.slane %v4664, %v4677
  %v4679 = vcombine.low %v4671, %v4678
  %v4681 = vunpack.c.l.s4 1966171168
  %v4682 = vunpack.c.0.s8 %v4681
  %v4683 = vlaneseq
  %v4684 = vshrl.u32 %v4683, 7
  %v4685 = vsub.s32 %v4682, %v4684
  %v4686 = vrot.slane %v4679, %v4685
  %v4688 = vadd.f32 %v4383, %v4686
  %v4689 = vxor.u32 %v4688, 2147483648
  %v4690 = vmul.f32 %v4689, 1.442695
  %v4691 = vpow.pop %v4690
  %v4692 = vadd.f32 %v4691, 1.0
  %v4693 = vrcp.pop %v4692
  %v4694 = vmul.f32 1.0, %v4693
  %v4696 = vrot.slane %v4688, 3
  %v4698 = vtanh.pop %v4696
  %v4700 = vrot.slane %v4694, 1
  %v4702 = vmul.f32 %v4700, %v4377
  %v4703 = vmul.f32 %v4694, %v4698
  %v4704 = vadd.f32 %v4702, %v4703
  %v4705 = vtanh.pop %v4704
  %v4706 = vrot.slane %v4694, 2
  %v4708 = vmul.f32 %v4706, %v4705
  %4709 = vst [vmem:[#allocation3 + $0x4] sm:$0x1] %v4708
  %v4710 = vld [vmem:[%s1859] ss:$8 sm:$0xf]
  %v4711 = vpack.c.bf16 %v4708, %v4708
  %v4712 = vld [vmem:[%s5] sm:$0xff]
  %v4713 = vld [vmem:[%s5 + $0x8] sm:$0xff]
  %v4714 = vld [vmem:[%s5 + $0x10] sm:$0xff]
  %v4715 = vld [vmem:[%s5 + $0x18] sm:$0xff]
  %v4716 = vld [vmem:[%s5 + $0x20] sm:$0xff]
  %v4717 = vld [vmem:[%s5 + $0x28] sm:$0xff]
  %v4718 = vld [vmem:[%s5 + $0x30] sm:$0xff]
  %v4719 = vld [vmem:[%s5 + $0x38] sm:$0xff]
  %v4720 = vld [vmem:[%s5 + $0x40] sm:$0xff]
  %v4721 = vld [vmem:[%s5 + $0x48] sm:$0xff]
  %v4722 = vld [vmem:[%s5 + $0x50] sm:$0xff]
  %v4723 = vld [vmem:[%s5 + $0x58] sm:$0xff]
  %v4724 = vld [vmem:[%s5 + $0x60] sm:$0xff]
  %v4725 = vld [vmem:[%s5 + $0x68] sm:$0xff]
  %v4726 = vld [vmem:[%s5 + $0x70] sm:$0xff]
  %v4727 = vld [vmem:[%s5 + $0x78] sm:$0xff]
  %v4728 = vld [vmem:[%s5 + $0x80] sm:$0xff]
  %v4729 = vld [vmem:[%s5 + $0x88] sm:$0xff]
  %v4730 = vld [vmem:[%s5 + $0x90] sm:$0xff]
  %v4731 = vld [vmem:[%s5 + $0x98] sm:$0xff]
  %v4732 = vld [vmem:[%s5 + $0xa0] sm:$0xff]
  %v4733 = vld [vmem:[%s5 + $0xa8] sm:$0xff]
  %v4734 = vld [vmem:[%s5 + $0xb0] sm:$0xff]
  %v4735 = vld [vmem:[%s5 + $0xb8] sm:$0xff]
  %v4736 = vld [vmem:[%s5 + $0xc0] sm:$0xff]
  %v4737 = vld [vmem:[%s5 + $0xc8] sm:$0xff]
  %v4738 = vld [vmem:[%s5 + $0xd0] sm:$0xff]
  %v4739 = vld [vmem:[%s5 + $0xd8] sm:$0xff]
  %v4740 = vld [vmem:[%s5 + $0xe0] sm:$0xff]
  %v4741 = vld [vmem:[%s5 + $0xe8] sm:$0xff]
  %v4742 = vld [vmem:[%s5 + $0xf0] sm:$0xff]
  %v4743 = vld [vmem:[%s5 + $0xf8] sm:$0xff]
  %v4776 = vunpack.c.l.b16 %v4712
  %v4777 = vunpack.c.h.b16 %v4712
  %v4778 = vunpack.c.l.b16 %v4713
  %v4779 = vunpack.c.h.b16 %v4713
  %v4780 = vunpack.c.l.b16 %v4714
  %v4781 = vunpack.c.h.b16 %v4714
  %v4782 = vunpack.c.l.b16 %v4715
  %v4783 = vunpack.c.h.b16 %v4715
  %v4784 = vunpack.c.l.b16 %v4716
  %v4785 = vunpack.c.h.b16 %v4716
  %v4786 = vunpack.c.l.b16 %v4717
  %v4787 = vunpack.c.h.b16 %v4717
  %v4788 = vunpack.c.l.b16 %v4718
  %v4789 = vunpack.c.h.b16 %v4718
  %v4790 = vunpack.c.l.b16 %v4719
  %v4791 = vunpack.c.h.b16 %v4719
  %v4792 = vunpack.c.l.b16 %v4720
  %v4793 = vunpack.c.h.b16 %v4720
  %v4794 = vunpack.c.l.b16 %v4721
  %v4795 = vunpack.c.h.b16 %v4721
  %v4796 = vunpack.c.l.b16 %v4722
  %v4797 = vunpack.c.h.b16 %v4722
  %v4798 = vunpack.c.l.b16 %v4723
  %v4799 = vunpack.c.h.b16 %v4723
  %v4800 = vunpack.c.l.b16 %v4724
  %v4801 = vunpack.c.h.b16 %v4724
  %v4802 = vunpack.c.l.b16 %v4725
  %v4803 = vunpack.c.h.b16 %v4725
  %v4804 = vunpack.c.l.b16 %v4726
  %v4805 = vunpack.c.h.b16 %v4726
  %v4806 = vunpack.c.l.b16 %v4727
  %v4807 = vunpack.c.h.b16 %v4727
  %v4808 = vunpack.c.l.b16 %v4728
  %v4809 = vunpack.c.h.b16 %v4728
  %v4810 = vunpack.c.l.b16 %v4729
  %v4811 = vunpack.c.h.b16 %v4729
  %v4812 = vunpack.c.l.b16 %v4730
  %v4813 = vunpack.c.h.b16 %v4730
  %v4814 = vunpack.c.l.b16 %v4731
  %v4815 = vunpack.c.h.b16 %v4731
  %v4816 = vunpack.c.l.b16 %v4732
  %v4817 = vunpack.c.h.b16 %v4732
  %v4818 = vunpack.c.l.b16 %v4733
  %v4819 = vunpack.c.h.b16 %v4733
  %v4820 = vunpack.c.l.b16 %v4734
  %v4821 = vunpack.c.h.b16 %v4734
  %v4822 = vunpack.c.l.b16 %v4735
  %v4823 = vunpack.c.h.b16 %v4735
  %v4824 = vunpack.c.l.b16 %v4736
  %v4825 = vunpack.c.h.b16 %v4736
  %v4826 = vunpack.c.l.b16 %v4737
  %v4827 = vunpack.c.h.b16 %v4737
  %v4828 = vunpack.c.l.b16 %v4738
  %v4829 = vunpack.c.h.b16 %v4738
  %v4830 = vunpack.c.l.b16 %v4739
  %v4831 = vunpack.c.h.b16 %v4739
  %v4832 = vunpack.c.l.b16 %v4740
  %v4833 = vunpack.c.h.b16 %v4740
  %v4834 = vunpack.c.l.b16 %v4741
  %v4835 = vunpack.c.h.b16 %v4741
  %v4836 = vunpack.c.l.b16 %v4742
  %v4837 = vunpack.c.h.b16 %v4742
  %v4838 = vunpack.c.l.b16 %v4743
  %v4839 = vunpack.c.h.b16 %v4743
  %v4840 = vpack.c.b16 %v4780, %v4776
  %v4841 = vpack.c.b16 %v4781, %v4777
  %v4842 = vpack.c.b16 %v4782, %v4778
  %v4843 = vpack.c.b16 %v4783, %v4779
  %v4844 = vpack.c.b16 %v4788, %v4784
  %v4845 = vpack.c.b16 %v4789, %v4785
  %v4846 = vpack.c.b16 %v4790, %v4786
  %v4847 = vpack.c.b16 %v4791, %v4787
  %v4848 = vpack.c.b16 %v4796, %v4792
  %v4849 = vpack.c.b16 %v4797, %v4793
  %v4850 = vpack.c.b16 %v4798, %v4794
  %v4851 = vpack.c.b16 %v4799, %v4795
  %v4852 = vpack.c.b16 %v4804, %v4800
  %v4853 = vpack.c.b16 %v4805, %v4801
  %v4854 = vpack.c.b16 %v4806, %v4802
  %v4855 = vpack.c.b16 %v4807, %v4803
  %v4856 = vpack.c.b16 %v4812, %v4808
  %v4857 = vpack.c.b16 %v4813, %v4809
  %v4858 = vpack.c.b16 %v4814, %v4810
  %v4859 = vpack.c.b16 %v4815, %v4811
  %v4860 = vpack.c.b16 %v4820, %v4816
  %v4861 = vpack.c.b16 %v4821, %v4817
  %v4862 = vpack.c.b16 %v4822, %v4818
  %v4863 = vpack.c.b16 %v4823, %v4819
  %v4864 = vpack.c.b16 %v4828, %v4824
  %v4865 = vpack.c.b16 %v4829, %v4825
  %v4866 = vpack.c.b16 %v4830, %v4826
  %v4867 = vpack.c.b16 %v4831, %v4827
  %v4868 = vpack.c.b16 %v4836, %v4832
  %v4869 = vpack.c.b16 %v4837, %v4833
  %v4870 = vpack.c.b16 %v4838, %v4834
  %v4871 = vpack.c.b16 %v4839, %v4835
  %4904 = vmatprep.subr.bf16.mxu0 %v4841
  %4905 = vmatpush1.bf16.msra.mxu0 %v4840
  %4906 = vmatprep.subr.bf16.mxu0 %v4845
  %4907 = vmatpush1.bf16.msra.mxu0 %v4844
  %4908 = vmatprep.subr.bf16.mxu0 %v4849
  %4909 = vmatpush1.bf16.msra.mxu0 %v4848
  %4910 = vmatprep.subr.bf16.mxu0 %v4853
  %4911 = vmatpush1.bf16.msra.mxu0 %v4852
  %4912 = vmatprep.subr.bf16.mxu0 %v4857
  %4913 = vmatpush1.bf16.msra.mxu0 %v4856
  %4914 = vmatprep.subr.bf16.mxu0 %v4861
  %4915 = vmatpush1.bf16.msra.mxu0 %v4860
  %4916 = vmatprep.subr.bf16.mxu0 %v4865
  %4917 = vmatpush1.bf16.msra.mxu0 %v4864
  %4918 = vmatprep.subr.bf16.mxu0 %v4869
  %4919 = vmatpush1.bf16.msra.mxu0 %v4868
  %4920 = vmatprep.subr.bf16.mxu0 0
  %4921 = vmatpush1.bf16.msra.mxu0 0
  %4922 = vmatprep.subr.bf16.mxu0 0
  %4923 = vmatpush1.bf16.msra.mxu0 0
  %4924 = vmatprep.subr.bf16.mxu0 0
  %4925 = vmatpush1.bf16.msra.mxu0 0
  %4926 = vmatprep.subr.bf16.mxu0 0
  %4927 = vmatpush1.bf16.msra.mxu0 0
  %4928 = vmatprep.subr.bf16.mxu0 0
  %4929 = vmatpush1.bf16.msra.mxu0 0
  %4930 = vmatprep.subr.bf16.mxu0 0
  %4931 = vmatpush1.bf16.msra.mxu0 0
  %4932 = vmatprep.subr.bf16.mxu0 0
  %4933 = vmatpush1.bf16.msra.mxu0 0
  %4934 = vmatprep.subr.bf16.mxu0 0
  %4935 = vmatpush1.bf16.msra.mxu0 0
  %4936 = vmatprep.mubr.bf16.mxu0 0
  %4937 = vmatmul.mubr.bf16.gmra.mrb[0].mxu0 %v4711
  %v4938 = vpop.f32.mrb[0].mxu0
  %v4939 = vadd.f32 0.0, %v4938
  %v4940 = vpop.f32.mrb[0].mxu0
  %v4941 = vadd.f32 0.0, %v4940
  %v4942 = vpop.f32.mrb[0].mxu0
  %v4943 = vpop.f32.mrb[0].mxu0
  %4944 = vdwg.mxu0
  %4945 = vmatprep.subr.bf16.mxu0 %v4843
  %4946 = vmatpush1.bf16.msra.mxu0 %v4842
  %4947 = vmatprep.subr.bf16.mxu0 %v4847
  %4948 = vmatpush1.bf16.msra.mxu0 %v4846
  %4949 = vmatprep.subr.bf16.mxu0 %v4851
  %4950 = vmatpush1.bf16.msra.mxu0 %v4850
  %4951 = vmatprep.subr.bf16.mxu0 %v4855
  %4952 = vmatpush1.bf16.msra.mxu0 %v4854
  %4953 = vmatprep.subr.bf16.mxu0 %v4859
  %4954 = vmatpush1.bf16.msra.mxu0 %v4858
  %4955 = vmatprep.subr.bf16.mxu0 %v4863
  %4956 = vmatpush1.bf16.msra.mxu0 %v4862
  %4957 = vmatprep.subr.bf16.mxu0 %v4867
  %4958 = vmatpush1.bf16.msra.mxu0 %v4866
  %4959 = vmatprep.subr.bf16.mxu0 %v4871
  %4960 = vmatpush1.bf16.msra.mxu0 %v4870
  %4961 = vmatprep.subr.bf16.mxu0 0
  %4962 = vmatpush1.bf16.msra.mxu0 0
  %4963 = vmatprep.subr.bf16.mxu0 0
  %4964 = vmatpush1.bf16.msra.mxu0 0
  %4965 = vmatprep.subr.bf16.mxu0 0
  %4966 = vmatpush1.bf16.msra.mxu0 0
  %4967 = vmatprep.subr.bf16.mxu0 0
  %4968 = vmatpush1.bf16.msra.mxu0 0
  %4969 = vmatprep.subr.bf16.mxu0 0
  %4970 = vmatpush1.bf16.msra.mxu0 0
  %4971 = vmatprep.subr.bf16.mxu0 0
  %4972 = vmatpush1.bf16.msra.mxu0 0
  %4973 = vmatprep.subr.bf16.mxu0 0
  %4974 = vmatpush1.bf16.msra.mxu0 0
  %4975 = vmatprep.subr.bf16.mxu0 0
  %4976 = vmatpush1.bf16.msra.mxu0 0
  %4977 = vmatprep.mubr.bf16.mxu0 0
  %4978 = vmatmul.mubr.bf16.gmra.mrb[0].mxu0 %v4711
  %v4979 = vpop.f32.mrb[0].mxu0
  %v4980 = vadd.f32 0.0, %v4979
  %v4981 = vpop.f32.mrb[0].mxu0
  %v4982 = vadd.f32 0.0, %v4981
  %v4983 = vpop.f32.mrb[0].mxu0
  %v4984 = vpop.f32.mrb[0].mxu0
  %4985 = vdwg.mxu0
  %v4990 = vcombine.low %v4939, %v4941
  %v4991 = vcombine.low %v4980, %v4982
  %v4993 = vunpack.c.l.s4 1966171168
  %v4994 = vunpack.c.0.s8 %v4993
  %v4995 = vlaneseq
  %v4996 = vshrl.u32 %v4995, 7
  %v4997 = vsub.s32 %v4994, %v4996
  %v4998 = vrot.slane %v4990, %v4997
  %v5000 = vunpack.c.l.s4 1966171168
  %v5001 = vunpack.c.0.s8 %v5000
  %v5002 = vlaneseq
  %v5003 = vshrl.u32 %v5002, 7
  %v5004 = vsub.s32 %v5001, %v5003
  %v5005 = vrot.slane %v4991, %v5004
  %v5006 = vcombine.low %v4998, %v5005
  %v5008 = vunpack.c.l.s4 1966171168
  %v5009 = vunpack.c.0.s8 %v5008
  %v5010 = vlaneseq
  %v5011 = vshrl.u32 %v5010, 7
  %v5012 = vsub.s32 %v5009, %v5011
  %v5013 = vrot.slane %v5006, %v5012
  %v5015 = vadd.f32 %v4710, %v5013
  %v5016 = vxor.u32 %v5015, 2147483648
  %v5017 = vmul.f32 %v5016, 1.442695
  %v5018 = vpow.pop %v5017
  %v5019 = vadd.f32 %v5018, 1.0
  %v5020 = vrcp.pop %v5019
  %v5021 = vmul.f32 1.0, %v5020
  %v5023 = vrot.slane %v5015, 3
  %v5025 = vtanh.pop %v5023
  %v5027 = vrot.slane %v5021, 1
  %v5029 = vmul.f32 %v5027, %v4704
  %v5030 = vmul.f32 %v5021, %v5025
  %v5031 = vadd.f32 %v5029, %v5030
  %v5032 = vtanh.pop %v5031
  %v5033 = vrot.slane %v5021, 2
  %v5035 = vmul.f32 %v5033, %v5032
  %5036 = vst [vmem:[#allocation3 + $0x5] sm:$0x1] %v5035
  %v5037 = vld [vmem:[%s2187] ss:$8 sm:$0xf]
  %v5038 = vpack.c.bf16 %v5035, %v5035
  %v5039 = vld [vmem:[%s5] sm:$0xff]
  %v5040 = vld [vmem:[%s5 + $0x8] sm:$0xff]
  %v5041 = vld [vmem:[%s5 + $0x10] sm:$0xff]
  %v5042 = vld [vmem:[%s5 + $0x18] sm:$0xff]
  %v5043 = vld [vmem:[%s5 + $0x20] sm:$0xff]
  %v5044 = vld [vmem:[%s5 + $0x28] sm:$0xff]
  %v5045 = vld [vmem:[%s5 + $0x30] sm:$0xff]
  %v5046 = vld [vmem:[%s5 + $0x38] sm:$0xff]
  %v5047 = vld [vmem:[%s5 + $0x40] sm:$0xff]
  %v5048 = vld [vmem:[%s5 + $0x48] sm:$0xff]
  %v5049 = vld [vmem:[%s5 + $0x50] sm:$0xff]
  %v5050 = vld [vmem:[%s5 + $0x58] sm:$0xff]
  %v5051 = vld [vmem:[%s5 + $0x60] sm:$0xff]
  %v5052 = vld [vmem:[%s5 + $0x68] sm:$0xff]
  %v5053 = vld [vmem:[%s5 + $0x70] sm:$0xff]
  %v5054 = vld [vmem:[%s5 + $0x78] sm:$0xff]
  %v5055 = vld [vmem:[%s5 + $0x80] sm:$0xff]
  %v5056 = vld [vmem:[%s5 + $0x88] sm:$0xff]
  %v5057 = vld [vmem:[%s5 + $0x90] sm:$0xff]
  %v5058 = vld [vmem:[%s5 + $0x98] sm:$0xff]
  %v5059 = vld [vmem:[%s5 + $0xa0] sm:$0xff]
  %v5060 = vld [vmem:[%s5 + $0xa8] sm:$0xff]
  %v5061 = vld [vmem:[%s5 + $0xb0] sm:$0xff]
  %v5062 = vld [vmem:[%s5 + $0xb8] sm:$0xff]
  %v5063 = vld [vmem:[%s5 + $0xc0] sm:$0xff]
  %v5064 = vld [vmem:[%s5 + $0xc8] sm:$0xff]
  %v5065 = vld [vmem:[%s5 + $0xd0] sm:$0xff]
  %v5066 = vld [vmem:[%s5 + $0xd8] sm:$0xff]
  %v5067 = vld [vmem:[%s5 + $0xe0] sm:$0xff]
  %v5068 = vld [vmem:[%s5 + $0xe8] sm:$0xff]
  %v5069 = vld [vmem:[%s5 + $0xf0] sm:$0xff]
  %v5070 = vld [vmem:[%s5 + $0xf8] sm:$0xff]
  %v5103 = vunpack.c.l.b16 %v5039
  %v5104 = vunpack.c.h.b16 %v5039
  %v5105 = vunpack.c.l.b16 %v5040
  %v5106 = vunpack.c.h.b16 %v5040
  %v5107 = vunpack.c.l.b16 %v5041
  %v5108 = vunpack.c.h.b16 %v5041
  %v5109 = vunpack.c.l.b16 %v5042
  %v5110 = vunpack.c.h.b16 %v5042
  %v5111 = vunpack.c.l.b16 %v5043
  %v5112 = vunpack.c.h.b16 %v5043
  %v5113 = vunpack.c.l.b16 %v5044
  %v5114 = vunpack.c.h.b16 %v5044
  %v5115 = vunpack.c.l.b16 %v5045
  %v5116 = vunpack.c.h.b16 %v5045
  %v5117 = vunpack.c.l.b16 %v5046
  %v5118 = vunpack.c.h.b16 %v5046
  %v5119 = vunpack.c.l.b16 %v5047
  %v5120 = vunpack.c.h.b16 %v5047
  %v5121 = vunpack.c.l.b16 %v5048
  %v5122 = vunpack.c.h.b16 %v5048
  %v5123 = vunpack.c.l.b16 %v5049
  %v5124 = vunpack.c.h.b16 %v5049
  %v5125 = vunpack.c.l.b16 %v5050
  %v5126 = vunpack.c.h.b16 %v5050
  %v5127 = vunpack.c.l.b16 %v5051
  %v5128 = vunpack.c.h.b16 %v5051
  %v5129 = vunpack.c.l.b16 %v5052
  %v5130 = vunpack.c.h.b16 %v5052
  %v5131 = vunpack.c.l.b16 %v5053
  %v5132 = vunpack.c.h.b16 %v5053
  %v5133 = vunpack.c.l.b16 %v5054
  %v5134 = vunpack.c.h.b16 %v5054
  %v5135 = vunpack.c.l.b16 %v5055
  %v5136 = vunpack.c.h.b16 %v5055
  %v5137 = vunpack.c.l.b16 %v5056
  %v5138 = vunpack.c.h.b16 %v5056
  %v5139 = vunpack.c.l.b16 %v5057
  %v5140 = vunpack.c.h.b16 %v5057
  %v5141 = vunpack.c.l.b16 %v5058
  %v5142 = vunpack.c.h.b16 %v5058
  %v5143 = vunpack.c.l.b16 %v5059
  %v5144 = vunpack.c.h.b16 %v5059
  %v5145 = vunpack.c.l.b16 %v5060
  %v5146 = vunpack.c.h.b16 %v5060
  %v5147 = vunpack.c.l.b16 %v5061
  %v5148 = vunpack.c.h.b16 %v5061
  %v5149 = vunpack.c.l.b16 %v5062
  %v5150 = vunpack.c.h.b16 %v5062
  %v5151 = vunpack.c.l.b16 %v5063
  %v5152 = vunpack.c.h.b16 %v5063
  %v5153 = vunpack.c.l.b16 %v5064
  %v5154 = vunpack.c.h.b16 %v5064
  %v5155 = vunpack.c.l.b16 %v5065
  %v5156 = vunpack.c.h.b16 %v5065
  %v5157 = vunpack.c.l.b16 %v5066
  %v5158 = vunpack.c.h.b16 %v5066
  %v5159 = vunpack.c.l.b16 %v5067
  %v5160 = vunpack.c.h.b16 %v5067
  %v5161 = vunpack.c.l.b16 %v5068
  %v5162 = vunpack.c.h.b16 %v5068
  %v5163 = vunpack.c.l.b16 %v5069
  %v5164 = vunpack.c.h.b16 %v5069
  %v5165 = vunpack.c.l.b16 %v5070
  %v5166 = vunpack.c.h.b16 %v5070
  %v5167 = vpack.c.b16 %v5107, %v5103
  %v5168 = vpack.c.b16 %v5108, %v5104
  %v5169 = vpack.c.b16 %v5109, %v5105
  %v5170 = vpack.c.b16 %v5110, %v5106
  %v5171 = vpack.c.b16 %v5115, %v5111
  %v5172 = vpack.c.b16 %v5116, %v5112
  %v5173 = vpack.c.b16 %v5117, %v5113
  %v5174 = vpack.c.b16 %v5118, %v5114
  %v5175 = vpack.c.b16 %v5123, %v5119
  %v5176 = vpack.c.b16 %v5124, %v5120
  %v5177 = vpack.c.b16 %v5125, %v5121
  %v5178 = vpack.c.b16 %v5126, %v5122
  %v5179 = vpack.c.b16 %v5131, %v5127
  %v5180 = vpack.c.b16 %v5132, %v5128
  %v5181 = vpack.c.b16 %v5133, %v5129
  %v5182 = vpack.c.b16 %v5134, %v5130
  %v5183 = vpack.c.b16 %v5139, %v5135
  %v5184 = vpack.c.b16 %v5140, %v5136
  %v5185 = vpack.c.b16 %v5141, %v5137
  %v5186 = vpack.c.b16 %v5142, %v5138
  %v5187 = vpack.c.b16 %v5147, %v5143
  %v5188 = vpack.c.b16 %v5148, %v5144
  %v5189 = vpack.c.b16 %v5149, %v5145
  %v5190 = vpack.c.b16 %v5150, %v5146
  %v5191 = vpack.c.b16 %v5155, %v5151
  %v5192 = vpack.c.b16 %v5156, %v5152
  %v5193 = vpack.c.b16 %v5157, %v5153
  %v5194 = vpack.c.b16 %v5158, %v5154
  %v5195 = vpack.c.b16 %v5163, %v5159
  %v5196 = vpack.c.b16 %v5164, %v5160
  %v5197 = vpack.c.b16 %v5165, %v5161
  %v5198 = vpack.c.b16 %v5166, %v5162
  %5231 = vmatprep.subr.bf16.mxu0 %v5168
  %5232 = vmatpush1.bf16.msra.mxu0 %v5167
  %5233 = vmatprep.subr.bf16.mxu0 %v5172
  %5234 = vmatpush1.bf16.msra.mxu0 %v5171
  %5235 = vmatprep.subr.bf16.mxu0 %v5176
  %5236 = vmatpush1.bf16.msra.mxu0 %v5175
  %5237 = vmatprep.subr.bf16.mxu0 %v5180
  %5238 = vmatpush1.bf16.msra.mxu0 %v5179
  %5239 = vmatprep.subr.bf16.mxu0 %v5184
  %5240 = vmatpush1.bf16.msra.mxu0 %v5183
  %5241 = vmatprep.subr.bf16.mxu0 %v5188
  %5242 = vmatpush1.bf16.msra.mxu0 %v5187
  %5243 = vmatprep.subr.bf16.mxu0 %v5192
  %5244 = vmatpush1.bf16.msra.mxu0 %v5191
  %5245 = vmatprep.subr.bf16.mxu0 %v5196
  %5246 = vmatpush1.bf16.msra.mxu0 %v5195
  %5247 = vmatprep.subr.bf16.mxu0 0
  %5248 = vmatpush1.bf16.msra.mxu0 0
  %5249 = vmatprep.subr.bf16.mxu0 0
  %5250 = vmatpush1.bf16.msra.mxu0 0
  %5251 = vmatprep.subr.bf16.mxu0 0
  %5252 = vmatpush1.bf16.msra.mxu0 0
  %5253 = vmatprep.subr.bf16.mxu0 0
  %5254 = vmatpush1.bf16.msra.mxu0 0
  %5255 = vmatprep.subr.bf16.mxu0 0
  %5256 = vmatpush1.bf16.msra.mxu0 0
  %5257 = vmatprep.subr.bf16.mxu0 0
  %5258 = vmatpush1.bf16.msra.mxu0 0
  %5259 = vmatprep.subr.bf16.mxu0 0
  %5260 = vmatpush1.bf16.msra.mxu0 0
  %5261 = vmatprep.subr.bf16.mxu0 0
  %5262 = vmatpush1.bf16.msra.mxu0 0
  %5263 = vmatprep.mubr.bf16.mxu0 0
  %5264 = vmatmul.mubr.bf16.gmra.mrb[0].mxu0 %v5038
  %v5265 = vpop.f32.mrb[0].mxu0
  %v5266 = vadd.f32 0.0, %v5265
  %v5267 = vpop.f32.mrb[0].mxu0
  %v5268 = vadd.f32 0.0, %v5267
  %v5269 = vpop.f32.mrb[0].mxu0
  %v5270 = vpop.f32.mrb[0].mxu0
  %5271 = vdwg.mxu0
  %5272 = vmatprep.subr.bf16.mxu0 %v5170
  %5273 = vmatpush1.bf16.msra.mxu0 %v5169
  %5274 = vmatprep.subr.bf16.mxu0 %v5174
  %5275 = vmatpush1.bf16.msra.mxu0 %v5173
  %5276 = vmatprep.subr.bf16.mxu0 %v5178
  %5277 = vmatpush1.bf16.msra.mxu0 %v5177
  %5278 = vmatprep.subr.bf16.mxu0 %v5182
  %5279 = vmatpush1.bf16.msra.mxu0 %v5181
  %5280 = vmatprep.subr.bf16.mxu0 %v5186
  %5281 = vmatpush1.bf16.msra.mxu0 %v5185
  %5282 = vmatprep.subr.bf16.mxu0 %v5190
  %5283 = vmatpush1.bf16.msra.mxu0 %v5189
  %5284 = vmatprep.subr.bf16.mxu0 %v5194
  %5285 = vmatpush1.bf16.msra.mxu0 %v5193
  %5286 = vmatprep.subr.bf16.mxu0 %v5198
  %5287 = vmatpush1.bf16.msra.mxu0 %v5197
  %5288 = vmatprep.subr.bf16.mxu0 0
  %5289 = vmatpush1.bf16.msra.mxu0 0
  %5290 = vmatprep.subr.bf16.mxu0 0
  %5291 = vmatpush1.bf16.msra.mxu0 0
  %5292 = vmatprep.subr.bf16.mxu0 0
  %5293 = vmatpush1.bf16.msra.mxu0 0
  %5294 = vmatprep.subr.bf16.mxu0 0
  %5295 = vmatpush1.bf16.msra.mxu0 0
  %5296 = vmatprep.subr.bf16.mxu0 0
  %5297 = vmatpush1.bf16.msra.mxu0 0
  %5298 = vmatprep.subr.bf16.mxu0 0
  %5299 = vmatpush1.bf16.msra.mxu0 0
  %5300 = vmatprep.subr.bf16.mxu0 0
  %5301 = vmatpush1.bf16.msra.mxu0 0
  %5302 = vmatprep.subr.bf16.mxu0 0
  %5303 = vmatpush1.bf16.msra.mxu0 0
  %5304 = vmatprep.mubr.bf16.mxu0 0
  %5305 = vmatmul.mubr.bf16.gmra.mrb[0].mxu0 %v5038
  %v5306 = vpop.f32.mrb[0].mxu0
  %v5307 = vadd.f32 0.0, %v5306
  %v5308 = vpop.f32.mrb[0].mxu0
  %v5309 = vadd.f32 0.0, %v5308
  %v5310 = vpop.f32.mrb[0].mxu0
  %v5311 = vpop.f32.mrb[0].mxu0
  %5312 = vdwg.mxu0
  %v5317 = vcombine.low %v5266, %v5268
  %v5318 = vcombine.low %v5307, %v5309
  %v5320 = vunpack.c.l.s4 1966171168
  %v5321 = vunpack.c.0.s8 %v5320
  %v5322 = vlaneseq
  %v5323 = vshrl.u32 %v5322, 7
  %v5324 = vsub.s32 %v5321, %v5323
  %v5325 = vrot.slane %v5317, %v5324
  %v5327 = vunpack.c.l.s4 1966171168
  %v5328 = vunpack.c.0.s8 %v5327
  %v5329 = vlaneseq
  %v5330 = vshrl.u32 %v5329, 7
  %v5331 = vsub.s32 %v5328, %v5330
  %v5332 = vrot.slane %v5318, %v5331
  %v5333 = vcombine.low %v5325, %v5332
  %v5335 = vunpack.c.l.s4 1966171168
  %v5336 = vunpack.c.0.s8 %v5335
  %v5337 = vlaneseq
  %v5338 = vshrl.u32 %v5337, 7
  %v5339 = vsub.s32 %v5336, %v5338
  %v5340 = vrot.slane %v5333, %v5339
  %v5342 = vadd.f32 %v5037, %v5340
  %v5343 = vxor.u32 %v5342, 2147483648
  %v5344 = vmul.f32 %v5343, 1.442695
  %v5345 = vpow.pop %v5344
  %v5346 = vadd.f32 %v5345, 1.0
  %v5347 = vrcp.pop %v5346
  %v5348 = vmul.f32 1.0, %v5347
  %v5350 = vrot.slane %v5342, 3
  %v5352 = vtanh.pop %v5350
  %v5354 = vrot.slane %v5348, 1
  %v5356 = vmul.f32 %v5354, %v5031
  %v5357 = vmul.f32 %v5348, %v5352
  %v5358 = vadd.f32 %v5356, %v5357
  %v5359 = vtanh.pop %v5358
  %v5360 = vrot.slane %v5348, 2
  %v5362 = vmul.f32 %v5360, %v5359
  %5363 = vst [vmem:[#allocation3 + $0x6] sm:$0x1] %v5362
  %v5364 = vld [vmem:[%s2515] ss:$8 sm:$0xf]
  %v5365 = vpack.c.bf16 %v5362, %v5362
  %v5366 = vld [vmem:[%s5] sm:$0xff]
  %v5367 = vld [vmem:[%s5 + $0x8] sm:$0xff]
  %v5368 = vld [vmem:[%s5 + $0x10] sm:$0xff]
  %v5369 = vld [vmem:[%s5 + $0x18] sm:$0xff]
  %v5370 = vld [vmem:[%s5 + $0x20] sm:$0xff]
  %v5371 = vld [vmem:[%s5 + $0x28] sm:$0xff]
  %v5372 = vld [vmem:[%s5 + $0x30] sm:$0xff]
  %v5373 = vld [vmem:[%s5 + $0x38] sm:$0xff]
  %v5374 = vld [vmem:[%s5 + $0x40] sm:$0xff]
  %v5375 = vld [vmem:[%s5 + $0x48] sm:$0xff]
  %v5376 = vld [vmem:[%s5 + $0x50] sm:$0xff]
  %v5377 = vld [vmem:[%s5 + $0x58] sm:$0xff]
  %v5378 = vld [vmem:[%s5 + $0x60] sm:$0xff]
  %v5379 = vld [vmem:[%s5 + $0x68] sm:$0xff]
  %v5380 = vld [vmem:[%s5 + $0x70] sm:$0xff]
  %v5381 = vld [vmem:[%s5 + $0x78] sm:$0xff]
  %v5382 = vld [vmem:[%s5 + $0x80] sm:$0xff]
  %v5383 = vld [vmem:[%s5 + $0x88] sm:$0xff]
  %v5384 = vld [vmem:[%s5 + $0x90] sm:$0xff]
  %v5385 = vld [vmem:[%s5 + $0x98] sm:$0xff]
  %v5386 = vld [vmem:[%s5 + $0xa0] sm:$0xff]
  %v5387 = vld [vmem:[%s5 + $0xa8] sm:$0xff]
  %v5388 = vld [vmem:[%s5 + $0xb0] sm:$0xff]
  %v5389 = vld [vmem:[%s5 + $0xb8] sm:$0xff]
  %v5390 = vld [vmem:[%s5 + $0xc0] sm:$0xff]
  %v5391 = vld [vmem:[%s5 + $0xc8] sm:$0xff]
  %v5392 = vld [vmem:[%s5 + $0xd0] sm:$0xff]
  %v5393 = vld [vmem:[%s5 + $0xd8] sm:$0xff]
  %v5394 = vld [vmem:[%s5 + $0xe0] sm:$0xff]
  %v5395 = vld [vmem:[%s5 + $0xe8] sm:$0xff]
  %v5396 = vld [vmem:[%s5 + $0xf0] sm:$0xff]
  %v5397 = vld [vmem:[%s5 + $0xf8] sm:$0xff]
  %v5430 = vunpack.c.l.b16 %v5366
  %v5431 = vunpack.c.h.b16 %v5366
  %v5432 = vunpack.c.l.b16 %v5367
  %v5433 = vunpack.c.h.b16 %v5367
  %v5434 = vunpack.c.l.b16 %v5368
  %v5435 = vunpack.c.h.b16 %v5368
  %v5436 = vunpack.c.l.b16 %v5369
  %v5437 = vunpack.c.h.b16 %v5369
  %v5438 = vunpack.c.l.b16 %v5370
  %v5439 = vunpack.c.h.b16 %v5370
  %v5440 = vunpack.c.l.b16 %v5371
  %v5441 = vunpack.c.h.b16 %v5371
  %v5442 = vunpack.c.l.b16 %v5372
  %v5443 = vunpack.c.h.b16 %v5372
  %v5444 = vunpack.c.l.b16 %v5373
  %v5445 = vunpack.c.h.b16 %v5373
  %v5446 = vunpack.c.l.b16 %v5374
  %v5447 = vunpack.c.h.b16 %v5374
  %v5448 = vunpack.c.l.b16 %v5375
  %v5449 = vunpack.c.h.b16 %v5375
  %v5450 = vunpack.c.l.b16 %v5376
  %v5451 = vunpack.c.h.b16 %v5376
  %v5452 = vunpack.c.l.b16 %v5377
  %v5453 = vunpack.c.h.b16 %v5377
  %v5454 = vunpack.c.l.b16 %v5378
  %v5455 = vunpack.c.h.b16 %v5378
  %v5456 = vunpack.c.l.b16 %v5379
  %v5457 = vunpack.c.h.b16 %v5379
  %v5458 = vunpack.c.l.b16 %v5380
  %v5459 = vunpack.c.h.b16 %v5380
  %v5460 = vunpack.c.l.b16 %v5381
  %v5461 = vunpack.c.h.b16 %v5381
  %v5462 = vunpack.c.l.b16 %v5382
  %v5463 = vunpack.c.h.b16 %v5382
  %v5464 = vunpack.c.l.b16 %v5383
  %v5465 = vunpack.c.h.b16 %v5383
  %v5466 = vunpack.c.l.b16 %v5384
  %v5467 = vunpack.c.h.b16 %v5384
  %v5468 = vunpack.c.l.b16 %v5385
  %v5469 = vunpack.c.h.b16 %v5385
  %v5470 = vunpack.c.l.b16 %v5386
  %v5471 = vunpack.c.h.b16 %v5386
  %v5472 = vunpack.c.l.b16 %v5387
  %v5473 = vunpack.c.h.b16 %v5387
  %v5474 = vunpack.c.l.b16 %v5388
  %v5475 = vunpack.c.h.b16 %v5388
  %v5476 = vunpack.c.l.b16 %v5389
  %v5477 = vunpack.c.h.b16 %v5389
  %v5478 = vunpack.c.l.b16 %v5390
  %v5479 = vunpack.c.h.b16 %v5390
  %v5480 = vunpack.c.l.b16 %v5391
  %v5481 = vunpack.c.h.b16 %v5391
  %v5482 = vunpack.c.l.b16 %v5392
  %v5483 = vunpack.c.h.b16 %v5392
  %v5484 = vunpack.c.l.b16 %v5393
  %v5485 = vunpack.c.h.b16 %v5393
  %v5486 = vunpack.c.l.b16 %v5394
  %v5487 = vunpack.c.h.b16 %v5394
  %v5488 = vunpack.c.l.b16 %v5395
  %v5489 = vunpack.c.h.b16 %v5395
  %v5490 = vunpack.c.l.b16 %v5396
  %v5491 = vunpack.c.h.b16 %v5396
  %v5492 = vunpack.c.l.b16 %v5397
  %v5493 = vunpack.c.h.b16 %v5397
  %v5494 = vpack.c.b16 %v5434, %v5430
  %v5495 = vpack.c.b16 %v5435, %v5431
  %v5496 = vpack.c.b16 %v5436, %v5432
  %v5497 = vpack.c.b16 %v5437, %v5433
  %v5498 = vpack.c.b16 %v5442, %v5438
  %v5499 = vpack.c.b16 %v5443, %v5439
  %v5500 = vpack.c.b16 %v5444, %v5440
  %v5501 = vpack.c.b16 %v5445, %v5441
  %v5502 = vpack.c.b16 %v5450, %v5446
  %v5503 = vpack.c.b16 %v5451, %v5447
  %v5504 = vpack.c.b16 %v5452, %v5448
  %v5505 = vpack.c.b16 %v5453, %v5449
  %v5506 = vpack.c.b16 %v5458, %v5454
  %v5507 = vpack.c.b16 %v5459, %v5455
  %v5508 = vpack.c.b16 %v5460, %v5456
  %v5509 = vpack.c.b16 %v5461, %v5457
  %v5510 = vpack.c.b16 %v5466, %v5462
  %v5511 = vpack.c.b16 %v5467, %v5463
  %v5512 = vpack.c.b16 %v5468, %v5464
  %v5513 = vpack.c.b16 %v5469, %v5465
  %v5514 = vpack.c.b16 %v5474, %v5470
  %v5515 = vpack.c.b16 %v5475, %v5471
  %v5516 = vpack.c.b16 %v5476, %v5472
  %v5517 = vpack.c.b16 %v5477, %v5473
  %v5518 = vpack.c.b16 %v5482, %v5478
  %v5519 = vpack.c.b16 %v5483, %v5479
  %v5520 = vpack.c.b16 %v5484, %v5480
  %v5521 = vpack.c.b16 %v5485, %v5481
  %v5522 = vpack.c.b16 %v5490, %v5486
  %v5523 = vpack.c.b16 %v5491, %v5487
  %v5524 = vpack.c.b16 %v5492, %v5488
  %v5525 = vpack.c.b16 %v5493, %v5489
  %5558 = vmatprep.subr.bf16.mxu0 %v5495
  %5559 = vmatpush1.bf16.msra.mxu0 %v5494
  %5560 = vmatprep.subr.bf16.mxu0 %v5499
  %5561 = vmatpush1.bf16.msra.mxu0 %v5498
  %5562 = vmatprep.subr.bf16.mxu0 %v5503
  %5563 = vmatpush1.bf16.msra.mxu0 %v5502
  %5564 = vmatprep.subr.bf16.mxu0 %v5507
  %5565 = vmatpush1.bf16.msra.mxu0 %v5506
  %5566 = vmatprep.subr.bf16.mxu0 %v5511
  %5567 = vmatpush1.bf16.msra.mxu0 %v5510
  %5568 = vmatprep.subr.bf16.mxu0 %v5515
  %5569 = vmatpush1.bf16.msra.mxu0 %v5514
  %5570 = vmatprep.subr.bf16.mxu0 %v5519
  %5571 = vmatpush1.bf16.msra.mxu0 %v5518
  %5572 = vmatprep.subr.bf16.mxu0 %v5523
  %5573 = vmatpush1.bf16.msra.mxu0 %v5522
  %5574 = vmatprep.subr.bf16.mxu0 0
  %5575 = vmatpush1.bf16.msra.mxu0 0
  %5576 = vmatprep.subr.bf16.mxu0 0
  %5577 = vmatpush1.bf16.msra.mxu0 0
  %5578 = vmatprep.subr.bf16.mxu0 0
  %5579 = vmatpush1.bf16.msra.mxu0 0
  %5580 = vmatprep.subr.bf16.mxu0 0
  %5581 = vmatpush1.bf16.msra.mxu0 0
  %5582 = vmatprep.subr.bf16.mxu0 0
  %5583 = vmatpush1.bf16.msra.mxu0 0
  %5584 = vmatprep.subr.bf16.mxu0 0
  %5585 = vmatpush1.bf16.msra.mxu0 0
  %5586 = vmatprep.subr.bf16.mxu0 0
  %5587 = vmatpush1.bf16.msra.mxu0 0
  %5588 = vmatprep.subr.bf16.mxu0 0
  %5589 = vmatpush1.bf16.msra.mxu0 0
  %5590 = vmatprep.mubr.bf16.mxu0 0
  %5591 = vmatmul.mubr.bf16.gmra.mrb[0].mxu0 %v5365
  %v5592 = vpop.f32.mrb[0].mxu0
  %v5593 = vadd.f32 0.0, %v5592
  %v5594 = vpop.f32.mrb[0].mxu0
  %v5595 = vadd.f32 0.0, %v5594
  %v5596 = vpop.f32.mrb[0].mxu0
  %v5597 = vpop.f32.mrb[0].mxu0
  %5598 = vdwg.mxu0
  %5599 = vmatprep.subr.bf16.mxu0 %v5497
  %5600 = vmatpush1.bf16.msra.mxu0 %v5496
  %5601 = vmatprep.subr.bf16.mxu0 %v5501
  %5602 = vmatpush1.bf16.msra.mxu0 %v5500
  %5603 = vmatprep.subr.bf16.mxu0 %v5505
  %5604 = vmatpush1.bf16.msra.mxu0 %v5504
  %5605 = vmatprep.subr.bf16.mxu0 %v5509
  %5606 = vmatpush1.bf16.msra.mxu0 %v5508
  %5607 = vmatprep.subr.bf16.mxu0 %v5513
  %5608 = vmatpush1.bf16.msra.mxu0 %v5512
  %5609 = vmatprep.subr.bf16.mxu0 %v5517
  %5610 = vmatpush1.bf16.msra.mxu0 %v5516
  %5611 = vmatprep.subr.bf16.mxu0 %v5521
  %5612 = vmatpush1.bf16.msra.mxu0 %v5520
  %5613 = vmatprep.subr.bf16.mxu0 %v5525
  %5614 = vmatpush1.bf16.msra.mxu0 %v5524
  %5615 = vmatprep.subr.bf16.mxu0 0
  %5616 = vmatpush1.bf16.msra.mxu0 0
  %5617 = vmatprep.subr.bf16.mxu0 0
  %5618 = vmatpush1.bf16.msra.mxu0 0
  %5619 = vmatprep.subr.bf16.mxu0 0
  %5620 = vmatpush1.bf16.msra.mxu0 0
  %5621 = vmatprep.subr.bf16.mxu0 0
  %5622 = vmatpush1.bf16.msra.mxu0 0
  %5623 = vmatprep.subr.bf16.mxu0 0
  %5624 = vmatpush1.bf16.msra.mxu0 0
  %5625 = vmatprep.subr.bf16.mxu0 0
  %5626 = vmatpush1.bf16.msra.mxu0 0
  %5627 = vmatprep.subr.bf16.mxu0 0
  %5628 = vmatpush1.bf16.msra.mxu0 0
  %5629 = vmatprep.subr.bf16.mxu0 0
  %5630 = vmatpush1.bf16.msra.mxu0 0
  %5631 = vmatprep.mubr.bf16.mxu0 0
  %5632 = vmatmul.mubr.bf16.gmra.mrb[0].mxu0 %v5365
  %v5633 = vpop.f32.mrb[0].mxu0
  %v5634 = vadd.f32 0.0, %v5633
  %v5635 = vpop.f32.mrb[0].mxu0
  %v5636 = vadd.f32 0.0, %v5635
  %v5637 = vpop.f32.mrb[0].mxu0
  %v5638 = vpop.f32.mrb[0].mxu0
  %5639 = vdwg.mxu0
  %v5644 = vcombine.low %v5593, %v5595
  %v5645 = vcombine.low %v5634, %v5636
  %v5647 = vunpack.c.l.s4 1966171168
  %v5648 = vunpack.c.0.s8 %v5647
  %v5649 = vlaneseq
  %v5650 = vshrl.u32 %v5649, 7
  %v5651 = vsub.s32 %v5648, %v5650
  %v5652 = vrot.slane %v5644, %v5651
  %v5654 = vunpack.c.l.s4 1966171168
  %v5655 = vunpack.c.0.s8 %v5654
  %v5656 = vlaneseq
  %v5657 = vshrl.u32 %v5656, 7
  %v5658 = vsub.s32 %v5655, %v5657
  %v5659 = vrot.slane %v5645, %v5658
  %v5660 = vcombine.low %v5652, %v5659
  %v5662 = vunpack.c.l.s4 1966171168
  %v5663 = vunpack.c.0.s8 %v5662
  %v5664 = vlaneseq
  %v5665 = vshrl.u32 %v5664, 7
  %v5666 = vsub.s32 %v5663, %v5665
  %v5667 = vrot.slane %v5660, %v5666
  %v5669 = vadd.f32 %v5364, %v5667
  %v5670 = vxor.u32 %v5669, 2147483648
  %v5671 = vmul.f32 %v5670, 1.442695
  %v5672 = vpow.pop %v5671
  %v5673 = vadd.f32 %v5672, 1.0
  %v5674 = vrcp.pop %v5673
  %v5675 = vmul.f32 1.0, %v5674
  %v5677 = vrot.slane %v5669, 3
  %v5679 = vtanh.pop %v5677
  %v5681 = vrot.slane %v5675, 1
  %v5683 = vmul.f32 %v5681, %v5358
  %v5684 = vmul.f32 %v5675, %v5679
  %v5685 = vadd.f32 %v5683, %v5684
  %v5686 = vtanh.pop %v5685
  %v5687 = vrot.slane %v5675, 2
  %v5689 = vmul.f32 %v5687, %v5686
  %5690 = vst [vmem:[#allocation3 + $0x7] sm:$0x1] %v5689
  %v5691 = vld [vmem:[#allocation3] sm:$0xff]
  %v5692 = vld [vmem:[%s7] sm:$0xff]
  %v5693 = vld [vmem:[%s7 + $0x8] sm:$0xff]
  %v5694 = vld [vmem:[%s7 + $0x10] sm:$0xff]
  %v5695 = vld [vmem:[%s7 + $0x18] sm:$0xff]
  %v5696 = vld [vmem:[%s7 + $0x20] sm:$0xff]
  %v5697 = vld [vmem:[%s7 + $0x28] sm:$0xff]
  %v5698 = vld [vmem:[%s7 + $0x30] sm:$0xff]
  %v5699 = vld [vmem:[%s7 + $0x38] sm:$0xff]
  %v5700 = vld [vmem:[%s7 + $0x40] sm:$0xff]
  %v5701 = vld [vmem:[%s7 + $0x48] sm:$0xff]
  %v5702 = vld [vmem:[%s7 + $0x50] sm:$0xff]
  %v5703 = vld [vmem:[%s7 + $0x58] sm:$0xff]
  %v5704 = vld [vmem:[%s7 + $0x60] sm:$0xff]
  %v5705 = vld [vmem:[%s7 + $0x68] sm:$0xff]
  %v5706 = vld [vmem:[%s7 + $0x70] sm:$0xff]
  %v5707 = vld [vmem:[%s7 + $0x78] sm:$0xff]
  %v5708 = vld [vmem:[%s7 + $0x80] sm:$0xff]
  %v5709 = vld [vmem:[%s7 + $0x88] sm:$0xff]
  %v5710 = vld [vmem:[%s7 + $0x90] sm:$0xff]
  %v5711 = vld [vmem:[%s7 + $0x98] sm:$0xff]
  %v5712 = vld [vmem:[%s7 + $0xa0] sm:$0xff]
  %v5713 = vld [vmem:[%s7 + $0xa8] sm:$0xff]
  %v5714 = vld [vmem:[%s7 + $0xb0] sm:$0xff]
  %v5715 = vld [vmem:[%s7 + $0xb8] sm:$0xff]
  %v5716 = vld [vmem:[%s7 + $0xc0] sm:$0xff]
  %v5717 = vld [vmem:[%s7 + $0xc8] sm:$0xff]
  %v5718 = vld [vmem:[%s7 + $0xd0] sm:$0xff]
  %v5719 = vld [vmem:[%s7 + $0xd8] sm:$0xff]
  %v5720 = vld [vmem:[%s7 + $0xe0] sm:$0xff]
  %v5721 = vld [vmem:[%s7 + $0xe8] sm:$0xff]
  %v5722 = vld [vmem:[%s7 + $0xf0] sm:$0xff]
  %v5723 = vld [vmem:[%s7 + $0xf8] sm:$0xff]
  %v5724 = vld [vmem:[%s7 + $0x100] sm:$0xff]
  %v5725 = vld [vmem:[%s7 + $0x108] sm:$0xff]
  %v5726 = vld [vmem:[%s7 + $0x110] sm:$0xff]
  %v5727 = vld [vmem:[%s7 + $0x118] sm:$0xff]
  %v5728 = vld [vmem:[%s7 + $0x120] sm:$0xff]
  %v5729 = vld [vmem:[%s7 + $0x128] sm:$0xff]
  %v5730 = vld [vmem:[%s7 + $0x130] sm:$0xff]
  %v5731 = vld [vmem:[%s7 + $0x138] sm:$0xff]
  %v5732 = vld [vmem:[%s7 + $0x140] sm:$0xff]
  %v5733 = vld [vmem:[%s7 + $0x148] sm:$0xff]
  %v5734 = vld [vmem:[%s7 + $0x150] sm:$0xff]
  %v5735 = vld [vmem:[%s7 + $0x158] sm:$0xff]
  %v5736 = vld [vmem:[%s7 + $0x160] sm:$0xff]
  %v5737 = vld [vmem:[%s7 + $0x168] sm:$0xff]
  %v5738 = vld [vmem:[%s7 + $0x170] sm:$0xff]
  %v5739 = vld [vmem:[%s7 + $0x178] sm:$0xff]
  %v5740 = vld [vmem:[%s7 + $0x180] sm:$0xff]
  %v5741 = vld [vmem:[%s7 + $0x188] sm:$0xff]
  %v5742 = vld [vmem:[%s7 + $0x190] sm:$0xff]
  %v5743 = vld [vmem:[%s7 + $0x198] sm:$0xff]
  %v5744 = vld [vmem:[%s7 + $0x1a0] sm:$0xff]
  %v5745 = vld [vmem:[%s7 + $0x1a8] sm:$0xff]
  %v5746 = vld [vmem:[%s7 + $0x1b0] sm:$0xff]
  %v5747 = vld [vmem:[%s7 + $0x1b8] sm:$0xff]
  %v5748 = vld [vmem:[%s7 + $0x1c0] sm:$0xff]
  %v5749 = vld [vmem:[%s7 + $0x1c8] sm:$0xff]
  %v5750 = vld [vmem:[%s7 + $0x1d0] sm:$0xff]
  %v5751 = vld [vmem:[%s7 + $0x1d8] sm:$0xff]
  %v5752 = vld [vmem:[%s7 + $0x1e0] sm:$0xff]
  %v5753 = vld [vmem:[%s7 + $0x1e8] sm:$0xff]
  %v5754 = vld [vmem:[%s7 + $0x1f0] sm:$0xff]
  %v5755 = vld [vmem:[%s7 + $0x1f8] sm:$0xff]
  %v5756 = vld [vmem:[%s9] sm:$0xf]
  %v5758 = vlaneseq
  %v5759 = vshrl.u32 %v5758, 7
  %v5760 = vsub.s32 0, %v5759
  %v5761 = vrot.slane %v5756, %v5760
  %v5762 = vlaneseq
  %v5763 = vshrl.u32 %v5762, 7
  %v5764 = vsub.s32 1, %v5763
  %v5765 = vrot.slane %v5756, %v5764
  %v5766 = vlaneseq
  %v5767 = vshrl.u32 %v5766, 7
  %v5768 = vsub.s32 2, %v5767
  %v5769 = vrot.slane %v5756, %v5768
  %v5770 = vlaneseq
  %v5771 = vshrl.u32 %v5770, 7
  %v5772 = vsub.s32 3, %v5771
  %v5773 = vrot.slane %v5756, %v5772
  %5778 = vmatprep.subr.mxu0 %v5693
  %5779 = vmatpush1.msra.mxu0 %v5692
  %5780 = vmatprep.subr.mxu0 %v5697
  %5781 = vmatpush1.msra.mxu0 %v5696
  %5782 = vmatprep.subr.mxu0 %v5701
  %5783 = vmatpush1.msra.mxu0 %v5700
  %5784 = vmatprep.subr.mxu0 %v5705
  %5785 = vmatpush1.msra.mxu0 %v5704
  %5786 = vmatprep.subr.mxu0 %v5709
  %5787 = vmatpush1.msra.mxu0 %v5708
  %5788 = vmatprep.subr.mxu0 %v5713
  %5789 = vmatpush1.msra.mxu0 %v5712
  %5790 = vmatprep.subr.mxu0 %v5717
  %5791 = vmatpush1.msra.mxu0 %v5716
  %5792 = vmatprep.subr.mxu0 %v5721
  %5793 = vmatpush1.msra.mxu0 %v5720
  %5794 = vmatprep.subr.mxu0 %v5725
  %5795 = vmatpush1.msra.mxu0 %v5724
  %5796 = vmatprep.subr.mxu0 %v5729
  %5797 = vmatpush1.msra.mxu0 %v5728
  %5798 = vmatprep.subr.mxu0 %v5733
  %5799 = vmatpush1.msra.mxu0 %v5732
  %5800 = vmatprep.subr.mxu0 %v5737
  %5801 = vmatpush1.msra.mxu0 %v5736
  %5802 = vmatprep.subr.mxu0 %v5741
  %5803 = vmatpush1.msra.mxu0 %v5740
  %5804 = vmatprep.subr.mxu0 %v5745
  %5805 = vmatpush1.msra.mxu0 %v5744
  %5806 = vmatprep.subr.mxu0 %v5749
  %5807 = vmatpush1.msra.mxu0 %v5748
  %5808 = vmatprep.subr.mxu0 %v5753
  %5809 = vmatpush1.msra.mxu0 %v5752
  %5810 = vmatprep.subr.mxu0 0.0
  %5811 = vmatpush1.msra.mxu0 0.0
  %5812 = vmatprep.subr.mxu0 0.0
  %5813 = vmatpush1.msra.mxu0 0.0
  %5814 = vmatprep.subr.mxu0 0.0
  %5815 = vmatpush1.msra.mxu0 0.0
  %5816 = vmatprep.subr.mxu0 0.0
  %5817 = vmatpush1.msra.mxu0 0.0
  %5818 = vmatprep.subr.mxu0 0.0
  %5819 = vmatpush1.msra.mxu0 0.0
  %5820 = vmatprep.subr.mxu0 0.0
  %5821 = vmatpush1.msra.mxu0 0.0
  %5822 = vmatprep.subr.mxu0 0.0
  %5823 = vmatpush1.msra.mxu0 0.0
  %5824 = vmatprep.subr.mxu0 0.0
  %5825 = vmatpush1.msra.mxu0 0.0
  %5826 = vmatprep.subr.mxu0 0.0
  %5827 = vmatpush1.msra.mxu0 0.0
  %5828 = vmatprep.subr.mxu0 0.0
  %5829 = vmatpush1.msra.mxu0 0.0
  %5830 = vmatprep.subr.mxu0 0.0
  %5831 = vmatpush1.msra.mxu0 0.0
  %5832 = vmatprep.subr.mxu0 0.0
  %5833 = vmatpush1.msra.mxu0 0.0
  %5834 = vmatprep.subr.mxu0 0.0
  %5835 = vmatpush1.msra.mxu0 0.0
  %5836 = vmatprep.subr.mxu0 0.0
  %5837 = vmatpush1.msra.mxu0 0.0
  %5838 = vmatprep.subr.mxu0 0.0
  %5839 = vmatpush1.msra.mxu0 0.0
  %5840 = vmatprep.subr.mxu0 0.0
  %5841 = vmatpush1.msra.mxu0 0.0
  %5842 = vmatprep.mubr.f32.mxu0 0.0
  %5843 = vmatmul.mubr.f32.gmra.mrb[0].mxu0 %v5691
  %v5844 = vpop.f32.mrb[0].mxu0
  %v5845 = vadd.f32 %v5761, %v5844
  %v5846 = vpop.f32.mrb[0].mxu0
  %v5847 = vadd.f32 %v5765, %v5846
  %5848 = vdwg.mxu0
  %5849 = vmatprep.subr.mxu0 %v5695
  %5850 = vmatpush1.msra.mxu0 %v5694
  %5851 = vmatprep.subr.mxu0 %v5699
  %5852 = vmatpush1.msra.mxu0 %v5698
  %5853 = vmatprep.subr.mxu0 %v5703
  %5854 = vmatpush1.msra.mxu0 %v5702
  %5855 = vmatprep.subr.mxu0 %v5707
  %5856 = vmatpush1.msra.mxu0 %v5706
  %5857 = vmatprep.subr.mxu0 %v5711
  %5858 = vmatpush1.msra.mxu0 %v5710
  %5859 = vmatprep.subr.mxu0 %v5715
  %5860 = vmatpush1.msra.mxu0 %v5714
  %5861 = vmatprep.subr.mxu0 %v5719
  %5862 = vmatpush1.msra.mxu0 %v5718
  %5863 = vmatprep.subr.mxu0 %v5723
  %5864 = vmatpush1.msra.mxu0 %v5722
  %5865 = vmatprep.subr.mxu0 %v5727
  %5866 = vmatpush1.msra.mxu0 %v5726
  %5867 = vmatprep.subr.mxu0 %v5731
  %5868 = vmatpush1.msra.mxu0 %v5730
  %5869 = vmatprep.subr.mxu0 %v5735
  %5870 = vmatpush1.msra.mxu0 %v5734
  %5871 = vmatprep.subr.mxu0 %v5739
  %5872 = vmatpush1.msra.mxu0 %v5738
  %5873 = vmatprep.subr.mxu0 %v5743
  %5874 = vmatpush1.msra.mxu0 %v5742
  %5875 = vmatprep.subr.mxu0 %v5747
  %5876 = vmatpush1.msra.mxu0 %v5746
  %5877 = vmatprep.subr.mxu0 %v5751
  %5878 = vmatpush1.msra.mxu0 %v5750
  %5879 = vmatprep.subr.mxu0 %v5755
  %5880 = vmatpush1.msra.mxu0 %v5754
  %5881 = vmatprep.subr.mxu0 0.0
  %5882 = vmatpush1.msra.mxu0 0.0
  %5883 = vmatprep.subr.mxu0 0.0
  %5884 = vmatpush1.msra.mxu0 0.0
  %5885 = vmatprep.subr.mxu0 0.0
  %5886 = vmatpush1.msra.mxu0 0.0
  %5887 = vmatprep.subr.mxu0 0.0
  %5888 = vmatpush1.msra.mxu0 0.0
  %5889 = vmatprep.subr.mxu0 0.0
  %5890 = vmatpush1.msra.mxu0 0.0
  %5891 = vmatprep.subr.mxu0 0.0
  %5892 = vmatpush1.msra.mxu0 0.0
  %5893 = vmatprep.subr.mxu0 0.0
  %5894 = vmatpush1.msra.mxu0 0.0
  %5895 = vmatprep.subr.mxu0 0.0
  %5896 = vmatpush1.msra.mxu0 0.0
  %5897 = vmatprep.subr.mxu0 0.0
  %5898 = vmatpush1.msra.mxu0 0.0
  %5899 = vmatprep.subr.mxu0 0.0
  %5900 = vmatpush1.msra.mxu0 0.0
  %5901 = vmatprep.subr.mxu0 0.0
  %5902 = vmatpush1.msra.mxu0 0.0
  %5903 = vmatprep.subr.mxu0 0.0
  %5904 = vmatpush1.msra.mxu0 0.0
  %5905 = vmatprep.subr.mxu0 0.0
  %5906 = vmatpush1.msra.mxu0 0.0
  %5907 = vmatprep.subr.mxu0 0.0
  %5908 = vmatpush1.msra.mxu0 0.0
  %5909 = vmatprep.subr.mxu0 0.0
  %5910 = vmatpush1.msra.mxu0 0.0
  %5911 = vmatprep.subr.mxu0 0.0
  %5912 = vmatpush1.msra.mxu0 0.0
  %5913 = vmatprep.mubr.f32.mxu0 0.0
  %5914 = vmatmul.mubr.f32.gmra.mrb[0].mxu0 %v5691
  %v5915 = vpop.f32.mrb[0].mxu0
  %v5916 = vadd.f32 %v5769, %v5915
  %v5917 = vpop.f32.mrb[0].mxu0
  %v5918 = vadd.f32 %v5773, %v5917
  %5919 = vdwg.mxu0
  %5920 = vst [vmem:[#allocation2] sm:$0xff] %v5845
  %5921 = vst [vmem:[#allocation2 + $0x8] sm:$0xff] %v5847
  %5922 = vst [vmem:[#allocation2 + $0x10] sm:$0xff] %v5916
  %5923 = vst [vmem:[#allocation2 + $0x18] sm:$0xff] %v5918
  %v5924 = vld [vmem:[#allocation2] ss:$8 sm:$0xf]
  %v5925 = vld [vmem:[%s8] sm:$0xff]
  %v5926 = vld [vmem:[%s8 + $0x8] sm:$0xff]
  %v5927 = vld [vmem:[%s8 + $0x10] sm:$0xff]
  %v5928 = vld [vmem:[%s8 + $0x18] sm:$0xff]
  %v5929 = vld [vmem:[%s8 + $0x20] sm:$0xff]
  %v5930 = vld [vmem:[%s8 + $0x28] sm:$0xff]
  %v5931 = vld [vmem:[%s8 + $0x30] sm:$0xff]
  %v5932 = vld [vmem:[%s8 + $0x38] sm:$0xff]
  %v5933 = vld [vmem:[%s8 + $0x40] sm:$0xff]
  %v5934 = vld [vmem:[%s8 + $0x48] sm:$0xff]
  %v5935 = vld [vmem:[%s8 + $0x50] sm:$0xff]
  %v5936 = vld [vmem:[%s8 + $0x58] sm:$0xff]
  %v5937 = vld [vmem:[%s8 + $0x60] sm:$0xff]
  %v5938 = vld [vmem:[%s8 + $0x68] sm:$0xff]
  %v5939 = vld [vmem:[%s8 + $0x70] sm:$0xff]
  %v5940 = vld [vmem:[%s8 + $0x78] sm:$0xff]
  %v5941 = vld [vmem:[%s8 + $0x80] sm:$0xff]
  %v5942 = vld [vmem:[%s8 + $0x88] sm:$0xff]
  %v5943 = vld [vmem:[%s8 + $0x90] sm:$0xff]
  %v5944 = vld [vmem:[%s8 + $0x98] sm:$0xff]
  %v5945 = vld [vmem:[%s8 + $0xa0] sm:$0xff]
  %v5946 = vld [vmem:[%s8 + $0xa8] sm:$0xff]
  %v5947 = vld [vmem:[%s8 + $0xb0] sm:$0xff]
  %v5948 = vld [vmem:[%s8 + $0xb8] sm:$0xff]
  %v5949 = vld [vmem:[%s8 + $0xc0] sm:$0xff]
  %v5950 = vld [vmem:[%s8 + $0xc8] sm:$0xff]
  %v5951 = vld [vmem:[%s8 + $0xd0] sm:$0xff]
  %v5952 = vld [vmem:[%s8 + $0xd8] sm:$0xff]
  %v5953 = vld [vmem:[%s8 + $0xe0] sm:$0xff]
  %v5954 = vld [vmem:[%s8 + $0xe8] sm:$0xff]
  %v5955 = vld [vmem:[%s8 + $0xf0] sm:$0xff]
  %v5956 = vld [vmem:[%s8 + $0xf8] sm:$0xff]
  %v5989 = vunpack.c.l.b16 %v5925
  %v5990 = vunpack.c.h.b16 %v5925
  %v5991 = vunpack.c.l.b16 %v5926
  %v5992 = vunpack.c.h.b16 %v5926
  %v5993 = vunpack.c.l.b16 %v5927
  %v5994 = vunpack.c.h.b16 %v5927
  %v5995 = vunpack.c.l.b16 %v5928
  %v5996 = vunpack.c.h.b16 %v5928
  %v5997 = vunpack.c.l.b16 %v5929
  %v5998 = vunpack.c.h.b16 %v5929
  %v5999 = vunpack.c.l.b16 %v5930
  %v6000 = vunpack.c.h.b16 %v5930
  %v6001 = vunpack.c.l.b16 %v5931
  %v6002 = vunpack.c.h.b16 %v5931
  %v6003 = vunpack.c.l.b16 %v5932
  %v6004 = vunpack.c.h.b16 %v5932
  %v6005 = vunpack.c.l.b16 %v5933
  %v6006 = vunpack.c.h.b16 %v5933
  %v6007 = vunpack.c.l.b16 %v5934
  %v6008 = vunpack.c.h.b16 %v5934
  %v6009 = vunpack.c.l.b16 %v5935
  %v6010 = vunpack.c.h.b16 %v5935
  %v6011 = vunpack.c.l.b16 %v5936
  %v6012 = vunpack.c.h.b16 %v5936
  %v6013 = vunpack.c.l.b16 %v5937
  %v6014 = vunpack.c.h.b16 %v5937
  %v6015 = vunpack.c.l.b16 %v5938
  %v6016 = vunpack.c.h.b16 %v5938
  %v6017 = vunpack.c.l.b16 %v5939
  %v6018 = vunpack.c.h.b16 %v5939
  %v6019 = vunpack.c.l.b16 %v5940
  %v6020 = vunpack.c.h.b16 %v5940
  %v6021 = vunpack.c.l.b16 %v5941
  %v6022 = vunpack.c.h.b16 %v5941
  %v6023 = vunpack.c.l.b16 %v5942
  %v6024 = vunpack.c.h.b16 %v5942
  %v6025 = vunpack.c.l.b16 %v5943
  %v6026 = vunpack.c.h.b16 %v5943
  %v6027 = vunpack.c.l.b16 %v5944
  %v6028 = vunpack.c.h.b16 %v5944
  %v6029 = vunpack.c.l.b16 %v5945
  %v6030 = vunpack.c.h.b16 %v5945
  %v6031 = vunpack.c.l.b16 %v5946
  %v6032 = vunpack.c.h.b16 %v5946
  %v6033 = vunpack.c.l.b16 %v5947
  %v6034 = vunpack.c.h.b16 %v5947
  %v6035 = vunpack.c.l.b16 %v5948
  %v6036 = vunpack.c.h.b16 %v5948
  %v6037 = vunpack.c.l.b16 %v5949
  %v6038 = vunpack.c.h.b16 %v5949
  %v6039 = vunpack.c.l.b16 %v5950
  %v6040 = vunpack.c.h.b16 %v5950
  %v6041 = vunpack.c.l.b16 %v5951
  %v6042 = vunpack.c.h.b16 %v5951
  %v6043 = vunpack.c.l.b16 %v5952
  %v6044 = vunpack.c.h.b16 %v5952
  %v6045 = vunpack.c.l.b16 %v5953
  %v6046 = vunpack.c.h.b16 %v5953
  %v6047 = vunpack.c.l.b16 %v5954
  %v6048 = vunpack.c.h.b16 %v5954
  %v6049 = vunpack.c.l.b16 %v5955
  %v6050 = vunpack.c.h.b16 %v5955
  %v6051 = vunpack.c.l.b16 %v5956
  %v6052 = vunpack.c.h.b16 %v5956
  %v6053 = vpack.c.b16 %v5993, %v5989
  %v6054 = vpack.c.b16 %v5994, %v5990
  %v6055 = vpack.c.b16 %v5995, %v5991
  %v6056 = vpack.c.b16 %v5996, %v5992
  %v6057 = vpack.c.b16 %v6001, %v5997
  %v6058 = vpack.c.b16 %v6002, %v5998
  %v6059 = vpack.c.b16 %v6003, %v5999
  %v6060 = vpack.c.b16 %v6004, %v6000
  %v6061 = vpack.c.b16 %v6009, %v6005
  %v6062 = vpack.c.b16 %v6010, %v6006
  %v6063 = vpack.c.b16 %v6011, %v6007
  %v6064 = vpack.c.b16 %v6012, %v6008
  %v6065 = vpack.c.b16 %v6017, %v6013
  %v6066 = vpack.c.b16 %v6018, %v6014
  %v6067 = vpack.c.b16 %v6019, %v6015
  %v6068 = vpack.c.b16 %v6020, %v6016
  %v6069 = vpack.c.b16 %v6025, %v6021
  %v6070 = vpack.c.b16 %v6026, %v6022
  %v6071 = vpack.c.b16 %v6027, %v6023
  %v6072 = vpack.c.b16 %v6028, %v6024
  %v6073 = vpack.c.b16 %v6033, %v6029
  %v6074 = vpack.c.b16 %v6034, %v6030
  %v6075 = vpack.c.b16 %v6035, %v6031
  %v6076 = vpack.c.b16 %v6036, %v6032
  %v6077 = vpack.c.b16 %v6041, %v6037
  %v6078 = vpack.c.b16 %v6042, %v6038
  %v6079 = vpack.c.b16 %v6043, %v6039
  %v6080 = vpack.c.b16 %v6044, %v6040
  %v6081 = vpack.c.b16 %v6049, %v6045
  %v6082 = vpack.c.b16 %v6050, %v6046
  %v6083 = vpack.c.b16 %v6051, %v6047
  %v6084 = vpack.c.b16 %v6052, %v6048
  %6117 = vmatprep.subr.bf16.mxu0 %v6054
  %6118 = vmatpush1.bf16.msra.mxu0 %v6053
  %6119 = vmatprep.subr.bf16.mxu0 %v6058
  %6120 = vmatpush1.bf16.msra.mxu0 %v6057
  %6121 = vmatprep.subr.bf16.mxu0 %v6062
  %6122 = vmatpush1.bf16.msra.mxu0 %v6061
  %6123 = vmatprep.subr.bf16.mxu0 %v6066
  %6124 = vmatpush1.bf16.msra.mxu0 %v6065
  %6125 = vmatprep.subr.bf16.mxu0 %v6070
  %6126 = vmatpush1.bf16.msra.mxu0 %v6069
  %6127 = vmatprep.subr.bf16.mxu0 %v6074
  %6128 = vmatpush1.bf16.msra.mxu0 %v6073
  %6129 = vmatprep.subr.bf16.mxu0 %v6078
  %6130 = vmatpush1.bf16.msra.mxu0 %v6077
  %6131 = vmatprep.subr.bf16.mxu0 %v6082
  %6132 = vmatpush1.bf16.msra.mxu0 %v6081
  %6133 = vmatprep.subr.bf16.mxu0 0
  %6134 = vmatpush1.bf16.msra.mxu0 0
  %6135 = vmatprep.subr.bf16.mxu0 0
  %6136 = vmatpush1.bf16.msra.mxu0 0
  %6137 = vmatprep.subr.bf16.mxu0 0
  %6138 = vmatpush1.bf16.msra.mxu0 0
  %6139 = vmatprep.subr.bf16.mxu0 0
  %6140 = vmatpush1.bf16.msra.mxu0 0
  %6141 = vmatprep.subr.bf16.mxu0 0
  %6142 = vmatpush1.bf16.msra.mxu0 0
  %6143 = vmatprep.subr.bf16.mxu0 0
  %6144 = vmatpush1.bf16.msra.mxu0 0
  %6145 = vmatprep.subr.bf16.mxu0 0
  %6146 = vmatpush1.bf16.msra.mxu0 0
  %6147 = vmatprep.subr.bf16.mxu0 0
  %6148 = vmatpush1.bf16.msra.mxu0 0
  %6149 = vmatprep.mubr.bf16.mxu0 0
  %6150 = vmatmul.mubr.bf16.gmra.mrb[0].mxu0 0
  %v6151 = vpop.f32.mrb[0].mxu0
  %v6152 = vadd.f32 0.0, %v6151
  %v6153 = vpop.f32.mrb[0].mxu0
  %v6154 = vadd.f32 0.0, %v6153
  %v6155 = vpop.f32.mrb[0].mxu0
  %v6156 = vpop.f32.mrb[0].mxu0
  %6157 = vdwg.mxu0
  %6158 = vmatprep.subr.bf16.mxu0 %v6056
  %6159 = vmatpush1.bf16.msra.mxu0 %v6055
  %6160 = vmatprep.subr.bf16.mxu0 %v6060
  %6161 = vmatpush1.bf16.msra.mxu0 %v6059
  %6162 = vmatprep.subr.bf16.mxu0 %v6064
  %6163 = vmatpush1.bf16.msra.mxu0 %v6063
  %6164 = vmatprep.subr.bf16.mxu0 %v6068
  %6165 = vmatpush1.bf16.msra.mxu0 %v6067
  %6166 = vmatprep.subr.bf16.mxu0 %v6072
  %6167 = vmatpush1.bf16.msra.mxu0 %v6071
  %6168 = vmatprep.subr.bf16.mxu0 %v6076
  %6169 = vmatpush1.bf16.msra.mxu0 %v6075
  %6170 = vmatprep.subr.bf16.mxu0 %v6080
  %6171 = vmatpush1.bf16.msra.mxu0 %v6079
  %6172 = vmatprep.subr.bf16.mxu0 %v6084
  %6173 = vmatpush1.bf16.msra.mxu0 %v6083
  %6174 = vmatprep.subr.bf16.mxu0 0
  %6175 = vmatpush1.bf16.msra.mxu0 0
  %6176 = vmatprep.subr.bf16.mxu0 0
  %6177 = vmatpush1.bf16.msra.mxu0 0
  %6178 = vmatprep.subr.bf16.mxu0 0
  %6179 = vmatpush1.bf16.msra.mxu0 0
  %6180 = vmatprep.subr.bf16.mxu0 0
  %6181 = vmatpush1.bf16.msra.mxu0 0
  %6182 = vmatprep.subr.bf16.mxu0 0
  %6183 = vmatpush1.bf16.msra.mxu0 0
  %6184 = vmatprep.subr.bf16.mxu0 0
  %6185 = vmatpush1.bf16.msra.mxu0 0
  %6186 = vmatprep.subr.bf16.mxu0 0
  %6187 = vmatpush1.bf16.msra.mxu0 0
  %6188 = vmatprep.subr.bf16.mxu0 0
  %6189 = vmatpush1.bf16.msra.mxu0 0
  %6190 = vmatprep.mubr.bf16.mxu0 0
  %6191 = vmatmul.mubr.bf16.gmra.mrb[0].mxu0 0
  %v6192 = vpop.f32.mrb[0].mxu0
  %v6193 = vadd.f32 0.0, %v6192
  %v6194 = vpop.f32.mrb[0].mxu0
  %v6195 = vadd.f32 0.0, %v6194
  %v6196 = vpop.f32.mrb[0].mxu0
  %v6197 = vpop.f32.mrb[0].mxu0
  %6198 = vdwg.mxu0
  %v6203 = vcombine.low %v6152, %v6154
  %v6204 = vcombine.low %v6193, %v6195
  %v6206 = vunpack.c.l.s4 1966171168
  %v6207 = vunpack.c.0.s8 %v6206
  %v6208 = vlaneseq
  %v6209 = vshrl.u32 %v6208, 7
  %v6210 = vsub.s32 %v6207, %v6209
  %v6211 = vrot.slane %v6203, %v6210
  %v6213 = vunpack.c.l.s4 1966171168
  %v6214 = vunpack.c.0.s8 %v6213
  %v6215 = vlaneseq
  %v6216 = vshrl.u32 %v6215, 7
  %v6217 = vsub.s32 %v6214, %v6216
  %v6218 = vrot.slane %v6204, %v6217
  %v6219 = vcombine.low %v6211, %v6218
  %v6221 = vunpack.c.l.s4 1966171168
  %v6222 = vunpack.c.0.s8 %v6221
  %v6223 = vlaneseq
  %v6224 = vshrl.u32 %v6223, 7
  %v6225 = vsub.s32 %v6222, %v6224
  %v6226 = vrot.slane %v6219, %v6225
  %v6228 = vadd.f32 %v5924, %v6226
  %v6229 = vxor.u32 %v6228, 2147483648
  %v6230 = vmul.f32 %v6229, 1.442695
  %v6231 = vpow.pop %v6230
  %v6232 = vadd.f32 %v6231, 1.0
  %v6233 = vrcp.pop %v6232
  %v6234 = vmul.f32 1.0, %v6233
  %v6236 = vrot.slane %v6228, 3
  %v6238 = vtanh.pop %v6236
  %v6240 = vrot.slane %v6234, 1
  %v6242 = vmul.f32 %v6240, 0.0
  %v6243 = vmul.f32 %v6234, %v6238
  %v6244 = vadd.f32 %v6242, %v6243
  %v6245 = vtanh.pop %v6244
  %v6246 = vrot.slane %v6234, 2
  %v6248 = vmul.f32 %v6246, %v6245
  %6249 = vst [vmem:[#allocation3] sm:$0x1] %v6248
  %v6250 = vld [vmem:[%s547] ss:$8 sm:$0xf]
  %v6251 = vpack.c.bf16 %v6248, %v6248
  %v6252 = vld [vmem:[%s8] sm:$0xff]
  %v6253 = vld [vmem:[%s8 + $0x8] sm:$0xff]
  %v6254 = vld [vmem:[%s8 + $0x10] sm:$0xff]
  %v6255 = vld [vmem:[%s8 + $0x18] sm:$0xff]
  %v6256 = vld [vmem:[%s8 + $0x20] sm:$0xff]
  %v6257 = vld [vmem:[%s8 + $0x28] sm:$0xff]
  %v6258 = vld [vmem:[%s8 + $0x30] sm:$0xff]
  %v6259 = vld [vmem:[%s8 + $0x38] sm:$0xff]
  %v6260 = vld [vmem:[%s8 + $0x40] sm:$0xff]
  %v6261 = vld [vmem:[%s8 + $0x48] sm:$0xff]
  %v6262 = vld [vmem:[%s8 + $0x50] sm:$0xff]
  %v6263 = vld [vmem:[%s8 + $0x58] sm:$0xff]
  %v6264 = vld [vmem:[%s8 + $0x60] sm:$0xff]
  %v6265 = vld [vmem:[%s8 + $0x68] sm:$0xff]
  %v6266 = vld [vmem:[%s8 + $0x70] sm:$0xff]
  %v6267 = vld [vmem:[%s8 + $0x78] sm:$0xff]
  %v6268 = vld [vmem:[%s8 + $0x80] sm:$0xff]
  %v6269 = vld [vmem:[%s8 + $0x88] sm:$0xff]
  %v6270 = vld [vmem:[%s8 + $0x90] sm:$0xff]
  %v6271 = vld [vmem:[%s8 + $0x98] sm:$0xff]
  %v6272 = vld [vmem:[%s8 + $0xa0] sm:$0xff]
  %v6273 = vld [vmem:[%s8 + $0xa8] sm:$0xff]
  %v6274 = vld [vmem:[%s8 + $0xb0] sm:$0xff]
  %v6275 = vld [vmem:[%s8 + $0xb8] sm:$0xff]
  %v6276 = vld [vmem:[%s8 + $0xc0] sm:$0xff]
  %v6277 = vld [vmem:[%s8 + $0xc8] sm:$0xff]
  %v6278 = vld [vmem:[%s8 + $0xd0] sm:$0xff]
  %v6279 = vld [vmem:[%s8 + $0xd8] sm:$0xff]
  %v6280 = vld [vmem:[%s8 + $0xe0] sm:$0xff]
  %v6281 = vld [vmem:[%s8 + $0xe8] sm:$0xff]
  %v6282 = vld [vmem:[%s8 + $0xf0] sm:$0xff]
  %v6283 = vld [vmem:[%s8 + $0xf8] sm:$0xff]
  %v6316 = vunpack.c.l.b16 %v6252
  %v6317 = vunpack.c.h.b16 %v6252
  %v6318 = vunpack.c.l.b16 %v6253
  %v6319 = vunpack.c.h.b16 %v6253
  %v6320 = vunpack.c.l.b16 %v6254
  %v6321 = vunpack.c.h.b16 %v6254
  %v6322 = vunpack.c.l.b16 %v6255
  %v6323 = vunpack.c.h.b16 %v6255
  %v6324 = vunpack.c.l.b16 %v6256
  %v6325 = vunpack.c.h.b16 %v6256
  %v6326 = vunpack.c.l.b16 %v6257
  %v6327 = vunpack.c.h.b16 %v6257
  %v6328 = vunpack.c.l.b16 %v6258
  %v6329 = vunpack.c.h.b16 %v6258
  %v6330 = vunpack.c.l.b16 %v6259
  %v6331 = vunpack.c.h.b16 %v6259
  %v6332 = vunpack.c.l.b16 %v6260
  %v6333 = vunpack.c.h.b16 %v6260
  %v6334 = vunpack.c.l.b16 %v6261
  %v6335 = vunpack.c.h.b16 %v6261
  %v6336 = vunpack.c.l.b16 %v6262
  %v6337 = vunpack.c.h.b16 %v6262
  %v6338 = vunpack.c.l.b16 %v6263
  %v6339 = vunpack.c.h.b16 %v6263
  %v6340 = vunpack.c.l.b16 %v6264
  %v6341 = vunpack.c.h.b16 %v6264
  %v6342 = vunpack.c.l.b16 %v6265
  %v6343 = vunpack.c.h.b16 %v6265
  %v6344 = vunpack.c.l.b16 %v6266
  %v6345 = vunpack.c.h.b16 %v6266
  %v6346 = vunpack.c.l.b16 %v6267
  %v6347 = vunpack.c.h.b16 %v6267
  %v6348 = vunpack.c.l.b16 %v6268
  %v6349 = vunpack.c.h.b16 %v6268
  %v6350 = vunpack.c.l.b16 %v6269
  %v6351 = vunpack.c.h.b16 %v6269
  %v6352 = vunpack.c.l.b16 %v6270
  %v6353 = vunpack.c.h.b16 %v6270
  %v6354 = vunpack.c.l.b16 %v6271
  %v6355 = vunpack.c.h.b16 %v6271
  %v6356 = vunpack.c.l.b16 %v6272
  %v6357 = vunpack.c.h.b16 %v6272
  %v6358 = vunpack.c.l.b16 %v6273
  %v6359 = vunpack.c.h.b16 %v6273
  %v6360 = vunpack.c.l.b16 %v6274
  %v6361 = vunpack.c.h.b16 %v6274
  %v6362 = vunpack.c.l.b16 %v6275
  %v6363 = vunpack.c.h.b16 %v6275
  %v6364 = vunpack.c.l.b16 %v6276
  %v6365 = vunpack.c.h.b16 %v6276
  %v6366 = vunpack.c.l.b16 %v6277
  %v6367 = vunpack.c.h.b16 %v6277
  %v6368 = vunpack.c.l.b16 %v6278
  %v6369 = vunpack.c.h.b16 %v6278
  %v6370 = vunpack.c.l.b16 %v6279
  %v6371 = vunpack.c.h.b16 %v6279
  %v6372 = vunpack.c.l.b16 %v6280
  %v6373 = vunpack.c.h.b16 %v6280
  %v6374 = vunpack.c.l.b16 %v6281
  %v6375 = vunpack.c.h.b16 %v6281
  %v6376 = vunpack.c.l.b16 %v6282
  %v6377 = vunpack.c.h.b16 %v6282
  %v6378 = vunpack.c.l.b16 %v6283
  %v6379 = vunpack.c.h.b16 %v6283
  %v6380 = vpack.c.b16 %v6320, %v6316
  %v6381 = vpack.c.b16 %v6321, %v6317
  %v6382 = vpack.c.b16 %v6322, %v6318
  %v6383 = vpack.c.b16 %v6323, %v6319
  %v6384 = vpack.c.b16 %v6328, %v6324
  %v6385 = vpack.c.b16 %v6329, %v6325
  %v6386 = vpack.c.b16 %v6330, %v6326
  %v6387 = vpack.c.b16 %v6331, %v6327
  %v6388 = vpack.c.b16 %v6336, %v6332
  %v6389 = vpack.c.b16 %v6337, %v6333
  %v6390 = vpack.c.b16 %v6338, %v6334
  %v6391 = vpack.c.b16 %v6339, %v6335
  %v6392 = vpack.c.b16 %v6344, %v6340
  %v6393 = vpack.c.b16 %v6345, %v6341
  %v6394 = vpack.c.b16 %v6346, %v6342
  %v6395 = vpack.c.b16 %v6347, %v6343
  %v6396 = vpack.c.b16 %v6352, %v6348
  %v6397 = vpack.c.b16 %v6353, %v6349
  %v6398 = vpack.c.b16 %v6354, %v6350
  %v6399 = vpack.c.b16 %v6355, %v6351
  %v6400 = vpack.c.b16 %v6360, %v6356
  %v6401 = vpack.c.b16 %v6361, %v6357
  %v6402 = vpack.c.b16 %v6362, %v6358
  %v6403 = vpack.c.b16 %v6363, %v6359
  %v6404 = vpack.c.b16 %v6368, %v6364
  %v6405 = vpack.c.b16 %v6369, %v6365
  %v6406 = vpack.c.b16 %v6370, %v6366
  %v6407 = vpack.c.b16 %v6371, %v6367
  %v6408 = vpack.c.b16 %v6376, %v6372
  %v6409 = vpack.c.b16 %v6377, %v6373
  %v6410 = vpack.c.b16 %v6378, %v6374
  %v6411 = vpack.c.b16 %v6379, %v6375
  %6444 = vmatprep.subr.bf16.mxu0 %v6381
  %6445 = vmatpush1.bf16.msra.mxu0 %v6380
  %6446 = vmatprep.subr.bf16.mxu0 %v6385
  %6447 = vmatpush1.bf16.msra.mxu0 %v6384
  %6448 = vmatprep.subr.bf16.mxu0 %v6389
  %6449 = vmatpush1.bf16.msra.mxu0 %v6388
  %6450 = vmatprep.subr.bf16.mxu0 %v6393
  %6451 = vmatpush1.bf16.msra.mxu0 %v6392
  %6452 = vmatprep.subr.bf16.mxu0 %v6397
  %6453 = vmatpush1.bf16.msra.mxu0 %v6396
  %6454 = vmatprep.subr.bf16.mxu0 %v6401
  %6455 = vmatpush1.bf16.msra.mxu0 %v6400
  %6456 = vmatprep.subr.bf16.mxu0 %v6405
  %6457 = vmatpush1.bf16.msra.mxu0 %v6404
  %6458 = vmatprep.subr.bf16.mxu0 %v6409
  %6459 = vmatpush1.bf16.msra.mxu0 %v6408
  %6460 = vmatprep.subr.bf16.mxu0 0
  %6461 = vmatpush1.bf16.msra.mxu0 0
  %6462 = vmatprep.subr.bf16.mxu0 0
  %6463 = vmatpush1.bf16.msra.mxu0 0
  %6464 = vmatprep.subr.bf16.mxu0 0
  %6465 = vmatpush1.bf16.msra.mxu0 0
  %6466 = vmatprep.subr.bf16.mxu0 0
  %6467 = vmatpush1.bf16.msra.mxu0 0
  %6468 = vmatprep.subr.bf16.mxu0 0
  %6469 = vmatpush1.bf16.msra.mxu0 0
  %6470 = vmatprep.subr.bf16.mxu0 0
  %6471 = vmatpush1.bf16.msra.mxu0 0
  %6472 = vmatprep.subr.bf16.mxu0 0
  %6473 = vmatpush1.bf16.msra.mxu0 0
  %6474 = vmatprep.subr.bf16.mxu0 0
  %6475 = vmatpush1.bf16.msra.mxu0 0
  %6476 = vmatprep.mubr.bf16.mxu0 0
  %6477 = vmatmul.mubr.bf16.gmra.mrb[0].mxu0 %v6251
  %v6478 = vpop.f32.mrb[0].mxu0
  %v6479 = vadd.f32 0.0, %v6478
  %v6480 = vpop.f32.mrb[0].mxu0
  %v6481 = vadd.f32 0.0, %v6480
  %v6482 = vpop.f32.mrb[0].mxu0
  %v6483 = vpop.f32.mrb[0].mxu0
  %6484 = vdwg.mxu0
  %6485 = vmatprep.subr.bf16.mxu0 %v6383
  %6486 = vmatpush1.bf16.msra.mxu0 %v6382
  %6487 = vmatprep.subr.bf16.mxu0 %v6387
  %6488 = vmatpush1.bf16.msra.mxu0 %v6386
  %6489 = vmatprep.subr.bf16.mxu0 %v6391
  %6490 = vmatpush1.bf16.msra.mxu0 %v6390
  %6491 = vmatprep.subr.bf16.mxu0 %v6395
  %6492 = vmatpush1.bf16.msra.mxu0 %v6394
  %6493 = vmatprep.subr.bf16.mxu0 %v6399
  %6494 = vmatpush1.bf16.msra.mxu0 %v6398
  %6495 = vmatprep.subr.bf16.mxu0 %v6403
  %6496 = vmatpush1.bf16.msra.mxu0 %v6402
  %6497 = vmatprep.subr.bf16.mxu0 %v6407
  %6498 = vmatpush1.bf16.msra.mxu0 %v6406
  %6499 = vmatprep.subr.bf16.mxu0 %v6411
  %6500 = vmatpush1.bf16.msra.mxu0 %v6410
  %6501 = vmatprep.subr.bf16.mxu0 0
  %6502 = vmatpush1.bf16.msra.mxu0 0
  %6503 = vmatprep.subr.bf16.mxu0 0
  %6504 = vmatpush1.bf16.msra.mxu0 0
  %6505 = vmatprep.subr.bf16.mxu0 0
  %6506 = vmatpush1.bf16.msra.mxu0 0
  %6507 = vmatprep.subr.bf16.mxu0 0
  %6508 = vmatpush1.bf16.msra.mxu0 0
  %6509 = vmatprep.subr.bf16.mxu0 0
  %6510 = vmatpush1.bf16.msra.mxu0 0
  %6511 = vmatprep.subr.bf16.mxu0 0
  %6512 = vmatpush1.bf16.msra.mxu0 0
  %6513 = vmatprep.subr.bf16.mxu0 0
  %6514 = vmatpush1.bf16.msra.mxu0 0
  %6515 = vmatprep.subr.bf16.mxu0 0
  %6516 = vmatpush1.bf16.msra.mxu0 0
  %6517 = vmatprep.mubr.bf16.mxu0 0
  %6518 = vmatmul.mubr.bf16.gmra.mrb[0].mxu0 %v6251
  %v6519 = vpop.f32.mrb[0].mxu0
  %v6520 = vadd.f32 0.0, %v6519
  %v6521 = vpop.f32.mrb[0].mxu0
  %v6522 = vadd.f32 0.0, %v6521
  %v6523 = vpop.f32.mrb[0].mxu0
  %v6524 = vpop.f32.mrb[0].mxu0
  %6525 = vdwg.mxu0
  %v6530 = vcombine.low %v6479, %v6481
  %v6531 = vcombine.low %v6520, %v6522
  %v6533 = vunpack.c.l.s4 1966171168
  %v6534 = vunpack.c.0.s8 %v6533
  %v6535 = vlaneseq
  %v6536 = vshrl.u32 %v6535, 7
  %v6537 = vsub.s32 %v6534, %v6536
  %v6538 = vrot.slane %v6530, %v6537
  %v6540 = vunpack.c.l.s4 1966171168
  %v6541 = vunpack.c.0.s8 %v6540
  %v6542 = vlaneseq
  %v6543 = vshrl.u32 %v6542, 7
  %v6544 = vsub.s32 %v6541, %v6543
  %v6545 = vrot.slane %v6531, %v6544
  %v6546 = vcombine.low %v6538, %v6545
  %v6548 = vunpack.c.l.s4 1966171168
  %v6549 = vunpack.c.0.s8 %v6548
  %v6550 = vlaneseq
  %v6551 = vshrl.u32 %v6550, 7
  %v6552 = vsub.s32 %v6549, %v6551
  %v6553 = vrot.slane %v6546, %v6552
  %v6555 = vadd.f32 %v6250, %v6553
  %v6556 = vxor.u32 %v6555, 2147483648
  %v6557 = vmul.f32 %v6556, 1.442695
  %v6558 = vpow.pop %v6557
  %v6559 = vadd.f32 %v6558, 1.0
  %v6560 = vrcp.pop %v6559
  %v6561 = vmul.f32 1.0, %v6560
  %v6563 = vrot.slane %v6555, 3
  %v6565 = vtanh.pop %v6563
  %v6567 = vrot.slane %v6561, 1
  %v6569 = vmul.f32 %v6567, %v6244
  %v6570 = vmul.f32 %v6561, %v6565
  %v6571 = vadd.f32 %v6569, %v6570
  %v6572 = vtanh.pop %v6571
  %v6573 = vrot.slane %v6561, 2
  %v6575 = vmul.f32 %v6573, %v6572
  %6576 = vst [vmem:[#allocation3 + $0x1] sm:$0x1] %v6575
  %v6577 = vld [vmem:[%s875] ss:$8 sm:$0xf]
  %v6578 = vpack.c.bf16 %v6575, %v6575
  %v6579 = vld [vmem:[%s8] sm:$0xff]
  %v6580 = vld [vmem:[%s8 + $0x8] sm:$0xff]
  %v6581 = vld [vmem:[%s8 + $0x10] sm:$0xff]
  %v6582 = vld [vmem:[%s8 + $0x18] sm:$0xff]
  %v6583 = vld [vmem:[%s8 + $0x20] sm:$0xff]
  %v6584 = vld [vmem:[%s8 + $0x28] sm:$0xff]
  %v6585 = vld [vmem:[%s8 + $0x30] sm:$0xff]
  %v6586 = vld [vmem:[%s8 + $0x38] sm:$0xff]
  %v6587 = vld [vmem:[%s8 + $0x40] sm:$0xff]
  %v6588 = vld [vmem:[%s8 + $0x48] sm:$0xff]
  %v6589 = vld [vmem:[%s8 + $0x50] sm:$0xff]
  %v6590 = vld [vmem:[%s8 + $0x58] sm:$0xff]
  %v6591 = vld [vmem:[%s8 + $0x60] sm:$0xff]
  %v6592 = vld [vmem:[%s8 + $0x68] sm:$0xff]
  %v6593 = vld [vmem:[%s8 + $0x70] sm:$0xff]
  %v6594 = vld [vmem:[%s8 + $0x78] sm:$0xff]
  %v6595 = vld [vmem:[%s8 + $0x80] sm:$0xff]
  %v6596 = vld [vmem:[%s8 + $0x88] sm:$0xff]
  %v6597 = vld [vmem:[%s8 + $0x90] sm:$0xff]
  %v6598 = vld [vmem:[%s8 + $0x98] sm:$0xff]
  %v6599 = vld [vmem:[%s8 + $0xa0] sm:$0xff]
  %v6600 = vld [vmem:[%s8 + $0xa8] sm:$0xff]
  %v6601 = vld [vmem:[%s8 + $0xb0] sm:$0xff]
  %v6602 = vld [vmem:[%s8 + $0xb8] sm:$0xff]
  %v6603 = vld [vmem:[%s8 + $0xc0] sm:$0xff]
  %v6604 = vld [vmem:[%s8 + $0xc8] sm:$0xff]
  %v6605 = vld [vmem:[%s8 + $0xd0] sm:$0xff]
  %v6606 = vld [vmem:[%s8 + $0xd8] sm:$0xff]
  %v6607 = vld [vmem:[%s8 + $0xe0] sm:$0xff]
  %v6608 = vld [vmem:[%s8 + $0xe8] sm:$0xff]
  %v6609 = vld [vmem:[%s8 + $0xf0] sm:$0xff]
  %v6610 = vld [vmem:[%s8 + $0xf8] sm:$0xff]
  %v6643 = vunpack.c.l.b16 %v6579
  %v6644 = vunpack.c.h.b16 %v6579
  %v6645 = vunpack.c.l.b16 %v6580
  %v6646 = vunpack.c.h.b16 %v6580
  %v6647 = vunpack.c.l.b16 %v6581
  %v6648 = vunpack.c.h.b16 %v6581
  %v6649 = vunpack.c.l.b16 %v6582
  %v6650 = vunpack.c.h.b16 %v6582
  %v6651 = vunpack.c.l.b16 %v6583
  %v6652 = vunpack.c.h.b16 %v6583
  %v6653 = vunpack.c.l.b16 %v6584
  %v6654 = vunpack.c.h.b16 %v6584
  %v6655 = vunpack.c.l.b16 %v6585
  %v6656 = vunpack.c.h.b16 %v6585
  %v6657 = vunpack.c.l.b16 %v6586
  %v6658 = vunpack.c.h.b16 %v6586
  %v6659 = vunpack.c.l.b16 %v6587
  %v6660 = vunpack.c.h.b16 %v6587
  %v6661 = vunpack.c.l.b16 %v6588
  %v6662 = vunpack.c.h.b16 %v6588
  %v6663 = vunpack.c.l.b16 %v6589
  %v6664 = vunpack.c.h.b16 %v6589
  %v6665 = vunpack.c.l.b16 %v6590
  %v6666 = vunpack.c.h.b16 %v6590
  %v6667 = vunpack.c.l.b16 %v6591
  %v6668 = vunpack.c.h.b16 %v6591
  %v6669 = vunpack.c.l.b16 %v6592
  %v6670 = vunpack.c.h.b16 %v6592
  %v6671 = vunpack.c.l.b16 %v6593
  %v6672 = vunpack.c.h.b16 %v6593
  %v6673 = vunpack.c.l.b16 %v6594
  %v6674 = vunpack.c.h.b16 %v6594
  %v6675 = vunpack.c.l.b16 %v6595
  %v6676 = vunpack.c.h.b16 %v6595
  %v6677 = vunpack.c.l.b16 %v6596
  %v6678 = vunpack.c.h.b16 %v6596
  %v6679 = vunpack.c.l.b16 %v6597
  %v6680 = vunpack.c.h.b16 %v6597
  %v6681 = vunpack.c.l.b16 %v6598
  %v6682 = vunpack.c.h.b16 %v6598
  %v6683 = vunpack.c.l.b16 %v6599
  %v6684 = vunpack.c.h.b16 %v6599
  %v6685 = vunpack.c.l.b16 %v6600
  %v6686 = vunpack.c.h.b16 %v6600
  %v6687 = vunpack.c.l.b16 %v6601
  %v6688 = vunpack.c.h.b16 %v6601
  %v6689 = vunpack.c.l.b16 %v6602
  %v6690 = vunpack.c.h.b16 %v6602
  %v6691 = vunpack.c.l.b16 %v6603
  %v6692 = vunpack.c.h.b16 %v6603
  %v6693 = vunpack.c.l.b16 %v6604
  %v6694 = vunpack.c.h.b16 %v6604
  %v6695 = vunpack.c.l.b16 %v6605
  %v6696 = vunpack.c.h.b16 %v6605
  %v6697 = vunpack.c.l.b16 %v6606
  %v6698 = vunpack.c.h.b16 %v6606
  %v6699 = vunpack.c.l.b16 %v6607
  %v6700 = vunpack.c.h.b16 %v6607
  %v6701 = vunpack.c.l.b16 %v6608
  %v6702 = vunpack.c.h.b16 %v6608
  %v6703 = vunpack.c.l.b16 %v6609
  %v6704 = vunpack.c.h.b16 %v6609
  %v6705 = vunpack.c.l.b16 %v6610
  %v6706 = vunpack.c.h.b16 %v6610
  %v6707 = vpack.c.b16 %v6647, %v6643
  %v6708 = vpack.c.b16 %v6648, %v6644
  %v6709 = vpack.c.b16 %v6649, %v6645
  %v6710 = vpack.c.b16 %v6650, %v6646
  %v6711 = vpack.c.b16 %v6655, %v6651
  %v6712 = vpack.c.b16 %v6656, %v6652
  %v6713 = vpack.c.b16 %v6657, %v6653
  %v6714 = vpack.c.b16 %v6658, %v6654
  %v6715 = vpack.c.b16 %v6663, %v6659
  %v6716 = vpack.c.b16 %v6664, %v6660
  %v6717 = vpack.c.b16 %v6665, %v6661
  %v6718 = vpack.c.b16 %v6666, %v6662
  %v6719 = vpack.c.b16 %v6671, %v6667
  %v6720 = vpack.c.b16 %v6672, %v6668
  %v6721 = vpack.c.b16 %v6673, %v6669
  %v6722 = vpack.c.b16 %v6674, %v6670
  %v6723 = vpack.c.b16 %v6679, %v6675
  %v6724 = vpack.c.b16 %v6680, %v6676
  %v6725 = vpack.c.b16 %v6681, %v6677
  %v6726 = vpack.c.b16 %v6682, %v6678
  %v6727 = vpack.c.b16 %v6687, %v6683
  %v6728 = vpack.c.b16 %v6688, %v6684
  %v6729 = vpack.c.b16 %v6689, %v6685
  %v6730 = vpack.c.b16 %v6690, %v6686
  %v6731 = vpack.c.b16 %v6695, %v6691
  %v6732 = vpack.c.b16 %v6696, %v6692
  %v6733 = vpack.c.b16 %v6697, %v6693
  %v6734 = vpack.c.b16 %v6698, %v6694
  %v6735 = vpack.c.b16 %v6703, %v6699
  %v6736 = vpack.c.b16 %v6704, %v6700
  %v6737 = vpack.c.b16 %v6705, %v6701
  %v6738 = vpack.c.b16 %v6706, %v6702
  %6771 = vmatprep.subr.bf16.mxu0 %v6708
  %6772 = vmatpush1.bf16.msra.mxu0 %v6707
  %6773 = vmatprep.subr.bf16.mxu0 %v6712
  %6774 = vmatpush1.bf16.msra.mxu0 %v6711
  %6775 = vmatprep.subr.bf16.mxu0 %v6716
  %6776 = vmatpush1.bf16.msra.mxu0 %v6715
  %6777 = vmatprep.subr.bf16.mxu0 %v6720
  %6778 = vmatpush1.bf16.msra.mxu0 %v6719
  %6779 = vmatprep.subr.bf16.mxu0 %v6724
  %6780 = vmatpush1.bf16.msra.mxu0 %v6723
  %6781 = vmatprep.subr.bf16.mxu0 %v6728
  %6782 = vmatpush1.bf16.msra.mxu0 %v6727
  %6783 = vmatprep.subr.bf16.mxu0 %v6732
  %6784 = vmatpush1.bf16.msra.mxu0 %v6731
  %6785 = vmatprep.subr.bf16.mxu0 %v6736
  %6786 = vmatpush1.bf16.msra.mxu0 %v6735
  %6787 = vmatprep.subr.bf16.mxu0 0
  %6788 = vmatpush1.bf16.msra.mxu0 0
  %6789 = vmatprep.subr.bf16.mxu0 0
  %6790 = vmatpush1.bf16.msra.mxu0 0
  %6791 = vmatprep.subr.bf16.mxu0 0
  %6792 = vmatpush1.bf16.msra.mxu0 0
  %6793 = vmatprep.subr.bf16.mxu0 0
  %6794 = vmatpush1.bf16.msra.mxu0 0
  %6795 = vmatprep.subr.bf16.mxu0 0
  %6796 = vmatpush1.bf16.msra.mxu0 0
  %6797 = vmatprep.subr.bf16.mxu0 0
  %6798 = vmatpush1.bf16.msra.mxu0 0
  %6799 = vmatprep.subr.bf16.mxu0 0
  %6800 = vmatpush1.bf16.msra.mxu0 0
  %6801 = vmatprep.subr.bf16.mxu0 0
  %6802 = vmatpush1.bf16.msra.mxu0 0
  %6803 = vmatprep.mubr.bf16.mxu0 0
  %6804 = vmatmul.mubr.bf16.gmra.mrb[0].mxu0 %v6578
  %v6805 = vpop.f32.mrb[0].mxu0
  %v6806 = vadd.f32 0.0, %v6805
  %v6807 = vpop.f32.mrb[0].mxu0
  %v6808 = vadd.f32 0.0, %v6807
  %v6809 = vpop.f32.mrb[0].mxu0
  %v6810 = vpop.f32.mrb[0].mxu0
  %6811 = vdwg.mxu0
  %6812 = vmatprep.subr.bf16.mxu0 %v6710
  %6813 = vmatpush1.bf16.msra.mxu0 %v6709
  %6814 = vmatprep.subr.bf16.mxu0 %v6714
  %6815 = vmatpush1.bf16.msra.mxu0 %v6713
  %6816 = vmatprep.subr.bf16.mxu0 %v6718
  %6817 = vmatpush1.bf16.msra.mxu0 %v6717
  %6818 = vmatprep.subr.bf16.mxu0 %v6722
  %6819 = vmatpush1.bf16.msra.mxu0 %v6721
  %6820 = vmatprep.subr.bf16.mxu0 %v6726
  %6821 = vmatpush1.bf16.msra.mxu0 %v6725
  %6822 = vmatprep.subr.bf16.mxu0 %v6730
  %6823 = vmatpush1.bf16.msra.mxu0 %v6729
  %6824 = vmatprep.subr.bf16.mxu0 %v6734
  %6825 = vmatpush1.bf16.msra.mxu0 %v6733
  %6826 = vmatprep.subr.bf16.mxu0 %v6738
  %6827 = vmatpush1.bf16.msra.mxu0 %v6737
  %6828 = vmatprep.subr.bf16.mxu0 0
  %6829 = vmatpush1.bf16.msra.mxu0 0
  %6830 = vmatprep.subr.bf16.mxu0 0
  %6831 = vmatpush1.bf16.msra.mxu0 0
  %6832 = vmatprep.subr.bf16.mxu0 0
  %6833 = vmatpush1.bf16.msra.mxu0 0
  %6834 = vmatprep.subr.bf16.mxu0 0
  %6835 = vmatpush1.bf16.msra.mxu0 0
  %6836 = vmatprep.subr.bf16.mxu0 0
  %6837 = vmatpush1.bf16.msra.mxu0 0
  %6838 = vmatprep.subr.bf16.mxu0 0
  %6839 = vmatpush1.bf16.msra.mxu0 0
  %6840 = vmatprep.subr.bf16.mxu0 0
  %6841 = vmatpush1.bf16.msra.mxu0 0
  %6842 = vmatprep.subr.bf16.mxu0 0
  %6843 = vmatpush1.bf16.msra.mxu0 0
  %6844 = vmatprep.mubr.bf16.mxu0 0
  %6845 = vmatmul.mubr.bf16.gmra.mrb[0].mxu0 %v6578
  %v6846 = vpop.f32.mrb[0].mxu0
  %v6847 = vadd.f32 0.0, %v6846
  %v6848 = vpop.f32.mrb[0].mxu0
  %v6849 = vadd.f32 0.0, %v6848
  %v6850 = vpop.f32.mrb[0].mxu0
  %v6851 = vpop.f32.mrb[0].mxu0
  %6852 = vdwg.mxu0
  %v6857 = vcombine.low %v6806, %v6808
  %v6858 = vcombine.low %v6847, %v6849
  %v6860 = vunpack.c.l.s4 1966171168
  %v6861 = vunpack.c.0.s8 %v6860
  %v6862 = vlaneseq
  %v6863 = vshrl.u32 %v6862, 7
  %v6864 = vsub.s32 %v6861, %v6863
  %v6865 = vrot.slane %v6857, %v6864
  %v6867 = vunpack.c.l.s4 1966171168
  %v6868 = vunpack.c.0.s8 %v6867
  %v6869 = vlaneseq
  %v6870 = vshrl.u32 %v6869, 7
  %v6871 = vsub.s32 %v6868, %v6870
  %v6872 = vrot.slane %v6858, %v6871
  %v6873 = vcombine.low %v6865, %v6872
  %v6875 = vunpack.c.l.s4 1966171168
  %v6876 = vunpack.c.0.s8 %v6875
  %v6877 = vlaneseq
  %v6878 = vshrl.u32 %v6877, 7
  %v6879 = vsub.s32 %v6876, %v6878
  %v6880 = vrot.slane %v6873, %v6879
  %v6882 = vadd.f32 %v6577, %v6880
  %v6883 = vxor.u32 %v6882, 2147483648
  %v6884 = vmul.f32 %v6883, 1.442695
  %v6885 = vpow.pop %v6884
  %v6886 = vadd.f32 %v6885, 1.0
  %v6887 = vrcp.pop %v6886
  %v6888 = vmul.f32 1.0, %v6887
  %v6890 = vrot.slane %v6882, 3
  %v6892 = vtanh.pop %v6890
  %v6894 = vrot.slane %v6888, 1
  %v6896 = vmul.f32 %v6894, %v6571
  %v6897 = vmul.f32 %v6888, %v6892
  %v6898 = vadd.f32 %v6896, %v6897
  %v6899 = vtanh.pop %v6898
  %v6900 = vrot.slane %v6888, 2
  %v6902 = vmul.f32 %v6900, %v6899
  %6903 = vst [vmem:[#allocation3 + $0x2] sm:$0x1] %v6902
  %v6904 = vld [vmem:[%s1203] ss:$8 sm:$0xf]
  %v6905 = vpack.c.bf16 %v6902, %v6902
  %v6906 = vld [vmem:[%s8] sm:$0xff]
  %v6907 = vld [vmem:[%s8 + $0x8] sm:$0xff]
  %v6908 = vld [vmem:[%s8 + $0x10] sm:$0xff]
  %v6909 = vld [vmem:[%s8 + $0x18] sm:$0xff]
  %v6910 = vld [vmem:[%s8 + $0x20] sm:$0xff]
  %v6911 = vld [vmem:[%s8 + $0x28] sm:$0xff]
  %v6912 = vld [vmem:[%s8 + $0x30] sm:$0xff]
  %v6913 = vld [vmem:[%s8 + $0x38] sm:$0xff]
  %v6914 = vld [vmem:[%s8 + $0x40] sm:$0xff]
  %v6915 = vld [vmem:[%s8 + $0x48] sm:$0xff]
  %v6916 = vld [vmem:[%s8 + $0x50] sm:$0xff]
  %v6917 = vld [vmem:[%s8 + $0x58] sm:$0xff]
  %v6918 = vld [vmem:[%s8 + $0x60] sm:$0xff]
  %v6919 = vld [vmem:[%s8 + $0x68] sm:$0xff]
  %v6920 = vld [vmem:[%s8 + $0x70] sm:$0xff]
  %v6921 = vld [vmem:[%s8 + $0x78] sm:$0xff]
  %v6922 = vld [vmem:[%s8 + $0x80] sm:$0xff]
  %v6923 = vld [vmem:[%s8 + $0x88] sm:$0xff]
  %v6924 = vld [vmem:[%s8 + $0x90] sm:$0xff]
  %v6925 = vld [vmem:[%s8 + $0x98] sm:$0xff]
  %v6926 = vld [vmem:[%s8 + $0xa0] sm:$0xff]
  %v6927 = vld [vmem:[%s8 + $0xa8] sm:$0xff]
  %v6928 = vld [vmem:[%s8 + $0xb0] sm:$0xff]
  %v6929 = vld [vmem:[%s8 + $0xb8] sm:$0xff]
  %v6930 = vld [vmem:[%s8 + $0xc0] sm:$0xff]
  %v6931 = vld [vmem:[%s8 + $0xc8] sm:$0xff]
  %v6932 = vld [vmem:[%s8 + $0xd0] sm:$0xff]
  %v6933 = vld [vmem:[%s8 + $0xd8] sm:$0xff]
  %v6934 = vld [vmem:[%s8 + $0xe0] sm:$0xff]
  %v6935 = vld [vmem:[%s8 + $0xe8] sm:$0xff]
  %v6936 = vld [vmem:[%s8 + $0xf0] sm:$0xff]
  %v6937 = vld [vmem:[%s8 + $0xf8] sm:$0xff]
  %v6970 = vunpack.c.l.b16 %v6906
  %v6971 = vunpack.c.h.b16 %v6906
  %v6972 = vunpack.c.l.b16 %v6907
  %v6973 = vunpack.c.h.b16 %v6907
  %v6974 = vunpack.c.l.b16 %v6908
  %v6975 = vunpack.c.h.b16 %v6908
  %v6976 = vunpack.c.l.b16 %v6909
  %v6977 = vunpack.c.h.b16 %v6909
  %v6978 = vunpack.c.l.b16 %v6910
  %v6979 = vunpack.c.h.b16 %v6910
  %v6980 = vunpack.c.l.b16 %v6911
  %v6981 = vunpack.c.h.b16 %v6911
  %v6982 = vunpack.c.l.b16 %v6912
  %v6983 = vunpack.c.h.b16 %v6912
  %v6984 = vunpack.c.l.b16 %v6913
  %v6985 = vunpack.c.h.b16 %v6913
  %v6986 = vunpack.c.l.b16 %v6914
  %v6987 = vunpack.c.h.b16 %v6914
  %v6988 = vunpack.c.l.b16 %v6915
  %v6989 = vunpack.c.h.b16 %v6915
  %v6990 = vunpack.c.l.b16 %v6916
  %v6991 = vunpack.c.h.b16 %v6916
  %v6992 = vunpack.c.l.b16 %v6917
  %v6993 = vunpack.c.h.b16 %v6917
  %v6994 = vunpack.c.l.b16 %v6918
  %v6995 = vunpack.c.h.b16 %v6918
  %v6996 = vunpack.c.l.b16 %v6919
  %v6997 = vunpack.c.h.b16 %v6919
  %v6998 = vunpack.c.l.b16 %v6920
  %v6999 = vunpack.c.h.b16 %v6920
  %v7000 = vunpack.c.l.b16 %v6921
  %v7001 = vunpack.c.h.b16 %v6921
  %v7002 = vunpack.c.l.b16 %v6922
  %v7003 = vunpack.c.h.b16 %v6922
  %v7004 = vunpack.c.l.b16 %v6923
  %v7005 = vunpack.c.h.b16 %v6923
  %v7006 = vunpack.c.l.b16 %v6924
  %v7007 = vunpack.c.h.b16 %v6924
  %v7008 = vunpack.c.l.b16 %v6925
  %v7009 = vunpack.c.h.b16 %v6925
  %v7010 = vunpack.c.l.b16 %v6926
  %v7011 = vunpack.c.h.b16 %v6926
  %v7012 = vunpack.c.l.b16 %v6927
  %v7013 = vunpack.c.h.b16 %v6927
  %v7014 = vunpack.c.l.b16 %v6928
  %v7015 = vunpack.c.h.b16 %v6928
  %v7016 = vunpack.c.l.b16 %v6929
  %v7017 = vunpack.c.h.b16 %v6929
  %v7018 = vunpack.c.l.b16 %v6930
  %v7019 = vunpack.c.h.b16 %v6930
  %v7020 = vunpack.c.l.b16 %v6931
  %v7021 = vunpack.c.h.b16 %v6931
  %v7022 = vunpack.c.l.b16 %v6932
  %v7023 = vunpack.c.h.b16 %v6932
  %v7024 = vunpack.c.l.b16 %v6933
  %v7025 = vunpack.c.h.b16 %v6933
  %v7026 = vunpack.c.l.b16 %v6934
  %v7027 = vunpack.c.h.b16 %v6934
  %v7028 = vunpack.c.l.b16 %v6935
  %v7029 = vunpack.c.h.b16 %v6935
  %v7030 = vunpack.c.l.b16 %v6936
  %v7031 = vunpack.c.h.b16 %v6936
  %v7032 = vunpack.c.l.b16 %v6937
  %v7033 = vunpack.c.h.b16 %v6937
  %v7034 = vpack.c.b16 %v6974, %v6970
  %v7035 = vpack.c.b16 %v6975, %v6971
  %v7036 = vpack.c.b16 %v6976, %v6972
  %v7037 = vpack.c.b16 %v6977, %v6973
  %v7038 = vpack.c.b16 %v6982, %v6978
  %v7039 = vpack.c.b16 %v6983, %v6979
  %v7040 = vpack.c.b16 %v6984, %v6980
  %v7041 = vpack.c.b16 %v6985, %v6981
  %v7042 = vpack.c.b16 %v6990, %v6986
  %v7043 = vpack.c.b16 %v6991, %v6987
  %v7044 = vpack.c.b16 %v6992, %v6988
  %v7045 = vpack.c.b16 %v6993, %v6989
  %v7046 = vpack.c.b16 %v6998, %v6994
  %v7047 = vpack.c.b16 %v6999, %v6995
  %v7048 = vpack.c.b16 %v7000, %v6996
  %v7049 = vpack.c.b16 %v7001, %v6997
  %v7050 = vpack.c.b16 %v7006, %v7002
  %v7051 = vpack.c.b16 %v7007, %v7003
  %v7052 = vpack.c.b16 %v7008, %v7004
  %v7053 = vpack.c.b16 %v7009, %v7005
  %v7054 = vpack.c.b16 %v7014, %v7010
  %v7055 = vpack.c.b16 %v7015, %v7011
  %v7056 = vpack.c.b16 %v7016, %v7012
  %v7057 = vpack.c.b16 %v7017, %v7013
  %v7058 = vpack.c.b16 %v7022, %v7018
  %v7059 = vpack.c.b16 %v7023, %v7019
  %v7060 = vpack.c.b16 %v7024, %v7020
  %v7061 = vpack.c.b16 %v7025, %v7021
  %v7062 = vpack.c.b16 %v7030, %v7026
  %v7063 = vpack.c.b16 %v7031, %v7027
  %v7064 = vpack.c.b16 %v7032, %v7028
  %v7065 = vpack.c.b16 %v7033, %v7029
  %7098 = vmatprep.subr.bf16.mxu0 %v7035
  %7099 = vmatpush1.bf16.msra.mxu0 %v7034
  %7100 = vmatprep.subr.bf16.mxu0 %v7039
  %7101 = vmatpush1.bf16.msra.mxu0 %v7038
  %7102 = vmatprep.subr.bf16.mxu0 %v7043
  %7103 = vmatpush1.bf16.msra.mxu0 %v7042
  %7104 = vmatprep.subr.bf16.mxu0 %v7047
  %7105 = vmatpush1.bf16.msra.mxu0 %v7046
  %7106 = vmatprep.subr.bf16.mxu0 %v7051
  %7107 = vmatpush1.bf16.msra.mxu0 %v7050
  %7108 = vmatprep.subr.bf16.mxu0 %v7055
  %7109 = vmatpush1.bf16.msra.mxu0 %v7054
  %7110 = vmatprep.subr.bf16.mxu0 %v7059
  %7111 = vmatpush1.bf16.msra.mxu0 %v7058
  %7112 = vmatprep.subr.bf16.mxu0 %v7063
  %7113 = vmatpush1.bf16.msra.mxu0 %v7062
  %7114 = vmatprep.subr.bf16.mxu0 0
  %7115 = vmatpush1.bf16.msra.mxu0 0
  %7116 = vmatprep.subr.bf16.mxu0 0
  %7117 = vmatpush1.bf16.msra.mxu0 0
  %7118 = vmatprep.subr.bf16.mxu0 0
  %7119 = vmatpush1.bf16.msra.mxu0 0
  %7120 = vmatprep.subr.bf16.mxu0 0
  %7121 = vmatpush1.bf16.msra.mxu0 0
  %7122 = vmatprep.subr.bf16.mxu0 0
  %7123 = vmatpush1.bf16.msra.mxu0 0
  %7124 = vmatprep.subr.bf16.mxu0 0
  %7125 = vmatpush1.bf16.msra.mxu0 0
  %7126 = vmatprep.subr.bf16.mxu0 0
  %7127 = vmatpush1.bf16.msra.mxu0 0
  %7128 = vmatprep.subr.bf16.mxu0 0
  %7129 = vmatpush1.bf16.msra.mxu0 0
  %7130 = vmatprep.mubr.bf16.mxu0 0
  %7131 = vmatmul.mubr.bf16.gmra.mrb[0].mxu0 %v6905
  %v7132 = vpop.f32.mrb[0].mxu0
  %v7133 = vadd.f32 0.0, %v7132
  %v7134 = vpop.f32.mrb[0].mxu0
  %v7135 = vadd.f32 0.0, %v7134
  %v7136 = vpop.f32.mrb[0].mxu0
  %v7137 = vpop.f32.mrb[0].mxu0
  %7138 = vdwg.mxu0
  %7139 = vmatprep.subr.bf16.mxu0 %v7037
  %7140 = vmatpush1.bf16.msra.mxu0 %v7036
  %7141 = vmatprep.subr.bf16.mxu0 %v7041
  %7142 = vmatpush1.bf16.msra.mxu0 %v7040
  %7143 = vmatprep.subr.bf16.mxu0 %v7045
  %7144 = vmatpush1.bf16.msra.mxu0 %v7044
  %7145 = vmatprep.subr.bf16.mxu0 %v7049
  %7146 = vmatpush1.bf16.msra.mxu0 %v7048
  %7147 = vmatprep.subr.bf16.mxu0 %v7053
  %7148 = vmatpush1.bf16.msra.mxu0 %v7052
  %7149 = vmatprep.subr.bf16.mxu0 %v7057
  %7150 = vmatpush1.bf16.msra.mxu0 %v7056
  %7151 = vmatprep.subr.bf16.mxu0 %v7061
  %7152 = vmatpush1.bf16.msra.mxu0 %v7060
  %7153 = vmatprep.subr.bf16.mxu0 %v7065
  %7154 = vmatpush1.bf16.msra.mxu0 %v7064
  %7155 = vmatprep.subr.bf16.mxu0 0
  %7156 = vmatpush1.bf16.msra.mxu0 0
  %7157 = vmatprep.subr.bf16.mxu0 0
  %7158 = vmatpush1.bf16.msra.mxu0 0
  %7159 = vmatprep.subr.bf16.mxu0 0
  %7160 = vmatpush1.bf16.msra.mxu0 0
  %7161 = vmatprep.subr.bf16.mxu0 0
  %7162 = vmatpush1.bf16.msra.mxu0 0
  %7163 = vmatprep.subr.bf16.mxu0 0
  %7164 = vmatpush1.bf16.msra.mxu0 0
  %7165 = vmatprep.subr.bf16.mxu0 0
  %7166 = vmatpush1.bf16.msra.mxu0 0
  %7167 = vmatprep.subr.bf16.mxu0 0
  %7168 = vmatpush1.bf16.msra.mxu0 0
  %7169 = vmatprep.subr.bf16.mxu0 0
  %7170 = vmatpush1.bf16.msra.mxu0 0
  %7171 = vmatprep.mubr.bf16.mxu0 0
  %7172 = vmatmul.mubr.bf16.gmra.mrb[0].mxu0 %v6905
  %v7173 = vpop.f32.mrb[0].mxu0
  %v7174 = vadd.f32 0.0, %v7173
  %v7175 = vpop.f32.mrb[0].mxu0
  %v7176 = vadd.f32 0.0, %v7175
  %v7177 = vpop.f32.mrb[0].mxu0
  %v7178 = vpop.f32.mrb[0].mxu0
  %7179 = vdwg.mxu0
  %v7184 = vcombine.low %v7133, %v7135
  %v7185 = vcombine.low %v7174, %v7176
  %v7187 = vunpack.c.l.s4 1966171168
  %v7188 = vunpack.c.0.s8 %v7187
  %v7189 = vlaneseq
  %v7190 = vshrl.u32 %v7189, 7
  %v7191 = vsub.s32 %v7188, %v7190
  %v7192 = vrot.slane %v7184, %v7191
  %v7194 = vunpack.c.l.s4 1966171168
  %v7195 = vunpack.c.0.s8 %v7194
  %v7196 = vlaneseq
  %v7197 = vshrl.u32 %v7196, 7
  %v7198 = vsub.s32 %v7195, %v7197
  %v7199 = vrot.slane %v7185, %v7198
  %v7200 = vcombine.low %v7192, %v7199
  %v7202 = vunpack.c.l.s4 1966171168
  %v7203 = vunpack.c.0.s8 %v7202
  %v7204 = vlaneseq
  %v7205 = vshrl.u32 %v7204, 7
  %v7206 = vsub.s32 %v7203, %v7205
  %v7207 = vrot.slane %v7200, %v7206
  %v7209 = vadd.f32 %v6904, %v7207
  %v7210 = vxor.u32 %v7209, 2147483648
  %v7211 = vmul.f32 %v7210, 1.442695
  %v7212 = vpow.pop %v7211
  %v7213 = vadd.f32 %v7212, 1.0
  %v7214 = vrcp.pop %v7213
  %v7215 = vmul.f32 1.0, %v7214
  %v7217 = vrot.slane %v7209, 3
  %v7219 = vtanh.pop %v7217
  %v7221 = vrot.slane %v7215, 1
  %v7223 = vmul.f32 %v7221, %v6898
  %v7224 = vmul.f32 %v7215, %v7219
  %v7225 = vadd.f32 %v7223, %v7224
  %v7226 = vtanh.pop %v7225
  %v7227 = vrot.slane %v7215, 2
  %v7229 = vmul.f32 %v7227, %v7226
  %7230 = vst [vmem:[#allocation3 + $0x3] sm:$0x1] %v7229
  %v7231 = vld [vmem:[%s1531] ss:$8 sm:$0xf]
  %v7232 = vpack.c.bf16 %v7229, %v7229
  %v7233 = vld [vmem:[%s8] sm:$0xff]
  %v7234 = vld [vmem:[%s8 + $0x8] sm:$0xff]
  %v7235 = vld [vmem:[%s8 + $0x10] sm:$0xff]
  %v7236 = vld [vmem:[%s8 + $0x18] sm:$0xff]
  %v7237 = vld [vmem:[%s8 + $0x20] sm:$0xff]
  %v7238 = vld [vmem:[%s8 + $0x28] sm:$0xff]
  %v7239 = vld [vmem:[%s8 + $0x30] sm:$0xff]
  %v7240 = vld [vmem:[%s8 + $0x38] sm:$0xff]
  %v7241 = vld [vmem:[%s8 + $0x40] sm:$0xff]
  %v7242 = vld [vmem:[%s8 + $0x48] sm:$0xff]
  %v7243 = vld [vmem:[%s8 + $0x50] sm:$0xff]
  %v7244 = vld [vmem:[%s8 + $0x58] sm:$0xff]
  %v7245 = vld [vmem:[%s8 + $0x60] sm:$0xff]
  %v7246 = vld [vmem:[%s8 + $0x68] sm:$0xff]
  %v7247 = vld [vmem:[%s8 + $0x70] sm:$0xff]
  %v7248 = vld [vmem:[%s8 + $0x78] sm:$0xff]
  %v7249 = vld [vmem:[%s8 + $0x80] sm:$0xff]
  %v7250 = vld [vmem:[%s8 + $0x88] sm:$0xff]
  %v7251 = vld [vmem:[%s8 + $0x90] sm:$0xff]
  %v7252 = vld [vmem:[%s8 + $0x98] sm:$0xff]
  %v7253 = vld [vmem:[%s8 + $0xa0] sm:$0xff]
  %v7254 = vld [vmem:[%s8 + $0xa8] sm:$0xff]
  %v7255 = vld [vmem:[%s8 + $0xb0] sm:$0xff]
  %v7256 = vld [vmem:[%s8 + $0xb8] sm:$0xff]
  %v7257 = vld [vmem:[%s8 + $0xc0] sm:$0xff]
  %v7258 = vld [vmem:[%s8 + $0xc8] sm:$0xff]
  %v7259 = vld [vmem:[%s8 + $0xd0] sm:$0xff]
  %v7260 = vld [vmem:[%s8 + $0xd8] sm:$0xff]
  %v7261 = vld [vmem:[%s8 + $0xe0] sm:$0xff]
  %v7262 = vld [vmem:[%s8 + $0xe8] sm:$0xff]
  %v7263 = vld [vmem:[%s8 + $0xf0] sm:$0xff]
  %v7264 = vld [vmem:[%s8 + $0xf8] sm:$0xff]
  %v7297 = vunpack.c.l.b16 %v7233
  %v7298 = vunpack.c.h.b16 %v7233
  %v7299 = vunpack.c.l.b16 %v7234
  %v7300 = vunpack.c.h.b16 %v7234
  %v7301 = vunpack.c.l.b16 %v7235
  %v7302 = vunpack.c.h.b16 %v7235
  %v7303 = vunpack.c.l.b16 %v7236
  %v7304 = vunpack.c.h.b16 %v7236
  %v7305 = vunpack.c.l.b16 %v7237
  %v7306 = vunpack.c.h.b16 %v7237
  %v7307 = vunpack.c.l.b16 %v7238
  %v7308 = vunpack.c.h.b16 %v7238
  %v7309 = vunpack.c.l.b16 %v7239
  %v7310 = vunpack.c.h.b16 %v7239
  %v7311 = vunpack.c.l.b16 %v7240
  %v7312 = vunpack.c.h.b16 %v7240
  %v7313 = vunpack.c.l.b16 %v7241
  %v7314 = vunpack.c.h.b16 %v7241
  %v7315 = vunpack.c.l.b16 %v7242
  %v7316 = vunpack.c.h.b16 %v7242
  %v7317 = vunpack.c.l.b16 %v7243
  %v7318 = vunpack.c.h.b16 %v7243
  %v7319 = vunpack.c.l.b16 %v7244
  %v7320 = vunpack.c.h.b16 %v7244
  %v7321 = vunpack.c.l.b16 %v7245
  %v7322 = vunpack.c.h.b16 %v7245
  %v7323 = vunpack.c.l.b16 %v7246
  %v7324 = vunpack.c.h.b16 %v7246
  %v7325 = vunpack.c.l.b16 %v7247
  %v7326 = vunpack.c.h.b16 %v7247
  %v7327 = vunpack.c.l.b16 %v7248
  %v7328 = vunpack.c.h.b16 %v7248
  %v7329 = vunpack.c.l.b16 %v7249
  %v7330 = vunpack.c.h.b16 %v7249
  %v7331 = vunpack.c.l.b16 %v7250
  %v7332 = vunpack.c.h.b16 %v7250
  %v7333 = vunpack.c.l.b16 %v7251
  %v7334 = vunpack.c.h.b16 %v7251
  %v7335 = vunpack.c.l.b16 %v7252
  %v7336 = vunpack.c.h.b16 %v7252
  %v7337 = vunpack.c.l.b16 %v7253
  %v7338 = vunpack.c.h.b16 %v7253
  %v7339 = vunpack.c.l.b16 %v7254
  %v7340 = vunpack.c.h.b16 %v7254
  %v7341 = vunpack.c.l.b16 %v7255
  %v7342 = vunpack.c.h.b16 %v7255
  %v7343 = vunpack.c.l.b16 %v7256
  %v7344 = vunpack.c.h.b16 %v7256
  %v7345 = vunpack.c.l.b16 %v7257
  %v7346 = vunpack.c.h.b16 %v7257
  %v7347 = vunpack.c.l.b16 %v7258
  %v7348 = vunpack.c.h.b16 %v7258
  %v7349 = vunpack.c.l.b16 %v7259
  %v7350 = vunpack.c.h.b16 %v7259
  %v7351 = vunpack.c.l.b16 %v7260
  %v7352 = vunpack.c.h.b16 %v7260
  %v7353 = vunpack.c.l.b16 %v7261
  %v7354 = vunpack.c.h.b16 %v7261
  %v7355 = vunpack.c.l.b16 %v7262
  %v7356 = vunpack.c.h.b16 %v7262
  %v7357 = vunpack.c.l.b16 %v7263
  %v7358 = vunpack.c.h.b16 %v7263
  %v7359 = vunpack.c.l.b16 %v7264
  %v7360 = vunpack.c.h.b16 %v7264
  %v7361 = vpack.c.b16 %v7301, %v7297
  %v7362 = vpack.c.b16 %v7302, %v7298
  %v7363 = vpack.c.b16 %v7303, %v7299
  %v7364 = vpack.c.b16 %v7304, %v7300
  %v7365 = vpack.c.b16 %v7309, %v7305
  %v7366 = vpack.c.b16 %v7310, %v7306
  %v7367 = vpack.c.b16 %v7311, %v7307
  %v7368 = vpack.c.b16 %v7312, %v7308
  %v7369 = vpack.c.b16 %v7317, %v7313
  %v7370 = vpack.c.b16 %v7318, %v7314
  %v7371 = vpack.c.b16 %v7319, %v7315
  %v7372 = vpack.c.b16 %v7320, %v7316
  %v7373 = vpack.c.b16 %v7325, %v7321
  %v7374 = vpack.c.b16 %v7326, %v7322
  %v7375 = vpack.c.b16 %v7327, %v7323
  %v7376 = vpack.c.b16 %v7328, %v7324
  %v7377 = vpack.c.b16 %v7333, %v7329
  %v7378 = vpack.c.b16 %v7334, %v7330
  %v7379 = vpack.c.b16 %v7335, %v7331
  %v7380 = vpack.c.b16 %v7336, %v7332
  %v7381 = vpack.c.b16 %v7341, %v7337
  %v7382 = vpack.c.b16 %v7342, %v7338
  %v7383 = vpack.c.b16 %v7343, %v7339
  %v7384 = vpack.c.b16 %v7344, %v7340
  %v7385 = vpack.c.b16 %v7349, %v7345
  %v7386 = vpack.c.b16 %v7350, %v7346
  %v7387 = vpack.c.b16 %v7351, %v7347
  %v7388 = vpack.c.b16 %v7352, %v7348
  %v7389 = vpack.c.b16 %v7357, %v7353
  %v7390 = vpack.c.b16 %v7358, %v7354
  %v7391 = vpack.c.b16 %v7359, %v7355
  %v7392 = vpack.c.b16 %v7360, %v7356
  %7425 = vmatprep.subr.bf16.mxu0 %v7362
  %7426 = vmatpush1.bf16.msra.mxu0 %v7361
  %7427 = vmatprep.subr.bf16.mxu0 %v7366
  %7428 = vmatpush1.bf16.msra.mxu0 %v7365
  %7429 = vmatprep.subr.bf16.mxu0 %v7370
  %7430 = vmatpush1.bf16.msra.mxu0 %v7369
  %7431 = vmatprep.subr.bf16.mxu0 %v7374
  %7432 = vmatpush1.bf16.msra.mxu0 %v7373
  %7433 = vmatprep.subr.bf16.mxu0 %v7378
  %7434 = vmatpush1.bf16.msra.mxu0 %v7377
  %7435 = vmatprep.subr.bf16.mxu0 %v7382
  %7436 = vmatpush1.bf16.msra.mxu0 %v7381
  %7437 = vmatprep.subr.bf16.mxu0 %v7386
  %7438 = vmatpush1.bf16.msra.mxu0 %v7385
  %7439 = vmatprep.subr.bf16.mxu0 %v7390
  %7440 = vmatpush1.bf16.msra.mxu0 %v7389
  %7441 = vmatprep.subr.bf16.mxu0 0
  %7442 = vmatpush1.bf16.msra.mxu0 0
  %7443 = vmatprep.subr.bf16.mxu0 0
  %7444 = vmatpush1.bf16.msra.mxu0 0
  %7445 = vmatprep.subr.bf16.mxu0 0
  %7446 = vmatpush1.bf16.msra.mxu0 0
  %7447 = vmatprep.subr.bf16.mxu0 0
  %7448 = vmatpush1.bf16.msra.mxu0 0
  %7449 = vmatprep.subr.bf16.mxu0 0
  %7450 = vmatpush1.bf16.msra.mxu0 0
  %7451 = vmatprep.subr.bf16.mxu0 0
  %7452 = vmatpush1.bf16.msra.mxu0 0
  %7453 = vmatprep.subr.bf16.mxu0 0
  %7454 = vmatpush1.bf16.msra.mxu0 0
  %7455 = vmatprep.subr.bf16.mxu0 0
  %7456 = vmatpush1.bf16.msra.mxu0 0
  %7457 = vmatprep.mubr.bf16.mxu0 0
  %7458 = vmatmul.mubr.bf16.gmra.mrb[0].mxu0 %v7232
  %v7459 = vpop.f32.mrb[0].mxu0
  %v7460 = vadd.f32 0.0, %v7459
  %v7461 = vpop.f32.mrb[0].mxu0
  %v7462 = vadd.f32 0.0, %v7461
  %v7463 = vpop.f32.mrb[0].mxu0
  %v7464 = vpop.f32.mrb[0].mxu0
  %7465 = vdwg.mxu0
  %7466 = vmatprep.subr.bf16.mxu0 %v7364
  %7467 = vmatpush1.bf16.msra.mxu0 %v7363
  %7468 = vmatprep.subr.bf16.mxu0 %v7368
  %7469 = vmatpush1.bf16.msra.mxu0 %v7367
  %7470 = vmatprep.subr.bf16.mxu0 %v7372
  %7471 = vmatpush1.bf16.msra.mxu0 %v7371
  %7472 = vmatprep.subr.bf16.mxu0 %v7376
  %7473 = vmatpush1.bf16.msra.mxu0 %v7375
  %7474 = vmatprep.subr.bf16.mxu0 %v7380
  %7475 = vmatpush1.bf16.msra.mxu0 %v7379
  %7476 = vmatprep.subr.bf16.mxu0 %v7384
  %7477 = vmatpush1.bf16.msra.mxu0 %v7383
  %7478 = vmatprep.subr.bf16.mxu0 %v7388
  %7479 = vmatpush1.bf16.msra.mxu0 %v7387
  %7480 = vmatprep.subr.bf16.mxu0 %v7392
  %7481 = vmatpush1.bf16.msra.mxu0 %v7391
  %7482 = vmatprep.subr.bf16.mxu0 0
  %7483 = vmatpush1.bf16.msra.mxu0 0
  %7484 = vmatprep.subr.bf16.mxu0 0
  %7485 = vmatpush1.bf16.msra.mxu0 0
  %7486 = vmatprep.subr.bf16.mxu0 0
  %7487 = vmatpush1.bf16.msra.mxu0 0
  %7488 = vmatprep.subr.bf16.mxu0 0
  %7489 = vmatpush1.bf16.msra.mxu0 0
  %7490 = vmatprep.subr.bf16.mxu0 0
  %7491 = vmatpush1.bf16.msra.mxu0 0
  %7492 = vmatprep.subr.bf16.mxu0 0
  %7493 = vmatpush1.bf16.msra.mxu0 0
  %7494 = vmatprep.subr.bf16.mxu0 0
  %7495 = vmatpush1.bf16.msra.mxu0 0
  %7496 = vmatprep.subr.bf16.mxu0 0
  %7497 = vmatpush1.bf16.msra.mxu0 0
  %7498 = vmatprep.mubr.bf16.mxu0 0
  %7499 = vmatmul.mubr.bf16.gmra.mrb[0].mxu0 %v7232
  %v7500 = vpop.f32.mrb[0].mxu0
  %v7501 = vadd.f32 0.0, %v7500
  %v7502 = vpop.f32.mrb[0].mxu0
  %v7503 = vadd.f32 0.0, %v7502
  %v7504 = vpop.f32.mrb[0].mxu0
  %v7505 = vpop.f32.mrb[0].mxu0
  %7506 = vdwg.mxu0
  %v7511 = vcombine.low %v7460, %v7462
  %v7512 = vcombine.low %v7501, %v7503
  %v7514 = vunpack.c.l.s4 1966171168
  %v7515 = vunpack.c.0.s8 %v7514
  %v7516 = vlaneseq
  %v7517 = vshrl.u32 %v7516, 7
  %v7518 = vsub.s32 %v7515, %v7517
  %v7519 = vrot.slane %v7511, %v7518
  %v7521 = vunpack.c.l.s4 1966171168
  %v7522 = vunpack.c.0.s8 %v7521
  %v7523 = vlaneseq
  %v7524 = vshrl.u32 %v7523, 7
  %v7525 = vsub.s32 %v7522, %v7524
  %v7526 = vrot.slane %v7512, %v7525
  %v7527 = vcombine.low %v7519, %v7526
  %v7529 = vunpack.c.l.s4 1966171168
  %v7530 = vunpack.c.0.s8 %v7529
  %v7531 = vlaneseq
  %v7532 = vshrl.u32 %v7531, 7
  %v7533 = vsub.s32 %v7530, %v7532
  %v7534 = vrot.slane %v7527, %v7533
  %v7536 = vadd.f32 %v7231, %v7534
  %v7537 = vxor.u32 %v7536, 2147483648
  %v7538 = vmul.f32 %v7537, 1.442695
  %v7539 = vpow.pop %v7538
  %v7540 = vadd.f32 %v7539, 1.0
  %v7541 = vrcp.pop %v7540
  %v7542 = vmul.f32 1.0, %v7541
  %v7544 = vrot.slane %v7536, 3
  %v7546 = vtanh.pop %v7544
  %v7548 = vrot.slane %v7542, 1
  %v7550 = vmul.f32 %v7548, %v7225
  %v7551 = vmul.f32 %v7542, %v7546
  %v7552 = vadd.f32 %v7550, %v7551
  %v7553 = vtanh.pop %v7552
  %v7554 = vrot.slane %v7542, 2
  %v7556 = vmul.f32 %v7554, %v7553
  %7557 = vst [vmem:[#allocation3 + $0x4] sm:$0x1] %v7556
  %v7558 = vld [vmem:[%s1859] ss:$8 sm:$0xf]
  %v7559 = vpack.c.bf16 %v7556, %v7556
  %v7560 = vld [vmem:[%s8] sm:$0xff]
  %v7561 = vld [vmem:[%s8 + $0x8] sm:$0xff]
  %v7562 = vld [vmem:[%s8 + $0x10] sm:$0xff]
  %v7563 = vld [vmem:[%s8 + $0x18] sm:$0xff]
  %v7564 = vld [vmem:[%s8 + $0x20] sm:$0xff]
  %v7565 = vld [vmem:[%s8 + $0x28] sm:$0xff]
  %v7566 = vld [vmem:[%s8 + $0x30] sm:$0xff]
  %v7567 = vld [vmem:[%s8 + $0x38] sm:$0xff]
  %v7568 = vld [vmem:[%s8 + $0x40] sm:$0xff]
  %v7569 = vld [vmem:[%s8 + $0x48] sm:$0xff]
  %v7570 = vld [vmem:[%s8 + $0x50] sm:$0xff]
  %v7571 = vld [vmem:[%s8 + $0x58] sm:$0xff]
  %v7572 = vld [vmem:[%s8 + $0x60] sm:$0xff]
  %v7573 = vld [vmem:[%s8 + $0x68] sm:$0xff]
  %v7574 = vld [vmem:[%s8 + $0x70] sm:$0xff]
  %v7575 = vld [vmem:[%s8 + $0x78] sm:$0xff]
  %v7576 = vld [vmem:[%s8 + $0x80] sm:$0xff]
  %v7577 = vld [vmem:[%s8 + $0x88] sm:$0xff]
  %v7578 = vld [vmem:[%s8 + $0x90] sm:$0xff]
  %v7579 = vld [vmem:[%s8 + $0x98] sm:$0xff]
  %v7580 = vld [vmem:[%s8 + $0xa0] sm:$0xff]
  %v7581 = vld [vmem:[%s8 + $0xa8] sm:$0xff]
  %v7582 = vld [vmem:[%s8 + $0xb0] sm:$0xff]
  %v7583 = vld [vmem:[%s8 + $0xb8] sm:$0xff]
  %v7584 = vld [vmem:[%s8 + $0xc0] sm:$0xff]
  %v7585 = vld [vmem:[%s8 + $0xc8] sm:$0xff]
  %v7586 = vld [vmem:[%s8 + $0xd0] sm:$0xff]
  %v7587 = vld [vmem:[%s8 + $0xd8] sm:$0xff]
  %v7588 = vld [vmem:[%s8 + $0xe0] sm:$0xff]
  %v7589 = vld [vmem:[%s8 + $0xe8] sm:$0xff]
  %v7590 = vld [vmem:[%s8 + $0xf0] sm:$0xff]
  %v7591 = vld [vmem:[%s8 + $0xf8] sm:$0xff]
  %v7624 = vunpack.c.l.b16 %v7560
  %v7625 = vunpack.c.h.b16 %v7560
  %v7626 = vunpack.c.l.b16 %v7561
  %v7627 = vunpack.c.h.b16 %v7561
  %v7628 = vunpack.c.l.b16 %v7562
  %v7629 = vunpack.c.h.b16 %v7562
  %v7630 = vunpack.c.l.b16 %v7563
  %v7631 = vunpack.c.h.b16 %v7563
  %v7632 = vunpack.c.l.b16 %v7564
  %v7633 = vunpack.c.h.b16 %v7564
  %v7634 = vunpack.c.l.b16 %v7565
  %v7635 = vunpack.c.h.b16 %v7565
  %v7636 = vunpack.c.l.b16 %v7566
  %v7637 = vunpack.c.h.b16 %v7566
  %v7638 = vunpack.c.l.b16 %v7567
  %v7639 = vunpack.c.h.b16 %v7567
  %v7640 = vunpack.c.l.b16 %v7568
  %v7641 = vunpack.c.h.b16 %v7568
  %v7642 = vunpack.c.l.b16 %v7569
  %v7643 = vunpack.c.h.b16 %v7569
  %v7644 = vunpack.c.l.b16 %v7570
  %v7645 = vunpack.c.h.b16 %v7570
  %v7646 = vunpack.c.l.b16 %v7571
  %v7647 = vunpack.c.h.b16 %v7571
  %v7648 = vunpack.c.l.b16 %v7572
  %v7649 = vunpack.c.h.b16 %v7572
  %v7650 = vunpack.c.l.b16 %v7573
  %v7651 = vunpack.c.h.b16 %v7573
  %v7652 = vunpack.c.l.b16 %v7574
  %v7653 = vunpack.c.h.b16 %v7574
  %v7654 = vunpack.c.l.b16 %v7575
  %v7655 = vunpack.c.h.b16 %v7575
  %v7656 = vunpack.c.l.b16 %v7576
  %v7657 = vunpack.c.h.b16 %v7576
  %v7658 = vunpack.c.l.b16 %v7577
  %v7659 = vunpack.c.h.b16 %v7577
  %v7660 = vunpack.c.l.b16 %v7578
  %v7661 = vunpack.c.h.b16 %v7578
  %v7662 = vunpack.c.l.b16 %v7579
  %v7663 = vunpack.c.h.b16 %v7579
  %v7664 = vunpack.c.l.b16 %v7580
  %v7665 = vunpack.c.h.b16 %v7580
  %v7666 = vunpack.c.l.b16 %v7581
  %v7667 = vunpack.c.h.b16 %v7581
  %v7668 = vunpack.c.l.b16 %v7582
  %v7669 = vunpack.c.h.b16 %v7582
  %v7670 = vunpack.c.l.b16 %v7583
  %v7671 = vunpack.c.h.b16 %v7583
  %v7672 = vunpack.c.l.b16 %v7584
  %v7673 = vunpack.c.h.b16 %v7584
  %v7674 = vunpack.c.l.b16 %v7585
  %v7675 = vunpack.c.h.b16 %v7585
  %v7676 = vunpack.c.l.b16 %v7586
  %v7677 = vunpack.c.h.b16 %v7586
  %v7678 = vunpack.c.l.b16 %v7587
  %v7679 = vunpack.c.h.b16 %v7587
  %v7680 = vunpack.c.l.b16 %v7588
  %v7681 = vunpack.c.h.b16 %v7588
  %v7682 = vunpack.c.l.b16 %v7589
  %v7683 = vunpack.c.h.b16 %v7589
  %v7684 = vunpack.c.l.b16 %v7590
  %v7685 = vunpack.c.h.b16 %v7590
  %v7686 = vunpack.c.l.b16 %v7591
  %v7687 = vunpack.c.h.b16 %v7591
  %v7688 = vpack.c.b16 %v7628, %v7624
  %v7689 = vpack.c.b16 %v7629, %v7625
  %v7690 = vpack.c.b16 %v7630, %v7626
  %v7691 = vpack.c.b16 %v7631, %v7627
  %v7692 = vpack.c.b16 %v7636, %v7632
  %v7693 = vpack.c.b16 %v7637, %v7633
  %v7694 = vpack.c.b16 %v7638, %v7634
  %v7695 = vpack.c.b16 %v7639, %v7635
  %v7696 = vpack.c.b16 %v7644, %v7640
  %v7697 = vpack.c.b16 %v7645, %v7641
  %v7698 = vpack.c.b16 %v7646, %v7642
  %v7699 = vpack.c.b16 %v7647, %v7643
  %v7700 = vpack.c.b16 %v7652, %v7648
  %v7701 = vpack.c.b16 %v7653, %v7649
  %v7702 = vpack.c.b16 %v7654, %v7650
  %v7703 = vpack.c.b16 %v7655, %v7651
  %v7704 = vpack.c.b16 %v7660, %v7656
  %v7705 = vpack.c.b16 %v7661, %v7657
  %v7706 = vpack.c.b16 %v7662, %v7658
  %v7707 = vpack.c.b16 %v7663, %v7659
  %v7708 = vpack.c.b16 %v7668, %v7664
  %v7709 = vpack.c.b16 %v7669, %v7665
  %v7710 = vpack.c.b16 %v7670, %v7666
  %v7711 = vpack.c.b16 %v7671, %v7667
  %v7712 = vpack.c.b16 %v7676, %v7672
  %v7713 = vpack.c.b16 %v7677, %v7673
  %v7714 = vpack.c.b16 %v7678, %v7674
  %v7715 = vpack.c.b16 %v7679, %v7675
  %v7716 = vpack.c.b16 %v7684, %v7680
  %v7717 = vpack.c.b16 %v7685, %v7681
  %v7718 = vpack.c.b16 %v7686, %v7682
  %v7719 = vpack.c.b16 %v7687, %v7683
  %7752 = vmatprep.subr.bf16.mxu0 %v7689
  %7753 = vmatpush1.bf16.msra.mxu0 %v7688
  %7754 = vmatprep.subr.bf16.mxu0 %v7693
  %7755 = vmatpush1.bf16.msra.mxu0 %v7692
  %7756 = vmatprep.subr.bf16.mxu0 %v7697
  %7757 = vmatpush1.bf16.msra.mxu0 %v7696
  %7758 = vmatprep.subr.bf16.mxu0 %v7701
  %7759 = vmatpush1.bf16.msra.mxu0 %v7700
  %7760 = vmatprep.subr.bf16.mxu0 %v7705
  %7761 = vmatpush1.bf16.msra.mxu0 %v7704
  %7762 = vmatprep.subr.bf16.mxu0 %v7709
  %7763 = vmatpush1.bf16.msra.mxu0 %v7708
  %7764 = vmatprep.subr.bf16.mxu0 %v7713
  %7765 = vmatpush1.bf16.msra.mxu0 %v7712
  %7766 = vmatprep.subr.bf16.mxu0 %v7717
  %7767 = vmatpush1.bf16.msra.mxu0 %v7716
  %7768 = vmatprep.subr.bf16.mxu0 0
  %7769 = vmatpush1.bf16.msra.mxu0 0
  %7770 = vmatprep.subr.bf16.mxu0 0
  %7771 = vmatpush1.bf16.msra.mxu0 0
  %7772 = vmatprep.subr.bf16.mxu0 0
  %7773 = vmatpush1.bf16.msra.mxu0 0
  %7774 = vmatprep.subr.bf16.mxu0 0
  %7775 = vmatpush1.bf16.msra.mxu0 0
  %7776 = vmatprep.subr.bf16.mxu0 0
  %7777 = vmatpush1.bf16.msra.mxu0 0
  %7778 = vmatprep.subr.bf16.mxu0 0
  %7779 = vmatpush1.bf16.msra.mxu0 0
  %7780 = vmatprep.subr.bf16.mxu0 0
  %7781 = vmatpush1.bf16.msra.mxu0 0
  %7782 = vmatprep.subr.bf16.mxu0 0
  %7783 = vmatpush1.bf16.msra.mxu0 0
  %7784 = vmatprep.mubr.bf16.mxu0 0
  %7785 = vmatmul.mubr.bf16.gmra.mrb[0].mxu0 %v7559
  %v7786 = vpop.f32.mrb[0].mxu0
  %v7787 = vadd.f32 0.0, %v7786
  %v7788 = vpop.f32.mrb[0].mxu0
  %v7789 = vadd.f32 0.0, %v7788
  %v7790 = vpop.f32.mrb[0].mxu0
  %v7791 = vpop.f32.mrb[0].mxu0
  %7792 = vdwg.mxu0
  %7793 = vmatprep.subr.bf16.mxu0 %v7691
  %7794 = vmatpush1.bf16.msra.mxu0 %v7690
  %7795 = vmatprep.subr.bf16.mxu0 %v7695
  %7796 = vmatpush1.bf16.msra.mxu0 %v7694
  %7797 = vmatprep.subr.bf16.mxu0 %v7699
  %7798 = vmatpush1.bf16.msra.mxu0 %v7698
  %7799 = vmatprep.subr.bf16.mxu0 %v7703
  %7800 = vmatpush1.bf16.msra.mxu0 %v7702
  %7801 = vmatprep.subr.bf16.mxu0 %v7707
  %7802 = vmatpush1.bf16.msra.mxu0 %v7706
  %7803 = vmatprep.subr.bf16.mxu0 %v7711
  %7804 = vmatpush1.bf16.msra.mxu0 %v7710
  %7805 = vmatprep.subr.bf16.mxu0 %v7715
  %7806 = vmatpush1.bf16.msra.mxu0 %v7714
  %7807 = vmatprep.subr.bf16.mxu0 %v7719
  %7808 = vmatpush1.bf16.msra.mxu0 %v7718
  %7809 = vmatprep.subr.bf16.mxu0 0
  %7810 = vmatpush1.bf16.msra.mxu0 0
  %7811 = vmatprep.subr.bf16.mxu0 0
  %7812 = vmatpush1.bf16.msra.mxu0 0
  %7813 = vmatprep.subr.bf16.mxu0 0
  %7814 = vmatpush1.bf16.msra.mxu0 0
  %7815 = vmatprep.subr.bf16.mxu0 0
  %7816 = vmatpush1.bf16.msra.mxu0 0
  %7817 = vmatprep.subr.bf16.mxu0 0
  %7818 = vmatpush1.bf16.msra.mxu0 0
  %7819 = vmatprep.subr.bf16.mxu0 0
  %7820 = vmatpush1.bf16.msra.mxu0 0
  %7821 = vmatprep.subr.bf16.mxu0 0
  %7822 = vmatpush1.bf16.msra.mxu0 0
  %7823 = vmatprep.subr.bf16.mxu0 0
  %7824 = vmatpush1.bf16.msra.mxu0 0
  %7825 = vmatprep.mubr.bf16.mxu0 0
  %7826 = vmatmul.mubr.bf16.gmra.mrb[0].mxu0 %v7559
  %v7827 = vpop.f32.mrb[0].mxu0
  %v7828 = vadd.f32 0.0, %v7827
  %v7829 = vpop.f32.mrb[0].mxu0
  %v7830 = vadd.f32 0.0, %v7829
  %v7831 = vpop.f32.mrb[0].mxu0
  %v7832 = vpop.f32.mrb[0].mxu0
  %7833 = vdwg.mxu0
  %v7838 = vcombine.low %v7787, %v7789
  %v7839 = vcombine.low %v7828, %v7830
  %v7841 = vunpack.c.l.s4 1966171168
  %v7842 = vunpack.c.0.s8 %v7841
  %v7843 = vlaneseq
  %v7844 = vshrl.u32 %v7843, 7
  %v7845 = vsub.s32 %v7842, %v7844
  %v7846 = vrot.slane %v7838, %v7845
  %v7848 = vunpack.c.l.s4 1966171168
  %v7849 = vunpack.c.0.s8 %v7848
  %v7850 = vlaneseq
  %v7851 = vshrl.u32 %v7850, 7
  %v7852 = vsub.s32 %v7849, %v7851
  %v7853 = vrot.slane %v7839, %v7852
  %v7854 = vcombine.low %v7846, %v7853
  %v7856 = vunpack.c.l.s4 1966171168
  %v7857 = vunpack.c.0.s8 %v7856
  %v7858 = vlaneseq
  %v7859 = vshrl.u32 %v7858, 7
  %v7860 = vsub.s32 %v7857, %v7859
  %v7861 = vrot.slane %v7854, %v7860
  %v7863 = vadd.f32 %v7558, %v7861
  %v7864 = vxor.u32 %v7863, 2147483648
  %v7865 = vmul.f32 %v7864, 1.442695
  %v7866 = vpow.pop %v7865
  %v7867 = vadd.f32 %v7866, 1.0
  %v7868 = vrcp.pop %v7867
  %v7869 = vmul.f32 1.0, %v7868
  %v7871 = vrot.slane %v7863, 3
  %v7873 = vtanh.pop %v7871
  %v7875 = vrot.slane %v7869, 1
  %v7877 = vmul.f32 %v7875, %v7552
  %v7878 = vmul.f32 %v7869, %v7873
  %v7879 = vadd.f32 %v7877, %v7878
  %v7880 = vtanh.pop %v7879
  %v7881 = vrot.slane %v7869, 2
  %v7883 = vmul.f32 %v7881, %v7880
  %7884 = vst [vmem:[#allocation3 + $0x5] sm:$0x1] %v7883
  %v7885 = vld [vmem:[%s2187] ss:$8 sm:$0xf]
  %v7886 = vpack.c.bf16 %v7883, %v7883
  %v7887 = vld [vmem:[%s8] sm:$0xff]
  %v7888 = vld [vmem:[%s8 + $0x8] sm:$0xff]
  %v7889 = vld [vmem:[%s8 + $0x10] sm:$0xff]
  %v7890 = vld [vmem:[%s8 + $0x18] sm:$0xff]
  %v7891 = vld [vmem:[%s8 + $0x20] sm:$0xff]
  %v7892 = vld [vmem:[%s8 + $0x28] sm:$0xff]
  %v7893 = vld [vmem:[%s8 + $0x30] sm:$0xff]
  %v7894 = vld [vmem:[%s8 + $0x38] sm:$0xff]
  %v7895 = vld [vmem:[%s8 + $0x40] sm:$0xff]
  %v7896 = vld [vmem:[%s8 + $0x48] sm:$0xff]
  %v7897 = vld [vmem:[%s8 + $0x50] sm:$0xff]
  %v7898 = vld [vmem:[%s8 + $0x58] sm:$0xff]
  %v7899 = vld [vmem:[%s8 + $0x60] sm:$0xff]
  %v7900 = vld [vmem:[%s8 + $0x68] sm:$0xff]
  %v7901 = vld [vmem:[%s8 + $0x70] sm:$0xff]
  %v7902 = vld [vmem:[%s8 + $0x78] sm:$0xff]
  %v7903 = vld [vmem:[%s8 + $0x80] sm:$0xff]
  %v7904 = vld [vmem:[%s8 + $0x88] sm:$0xff]
  %v7905 = vld [vmem:[%s8 + $0x90] sm:$0xff]
  %v7906 = vld [vmem:[%s8 + $0x98] sm:$0xff]
  %v7907 = vld [vmem:[%s8 + $0xa0] sm:$0xff]
  %v7908 = vld [vmem:[%s8 + $0xa8] sm:$0xff]
  %v7909 = vld [vmem:[%s8 + $0xb0] sm:$0xff]
  %v7910 = vld [vmem:[%s8 + $0xb8] sm:$0xff]
  %v7911 = vld [vmem:[%s8 + $0xc0] sm:$0xff]
  %v7912 = vld [vmem:[%s8 + $0xc8] sm:$0xff]
  %v7913 = vld [vmem:[%s8 + $0xd0] sm:$0xff]
  %v7914 = vld [vmem:[%s8 + $0xd8] sm:$0xff]
  %v7915 = vld [vmem:[%s8 + $0xe0] sm:$0xff]
  %v7916 = vld [vmem:[%s8 + $0xe8] sm:$0xff]
  %v7917 = vld [vmem:[%s8 + $0xf0] sm:$0xff]
  %v7918 = vld [vmem:[%s8 + $0xf8] sm:$0xff]
  %v7951 = vunpack.c.l.b16 %v7887
  %v7952 = vunpack.c.h.b16 %v7887
  %v7953 = vunpack.c.l.b16 %v7888
  %v7954 = vunpack.c.h.b16 %v7888
  %v7955 = vunpack.c.l.b16 %v7889
  %v7956 = vunpack.c.h.b16 %v7889
  %v7957 = vunpack.c.l.b16 %v7890
  %v7958 = vunpack.c.h.b16 %v7890
  %v7959 = vunpack.c.l.b16 %v7891
  %v7960 = vunpack.c.h.b16 %v7891
  %v7961 = vunpack.c.l.b16 %v7892
  %v7962 = vunpack.c.h.b16 %v7892
  %v7963 = vunpack.c.l.b16 %v7893
  %v7964 = vunpack.c.h.b16 %v7893
  %v7965 = vunpack.c.l.b16 %v7894
  %v7966 = vunpack.c.h.b16 %v7894
  %v7967 = vunpack.c.l.b16 %v7895
  %v7968 = vunpack.c.h.b16 %v7895
  %v7969 = vunpack.c.l.b16 %v7896
  %v7970 = vunpack.c.h.b16 %v7896
  %v7971 = vunpack.c.l.b16 %v7897
  %v7972 = vunpack.c.h.b16 %v7897
  %v7973 = vunpack.c.l.b16 %v7898
  %v7974 = vunpack.c.h.b16 %v7898
  %v7975 = vunpack.c.l.b16 %v7899
  %v7976 = vunpack.c.h.b16 %v7899
  %v7977 = vunpack.c.l.b16 %v7900
  %v7978 = vunpack.c.h.b16 %v7900
  %v7979 = vunpack.c.l.b16 %v7901
  %v7980 = vunpack.c.h.b16 %v7901
  %v7981 = vunpack.c.l.b16 %v7902
  %v7982 = vunpack.c.h.b16 %v7902
  %v7983 = vunpack.c.l.b16 %v7903
  %v7984 = vunpack.c.h.b16 %v7903
  %v7985 = vunpack.c.l.b16 %v7904
  %v7986 = vunpack.c.h.b16 %v7904
  %v7987 = vunpack.c.l.b16 %v7905
  %v7988 = vunpack.c.h.b16 %v7905
  %v7989 = vunpack.c.l.b16 %v7906
  %v7990 = vunpack.c.h.b16 %v7906
  %v7991 = vunpack.c.l.b16 %v7907
  %v7992 = vunpack.c.h.b16 %v7907
  %v7993 = vunpack.c.l.b16 %v7908
  %v7994 = vunpack.c.h.b16 %v7908
  %v7995 = vunpack.c.l.b16 %v7909
  %v7996 = vunpack.c.h.b16 %v7909
  %v7997 = vunpack.c.l.b16 %v7910
  %v7998 = vunpack.c.h.b16 %v7910
  %v7999 = vunpack.c.l.b16 %v7911
  %v8000 = vunpack.c.h.b16 %v7911
  %v8001 = vunpack.c.l.b16 %v7912
  %v8002 = vunpack.c.h.b16 %v7912
  %v8003 = vunpack.c.l.b16 %v7913
  %v8004 = vunpack.c.h.b16 %v7913
  %v8005 = vunpack.c.l.b16 %v7914
  %v8006 = vunpack.c.h.b16 %v7914
  %v8007 = vunpack.c.l.b16 %v7915
  %v8008 = vunpack.c.h.b16 %v7915
  %v8009 = vunpack.c.l.b16 %v7916
  %v8010 = vunpack.c.h.b16 %v7916
  %v8011 = vunpack.c.l.b16 %v7917
  %v8012 = vunpack.c.h.b16 %v7917
  %v8013 = vunpack.c.l.b16 %v7918
  %v8014 = vunpack.c.h.b16 %v7918
  %v8015 = vpack.c.b16 %v7955, %v7951
  %v8016 = vpack.c.b16 %v7956, %v7952
  %v8017 = vpack.c.b16 %v7957, %v7953
  %v8018 = vpack.c.b16 %v7958, %v7954
  %v8019 = vpack.c.b16 %v7963, %v7959
  %v8020 = vpack.c.b16 %v7964, %v7960
  %v8021 = vpack.c.b16 %v7965, %v7961
  %v8022 = vpack.c.b16 %v7966, %v7962
  %v8023 = vpack.c.b16 %v7971, %v7967
  %v8024 = vpack.c.b16 %v7972, %v7968
  %v8025 = vpack.c.b16 %v7973, %v7969
  %v8026 = vpack.c.b16 %v7974, %v7970
  %v8027 = vpack.c.b16 %v7979, %v7975
  %v8028 = vpack.c.b16 %v7980, %v7976
  %v8029 = vpack.c.b16 %v7981, %v7977
  %v8030 = vpack.c.b16 %v7982, %v7978
  %v8031 = vpack.c.b16 %v7987, %v7983
  %v8032 = vpack.c.b16 %v7988, %v7984
  %v8033 = vpack.c.b16 %v7989, %v7985
  %v8034 = vpack.c.b16 %v7990, %v7986
  %v8035 = vpack.c.b16 %v7995, %v7991
  %v8036 = vpack.c.b16 %v7996, %v7992
  %v8037 = vpack.c.b16 %v7997, %v7993
  %v8038 = vpack.c.b16 %v7998, %v7994
  %v8039 = vpack.c.b16 %v8003, %v7999
  %v8040 = vpack.c.b16 %v8004, %v8000
  %v8041 = vpack.c.b16 %v8005, %v8001
  %v8042 = vpack.c.b16 %v8006, %v8002
  %v8043 = vpack.c.b16 %v8011, %v8007
  %v8044 = vpack.c.b16 %v8012, %v8008
  %v8045 = vpack.c.b16 %v8013, %v8009
  %v8046 = vpack.c.b16 %v8014, %v8010
  %8079 = vmatprep.subr.bf16.mxu0 %v8016
  %8080 = vmatpush1.bf16.msra.mxu0 %v8015
  %8081 = vmatprep.subr.bf16.mxu0 %v8020
  %8082 = vmatpush1.bf16.msra.mxu0 %v8019
  %8083 = vmatprep.subr.bf16.mxu0 %v8024
  %8084 = vmatpush1.bf16.msra.mxu0 %v8023
  %8085 = vmatprep.subr.bf16.mxu0 %v8028
  %8086 = vmatpush1.bf16.msra.mxu0 %v8027
  %8087 = vmatprep.subr.bf16.mxu0 %v8032
  %8088 = vmatpush1.bf16.msra.mxu0 %v8031
  %8089 = vmatprep.subr.bf16.mxu0 %v8036
  %8090 = vmatpush1.bf16.msra.mxu0 %v8035
  %8091 = vmatprep.subr.bf16.mxu0 %v8040
  %8092 = vmatpush1.bf16.msra.mxu0 %v8039
  %8093 = vmatprep.subr.bf16.mxu0 %v8044
  %8094 = vmatpush1.bf16.msra.mxu0 %v8043
  %8095 = vmatprep.subr.bf16.mxu0 0
  %8096 = vmatpush1.bf16.msra.mxu0 0
  %8097 = vmatprep.subr.bf16.mxu0 0
  %8098 = vmatpush1.bf16.msra.mxu0 0
  %8099 = vmatprep.subr.bf16.mxu0 0
  %8100 = vmatpush1.bf16.msra.mxu0 0
  %8101 = vmatprep.subr.bf16.mxu0 0
  %8102 = vmatpush1.bf16.msra.mxu0 0
  %8103 = vmatprep.subr.bf16.mxu0 0
  %8104 = vmatpush1.bf16.msra.mxu0 0
  %8105 = vmatprep.subr.bf16.mxu0 0
  %8106 = vmatpush1.bf16.msra.mxu0 0
  %8107 = vmatprep.subr.bf16.mxu0 0
  %8108 = vmatpush1.bf16.msra.mxu0 0
  %8109 = vmatprep.subr.bf16.mxu0 0
  %8110 = vmatpush1.bf16.msra.mxu0 0
  %8111 = vmatprep.mubr.bf16.mxu0 0
  %8112 = vmatmul.mubr.bf16.gmra.mrb[0].mxu0 %v7886
  %v8113 = vpop.f32.mrb[0].mxu0
  %v8114 = vadd.f32 0.0, %v8113
  %v8115 = vpop.f32.mrb[0].mxu0
  %v8116 = vadd.f32 0.0, %v8115
  %v8117 = vpop.f32.mrb[0].mxu0
  %v8118 = vpop.f32.mrb[0].mxu0
  %8119 = vdwg.mxu0
  %8120 = vmatprep.subr.bf16.mxu0 %v8018
  %8121 = vmatpush1.bf16.msra.mxu0 %v8017
  %8122 = vmatprep.subr.bf16.mxu0 %v8022
  %8123 = vmatpush1.bf16.msra.mxu0 %v8021
  %8124 = vmatprep.subr.bf16.mxu0 %v8026
  %8125 = vmatpush1.bf16.msra.mxu0 %v8025
  %8126 = vmatprep.subr.bf16.mxu0 %v8030
  %8127 = vmatpush1.bf16.msra.mxu0 %v8029
  %8128 = vmatprep.subr.bf16.mxu0 %v8034
  %8129 = vmatpush1.bf16.msra.mxu0 %v8033
  %8130 = vmatprep.subr.bf16.mxu0 %v8038
  %8131 = vmatpush1.bf16.msra.mxu0 %v8037
  %8132 = vmatprep.subr.bf16.mxu0 %v8042
  %8133 = vmatpush1.bf16.msra.mxu0 %v8041
  %8134 = vmatprep.subr.bf16.mxu0 %v8046
  %8135 = vmatpush1.bf16.msra.mxu0 %v8045
  %8136 = vmatprep.subr.bf16.mxu0 0
  %8137 = vmatpush1.bf16.msra.mxu0 0
  %8138 = vmatprep.subr.bf16.mxu0 0
  %8139 = vmatpush1.bf16.msra.mxu0 0
  %8140 = vmatprep.subr.bf16.mxu0 0
  %8141 = vmatpush1.bf16.msra.mxu0 0
  %8142 = vmatprep.subr.bf16.mxu0 0
  %8143 = vmatpush1.bf16.msra.mxu0 0
  %8144 = vmatprep.subr.bf16.mxu0 0
  %8145 = vmatpush1.bf16.msra.mxu0 0
  %8146 = vmatprep.subr.bf16.mxu0 0
  %8147 = vmatpush1.bf16.msra.mxu0 0
  %8148 = vmatprep.subr.bf16.mxu0 0
  %8149 = vmatpush1.bf16.msra.mxu0 0
  %8150 = vmatprep.subr.bf16.mxu0 0
  %8151 = vmatpush1.bf16.msra.mxu0 0
  %8152 = vmatprep.mubr.bf16.mxu0 0
  %8153 = vmatmul.mubr.bf16.gmra.mrb[0].mxu0 %v7886
  %v8154 = vpop.f32.mrb[0].mxu0
  %v8155 = vadd.f32 0.0, %v8154
  %v8156 = vpop.f32.mrb[0].mxu0
  %v8157 = vadd.f32 0.0, %v8156
  %v8158 = vpop.f32.mrb[0].mxu0
  %v8159 = vpop.f32.mrb[0].mxu0
  %8160 = vdwg.mxu0
  %v8165 = vcombine.low %v8114, %v8116
  %v8166 = vcombine.low %v8155, %v8157
  %v8168 = vunpack.c.l.s4 1966171168
  %v8169 = vunpack.c.0.s8 %v8168
  %v8170 = vlaneseq
  %v8171 = vshrl.u32 %v8170, 7
  %v8172 = vsub.s32 %v8169, %v8171
  %v8173 = vrot.slane %v8165, %v8172
  %v8175 = vunpack.c.l.s4 1966171168
  %v8176 = vunpack.c.0.s8 %v8175
  %v8177 = vlaneseq
  %v8178 = vshrl.u32 %v8177, 7
  %v8179 = vsub.s32 %v8176, %v8178
  %v8180 = vrot.slane %v8166, %v8179
  %v8181 = vcombine.low %v8173, %v8180
  %v8183 = vunpack.c.l.s4 1966171168
  %v8184 = vunpack.c.0.s8 %v8183
  %v8185 = vlaneseq
  %v8186 = vshrl.u32 %v8185, 7
  %v8187 = vsub.s32 %v8184, %v8186
  %v8188 = vrot.slane %v8181, %v8187
  %v8190 = vadd.f32 %v7885, %v8188
  %v8191 = vxor.u32 %v8190, 2147483648
  %v8192 = vmul.f32 %v8191, 1.442695
  %v8193 = vpow.pop %v8192
  %v8194 = vadd.f32 %v8193, 1.0
  %v8195 = vrcp.pop %v8194
  %v8196 = vmul.f32 1.0, %v8195
  %v8198 = vrot.slane %v8190, 3
  %v8200 = vtanh.pop %v8198
  %v8202 = vrot.slane %v8196, 1
  %v8204 = vmul.f32 %v8202, %v7879
  %v8205 = vmul.f32 %v8196, %v8200
  %v8206 = vadd.f32 %v8204, %v8205
  %v8207 = vtanh.pop %v8206
  %v8208 = vrot.slane %v8196, 2
  %v8210 = vmul.f32 %v8208, %v8207
  %8211 = vst [vmem:[#allocation3 + $0x6] sm:$0x1] %v8210
  %v8212 = vld [vmem:[%s2515] ss:$8 sm:$0xf]
  %v8213 = vpack.c.bf16 %v8210, %v8210
  %v8214 = vld [vmem:[%s8] sm:$0xff]
  %v8215 = vld [vmem:[%s8 + $0x8] sm:$0xff]
  %v8216 = vld [vmem:[%s8 + $0x10] sm:$0xff]
  %v8217 = vld [vmem:[%s8 + $0x18] sm:$0xff]
  %v8218 = vld [vmem:[%s8 + $0x20] sm:$0xff]
  %v8219 = vld [vmem:[%s8 + $0x28] sm:$0xff]
  %v8220 = vld [vmem:[%s8 + $0x30] sm:$0xff]
  %v8221 = vld [vmem:[%s8 + $0x38] sm:$0xff]
  %v8222 = vld [vmem:[%s8 + $0x40] sm:$0xff]
  %v8223 = vld [vmem:[%s8 + $0x48] sm:$0xff]
  %v8224 = vld [vmem:[%s8 + $0x50] sm:$0xff]
  %v8225 = vld [vmem:[%s8 + $0x58] sm:$0xff]
  %v8226 = vld [vmem:[%s8 + $0x60] sm:$0xff]
  %v8227 = vld [vmem:[%s8 + $0x68] sm:$0xff]
  %v8228 = vld [vmem:[%s8 + $0x70] sm:$0xff]
  %v8229 = vld [vmem:[%s8 + $0x78] sm:$0xff]
  %v8230 = vld [vmem:[%s8 + $0x80] sm:$0xff]
  %v8231 = vld [vmem:[%s8 + $0x88] sm:$0xff]
  %v8232 = vld [vmem:[%s8 + $0x90] sm:$0xff]
  %v8233 = vld [vmem:[%s8 + $0x98] sm:$0xff]
  %v8234 = vld [vmem:[%s8 + $0xa0] sm:$0xff]
  %v8235 = vld [vmem:[%s8 + $0xa8] sm:$0xff]
  %v8236 = vld [vmem:[%s8 + $0xb0] sm:$0xff]
  %v8237 = vld [vmem:[%s8 + $0xb8] sm:$0xff]
  %v8238 = vld [vmem:[%s8 + $0xc0] sm:$0xff]
  %v8239 = vld [vmem:[%s8 + $0xc8] sm:$0xff]
  %v8240 = vld [vmem:[%s8 + $0xd0] sm:$0xff]
  %v8241 = vld [vmem:[%s8 + $0xd8] sm:$0xff]
  %v8242 = vld [vmem:[%s8 + $0xe0] sm:$0xff]
  %v8243 = vld [vmem:[%s8 + $0xe8] sm:$0xff]
  %v8244 = vld [vmem:[%s8 + $0xf0] sm:$0xff]
  %v8245 = vld [vmem:[%s8 + $0xf8] sm:$0xff]
  %v8278 = vunpack.c.l.b16 %v8214
  %v8279 = vunpack.c.h.b16 %v8214
  %v8280 = vunpack.c.l.b16 %v8215
  %v8281 = vunpack.c.h.b16 %v8215
  %v8282 = vunpack.c.l.b16 %v8216
  %v8283 = vunpack.c.h.b16 %v8216
  %v8284 = vunpack.c.l.b16 %v8217
  %v8285 = vunpack.c.h.b16 %v8217
  %v8286 = vunpack.c.l.b16 %v8218
  %v8287 = vunpack.c.h.b16 %v8218
  %v8288 = vunpack.c.l.b16 %v8219
  %v8289 = vunpack.c.h.b16 %v8219
  %v8290 = vunpack.c.l.b16 %v8220
  %v8291 = vunpack.c.h.b16 %v8220
  %v8292 = vunpack.c.l.b16 %v8221
  %v8293 = vunpack.c.h.b16 %v8221
  %v8294 = vunpack.c.l.b16 %v8222
  %v8295 = vunpack.c.h.b16 %v8222
  %v8296 = vunpack.c.l.b16 %v8223
  %v8297 = vunpack.c.h.b16 %v8223
  %v8298 = vunpack.c.l.b16 %v8224
  %v8299 = vunpack.c.h.b16 %v8224
  %v8300 = vunpack.c.l.b16 %v8225
  %v8301 = vunpack.c.h.b16 %v8225
  %v8302 = vunpack.c.l.b16 %v8226
  %v8303 = vunpack.c.h.b16 %v8226
  %v8304 = vunpack.c.l.b16 %v8227
  %v8305 = vunpack.c.h.b16 %v8227
  %v8306 = vunpack.c.l.b16 %v8228
  %v8307 = vunpack.c.h.b16 %v8228
  %v8308 = vunpack.c.l.b16 %v8229
  %v8309 = vunpack.c.h.b16 %v8229
  %v8310 = vunpack.c.l.b16 %v8230
  %v8311 = vunpack.c.h.b16 %v8230
  %v8312 = vunpack.c.l.b16 %v8231
  %v8313 = vunpack.c.h.b16 %v8231
  %v8314 = vunpack.c.l.b16 %v8232
  %v8315 = vunpack.c.h.b16 %v8232
  %v8316 = vunpack.c.l.b16 %v8233
  %v8317 = vunpack.c.h.b16 %v8233
  %v8318 = vunpack.c.l.b16 %v8234
  %v8319 = vunpack.c.h.b16 %v8234
  %v8320 = vunpack.c.l.b16 %v8235
  %v8321 = vunpack.c.h.b16 %v8235
  %v8322 = vunpack.c.l.b16 %v8236
  %v8323 = vunpack.c.h.b16 %v8236
  %v8324 = vunpack.c.l.b16 %v8237
  %v8325 = vunpack.c.h.b16 %v8237
  %v8326 = vunpack.c.l.b16 %v8238
  %v8327 = vunpack.c.h.b16 %v8238
  %v8328 = vunpack.c.l.b16 %v8239
  %v8329 = vunpack.c.h.b16 %v8239
  %v8330 = vunpack.c.l.b16 %v8240
  %v8331 = vunpack.c.h.b16 %v8240
  %v8332 = vunpack.c.l.b16 %v8241
  %v8333 = vunpack.c.h.b16 %v8241
  %v8334 = vunpack.c.l.b16 %v8242
  %v8335 = vunpack.c.h.b16 %v8242
  %v8336 = vunpack.c.l.b16 %v8243
  %v8337 = vunpack.c.h.b16 %v8243
  %v8338 = vunpack.c.l.b16 %v8244
  %v8339 = vunpack.c.h.b16 %v8244
  %v8340 = vunpack.c.l.b16 %v8245
  %v8341 = vunpack.c.h.b16 %v8245
  %v8342 = vpack.c.b16 %v8282, %v8278
  %v8343 = vpack.c.b16 %v8283, %v8279
  %v8344 = vpack.c.b16 %v8284, %v8280
  %v8345 = vpack.c.b16 %v8285, %v8281
  %v8346 = vpack.c.b16 %v8290, %v8286
  %v8347 = vpack.c.b16 %v8291, %v8287
  %v8348 = vpack.c.b16 %v8292, %v8288
  %v8349 = vpack.c.b16 %v8293, %v8289
  %v8350 = vpack.c.b16 %v8298, %v8294
  %v8351 = vpack.c.b16 %v8299, %v8295
  %v8352 = vpack.c.b16 %v8300, %v8296
  %v8353 = vpack.c.b16 %v8301, %v8297
  %v8354 = vpack.c.b16 %v8306, %v8302
  %v8355 = vpack.c.b16 %v8307, %v8303
  %v8356 = vpack.c.b16 %v8308, %v8304
  %v8357 = vpack.c.b16 %v8309, %v8305
  %v8358 = vpack.c.b16 %v8314, %v8310
  %v8359 = vpack.c.b16 %v8315, %v8311
  %v8360 = vpack.c.b16 %v8316, %v8312
  %v8361 = vpack.c.b16 %v8317, %v8313
  %v8362 = vpack.c.b16 %v8322, %v8318
  %v8363 = vpack.c.b16 %v8323, %v8319
  %v8364 = vpack.c.b16 %v8324, %v8320
  %v8365 = vpack.c.b16 %v8325, %v8321
  %v8366 = vpack.c.b16 %v8330, %v8326
  %v8367 = vpack.c.b16 %v8331, %v8327
  %v8368 = vpack.c.b16 %v8332, %v8328
  %v8369 = vpack.c.b16 %v8333, %v8329
  %v8370 = vpack.c.b16 %v8338, %v8334
  %v8371 = vpack.c.b16 %v8339, %v8335
  %v8372 = vpack.c.b16 %v8340, %v8336
  %v8373 = vpack.c.b16 %v8341, %v8337
  %8406 = vmatprep.subr.bf16.mxu0 %v8343
  %8407 = vmatpush1.bf16.msra.mxu0 %v8342
  %8408 = vmatprep.subr.bf16.mxu0 %v8347
  %8409 = vmatpush1.bf16.msra.mxu0 %v8346
  %8410 = vmatprep.subr.bf16.mxu0 %v8351
  %8411 = vmatpush1.bf16.msra.mxu0 %v8350
  %8412 = vmatprep.subr.bf16.mxu0 %v8355
  %8413 = vmatpush1.bf16.msra.mxu0 %v8354
  %8414 = vmatprep.subr.bf16.mxu0 %v8359
  %8415 = vmatpush1.bf16.msra.mxu0 %v8358
  %8416 = vmatprep.subr.bf16.mxu0 %v8363
  %8417 = vmatpush1.bf16.msra.mxu0 %v8362
  %8418 = vmatprep.subr.bf16.mxu0 %v8367
  %8419 = vmatpush1.bf16.msra.mxu0 %v8366
  %8420 = vmatprep.subr.bf16.mxu0 %v8371
  %8421 = vmatpush1.bf16.msra.mxu0 %v8370
  %8422 = vmatprep.subr.bf16.mxu0 0
  %8423 = vmatpush1.bf16.msra.mxu0 0
  %8424 = vmatprep.subr.bf16.mxu0 0
  %8425 = vmatpush1.bf16.msra.mxu0 0
  %8426 = vmatprep.subr.bf16.mxu0 0
  %8427 = vmatpush1.bf16.msra.mxu0 0
  %8428 = vmatprep.subr.bf16.mxu0 0
  %8429 = vmatpush1.bf16.msra.mxu0 0
  %8430 = vmatprep.subr.bf16.mxu0 0
  %8431 = vmatpush1.bf16.msra.mxu0 0
  %8432 = vmatprep.subr.bf16.mxu0 0
  %8433 = vmatpush1.bf16.msra.mxu0 0
  %8434 = vmatprep.subr.bf16.mxu0 0
  %8435 = vmatpush1.bf16.msra.mxu0 0
  %8436 = vmatprep.subr.bf16.mxu0 0
  %8437 = vmatpush1.bf16.msra.mxu0 0
  %8438 = vmatprep.mubr.bf16.mxu0 0
  %8439 = vmatmul.mubr.bf16.gmra.mrb[0].mxu0 %v8213
  %v8440 = vpop.f32.mrb[0].mxu0
  %v8441 = vadd.f32 0.0, %v8440
  %v8442 = vpop.f32.mrb[0].mxu0
  %v8443 = vadd.f32 0.0, %v8442
  %v8444 = vpop.f32.mrb[0].mxu0
  %v8445 = vpop.f32.mrb[0].mxu0
  %8446 = vdwg.mxu0
  %8447 = vmatprep.subr.bf16.mxu0 %v8345
  %8448 = vmatpush1.bf16.msra.mxu0 %v8344
  %8449 = vmatprep.subr.bf16.mxu0 %v8349
  %8450 = vmatpush1.bf16.msra.mxu0 %v8348
  %8451 = vmatprep.subr.bf16.mxu0 %v8353
  %8452 = vmatpush1.bf16.msra.mxu0 %v8352
  %8453 = vmatprep.subr.bf16.mxu0 %v8357
  %8454 = vmatpush1.bf16.msra.mxu0 %v8356
  %8455 = vmatprep.subr.bf16.mxu0 %v8361
  %8456 = vmatpush1.bf16.msra.mxu0 %v8360
  %8457 = vmatprep.subr.bf16.mxu0 %v8365
  %8458 = vmatpush1.bf16.msra.mxu0 %v8364
  %8459 = vmatprep.subr.bf16.mxu0 %v8369
  %8460 = vmatpush1.bf16.msra.mxu0 %v8368
  %8461 = vmatprep.subr.bf16.mxu0 %v8373
  %8462 = vmatpush1.bf16.msra.mxu0 %v8372
  %8463 = vmatprep.subr.bf16.mxu0 0
  %8464 = vmatpush1.bf16.msra.mxu0 0
  %8465 = vmatprep.subr.bf16.mxu0 0
  %8466 = vmatpush1.bf16.msra.mxu0 0
  %8467 = vmatprep.subr.bf16.mxu0 0
  %8468 = vmatpush1.bf16.msra.mxu0 0
  %8469 = vmatprep.subr.bf16.mxu0 0
  %8470 = vmatpush1.bf16.msra.mxu0 0
  %8471 = vmatprep.subr.bf16.mxu0 0
  %8472 = vmatpush1.bf16.msra.mxu0 0
  %8473 = vmatprep.subr.bf16.mxu0 0
  %8474 = vmatpush1.bf16.msra.mxu0 0
  %8475 = vmatprep.subr.bf16.mxu0 0
  %8476 = vmatpush1.bf16.msra.mxu0 0
  %8477 = vmatprep.subr.bf16.mxu0 0
  %8478 = vmatpush1.bf16.msra.mxu0 0
  %8479 = vmatprep.mubr.bf16.mxu0 0
  %8480 = vmatmul.mubr.bf16.gmra.mrb[0].mxu0 %v8213
  %v8481 = vpop.f32.mrb[0].mxu0
  %v8482 = vadd.f32 0.0, %v8481
  %v8483 = vpop.f32.mrb[0].mxu0
  %v8484 = vadd.f32 0.0, %v8483
  %v8485 = vpop.f32.mrb[0].mxu0
  %v8486 = vpop.f32.mrb[0].mxu0
  %8487 = vdwg.mxu0
  %v8492 = vcombine.low %v8441, %v8443
  %v8493 = vcombine.low %v8482, %v8484
  %v8495 = vunpack.c.l.s4 1966171168
  %v8496 = vunpack.c.0.s8 %v8495
  %v8497 = vlaneseq
  %v8498 = vshrl.u32 %v8497, 7
  %v8499 = vsub.s32 %v8496, %v8498
  %v8500 = vrot.slane %v8492, %v8499
  %v8502 = vunpack.c.l.s4 1966171168
  %v8503 = vunpack.c.0.s8 %v8502
  %v8504 = vlaneseq
  %v8505 = vshrl.u32 %v8504, 7
  %v8506 = vsub.s32 %v8503, %v8505
  %v8507 = vrot.slane %v8493, %v8506
  %v8508 = vcombine.low %v8500, %v8507
  %v8510 = vunpack.c.l.s4 1966171168
  %v8511 = vunpack.c.0.s8 %v8510
  %v8512 = vlaneseq
  %v8513 = vshrl.u32 %v8512, 7
  %v8514 = vsub.s32 %v8511, %v8513
  %v8515 = vrot.slane %v8508, %v8514
  %v8517 = vadd.f32 %v8212, %v8515
  %v8518 = vxor.u32 %v8517, 2147483648
  %v8519 = vmul.f32 %v8518, 1.442695
  %v8520 = vpow.pop %v8519
  %v8521 = vadd.f32 %v8520, 1.0
  %v8522 = vrcp.pop %v8521
  %v8523 = vmul.f32 1.0, %v8522
  %v8525 = vrot.slane %v8517, 3
  %v8527 = vtanh.pop %v8525
  %v8529 = vrot.slane %v8523, 1
  %v8531 = vmul.f32 %v8529, %v8206
  %v8532 = vmul.f32 %v8523, %v8527
  %v8533 = vadd.f32 %v8531, %v8532
  %v8534 = vtanh.pop %v8533
  %v8535 = vrot.slane %v8523, 2
  %v8537 = vmul.f32 %v8535, %v8534
  %8538 = vst [vmem:[#allocation3 + $0x7] sm:$0x1] %v8537
  %v8539 = vld [vmem:[#allocation3] sm:$0xff]
  %v8540 = vld [vmem:[%s10] sm:$0x1]
  %v8542 = vlaneseq
  %v8543 = vshrl.u32 %v8542, 7
  %v8544 = vsub.s32 0, %v8543
  %v8545 = vrot.slane %v8540, %v8544
  %v8547 = vmul.f32 %v8539, %v8545
  %8548 = vadd.xlane.f32.xlu0 %v8547
  %v8549 = vpop.xlane.xlu0 %8548
  %v8550 = vld [vmem:[#allocation4] sm:$0x1]
  %v8552 = vlaneseq
  %v8553 = vshrl.u32 %v8552, 7
  %v8554 = vsub.s32 0, %v8553
  %v8555 = vrot.slane %v8550, %v8554
  %v8557 = vadd.f32 %v8549, %v8555
  %vm8558 = vcmask 7168
  %8559 = vst.msk [vmem:[%s12] sm:$0xff] %vm8558, %v8557
  // Predicated region
  $region50: #{lstm_fc_pallas.1} parent=0 // pred_check
    _
  $region51: #{lstm_fc_pallas.1} parent=0 // pred_check_branch
    %8561 = sbr.rel (0) target = $region53
  $region52: #{lstm_fc_pallas.1} parent=0 // pred_region
    _
  $region53: #{lstm_fc_pallas.1} parent=0 // pred_fallthru
    _
  // Predicated region
  $region54: #{lstm_fc_pallas.1} parent=0 // pred_check
    _
  $region55: #{lstm_fc_pallas.1} parent=0 // pred_check_branch
    %8563 = sbr.rel (0) target = $region57
  $region56: #{lstm_fc_pallas.1} parent=0 // pred_region
    _
  $region57: #{lstm_fc_pallas.1} parent=0 // pred_fallthru
    _

</llo_original>
